<compile_context>
chip_gen: v6e
topology: v6e:2x2x1
jax: 0.10.0
libtpu: 0.0.40
codegen_flags: <defaults>
</compile_context>

<pallas_src>
import functools

import jax
import jax.numpy as jnp
from jax.experimental import pallas as pl
from jax.experimental.pallas import tpu as pltpu


def _srcnn_fused_kernel(xp_ref, w1_ref, b1_ref, w2_ref, b2_ref, w3_ref, b3_ref,
                        o_ref, a2p_ref, p3_ref, *, h, w, kh3, kw3):
    """Fused SRCNN forward for one batch element.

    xp_ref : (1, h*w, K1p)        conv1 im2col patches (K1p = 243 padded to 256)
    w1_ref : (K1p, f1)            conv1 weights, flattened + zero padded
    b1_ref : (1, f1)
    w2_ref : (f1, f2)             1x1 conv weights
    b2_ref : (1, f2)
    w3_ref : (kh3*kw3*f2, c_out)  conv3 weights, flattened
    b3_ref : (1, c_out)
    o_ref  : (1, h*w, c_out)
    a2p_ref: (h+2*ph, w+2*pw, f2) VMEM scratch: replication-padded a2
    p3_ref : (h*w, kh3*kw3*f2)    VMEM scratch: conv3 im2col matrix
    """
    f2 = w2_ref.shape[1]
    ph, pw = kh3 // 2, kw3 // 2

    # ---- conv1 + relu : one big MXU matmul (K lane-dense, 128-aligned) ----
    a1 = jnp.dot(xp_ref[0], w1_ref[...], preferred_element_type=jnp.float32)
    a1 = jnp.maximum(a1 + b1_ref[...], 0.0)                       # (h*w, f1)

    # ---- conv2 (1x1) + relu : second MXU matmul ----
    a2 = jnp.dot(a1, w2_ref[...], preferred_element_type=jnp.float32)
    a2 = jnp.maximum(a2 + b2_ref[...], 0.0)                       # (h*w, f2)

    # ---- in-kernel ReplicationPad2d(2) of a2 into VMEM scratch ----
    a2_sp = a2.reshape(h, w, f2)                                  # (h, w, f2)
    a2p_ref[ph:ph + h, pw:pw + w, :] = a2_sp
    top = a2_sp[0:1]
    bot = a2_sp[h - 1:h]
    for r in range(ph):                                           # edge rows
        a2p_ref[r:r + 1, pw:pw + w, :] = top
        a2p_ref[ph + h + r:ph + h + r + 1, pw:pw + w, :] = bot
    left = a2p_ref[:, pw:pw + 1, :]                               # full 20-row cols
    right = a2p_ref[:, pw + w - 1:pw + w, :]
    for c in range(pw):                                           # edge cols (+corners)
        a2p_ref[:, c:c + 1, :] = left
        a2p_ref[:, pw + w + c:pw + w + c + 1, :] = right

    # ---- conv3 im2col (25 static tap slabs) + single MXU matmul + bias + clamp ----
    for t in range(kh3 * kw3):
        i, j = divmod(t, kw3)
        tap = a2p_ref[i:i + h, j:j + w, :].reshape(h * w, f2)
        p3_ref[:, t * f2:(t + 1) * f2] = tap

    z3 = jnp.dot(p3_ref[...], w3_ref[...], preferred_element_type=jnp.float32)
    out = jnp.clip(z3 + b3_ref[...], 0.0, 255.0)
    # TODO(synk): output is stored (h*w, c_out); a lane-dense (c_out, h*w) NCHW store
    # would need a (256, 3) in-kernel transpose that risks Mosaic transpose limits.
    o_ref[...] = out.reshape(1, h * w, -1).astype(o_ref.dtype)


def _im2col_nhwc(x, kh, kw):
    """(N, Hp, Wp, C) -> (N, H*W, kh*kw*C), taps row-major (i, j), channel minor."""
    n, hp, wp, c = x.shape
    h, w = hp - kh + 1, wp - kw + 1
    taps = [x[:, i:i + h, j:j + w, :] for i in range(kh) for j in range(kw)]
    patches = jnp.stack(taps, axis=3)                   # (N, h, w, kh*kw, c)
    return patches.reshape(n, h * w, kh * kw * c)


def _round_up(v, m):
    return -(-v // m) * m


@jax.jit
def srcnn_forward(x_nchw, params):
    """SRCNN forward, module in eval mode (both replication pads applied)."""
    w1, b1 = params["w1"], params["b1"]                 # (9,9,Cin,64), (64,)
    w2, b2 = params["w2"], params["b2"]                 # (1,1,64,32), (32,)
    w3, b3 = params["w3"], params["b3"]                 # (5,5,32,Cin), (Cin,)
    n, c_in, h, w = x_nchw.shape
    kh1, kw1 = w1.shape[0], w1.shape[1]
    kh3, kw3 = w3.shape[0], w3.shape[1]
    f1, f2, c_out = w1.shape[3], w2.shape[3], w3.shape[3]

    # pad1 (ReplicationPad2d(4)) + conv1 patch extraction done once in the wrapper
    # (cheap XLA glue) so the kernel sees a lane-dense big-K matmul operand.
    x_nhwc = jnp.transpose(x_nchw, (0, 2, 3, 1))
    x_pad = jnp.pad(x_nhwc,
                    ((0, 0), (kh1 // 2, kh1 // 2), (kw1 // 2, kw1 // 2), (0, 0)),
                    mode="edge")
    patches = _im2col_nhwc(x_pad, kh1, kw1)             # (n, h*w, 243)
    k1 = kh1 * kw1 * c_in
    k1p = _round_up(k1, 128)                            # 243 -> 256
    patches = jnp.pad(patches, ((0, 0), (0, 0), (0, k1p - k1)))

    # Hoisted weight packing (constant index maps keep these VMEM-resident).
    w1f = jnp.pad(w1.reshape(k1, f1), ((0, k1p - k1), (0, 0)))
    w2f = w2.reshape(f1, f2)
    w3f = w3.reshape(kh3 * kw3 * f2, c_out)
    b1r, b2r, b3r = b1.reshape(1, f1), b2.reshape(1, f2), b3.reshape(1, c_out)

    kernel = functools.partial(_srcnn_fused_kernel, h=h, w=w, kh3=kh3, kw3=kw3)
    out = pl.pallas_call(
        kernel,
        out_shape=jax.ShapeDtypeStruct((n, h * w, c_out), x_nchw.dtype),
        grid=(n,),
        in_specs=[
            pl.BlockSpec((1, h * w, k1p), lambda b: (b, 0, 0)),
            pl.BlockSpec((k1p, f1), lambda b: (0, 0)),
            pl.BlockSpec((1, f1), lambda b: (0, 0)),
            pl.BlockSpec((f1, f2), lambda b: (0, 0)),
            pl.BlockSpec((1, f2), lambda b: (0, 0)),
            pl.BlockSpec((kh3 * kw3 * f2, c_out), lambda b: (0, 0)),
            pl.BlockSpec((1, c_out), lambda b: (0, 0)),
        ],
        out_specs=pl.BlockSpec((1, h * w, c_out), lambda b: (b, 0, 0)),
        scratch_shapes=[
            pltpu.VMEM((h + 2 * (kh3 // 2), w + 2 * (kw3 // 2), f2), jnp.float32),
            pltpu.VMEM((h * w, kh3 * kw3 * f2), jnp.float32),
        ],
        compiler_params=pltpu.CompilerParams(
            dimension_semantics=("parallel",)),
    )(patches, w1f, b1r, w2f, b2r, w3f, b3r)

    # (n, h*w, c_out) -> (n, c_out, h, w)
    return jnp.transpose(out.reshape(n, h, w, c_out), (0, 3, 1, 2))


def init_params(key, in_channels=3, f1_size=(9, 9), f1_filters=64,
                f2_filters=32, f3_size=(5, 5)):
    def kaiming_w(k, kh, kw, cin, cout):
        fan_in = cin * kh * kw
        std = (2.0 / fan_in) ** 0.5
        return jax.random.normal(k, (kh, kw, cin, cout), jnp.float32) * std

    def default_b(k, kh, kw, cin, cout):
        bound = 1.0 / (cin * kh * kw) ** 0.5
        return jax.random.uniform(k, (cout,), jnp.float32, -bound, bound)

    ks = jax.random.split(key, 6)
    return {
        "w1": kaiming_w(ks[0], f1_size[0], f1_size[1], in_channels, f1_filters),
        "b1": default_b(ks[1], f1_size[0], f1_size[1], in_channels, f1_filters),
        "w2": kaiming_w(ks[2], 1, 1, f1_filters, f2_filters),
        "b2": default_b(ks[3], 1, 1, f1_filters, f2_filters),
        "w3": kaiming_w(ks[4], f3_size[0], f3_size[1], f2_filters, in_channels),
        "b3": default_b(ks[5], f3_size[0], f3_size[1], f2_filters, in_channels),
    }


def _ref_forward(x_nchw, params):
    # Pure-JAX reference for the correctness check.
    def conv(x, w, b):
        return jax.lax.conv_general_dilated(
            x, w, (1, 1), "VALID",
            dimension_numbers=("NHWC", "HWIO", "NHWC")) + b

    x = jnp.transpose(x_nchw, (0, 2, 3, 1))
    x = jnp.pad(x, ((0, 0), (4, 4), (4, 4), (0, 0)), mode="edge")
    a1 = jax.nn.relu(conv(x, params["w1"], params["b1"]))
    a2 = jax.nn.relu(conv(a1, params["w2"], params["b2"]))
    a2 = jnp.pad(a2, ((0, 0), (2, 2), (2, 2), (0, 0)), mode="edge")
    z3 = conv(a2, params["w3"], params["b3"])
    out = jnp.clip(z3, 0.0, 255.0)
    return jnp.transpose(out, (0, 3, 1, 2))


if __name__ == "__main__":
    key = jax.random.PRNGKey(0)
    k_param, k_x = jax.random.split(key)
    params = init_params(k_param, in_channels=3)

    # batch=2, channels=3, 16x16 image in [0, 255] (SRCNN-consistent small shapes).
    x = jax.random.uniform(k_x, (2, 3, 16, 16), jnp.float32, 0.0, 255.0)

    out = srcnn_forward(x, params)
    out = jax.block_until_ready(out)

    ref = _ref_forward(x, params)
    assert out.shape == (2, 3, 16, 16)
    assert jnp.allclose(out, ref, rtol=1e-3, atol=1e-2), float(
        jnp.max(jnp.abs(out - ref)))

    print("KERNEL_OK")
</pallas_src>

<mosaic_0001>
module attributes {stable_mosaic.version = 11 : i64} {
  func.func @_srcnn_fused_kernel(%arg0: i32, %arg1: memref<1x256x256xf32, #tpu.memory_space<vmem>>, %arg2: memref<256x64xf32, #tpu.memory_space<vmem>>, %arg3: memref<1x64xf32, #tpu.memory_space<vmem>>, %arg4: memref<64x32xf32, #tpu.memory_space<vmem>>, %arg5: memref<1x32xf32, #tpu.memory_space<vmem>>, %arg6: memref<800x3xf32, #tpu.memory_space<vmem>>, %arg7: memref<1x3xf32, #tpu.memory_space<vmem>>, %arg8: memref<1x256x3xf32, #tpu.memory_space<vmem>>, %arg9: memref<20x20x32xf32, #tpu.memory_space<vmem>>, %arg10: memref<256x800xf32, #tpu.memory_space<vmem>>) attributes {dimension_semantics = [#tpu.dimension_semantics<parallel>], iteration_bounds = array<i64: 2>, scalar_prefetch = 0 : i64, scratch_operands = 2 : i64, tpu.core_type = #tpu.core_type<tc>, window_params = [{transform_indices = @transform_0, window_bounds = array<i64: 1, 256, 256>}, {pipeline_mode = #tpu.pipeline_mode<synchronous>, transform_indices = @transform_1, window_bounds = array<i64: 256, 64>}, {pipeline_mode = #tpu.pipeline_mode<synchronous>, transform_indices = @transform_2, window_bounds = array<i64: 1, 64>}, {pipeline_mode = #tpu.pipeline_mode<synchronous>, transform_indices = @transform_3, window_bounds = array<i64: 64, 32>}, {pipeline_mode = #tpu.pipeline_mode<synchronous>, transform_indices = @transform_4, window_bounds = array<i64: 1, 32>}, {pipeline_mode = #tpu.pipeline_mode<synchronous>, transform_indices = @transform_5, window_bounds = array<i64: 800, 3>}, {pipeline_mode = #tpu.pipeline_mode<synchronous>, transform_indices = @transform_6, window_bounds = array<i64: 1, 3>}, {transform_indices = @transform_7, window_bounds = array<i64: 1, 256, 3>}]} {
    %c0 = arith.constant 0 : index
    %c0_0 = arith.constant 0 : index
    %c0_1 = arith.constant 0 : index
    %0 = vector.load %arg1[%c0, %c0_0, %c0_1] : memref<1x256x256xf32, #tpu.memory_space<vmem>>, vector<1x256x256xf32>
    %1 = vector.shape_cast %0 : vector<1x256x256xf32> to vector<256x256xf32>
    %c0_2 = arith.constant 0 : index
    %c0_3 = arith.constant 0 : index
    %2 = vector.load %arg2[%c0_2, %c0_3] : memref<256x64xf32, #tpu.memory_space<vmem>>, vector<256x64xf32>
    %cst = arith.constant dense<0.000000e+00> : vector<256x64xf32>
    %3 = tpu.matmul %1, %2, %cst {dimension_numbers = #tpu.dot_dimension_numbers<[1], [0], [0], [1], [0, 0, 1, 1], [], []>} : vector<256x256xf32>, vector<256x64xf32>, vector<256x64xf32> -> vector<256x64xf32>
    %c0_4 = arith.constant 0 : index
    %c0_5 = arith.constant 0 : index
    %4 = vector.load %arg3[%c0_4, %c0_5] : memref<1x64xf32, #tpu.memory_space<vmem>>, vector<1x64xf32>
    %5 = vector.broadcast %4 : vector<1x64xf32> to vector<256x64xf32>
    %6 = arith.addf %3, %5 : vector<256x64xf32>
    %cst_6 = arith.constant 0.000000e+00 : f32
    %7 = vector.broadcast %cst_6 : f32 to vector<256x64xf32>
    %8 = arith.maximumf %6, %7 : vector<256x64xf32>
    %c0_7 = arith.constant 0 : index
    %c0_8 = arith.constant 0 : index
    %9 = vector.load %arg4[%c0_7, %c0_8] : memref<64x32xf32, #tpu.memory_space<vmem>>, vector<64x32xf32>
    %cst_9 = arith.constant dense<0.000000e+00> : vector<256x32xf32>
    %10 = tpu.matmul %8, %9, %cst_9 {dimension_numbers = #tpu.dot_dimension_numbers<[1], [0], [0], [1], [0, 0, 1, 1], [], []>} : vector<256x64xf32>, vector<64x32xf32>, vector<256x32xf32> -> vector<256x32xf32>
    %c0_10 = arith.constant 0 : index
    %c0_11 = arith.constant 0 : index
    %11 = vector.load %arg5[%c0_10, %c0_11] : memref<1x32xf32, #tpu.memory_space<vmem>>, vector<1x32xf32>
    %12 = vector.broadcast %11 : vector<1x32xf32> to vector<256x32xf32>
    %13 = arith.addf %10, %12 : vector<256x32xf32>
    %cst_12 = arith.constant 0.000000e+00 : f32
    %14 = vector.broadcast %cst_12 : f32 to vector<256x32xf32>
    %15 = arith.maximumf %13, %14 : vector<256x32xf32>
    %16 = vector.shape_cast %15 : vector<256x32xf32> to vector<16x16x32xf32>
    %c2 = arith.constant 2 : index
    %c2_13 = arith.constant 2 : index
    %c0_14 = arith.constant 0 : index
    %17 = vector.load %arg9[%c2, %c2_13, %c0_14] : memref<20x20x32xf32, #tpu.memory_space<vmem>>, vector<16x16x32xf32>
    tpu.vector_store %arg9[%c2, %c2_13, %c0_14], %16 {strides = array<i32>} : memref<20x20x32xf32, #tpu.memory_space<vmem>>, vector<16x16x32xf32>,
    %18 = vector.extract_strided_slice %16 {offsets = [0, 0, 0], sizes = [1, 16, 32], strides = [1, 1, 1]} : vector<16x16x32xf32> to vector<1x16x32xf32>
    %19 = vector.extract_strided_slice %16 {offsets = [15, 0, 0], sizes = [1, 16, 32], strides = [1, 1, 1]} : vector<16x16x32xf32> to vector<1x16x32xf32>
    %c0_15 = arith.constant 0 : index
    %c2_16 = arith.constant 2 : index
    %c0_17 = arith.constant 0 : index
    %20 = vector.load %arg9[%c0_15, %c2_16, %c0_17] : memref<20x20x32xf32, #tpu.memory_space<vmem>>, vector<1x16x32xf32>
    tpu.vector_store %arg9[%c0_15, %c2_16, %c0_17], %18 {strides = array<i32>} : memref<20x20x32xf32, #tpu.memory_space<vmem>>, vector<1x16x32xf32>,
    %c18 = arith.constant 18 : index
    %c2_18 = arith.constant 2 : index
    %c0_19 = arith.constant 0 : index
    %21 = vector.load %arg9[%c18, %c2_18, %c0_19] : memref<20x20x32xf32, #tpu.memory_space<vmem>>, vector<1x16x32xf32>
    tpu.vector_store %arg9[%c18, %c2_18, %c0_19], %19 {strides = array<i32>} : memref<20x20x32xf32, #tpu.memory_space<vmem>>, vector<1x16x32xf32>,
    %c1 = arith.constant 1 : index
    %c2_20 = arith.constant 2 : index
    %c0_21 = arith.constant 0 : index
    %22 = vector.load %arg9[%c1, %c2_20, %c0_21] : memref<20x20x32xf32, #tpu.memory_space<vmem>>, vector<1x16x32xf32>
    tpu.vector_store %arg9[%c1, %c2_20, %c0_21], %18 {strides = array<i32>} : memref<20x20x32xf32, #tpu.memory_space<vmem>>, vector<1x16x32xf32>,
    %c19 = arith.constant 19 : index
    %c2_22 = arith.constant 2 : index
    %c0_23 = arith.constant 0 : index
    %23 = vector.load %arg9[%c19, %c2_22, %c0_23] : memref<20x20x32xf32, #tpu.memory_space<vmem>>, vector<1x16x32xf32>
    tpu.vector_store %arg9[%c19, %c2_22, %c0_23], %19 {strides = array<i32>} : memref<20x20x32xf32, #tpu.memory_space<vmem>>, vector<1x16x32xf32>,
    %c0_24 = arith.constant 0 : index
    %c2_25 = arith.constant 2 : index
    %c0_26 = arith.constant 0 : index
    %24 = vector.load %arg9[%c0_24, %c2_25, %c0_26] : memref<20x20x32xf32, #tpu.memory_space<vmem>>, vector<20x1x32xf32>
    %c0_27 = arith.constant 0 : index
    %c17 = arith.constant 17 : index
    %c0_28 = arith.constant 0 : index
    %25 = vector.load %arg9[%c0_27, %c17, %c0_28] : memref<20x20x32xf32, #tpu.memory_space<vmem>>, vector<20x1x32xf32>
    %c0_29 = arith.constant 0 : index
    %c0_30 = arith.constant 0 : index
    %c0_31 = arith.constant 0 : index
    %26 = vector.load %arg9[%c0_29, %c0_30, %c0_31] : memref<20x20x32xf32, #tpu.memory_space<vmem>>, vector<20x1x32xf32>
    tpu.vector_store %arg9[%c0_29, %c0_30, %c0_31], %24 {strides = array<i32>} : memref<20x20x32xf32, #tpu.memory_space<vmem>>, vector<20x1x32xf32>,
    %c0_32 = arith.constant 0 : index
    %c18_33 = arith.constant 18 : index
    %c0_34 = arith.constant 0 : index
    %27 = vector.load %arg9[%c0_32, %c18_33, %c0_34] : memref<20x20x32xf32, #tpu.memory_space<vmem>>, vector<20x1x32xf32>
    tpu.vector_store %arg9[%c0_32, %c18_33, %c0_34], %25 {strides = array<i32>} : memref<20x20x32xf32, #tpu.memory_space<vmem>>, vector<20x1x32xf32>,
    %c0_35 = arith.constant 0 : index
    %c1_36 = arith.constant 1 : index
    %c0_37 = arith.constant 0 : index
    %28 = vector.load %arg9[%c0_35, %c1_36, %c0_37] : memref<20x20x32xf32, #tpu.memory_space<vmem>>, vector<20x1x32xf32>
    tpu.vector_store %arg9[%c0_35, %c1_36, %c0_37], %24 {strides = array<i32>} : memref<20x20x32xf32, #tpu.memory_space<vmem>>, vector<20x1x32xf32>,
    %c0_38 = arith.constant 0 : index
    %c19_39 = arith.constant 19 : index
    %c0_40 = arith.constant 0 : index
    %29 = vector.load %arg9[%c0_38, %c19_39, %c0_40] : memref<20x20x32xf32, #tpu.memory_space<vmem>>, vector<20x1x32xf32>
    tpu.vector_store %arg9[%c0_38, %c19_39, %c0_40], %25 {strides = array<i32>} : memref<20x20x32xf32, #tpu.memory_space<vmem>>, vector<20x1x32xf32>,
    %c0_41 = arith.constant 0 : index
    %c0_42 = arith.constant 0 : index
    %c0_43 = arith.constant 0 : index
    %30 = vector.load %arg9[%c0_41, %c0_42, %c0_43] : memref<20x20x32xf32, #tpu.memory_space<vmem>>, vector<16x16x32xf32>
    %31 = vector.shape_cast %30 : vector<16x16x32xf32> to vector<256x32xf32>
    %c0_44 = arith.constant 0 : index
    %c0_45 = arith.constant 0 : index
    %32 = vector.load %arg10[%c0_44, %c0_45] : memref<256x800xf32, #tpu.memory_space<vmem>>, vector<256x32xf32>
    tpu.vector_store %arg10[%c0_44, %c0_45], %31 {strides = array<i32>} : memref<256x800xf32, #tpu.memory_space<vmem>>, vector<256x32xf32>,
    %c0_46 = arith.constant 0 : index
    %c1_47 = arith.constant 1 : index
    %c0_48 = arith.constant 0 : index
    %33 = vector.load %arg9[%c0_46, %c1_47, %c0_48] : memref<20x20x32xf32, #tpu.memory_space<vmem>>, vector<16x16x32xf32>
    %34 = vector.shape_cast %33 : vector<16x16x32xf32> to vector<256x32xf32>
    %c0_49 = arith.constant 0 : index
    %c32 = arith.constant 32 : index
    %35 = vector.load %arg10[%c0_49, %c32] : memref<256x800xf32, #tpu.memory_space<vmem>>, vector<256x32xf32>
    tpu.vector_store %arg10[%c0_49, %c32], %34 {strides = array<i32>} : memref<256x800xf32, #tpu.memory_space<vmem>>, vector<256x32xf32>,
    %c0_50 = arith.constant 0 : index
    %c2_51 = arith.constant 2 : index
    %c0_52 = arith.constant 0 : index
    %36 = vector.load %arg9[%c0_50, %c2_51, %c0_52] : memref<20x20x32xf32, #tpu.memory_space<vmem>>, vector<16x16x32xf32>
    %37 = vector.shape_cast %36 : vector<16x16x32xf32> to vector<256x32xf32>
    %c0_53 = arith.constant 0 : index
    %c64 = arith.constant 64 : index
    %38 = vector.load %arg10[%c0_53, %c64] : memref<256x800xf32, #tpu.memory_space<vmem>>, vector<256x32xf32>
    tpu.vector_store %arg10[%c0_53, %c64], %37 {strides = array<i32>} : memref<256x800xf32, #tpu.memory_space<vmem>>, vector<256x32xf32>,
    %c0_54 = arith.constant 0 : index
    %c3 = arith.constant 3 : index
    %c0_55 = arith.constant 0 : index
    %39 = vector.load %arg9[%c0_54, %c3, %c0_55] : memref<20x20x32xf32, #tpu.memory_space<vmem>>, vector<16x16x32xf32>
    %40 = vector.shape_cast %39 : vector<16x16x32xf32> to vector<256x32xf32>
    %c0_56 = arith.constant 0 : index
    %c96 = arith.constant 96 : index
    %41 = vector.load %arg10[%c0_56, %c96] : memref<256x800xf32, #tpu.memory_space<vmem>>, vector<256x32xf32>
    tpu.vector_store %arg10[%c0_56, %c96], %40 {strides = array<i32>} : memref<256x800xf32, #tpu.memory_space<vmem>>, vector<256x32xf32>,
    %c0_57 = arith.constant 0 : index
    %c4 = arith.constant 4 : index
    %c0_58 = arith.constant 0 : index
    %42 = vector.load %arg9[%c0_57, %c4, %c0_58] : memref<20x20x32xf32, #tpu.memory_space<vmem>>, vector<16x16x32xf32>
    %43 = vector.shape_cast %42 : vector<16x16x32xf32> to vector<256x32xf32>
    %c0_59 = arith.constant 0 : index
    %c128 = arith.constant 128 : index
    %44 = vector.load %arg10[%c0_59, %c128] : memref<256x800xf32, #tpu.memory_space<vmem>>, vector<256x32xf32>
    tpu.vector_store %arg10[%c0_59, %c128], %43 {strides = array<i32>} : memref<256x800xf32, #tpu.memory_space<vmem>>, vector<256x32xf32>,
    %c1_60 = arith.constant 1 : index
    %c0_61 = arith.constant 0 : index
    %c0_62 = arith.constant 0 : index
    %45 = vector.load %arg9[%c1_60, %c0_61, %c0_62] : memref<20x20x32xf32, #tpu.memory_space<vmem>>, vector<16x16x32xf32>
    %46 = vector.shape_cast %45 : vector<16x16x32xf32> to vector<256x32xf32>
    %c0_63 = arith.constant 0 : index
    %c160 = arith.constant 160 : index
    %47 = vector.load %arg10[%c0_63, %c160] : memref<256x800xf32, #tpu.memory_space<vmem>>, vector<256x32xf32>
    tpu.vector_store %arg10[%c0_63, %c160], %46 {strides = array<i32>} : memref<256x800xf32, #tpu.memory_space<vmem>>, vector<256x32xf32>,
    %c1_64 = arith.constant 1 : index
    %c1_65 = arith.constant 1 : index
    %c0_66 = arith.constant 0 : index
    %48 = vector.load %arg9[%c1_64, %c1_65, %c0_66] : memref<20x20x32xf32, #tpu.memory_space<vmem>>, vector<16x16x32xf32>
    %49 = vector.shape_cast %48 : vector<16x16x32xf32> to vector<256x32xf32>
    %c0_67 = arith.constant 0 : index
    %c192 = arith.constant 192 : index
    %50 = vector.load %arg10[%c0_67, %c192] : memref<256x800xf32, #tpu.memory_space<vmem>>, vector<256x32xf32>
    tpu.vector_store %arg10[%c0_67, %c192], %49 {strides = array<i32>} : memref<256x800xf32, #tpu.memory_space<vmem>>, vector<256x32xf32>,
    %c1_68 = arith.constant 1 : index
    %c2_69 = arith.constant 2 : index
    %c0_70 = arith.constant 0 : index
    %51 = vector.load %arg9[%c1_68, %c2_69, %c0_70] : memref<20x20x32xf32, #tpu.memory_space<vmem>>, vector<16x16x32xf32>
    %52 = vector.shape_cast %51 : vector<16x16x32xf32> to vector<256x32xf32>
    %c0_71 = arith.constant 0 : index
    %c224 = arith.constant 224 : index
    %53 = vector.load %arg10[%c0_71, %c224] : memref<256x800xf32, #tpu.memory_space<vmem>>, vector<256x32xf32>
    tpu.vector_store %arg10[%c0_71, %c224], %52 {strides = array<i32>} : memref<256x800xf32, #tpu.memory_space<vmem>>, vector<256x32xf32>,
    %c1_72 = arith.constant 1 : index
    %c3_73 = arith.constant 3 : index
    %c0_74 = arith.constant 0 : index
    %54 = vector.load %arg9[%c1_72, %c3_73, %c0_74] : memref<20x20x32xf32, #tpu.memory_space<vmem>>, vector<16x16x32xf32>
    %55 = vector.shape_cast %54 : vector<16x16x32xf32> to vector<256x32xf32>
    %c0_75 = arith.constant 0 : index
    %c256 = arith.constant 256 : index
    %56 = vector.load %arg10[%c0_75, %c256] : memref<256x800xf32, #tpu.memory_space<vmem>>, vector<256x32xf32>
    tpu.vector_store %arg10[%c0_75, %c256], %55 {strides = array<i32>} : memref<256x800xf32, #tpu.memory_space<vmem>>, vector<256x32xf32>,
    %c1_76 = arith.constant 1 : index
    %c4_77 = arith.constant 4 : index
    %c0_78 = arith.constant 0 : index
    %57 = vector.load %arg9[%c1_76, %c4_77, %c0_78] : memref<20x20x32xf32, #tpu.memory_space<vmem>>, vector<16x16x32xf32>
    %58 = vector.shape_cast %57 : vector<16x16x32xf32> to vector<256x32xf32>
    %c0_79 = arith.constant 0 : index
    %c288 = arith.constant 288 : index
    %59 = vector.load %arg10[%c0_79, %c288] : memref<256x800xf32, #tpu.memory_space<vmem>>, vector<256x32xf32>
    tpu.vector_store %arg10[%c0_79, %c288], %58 {strides = array<i32>} : memref<256x800xf32, #tpu.memory_space<vmem>>, vector<256x32xf32>,
    %c2_80 = arith.constant 2 : index
    %c0_81 = arith.constant 0 : index
    %c0_82 = arith.constant 0 : index
    %60 = vector.load %arg9[%c2_80, %c0_81, %c0_82] : memref<20x20x32xf32, #tpu.memory_space<vmem>>, vector<16x16x32xf32>
    %61 = vector.shape_cast %60 : vector<16x16x32xf32> to vector<256x32xf32>
    %c0_83 = arith.constant 0 : index
    %c320 = arith.constant 320 : index
    %62 = vector.load %arg10[%c0_83, %c320] : memref<256x800xf32, #tpu.memory_space<vmem>>, vector<256x32xf32>
    tpu.vector_store %arg10[%c0_83, %c320], %61 {strides = array<i32>} : memref<256x800xf32, #tpu.memory_space<vmem>>, vector<256x32xf32>,
    %c2_84 = arith.constant 2 : index
    %c1_85 = arith.constant 1 : index
    %c0_86 = arith.constant 0 : index
    %63 = vector.load %arg9[%c2_84, %c1_85, %c0_86] : memref<20x20x32xf32, #tpu.memory_space<vmem>>, vector<16x16x32xf32>
    %64 = vector.shape_cast %63 : vector<16x16x32xf32> to vector<256x32xf32>
    %c0_87 = arith.constant 0 : index
    %c352 = arith.constant 352 : index
    %65 = vector.load %arg10[%c0_87, %c352] : memref<256x800xf32, #tpu.memory_space<vmem>>, vector<256x32xf32>
    tpu.vector_store %arg10[%c0_87, %c352], %64 {strides = array<i32>} : memref<256x800xf32, #tpu.memory_space<vmem>>, vector<256x32xf32>,
    %c2_88 = arith.constant 2 : index
    %c2_89 = arith.constant 2 : index
    %c0_90 = arith.constant 0 : index
    %66 = vector.load %arg9[%c2_88, %c2_89, %c0_90] : memref<20x20x32xf32, #tpu.memory_space<vmem>>, vector<16x16x32xf32>
    %67 = vector.shape_cast %66 : vector<16x16x32xf32> to vector<256x32xf32>
    %c0_91 = arith.constant 0 : index
    %c384 = arith.constant 384 : index
    %68 = vector.load %arg10[%c0_91, %c384] : memref<256x800xf32, #tpu.memory_space<vmem>>, vector<256x32xf32>
    tpu.vector_store %arg10[%c0_91, %c384], %67 {strides = array<i32>} : memref<256x800xf32, #tpu.memory_space<vmem>>, vector<256x32xf32>,
    %c2_92 = arith.constant 2 : index
    %c3_93 = arith.constant 3 : index
    %c0_94 = arith.constant 0 : index
    %69 = vector.load %arg9[%c2_92, %c3_93, %c0_94] : memref<20x20x32xf32, #tpu.memory_space<vmem>>, vector<16x16x32xf32>
    %70 = vector.shape_cast %69 : vector<16x16x32xf32> to vector<256x32xf32>
    %c0_95 = arith.constant 0 : index
    %c416 = arith.constant 416 : index
    %71 = vector.load %arg10[%c0_95, %c416] : memref<256x800xf32, #tpu.memory_space<vmem>>, vector<256x32xf32>
    tpu.vector_store %arg10[%c0_95, %c416], %70 {strides = array<i32>} : memref<256x800xf32, #tpu.memory_space<vmem>>, vector<256x32xf32>,
    %c2_96 = arith.constant 2 : index
    %c4_97 = arith.constant 4 : index
    %c0_98 = arith.constant 0 : index
    %72 = vector.load %arg9[%c2_96, %c4_97, %c0_98] : memref<20x20x32xf32, #tpu.memory_space<vmem>>, vector<16x16x32xf32>
    %73 = vector.shape_cast %72 : vector<16x16x32xf32> to vector<256x32xf32>
    %c0_99 = arith.constant 0 : index
    %c448 = arith.constant 448 : index
    %74 = vector.load %arg10[%c0_99, %c448] : memref<256x800xf32, #tpu.memory_space<vmem>>, vector<256x32xf32>
    tpu.vector_store %arg10[%c0_99, %c448], %73 {strides = array<i32>} : memref<256x800xf32, #tpu.memory_space<vmem>>, vector<256x32xf32>,
    %c3_100 = arith.constant 3 : index
    %c0_101 = arith.constant 0 : index
    %c0_102 = arith.constant 0 : index
    %75 = vector.load %arg9[%c3_100, %c0_101, %c0_102] : memref<20x20x32xf32, #tpu.memory_space<vmem>>, vector<16x16x32xf32>
    %76 = vector.shape_cast %75 : vector<16x16x32xf32> to vector<256x32xf32>
    %c0_103 = arith.constant 0 : index
    %c480 = arith.constant 480 : index
    %77 = vector.load %arg10[%c0_103, %c480] : memref<256x800xf32, #tpu.memory_space<vmem>>, vector<256x32xf32>
    tpu.vector_store %arg10[%c0_103, %c480], %76 {strides = array<i32>} : memref<256x800xf32, #tpu.memory_space<vmem>>, vector<256x32xf32>,
    %c3_104 = arith.constant 3 : index
    %c1_105 = arith.constant 1 : index
    %c0_106 = arith.constant 0 : index
    %78 = vector.load %arg9[%c3_104, %c1_105, %c0_106] : memref<20x20x32xf32, #tpu.memory_space<vmem>>, vector<16x16x32xf32>
    %79 = vector.shape_cast %78 : vector<16x16x32xf32> to vector<256x32xf32>
    %c0_107 = arith.constant 0 : index
    %c512 = arith.constant 512 : index
    %80 = vector.load %arg10[%c0_107, %c512] : memref<256x800xf32, #tpu.memory_space<vmem>>, vector<256x32xf32>
    tpu.vector_store %arg10[%c0_107, %c512], %79 {strides = array<i32>} : memref<256x800xf32, #tpu.memory_space<vmem>>, vector<256x32xf32>,
    %c3_108 = arith.constant 3 : index
    %c2_109 = arith.constant 2 : index
    %c0_110 = arith.constant 0 : index
    %81 = vector.load %arg9[%c3_108, %c2_109, %c0_110] : memref<20x20x32xf32, #tpu.memory_space<vmem>>, vector<16x16x32xf32>
    %82 = vector.shape_cast %81 : vector<16x16x32xf32> to vector<256x32xf32>
    %c0_111 = arith.constant 0 : index
    %c544 = arith.constant 544 : index
    %83 = vector.load %arg10[%c0_111, %c544] : memref<256x800xf32, #tpu.memory_space<vmem>>, vector<256x32xf32>
    tpu.vector_store %arg10[%c0_111, %c544], %82 {strides = array<i32>} : memref<256x800xf32, #tpu.memory_space<vmem>>, vector<256x32xf32>,
    %c3_112 = arith.constant 3 : index
    %c3_113 = arith.constant 3 : index
    %c0_114 = arith.constant 0 : index
    %84 = vector.load %arg9[%c3_112, %c3_113, %c0_114] : memref<20x20x32xf32, #tpu.memory_space<vmem>>, vector<16x16x32xf32>
    %85 = vector.shape_cast %84 : vector<16x16x32xf32> to vector<256x32xf32>
    %c0_115 = arith.constant 0 : index
    %c576 = arith.constant 576 : index
    %86 = vector.load %arg10[%c0_115, %c576] : memref<256x800xf32, #tpu.memory_space<vmem>>, vector<256x32xf32>
    tpu.vector_store %arg10[%c0_115, %c576], %85 {strides = array<i32>} : memref<256x800xf32, #tpu.memory_space<vmem>>, vector<256x32xf32>,
    %c3_116 = arith.constant 3 : index
    %c4_117 = arith.constant 4 : index
    %c0_118 = arith.constant 0 : index
    %87 = vector.load %arg9[%c3_116, %c4_117, %c0_118] : memref<20x20x32xf32, #tpu.memory_space<vmem>>, vector<16x16x32xf32>
    %88 = vector.shape_cast %87 : vector<16x16x32xf32> to vector<256x32xf32>
    %c0_119 = arith.constant 0 : index
    %c608 = arith.constant 608 : index
    %89 = vector.load %arg10[%c0_119, %c608] : memref<256x800xf32, #tpu.memory_space<vmem>>, vector<256x32xf32>
    tpu.vector_store %arg10[%c0_119, %c608], %88 {strides = array<i32>} : memref<256x800xf32, #tpu.memory_space<vmem>>, vector<256x32xf32>,
    %c4_120 = arith.constant 4 : index
    %c0_121 = arith.constant 0 : index
    %c0_122 = arith.constant 0 : index
    %90 = vector.load %arg9[%c4_120, %c0_121, %c0_122] : memref<20x20x32xf32, #tpu.memory_space<vmem>>, vector<16x16x32xf32>
    %91 = vector.shape_cast %90 : vector<16x16x32xf32> to vector<256x32xf32>
    %c0_123 = arith.constant 0 : index
    %c640 = arith.constant 640 : index
    %92 = vector.load %arg10[%c0_123, %c640] : memref<256x800xf32, #tpu.memory_space<vmem>>, vector<256x32xf32>
    tpu.vector_store %arg10[%c0_123, %c640], %91 {strides = array<i32>} : memref<256x800xf32, #tpu.memory_space<vmem>>, vector<256x32xf32>,
    %c4_124 = arith.constant 4 : index
    %c1_125 = arith.constant 1 : index
    %c0_126 = arith.constant 0 : index
    %93 = vector.load %arg9[%c4_124, %c1_125, %c0_126] : memref<20x20x32xf32, #tpu.memory_space<vmem>>, vector<16x16x32xf32>
    %94 = vector.shape_cast %93 : vector<16x16x32xf32> to vector<256x32xf32>
    %c0_127 = arith.constant 0 : index
    %c672 = arith.constant 672 : index
    %95 = vector.load %arg10[%c0_127, %c672] : memref<256x800xf32, #tpu.memory_space<vmem>>, vector<256x32xf32>
    tpu.vector_store %arg10[%c0_127, %c672], %94 {strides = array<i32>} : memref<256x800xf32, #tpu.memory_space<vmem>>, vector<256x32xf32>,
    %c4_128 = arith.constant 4 : index
    %c2_129 = arith.constant 2 : index
    %c0_130 = arith.constant 0 : index
    %96 = vector.load %arg9[%c4_128, %c2_129, %c0_130] : memref<20x20x32xf32, #tpu.memory_space<vmem>>, vector<16x16x32xf32>
    %97 = vector.shape_cast %96 : vector<16x16x32xf32> to vector<256x32xf32>
    %c0_131 = arith.constant 0 : index
    %c704 = arith.constant 704 : index
    %98 = vector.load %arg10[%c0_131, %c704] : memref<256x800xf32, #tpu.memory_space<vmem>>, vector<256x32xf32>
    tpu.vector_store %arg10[%c0_131, %c704], %97 {strides = array<i32>} : memref<256x800xf32, #tpu.memory_space<vmem>>, vector<256x32xf32>,
    %c4_132 = arith.constant 4 : index
    %c3_133 = arith.constant 3 : index
    %c0_134 = arith.constant 0 : index
    %99 = vector.load %arg9[%c4_132, %c3_133, %c0_134] : memref<20x20x32xf32, #tpu.memory_space<vmem>>, vector<16x16x32xf32>
    %100 = vector.shape_cast %99 : vector<16x16x32xf32> to vector<256x32xf32>
    %c0_135 = arith.constant 0 : index
    %c736 = arith.constant 736 : index
    %101 = vector.load %arg10[%c0_135, %c736] : memref<256x800xf32, #tpu.memory_space<vmem>>, vector<256x32xf32>
    tpu.vector_store %arg10[%c0_135, %c736], %100 {strides = array<i32>} : memref<256x800xf32, #tpu.memory_space<vmem>>, vector<256x32xf32>,
    %c4_136 = arith.constant 4 : index
    %c4_137 = arith.constant 4 : index
    %c0_138 = arith.constant 0 : index
    %102 = vector.load %arg9[%c4_136, %c4_137, %c0_138] : memref<20x20x32xf32, #tpu.memory_space<vmem>>, vector<16x16x32xf32>
    %103 = vector.shape_cast %102 : vector<16x16x32xf32> to vector<256x32xf32>
    %c0_139 = arith.constant 0 : index
    %c768 = arith.constant 768 : index
    %104 = vector.load %arg10[%c0_139, %c768] : memref<256x800xf32, #tpu.memory_space<vmem>>, vector<256x32xf32>
    tpu.vector_store %arg10[%c0_139, %c768], %103 {strides = array<i32>} : memref<256x800xf32, #tpu.memory_space<vmem>>, vector<256x32xf32>,
    %c0_140 = arith.constant 0 : index
    %c0_141 = arith.constant 0 : index
    %105 = vector.load %arg10[%c0_140, %c0_141] : memref<256x800xf32, #tpu.memory_space<vmem>>, vector<256x800xf32>
    %c0_142 = arith.constant 0 : index
    %c0_143 = arith.constant 0 : index
    %106 = vector.load %arg6[%c0_142, %c0_143] : memref<800x3xf32, #tpu.memory_space<vmem>>, vector<800x3xf32>
    %cst_144 = arith.constant dense<0.000000e+00> : vector<256x3xf32>
    %107 = tpu.matmul %105, %106, %cst_144 {dimension_numbers = #tpu.dot_dimension_numbers<[1], [0], [0], [1], [0, 0, 1, 1], [], []>} : vector<256x800xf32>, vector<800x3xf32>, vector<256x3xf32> -> vector<256x3xf32>
    %c0_145 = arith.constant 0 : index
    %c0_146 = arith.constant 0 : index
    %108 = vector.load %arg7[%c0_145, %c0_146] : memref<1x3xf32, #tpu.memory_space<vmem>>, vector<1x3xf32>
    %109 = vector.broadcast %108 : vector<1x3xf32> to vector<256x3xf32>
    %110 = arith.addf %107, %109 : vector<256x3xf32>
    %cst_147 = arith.constant 0.000000e+00 : f32
    %cst_148 = arith.constant 2.550000e+02 : f32
    %111 = vector.broadcast %cst_147 : f32 to vector<256x3xf32>
    %112 = arith.maximumf %111, %110 : vector<256x3xf32>
    %113 = vector.broadcast %cst_148 : f32 to vector<256x3xf32>
    %114 = arith.minimumf %113, %112 : vector<256x3xf32>
    %115 = vector.shape_cast %114 : vector<256x3xf32> to vector<1x256x3xf32>
    %c0_149 = arith.constant 0 : index
    %c0_150 = arith.constant 0 : index
    %c0_151 = arith.constant 0 : index
    %116 = vector.load %arg8[%c0_149, %c0_150, %c0_151] : memref<1x256x3xf32, #tpu.memory_space<vmem>>, vector<1x256x3xf32>
    tpu.vector_store %arg8[%c0_149, %c0_150, %c0_151], %115 {strides = array<i32>} : memref<1x256x3xf32, #tpu.memory_space<vmem>>, vector<1x256x3xf32>,
    return
  }
  func.func @transform_0(%arg0: i32) -> (i32, i32, i32) {
    %c0_i32 = arith.constant 0 : i32
    %c0_i32_0 = arith.constant 0 : i32
    %c0_i32_1 = arith.constant 0 : i32
    return %arg0, %c0_i32, %c0_i32_0 : i32, i32, i32
  }
  func.func @transform_1(%arg0: i32) -> (i32, i32) {
    %c0_i32 = arith.constant 0 : i32
    %c0_i32_0 = arith.constant 0 : i32
    %c0_i32_1 = arith.constant 0 : i32
    return %c0_i32, %c0_i32_0 : i32, i32
  }
  func.func @transform_2(%arg0: i32) -> (i32, i32) {
    %c0_i32 = arith.constant 0 : i32
    %c0_i32_0 = arith.constant 0 : i32
    %c0_i32_1 = arith.constant 0 : i32
    return %c0_i32, %c0_i32_0 : i32, i32
  }
  func.func @transform_3(%arg0: i32) -> (i32, i32) {
    %c0_i32 = arith.constant 0 : i32
    %c0_i32_0 = arith.constant 0 : i32
    %c0_i32_1 = arith.constant 0 : i32
    return %c0_i32, %c0_i32_0 : i32, i32
  }
  func.func @transform_4(%arg0: i32) -> (i32, i32) {
    %c0_i32 = arith.constant 0 : i32
    %c0_i32_0 = arith.constant 0 : i32
    %c0_i32_1 = arith.constant 0 : i32
    return %c0_i32, %c0_i32_0 : i32, i32
  }
  func.func @transform_5(%arg0: i32) -> (i32, i32) {
    %c0_i32 = arith.constant 0 : i32
    %c0_i32_0 = arith.constant 0 : i32
    %c0_i32_1 = arith.constant 0 : i32
    return %c0_i32, %c0_i32_0 : i32, i32
  }
  func.func @transform_6(%arg0: i32) -> (i32, i32) {
    %c0_i32 = arith.constant 0 : i32
    %c0_i32_0 = arith.constant 0 : i32
    %c0_i32_1 = arith.constant 0 : i32
    return %c0_i32, %c0_i32_0 : i32, i32
  }
  func.func @transform_7(%arg0: i32) -> (i32, i32, i32) {
    %c0_i32 = arith.constant 0 : i32
    %c0_i32_0 = arith.constant 0 : i32
    %c0_i32_1 = arith.constant 0 : i32
    return %arg0, %c0_i32, %c0_i32_0 : i32, i32, i32
  }
}

</mosaic_0001>

<llo_original>
// kernel: srcnn_forward.1
$region0: #{srcnn_forward.1}
  #allocation0 [shape = 'u32[]', space=smem, size = 0x4, offset = 0x4, fixed_abs, tag = 'smem constant byte address 0x4 - core index']
  #allocation1 [shape = 'u32[144,128]{1,0:T(1,128)}', space=vmem, size = 0x12000, scoped, tag = 'internal scratch']
  #allocation2 [shape = 'f32[20,20,32]{2,1,0:T(8,128)}', space=vmem, size = 0x3c000, scoped, tag = 'scratch operand']
  #allocation3 [shape = 'f32[256,800]{1,0:T(8,128)}', space=vmem, size = 0xe0000, scoped, tag = 'scratch operand']
  %s0 = inlined_call_operand.vmem [shape: f32[2,256,256], index: 0, kind: input, shape index: {}]
  %s1 = inlined_call_operand.vmem [shape: f32[256,64], index: 1, kind: input, shape index: {}]
  %s2 = inlined_call_operand.vmem [shape: f32[1,64], index: 2, kind: input, shape index: {}]
  %s3 = inlined_call_operand.vmem [shape: f32[64,32], index: 3, kind: input, shape index: {}]
  %s4 = inlined_call_operand.vmem [shape: f32[1,32], index: 4, kind: input, shape index: {}]
  %s5 = inlined_call_operand.vmem [shape: f32[800,3], index: 5, kind: input, shape index: {}]
  %s6 = inlined_call_operand.vmem [shape: f32[1,3], index: 6, kind: input, shape index: {}]
  %s7 = inlined_call_operand.vmem [shape: f32[2,256,3], index: 7, kind: output, shape index: {}]
  %s8 = sld [smem:[#allocation0]]
  $region61: #{srcnn_forward.1} parent=0
    _
  %s10 = ssub.s32 1, %s8
  %s11 = scalar_select 0, %s10, %s8
  loop: start=0, step=1, limit=4
  $region2: #{srcnn_forward.1} parent=0 // loop_pre_header
    _
  $region3: #{srcnn_forward.1} parent=0 // loop_header
    %s13 = sphi 0, %s17
    %p14 = scmp.ge.s32.totalorder %s13, 4
    %s23 = sphi 0, %s25
    %s26 = sphi 0, %s23
    %s27 = sphi 0, %s26
    %s43 = sphi 0, %s27
    %s47 = sphi 0, %s47
    %s49 = sphi 0, %s47
    %s50 = sphi 0, %s49
    %s64 = sphi 0, %s50
    %s68 = sphi 0, %s68
    %s70 = sphi 0, %s68
    %s71 = sphi 0, %s70
    %s85 = sphi 0, %s71
    %s89 = sphi 0, %s89
    %s91 = sphi 0, %s89
    %s92 = sphi 0, %s91
    %s106 = sphi 0, %s92
    %s110 = sphi 0, %s110
    %s112 = sphi 0, %s110
    %s113 = sphi 0, %s112
    %s127 = sphi 0, %s113
    %s131 = sphi 0, %s131
    %s133 = sphi 0, %s131
    %s134 = sphi 0, %s133
    %s148 = sphi 0, %s134
    %s152 = sphi 0, %s152
    %s154 = sphi 0, %s152
    %s155 = sphi 0, %s154
    %s169 = sphi 0, %s155
    %s175 = sphi 0, %s177
    %s178 = sphi 0, %s175
    %s179 = sphi 0, %s178
    %s195 = sphi 0, %s179
  $region4: #{srcnn_forward.1} parent=0 // loop_header_branch
    %16 = sbr.rel (%p14) target = $region8
  $region5: #{srcnn_forward.1} parent=0 // loop_body
    %s18 = ssub.s32 %s13, 1
    %s19 = ssub.s32 %s13, 2
    %s20 = sadd.s32 %s13, 1
    %s21 = ssub.s32 %s13, %s20
    %p22 = scmp.eq.s32.totalorder %s21, 0
    %s24 = sadd.s32 %s23, 1
    %s25 = scalar_select %p22, %s23, %s24
    %p28 = pneg %p22
    %p29 = scmp.eq.s32.totalorder %s13, 1
    %p30 = por %p28, %p29
    %p31 = scmp.ne.s32.totalorder %s23, %s26
    %p32 = scmp.eq.s32.totalorder %s13, 0
    %p33 = por %p31, %p32
    %p34 = scmp.ne.s32.totalorder %s23, %s26
    %p35 = scmp.eq.s32.totalorder %s18, 1
    %p36 = por %p34, %p35
    %p37 = scmp.ne.s32.totalorder %s26, %s27
    %p38 = scmp.eq.s32.totalorder %s18, 0
    %p39 = por %p37, %p38
    %p40 = scmp.ne.s32.totalorder %s26, %s27
    %p41 = scmp.eq.s32.totalorder %s19, 1
    %p42 = por %p40, %p41
    %p44 = scmp.ne.s32.totalorder %s27, %s43
    %p45 = scmp.eq.s32.totalorder %s19, 0
    %p46 = por %p44, %p45
    %s48 = sadd.s32 %s47, 1
    %p51 = scmp.eq.s32.totalorder %s13, 1
    %p52 = scmp.ne.s32.totalorder %s47, %s49
    %p53 = scmp.eq.s32.totalorder %s13, 0
    %p54 = por %p52, %p53
    %p55 = scmp.ne.s32.totalorder %s47, %s49
    %p56 = scmp.eq.s32.totalorder %s18, 1
    %p57 = por %p55, %p56
    %p58 = scmp.ne.s32.totalorder %s49, %s50
    %p59 = scmp.eq.s32.totalorder %s18, 0
    %p60 = por %p58, %p59
    %p61 = scmp.ne.s32.totalorder %s49, %s50
    %p62 = scmp.eq.s32.totalorder %s19, 1
    %p63 = por %p61, %p62
    %p65 = scmp.ne.s32.totalorder %s50, %s64
    %p66 = scmp.eq.s32.totalorder %s19, 0
    %p67 = por %p65, %p66
    %s69 = sadd.s32 %s68, 1
    %p72 = scmp.eq.s32.totalorder %s13, 1
    %p73 = scmp.ne.s32.totalorder %s68, %s70
    %p74 = scmp.eq.s32.totalorder %s13, 0
    %p75 = por %p73, %p74
    %p76 = scmp.ne.s32.totalorder %s68, %s70
    %p77 = scmp.eq.s32.totalorder %s18, 1
    %p78 = por %p76, %p77
    %p79 = scmp.ne.s32.totalorder %s70, %s71
    %p80 = scmp.eq.s32.totalorder %s18, 0
    %p81 = por %p79, %p80
    %p82 = scmp.ne.s32.totalorder %s70, %s71
    %p83 = scmp.eq.s32.totalorder %s19, 1
    %p84 = por %p82, %p83
    %p86 = scmp.ne.s32.totalorder %s71, %s85
    %p87 = scmp.eq.s32.totalorder %s19, 0
    %p88 = por %p86, %p87
    %s90 = sadd.s32 %s89, 1
    %p93 = scmp.eq.s32.totalorder %s13, 1
    %p94 = scmp.ne.s32.totalorder %s89, %s91
    %p95 = scmp.eq.s32.totalorder %s13, 0
    %p96 = por %p94, %p95
    %p97 = scmp.ne.s32.totalorder %s89, %s91
    %p98 = scmp.eq.s32.totalorder %s18, 1
    %p99 = por %p97, %p98
    %p100 = scmp.ne.s32.totalorder %s91, %s92
    %p101 = scmp.eq.s32.totalorder %s18, 0
    %p102 = por %p100, %p101
    %p103 = scmp.ne.s32.totalorder %s91, %s92
    %p104 = scmp.eq.s32.totalorder %s19, 1
    %p105 = por %p103, %p104
    %p107 = scmp.ne.s32.totalorder %s92, %s106
    %p108 = scmp.eq.s32.totalorder %s19, 0
    %p109 = por %p107, %p108
    %s111 = sadd.s32 %s110, 1
    %p114 = scmp.eq.s32.totalorder %s13, 1
    %p115 = scmp.ne.s32.totalorder %s110, %s112
    %p116 = scmp.eq.s32.totalorder %s13, 0
    %p117 = por %p115, %p116
    %p118 = scmp.ne.s32.totalorder %s110, %s112
    %p119 = scmp.eq.s32.totalorder %s18, 1
    %p120 = por %p118, %p119
    %p121 = scmp.ne.s32.totalorder %s112, %s113
    %p122 = scmp.eq.s32.totalorder %s18, 0
    %p123 = por %p121, %p122
    %p124 = scmp.ne.s32.totalorder %s112, %s113
    %p125 = scmp.eq.s32.totalorder %s19, 1
    %p126 = por %p124, %p125
    %p128 = scmp.ne.s32.totalorder %s113, %s127
    %p129 = scmp.eq.s32.totalorder %s19, 0
    %p130 = por %p128, %p129
    %s132 = sadd.s32 %s131, 1
    %p135 = scmp.eq.s32.totalorder %s13, 1
    %p136 = scmp.ne.s32.totalorder %s131, %s133
    %p137 = scmp.eq.s32.totalorder %s13, 0
    %p138 = por %p136, %p137
    %p139 = scmp.ne.s32.totalorder %s131, %s133
    %p140 = scmp.eq.s32.totalorder %s18, 1
    %p141 = por %p139, %p140
    %p142 = scmp.ne.s32.totalorder %s133, %s134
    %p143 = scmp.eq.s32.totalorder %s18, 0
    %p144 = por %p142, %p143
    %p145 = scmp.ne.s32.totalorder %s133, %s134
    %p146 = scmp.eq.s32.totalorder %s19, 1
    %p147 = por %p145, %p146
    %p149 = scmp.ne.s32.totalorder %s134, %s148
    %p150 = scmp.eq.s32.totalorder %s19, 0
    %p151 = por %p149, %p150
    %s153 = sadd.s32 %s152, 1
    %p156 = scmp.eq.s32.totalorder %s13, 1
    %p157 = scmp.ne.s32.totalorder %s152, %s154
    %p158 = scmp.eq.s32.totalorder %s13, 0
    %p159 = por %p157, %p158
    %p160 = scmp.ne.s32.totalorder %s152, %s154
    %p161 = scmp.eq.s32.totalorder %s18, 1
    %p162 = por %p160, %p161
    %p163 = scmp.ne.s32.totalorder %s154, %s155
    %p164 = scmp.eq.s32.totalorder %s18, 0
    %p165 = por %p163, %p164
    %p166 = scmp.ne.s32.totalorder %s154, %s155
    %p167 = scmp.eq.s32.totalorder %s19, 1
    %p168 = por %p166, %p167
    %p170 = scmp.ne.s32.totalorder %s155, %s169
    %p171 = scmp.eq.s32.totalorder %s19, 0
    %p172 = por %p170, %p171
    %s173 = ssub.s32 %s13, %s20
    %p174 = scmp.eq.s32.totalorder %s173, 0
    %s176 = sadd.s32 %s175, 1
    %s177 = scalar_select %p174, %s175, %s176
    %p180 = pneg %p174
    %p181 = scmp.eq.s32.totalorder %s13, 1
    %p182 = por %p180, %p181
    %p183 = scmp.ne.s32.totalorder %s175, %s178
    %p184 = scmp.eq.s32.totalorder %s13, 0
    %p185 = por %p183, %p184
    %p186 = scmp.ne.s32.totalorder %s175, %s178
    %p187 = scmp.eq.s32.totalorder %s18, 1
    %p188 = por %p186, %p187
    %p189 = scmp.ne.s32.totalorder %s178, %s179
    %p190 = scmp.eq.s32.totalorder %s18, 0
    %p191 = por %p189, %p190
    %p192 = scmp.ne.s32.totalorder %s178, %s179
    %p193 = scmp.eq.s32.totalorder %s19, 1
    %p194 = por %p192, %p193
    %p196 = scmp.ne.s32.totalorder %s179, %s195
    %p197 = scmp.eq.s32.totalorder %s19, 0
    %p198 = por %p196, %p197
    %p199 = scmp.le.s32.totalorder 1, %s13
    %p200 = scmp.lt.s32.totalorder %s13, 3
    %p201 = pnand %p199, %p200
    %p202 = pneg %p201
    // Predicated region
    $region9: #{srcnn_forward.1} parent=5 // pred_check
      _
    $region10: #{srcnn_forward.1} parent=5 // pred_check_branch
      %204 = sbr.rel (%p201) target = $region12
    $region11: #{srcnn_forward.1} parent=5 // pred_region
      %s205 = ssub.s32 %s13, 1
      // Predicated region
      $region13: #{srcnn_forward.1} parent=11 // pred_check
        %p206 = pneg %p60
      $region14: #{srcnn_forward.1} parent=11 // pred_check_branch
        %208 = sbr.rel (%p206) target = $region16
      $region15: #{srcnn_forward.1} parent=11 // pred_region
        _
      $region16: #{srcnn_forward.1} parent=11 // pred_fallthru
        _
      // Predicated region
      $region17: #{srcnn_forward.1} parent=11 // pred_check
        %p209 = pneg %p81
      $region18: #{srcnn_forward.1} parent=11 // pred_check_branch
        %211 = sbr.rel (%p209) target = $region20
      $region19: #{srcnn_forward.1} parent=11 // pred_region
        _
      $region20: #{srcnn_forward.1} parent=11 // pred_fallthru
        _
      // Predicated region
      $region21: #{srcnn_forward.1} parent=11 // pred_check
        %p212 = pneg %p102
      $region22: #{srcnn_forward.1} parent=11 // pred_check_branch
        %214 = sbr.rel (%p212) target = $region24
      $region23: #{srcnn_forward.1} parent=11 // pred_region
        _
      $region24: #{srcnn_forward.1} parent=11 // pred_fallthru
        _
      // Predicated region
      $region25: #{srcnn_forward.1} parent=11 // pred_check
        %p215 = pneg %p123
      $region26: #{srcnn_forward.1} parent=11 // pred_check_branch
        %217 = sbr.rel (%p215) target = $region28
      $region27: #{srcnn_forward.1} parent=11 // pred_region
        _
      $region28: #{srcnn_forward.1} parent=11 // pred_fallthru
        _
      // Predicated region
      $region29: #{srcnn_forward.1} parent=11 // pred_check
        %p218 = pneg %p144
      $region30: #{srcnn_forward.1} parent=11 // pred_check_branch
        %220 = sbr.rel (%p218) target = $region32
      $region31: #{srcnn_forward.1} parent=11 // pred_region
        _
      $region32: #{srcnn_forward.1} parent=11 // pred_fallthru
        _
      // Predicated region
      $region33: #{srcnn_forward.1} parent=11 // pred_check
        %p221 = pneg %p165
      $region34: #{srcnn_forward.1} parent=11 // pred_check_branch
        %223 = sbr.rel (%p221) target = $region36
      $region35: #{srcnn_forward.1} parent=11 // pred_region
        _
      $region36: #{srcnn_forward.1} parent=11 // pred_fallthru
        _
    $region12: #{srcnn_forward.1} parent=5 // pred_fallthru
      _
    %p224 = scmp.lt.s32.totalorder %s13, 2
    // Predicated region
    $region37: #{srcnn_forward.1} parent=5 // pred_check
      %p225 = pneg %p224
    $region38: #{srcnn_forward.1} parent=5 // pred_check_branch
      %227 = sbr.rel (%p225) target = $region40
    $region39: #{srcnn_forward.1} parent=5 // pred_region
      // Predicated region
      $region41: #{srcnn_forward.1} parent=39 // pred_check
        %p228 = pneg %p33
      $region42: #{srcnn_forward.1} parent=39 // pred_check_branch
        %230 = sbr.rel (%p228) target = $region44
      $region43: #{srcnn_forward.1} parent=39 // pred_region
        %p231 = scmp.lt.s32.totalorder %s13, 1
        %s232 = scalar_select %p231, %s13, 1
        %s233 = smul.addr %s232, 64
        %s234 = smul.addr %s233, 8
        %s235 = scalar_lea.vmem %s0, %s234
      $region44: #{srcnn_forward.1} parent=39 // pred_fallthru
        _
    $region40: #{srcnn_forward.1} parent=5 // pred_fallthru
      _
    %p236 = scmp.le.s32.totalorder 1, %s13
    %p237 = scmp.lt.s32.totalorder %s13, 3
    %p238 = pnand %p236, %p237
    %p239 = pneg %p238
    // Predicated region
    $region45: #{srcnn_forward.1} parent=5 // pred_check
      _
    $region46: #{srcnn_forward.1} parent=5 // pred_check_branch
      %241 = sbr.rel (%p238) target = $region48
    $region47: #{srcnn_forward.1} parent=5 // pred_region
      %s242 = ssub.s32 %s13, 1
      %p243 = scmp.lt.s32.totalorder %s18, 1
      %s244 = scalar_select %p243, %s18, 1
      %s245 = smul.addr %s244, 64
      %s246 = smul.addr %s245, 8
      %s247 = scalar_lea.vmem %s0, %s246
      %p248 = pneg %p39
      %p249 = pneg %p36
      %p250 = pneg %p60
      %p251 = pneg %p57
      %p252 = pneg %p81
      %p253 = pneg %p78
      %p254 = pneg %p102
      %p255 = pneg %p99
      %p256 = pneg %p123
      %p257 = pneg %p120
      %p258 = pneg %p144
      %p259 = pneg %p141
      %p260 = pneg %p165
      %p261 = pneg %p162
      %p262 = pneg %p191
      %p263 = pneg %p188
      %p264 = scmp.lt.s32.totalorder %s18, 1
      %s265 = scalar_select %p264, %s18, 1
      %s266 = smul.addr %s265, 32
      %s267 = smul.addr %s266, 8
      %s268 = scalar_lea.vmem %s7, %s267
      %p269 = scmp.lt.s32.totalorder %s18, 1
      %s270 = scalar_select %p269, %s18, 1
      %s271 = smul.addr %s270, 64
      %s272 = smul.addr %s271, 8
      %s273 = scalar_lea.vmem %s0, %s272
      %p274 = scmp.lt.s32.totalorder %s18, 1
      %s275 = scalar_select %p274, %s18, 1
      %s276 = smul.addr %s275, 32
      %s277 = smul.addr %s276, 8
      %s278 = scalar_lea.vmem %s7, %s277
      %v279 = vld [vmem:[%s273] sm:$0xff]
      %v280 = vld [vmem:[%s273 + $0x8] sm:$0xff]
      %v281 = vld [vmem:[%s273 + $0x10] sm:$0xff]
      %v282 = vld [vmem:[%s273 + $0x18] sm:$0xff]
      %v283 = vld [vmem:[%s273 + $0x20] sm:$0xff]
      %v284 = vld [vmem:[%s273 + $0x28] sm:$0xff]
      %v285 = vld [vmem:[%s273 + $0x30] sm:$0xff]
      %v286 = vld [vmem:[%s273 + $0x38] sm:$0xff]
      %v287 = vld [vmem:[%s273 + $0x40] sm:$0xff]
      %v288 = vld [vmem:[%s273 + $0x48] sm:$0xff]
      %v289 = vld [vmem:[%s273 + $0x50] sm:$0xff]
      %v290 = vld [vmem:[%s273 + $0x58] sm:$0xff]
      %v291 = vld [vmem:[%s273 + $0x60] sm:$0xff]
      %v292 = vld [vmem:[%s273 + $0x68] sm:$0xff]
      %v293 = vld [vmem:[%s273 + $0x70] sm:$0xff]
      %v294 = vld [vmem:[%s273 + $0x78] sm:$0xff]
      %v295 = vld [vmem:[%s273 + $0x80] sm:$0xff]
      %v296 = vld [vmem:[%s273 + $0x88] sm:$0xff]
      %v297 = vld [vmem:[%s273 + $0x90] sm:$0xff]
      %v298 = vld [vmem:[%s273 + $0x98] sm:$0xff]
      %v299 = vld [vmem:[%s273 + $0xa0] sm:$0xff]
      %v300 = vld [vmem:[%s273 + $0xa8] sm:$0xff]
      %v301 = vld [vmem:[%s273 + $0xb0] sm:$0xff]
      %v302 = vld [vmem:[%s273 + $0xb8] sm:$0xff]
      %v303 = vld [vmem:[%s273 + $0xc0] sm:$0xff]
      %v304 = vld [vmem:[%s273 + $0xc8] sm:$0xff]
      %v305 = vld [vmem:[%s273 + $0xd0] sm:$0xff]
      %v306 = vld [vmem:[%s273 + $0xd8] sm:$0xff]
      %v307 = vld [vmem:[%s273 + $0xe0] sm:$0xff]
      %v308 = vld [vmem:[%s273 + $0xe8] sm:$0xff]
      %v309 = vld [vmem:[%s273 + $0xf0] sm:$0xff]
      %v310 = vld [vmem:[%s273 + $0xf8] sm:$0xff]
      %v311 = vld [vmem:[%s273 + $0x100] sm:$0xff]
      %v312 = vld [vmem:[%s273 + $0x108] sm:$0xff]
      %v313 = vld [vmem:[%s273 + $0x110] sm:$0xff]
      %v314 = vld [vmem:[%s273 + $0x118] sm:$0xff]
      %v315 = vld [vmem:[%s273 + $0x120] sm:$0xff]
      %v316 = vld [vmem:[%s273 + $0x128] sm:$0xff]
      %v317 = vld [vmem:[%s273 + $0x130] sm:$0xff]
      %v318 = vld [vmem:[%s273 + $0x138] sm:$0xff]
      %v319 = vld [vmem:[%s273 + $0x140] sm:$0xff]
      %v320 = vld [vmem:[%s273 + $0x148] sm:$0xff]
      %v321 = vld [vmem:[%s273 + $0x150] sm:$0xff]
      %v322 = vld [vmem:[%s273 + $0x158] sm:$0xff]
      %v323 = vld [vmem:[%s273 + $0x160] sm:$0xff]
      %v324 = vld [vmem:[%s273 + $0x168] sm:$0xff]
      %v325 = vld [vmem:[%s273 + $0x170] sm:$0xff]
      %v326 = vld [vmem:[%s273 + $0x178] sm:$0xff]
      %v327 = vld [vmem:[%s273 + $0x180] sm:$0xff]
      %v328 = vld [vmem:[%s273 + $0x188] sm:$0xff]
      %v329 = vld [vmem:[%s273 + $0x190] sm:$0xff]
      %v330 = vld [vmem:[%s273 + $0x198] sm:$0xff]
      %v331 = vld [vmem:[%s273 + $0x1a0] sm:$0xff]
      %v332 = vld [vmem:[%s273 + $0x1a8] sm:$0xff]
      %v333 = vld [vmem:[%s273 + $0x1b0] sm:$0xff]
      %v334 = vld [vmem:[%s273 + $0x1b8] sm:$0xff]
      %v335 = vld [vmem:[%s273 + $0x1c0] sm:$0xff]
      %v336 = vld [vmem:[%s273 + $0x1c8] sm:$0xff]
      %v337 = vld [vmem:[%s273 + $0x1d0] sm:$0xff]
      %v338 = vld [vmem:[%s273 + $0x1d8] sm:$0xff]
      %v339 = vld [vmem:[%s273 + $0x1e0] sm:$0xff]
      %v340 = vld [vmem:[%s273 + $0x1e8] sm:$0xff]
      %v341 = vld [vmem:[%s273 + $0x1f0] sm:$0xff]
      %v342 = vld [vmem:[%s273 + $0x1f8] sm:$0xff]
      %v343 = vld [vmem:[%s1] sm:$0xff]
      %v344 = vld [vmem:[%s1 + $0x8] sm:$0xff]
      %v345 = vld [vmem:[%s1 + $0x10] sm:$0xff]
      %v346 = vld [vmem:[%s1 + $0x18] sm:$0xff]
      %v347 = vld [vmem:[%s1 + $0x20] sm:$0xff]
      %v348 = vld [vmem:[%s1 + $0x28] sm:$0xff]
      %v349 = vld [vmem:[%s1 + $0x30] sm:$0xff]
      %v350 = vld [vmem:[%s1 + $0x38] sm:$0xff]
      %v351 = vld [vmem:[%s1 + $0x40] sm:$0xff]
      %v352 = vld [vmem:[%s1 + $0x48] sm:$0xff]
      %v353 = vld [vmem:[%s1 + $0x50] sm:$0xff]
      %v354 = vld [vmem:[%s1 + $0x58] sm:$0xff]
      %v355 = vld [vmem:[%s1 + $0x60] sm:$0xff]
      %v356 = vld [vmem:[%s1 + $0x68] sm:$0xff]
      %v357 = vld [vmem:[%s1 + $0x70] sm:$0xff]
      %v358 = vld [vmem:[%s1 + $0x78] sm:$0xff]
      %v359 = vld [vmem:[%s1 + $0x80] sm:$0xff]
      %v360 = vld [vmem:[%s1 + $0x88] sm:$0xff]
      %v361 = vld [vmem:[%s1 + $0x90] sm:$0xff]
      %v362 = vld [vmem:[%s1 + $0x98] sm:$0xff]
      %v363 = vld [vmem:[%s1 + $0xa0] sm:$0xff]
      %v364 = vld [vmem:[%s1 + $0xa8] sm:$0xff]
      %v365 = vld [vmem:[%s1 + $0xb0] sm:$0xff]
      %v366 = vld [vmem:[%s1 + $0xb8] sm:$0xff]
      %v367 = vld [vmem:[%s1 + $0xc0] sm:$0xff]
      %v368 = vld [vmem:[%s1 + $0xc8] sm:$0xff]
      %v369 = vld [vmem:[%s1 + $0xd0] sm:$0xff]
      %v370 = vld [vmem:[%s1 + $0xd8] sm:$0xff]
      %v371 = vld [vmem:[%s1 + $0xe0] sm:$0xff]
      %v372 = vld [vmem:[%s1 + $0xe8] sm:$0xff]
      %v373 = vld [vmem:[%s1 + $0xf0] sm:$0xff]
      %v374 = vld [vmem:[%s1 + $0xf8] sm:$0xff]
      %v375 = vld [vmem:[%s2] sm:$0x1]
      %v377 = vlaneseq
      %v378 = vshrl.u32 %v377, 7
      %v379 = vsub.s32 0, %v378
      %v380 = vrot.slane %v375, %v379
      %382 = vmatprep.subr.mxu0 0.0
      %383 = vmatpush1.msra.mxu0 %v358
      %384 = vmatprep.subr.mxu0 0.0
      %385 = vmatpush1.msra.mxu0 %v357
      %386 = vmatprep.subr.mxu0 0.0
      %387 = vmatpush1.msra.mxu0 %v356
      %388 = vmatprep.subr.mxu0 0.0
      %389 = vmatpush1.msra.mxu0 %v355
      %390 = vmatprep.subr.mxu0 0.0
      %391 = vmatpush1.msra.mxu0 %v354
      %392 = vmatprep.subr.mxu0 0.0
      %393 = vmatpush1.msra.mxu0 %v353
      %394 = vmatprep.subr.mxu0 0.0
      %395 = vmatpush1.msra.mxu0 %v352
      %396 = vmatprep.subr.mxu0 0.0
      %397 = vmatpush1.msra.mxu0 %v351
      %398 = vmatprep.subr.mxu0 0.0
      %399 = vmatpush1.msra.mxu0 %v350
      %400 = vmatprep.subr.mxu0 0.0
      %401 = vmatpush1.msra.mxu0 %v349
      %402 = vmatprep.subr.mxu0 0.0
      %403 = vmatpush1.msra.mxu0 %v348
      %404 = vmatprep.subr.mxu0 0.0
      %405 = vmatpush1.msra.mxu0 %v347
      %406 = vmatprep.subr.mxu0 0.0
      %407 = vmatpush1.msra.mxu0 %v346
      %408 = vmatprep.subr.mxu0 0.0
      %409 = vmatpush1.msra.mxu0 %v345
      %410 = vmatprep.subr.mxu0 0.0
      %411 = vmatpush1.msra.mxu0 %v344
      %412 = vmatprep.subr.mxu0 0.0
      %413 = vmatpush1.msra.mxu0 %v343
      %414 = vmatprep.subr.mxu0 0.0
      %415 = vmatpush2.msra.mxu0 %v374
      %416 = vmatprep.subr.mxu0 0.0
      %417 = vmatpush2.msra.mxu0 %v373
      %418 = vmatprep.subr.mxu0 0.0
      %419 = vmatpush2.msra.mxu0 %v372
      %420 = vmatprep.subr.mxu0 0.0
      %421 = vmatpush2.msra.mxu0 %v371
      %422 = vmatprep.subr.mxu0 0.0
      %423 = vmatpush2.msra.mxu0 %v370
      %424 = vmatprep.subr.mxu0 0.0
      %425 = vmatpush2.msra.mxu0 %v369
      %426 = vmatprep.subr.mxu0 0.0
      %427 = vmatpush2.msra.mxu0 %v368
      %428 = vmatprep.subr.mxu0 0.0
      %429 = vmatpush2.msra.mxu0 %v367
      %430 = vmatprep.subr.mxu0 0.0
      %431 = vmatpush2.msra.mxu0 %v366
      %432 = vmatprep.subr.mxu0 0.0
      %433 = vmatpush2.msra.mxu0 %v365
      %434 = vmatprep.subr.mxu0 0.0
      %435 = vmatpush2.msra.mxu0 %v364
      %436 = vmatprep.subr.mxu0 0.0
      %437 = vmatpush2.msra.mxu0 %v363
      %438 = vmatprep.subr.mxu0 0.0
      %439 = vmatpush2.msra.mxu0 %v362
      %440 = vmatprep.subr.mxu0 0.0
      %441 = vmatpush2.msra.mxu0 %v361
      %442 = vmatprep.subr.mxu0 0.0
      %443 = vmatpush2.msra.mxu0 %v360
      %444 = vmatprep.subr.mxu0 0.0
      %445 = vmatpush2.msra.mxu0 %v359
      %446 = vmatprep.mubr.f32.mxu0 %v280
      %447 = vmatmul.mubr.f32.gmra.mxu0 %v279
      %v448 = vpop.f32.mrf.mxu0
      %v449 = vadd.f32 %v380, %v448
      %v450 = vpop.f32.mrf.mxu0
      %451 = vmatprep.mubr.f32.mxu0 %v282
      %452 = vmatmul.mubr.f32.gmra.mxu0 %v281
      %v453 = vpop.f32.mrf.mxu0
      %v454 = vadd.f32 %v380, %v453
      %v455 = vpop.f32.mrf.mxu0
      %456 = vmatprep.mubr.f32.mxu0 %v284
      %457 = vmatmul.mubr.f32.gmra.mxu0 %v283
      %v458 = vpop.f32.mrf.mxu0
      %v459 = vadd.f32 %v380, %v458
      %v460 = vpop.f32.mrf.mxu0
      %461 = vmatprep.mubr.f32.mxu0 %v286
      %462 = vmatmul.mubr.f32.gmra.mxu0 %v285
      %v463 = vpop.f32.mrf.mxu0
      %v464 = vadd.f32 %v380, %v463
      %v465 = vpop.f32.mrf.mxu0
      %466 = vmatprep.mubr.f32.mxu0 %v288
      %467 = vmatmul.mubr.f32.gmra.mxu0 %v287
      %v468 = vpop.f32.mrf.mxu0
      %v469 = vadd.f32 %v380, %v468
      %v470 = vpop.f32.mrf.mxu0
      %471 = vmatprep.mubr.f32.mxu0 %v290
      %472 = vmatmul.mubr.f32.gmra.mxu0 %v289
      %v473 = vpop.f32.mrf.mxu0
      %v474 = vadd.f32 %v380, %v473
      %v475 = vpop.f32.mrf.mxu0
      %476 = vmatprep.mubr.f32.mxu0 %v292
      %477 = vmatmul.mubr.f32.gmra.mxu0 %v291
      %v478 = vpop.f32.mrf.mxu0
      %v479 = vadd.f32 %v380, %v478
      %v480 = vpop.f32.mrf.mxu0
      %481 = vmatprep.mubr.f32.mxu0 %v294
      %482 = vmatmul.mubr.f32.gmra.mxu0 %v293
      %v483 = vpop.f32.mrf.mxu0
      %v484 = vadd.f32 %v380, %v483
      %v485 = vpop.f32.mrf.mxu0
      %486 = vmatprep.mubr.f32.mxu0 %v296
      %487 = vmatmul.mubr.f32.gmra.mxu0 %v295
      %v488 = vpop.f32.mrf.mxu0
      %v489 = vadd.f32 %v380, %v488
      %v490 = vpop.f32.mrf.mxu0
      %491 = vmatprep.mubr.f32.mxu0 %v298
      %492 = vmatmul.mubr.f32.gmra.mxu0 %v297
      %v493 = vpop.f32.mrf.mxu0
      %v494 = vadd.f32 %v380, %v493
      %v495 = vpop.f32.mrf.mxu0
      %496 = vmatprep.mubr.f32.mxu0 %v300
      %497 = vmatmul.mubr.f32.gmra.mxu0 %v299
      %v498 = vpop.f32.mrf.mxu0
      %v499 = vadd.f32 %v380, %v498
      %v500 = vpop.f32.mrf.mxu0
      %501 = vmatprep.mubr.f32.mxu0 %v302
      %502 = vmatmul.mubr.f32.gmra.mxu0 %v301
      %v503 = vpop.f32.mrf.mxu0
      %v504 = vadd.f32 %v380, %v503
      %v505 = vpop.f32.mrf.mxu0
      %506 = vmatprep.mubr.f32.mxu0 %v304
      %507 = vmatmul.mubr.f32.gmra.mxu0 %v303
      %v508 = vpop.f32.mrf.mxu0
      %v509 = vadd.f32 %v380, %v508
      %v510 = vpop.f32.mrf.mxu0
      %511 = vmatprep.mubr.f32.mxu0 %v306
      %512 = vmatmul.mubr.f32.gmra.mxu0 %v305
      %v513 = vpop.f32.mrf.mxu0
      %v514 = vadd.f32 %v380, %v513
      %v515 = vpop.f32.mrf.mxu0
      %516 = vmatprep.mubr.f32.mxu0 %v308
      %517 = vmatmul.mubr.f32.gmra.mxu0 %v307
      %v518 = vpop.f32.mrf.mxu0
      %v519 = vadd.f32 %v380, %v518
      %v520 = vpop.f32.mrf.mxu0
      %521 = vmatprep.mubr.f32.mxu0 %v310
      %522 = vmatmul.mubr.f32.gmra.mxu0 %v309
      %v523 = vpop.f32.mrf.mxu0
      %v524 = vadd.f32 %v380, %v523
      %v525 = vpop.f32.mrf.mxu0
      %526 = vmatprep.mubr.f32.mxu0 %v312
      %527 = vmatmul.mubr.f32.gmra.mxu0 %v311
      %v528 = vpop.f32.mrf.mxu0
      %v529 = vadd.f32 %v380, %v528
      %v530 = vpop.f32.mrf.mxu0
      %531 = vmatprep.mubr.f32.mxu0 %v314
      %532 = vmatmul.mubr.f32.gmra.mxu0 %v313
      %v533 = vpop.f32.mrf.mxu0
      %v534 = vadd.f32 %v380, %v533
      %v535 = vpop.f32.mrf.mxu0
      %536 = vmatprep.mubr.f32.mxu0 %v316
      %537 = vmatmul.mubr.f32.gmra.mxu0 %v315
      %v538 = vpop.f32.mrf.mxu0
      %v539 = vadd.f32 %v380, %v538
      %v540 = vpop.f32.mrf.mxu0
      %541 = vmatprep.mubr.f32.mxu0 %v318
      %542 = vmatmul.mubr.f32.gmra.mxu0 %v317
      %v543 = vpop.f32.mrf.mxu0
      %v544 = vadd.f32 %v380, %v543
      %v545 = vpop.f32.mrf.mxu0
      %546 = vmatprep.mubr.f32.mxu0 %v320
      %547 = vmatmul.mubr.f32.gmra.mxu0 %v319
      %v548 = vpop.f32.mrf.mxu0
      %v549 = vadd.f32 %v380, %v548
      %v550 = vpop.f32.mrf.mxu0
      %551 = vmatprep.mubr.f32.mxu0 %v322
      %552 = vmatmul.mubr.f32.gmra.mxu0 %v321
      %v553 = vpop.f32.mrf.mxu0
      %v554 = vadd.f32 %v380, %v553
      %v555 = vpop.f32.mrf.mxu0
      %556 = vmatprep.mubr.f32.mxu0 %v324
      %557 = vmatmul.mubr.f32.gmra.mxu0 %v323
      %v558 = vpop.f32.mrf.mxu0
      %v559 = vadd.f32 %v380, %v558
      %v560 = vpop.f32.mrf.mxu0
      %561 = vmatprep.mubr.f32.mxu0 %v326
      %562 = vmatmul.mubr.f32.gmra.mxu0 %v325
      %v563 = vpop.f32.mrf.mxu0
      %v564 = vadd.f32 %v380, %v563
      %v565 = vpop.f32.mrf.mxu0
      %566 = vmatprep.mubr.f32.mxu0 %v328
      %567 = vmatmul.mubr.f32.gmra.mxu0 %v327
      %v568 = vpop.f32.mrf.mxu0
      %v569 = vadd.f32 %v380, %v568
      %v570 = vpop.f32.mrf.mxu0
      %571 = vmatprep.mubr.f32.mxu0 %v330
      %572 = vmatmul.mubr.f32.gmra.mxu0 %v329
      %v573 = vpop.f32.mrf.mxu0
      %v574 = vadd.f32 %v380, %v573
      %v575 = vpop.f32.mrf.mxu0
      %576 = vmatprep.mubr.f32.mxu0 %v332
      %577 = vmatmul.mubr.f32.gmra.mxu0 %v331
      %v578 = vpop.f32.mrf.mxu0
      %v579 = vadd.f32 %v380, %v578
      %v580 = vpop.f32.mrf.mxu0
      %581 = vmatprep.mubr.f32.mxu0 %v334
      %582 = vmatmul.mubr.f32.gmra.mxu0 %v333
      %v583 = vpop.f32.mrf.mxu0
      %v584 = vadd.f32 %v380, %v583
      %v585 = vpop.f32.mrf.mxu0
      %586 = vmatprep.mubr.f32.mxu0 %v336
      %587 = vmatmul.mubr.f32.gmra.mxu0 %v335
      %v588 = vpop.f32.mrf.mxu0
      %v589 = vadd.f32 %v380, %v588
      %v590 = vpop.f32.mrf.mxu0
      %591 = vmatprep.mubr.f32.mxu0 %v338
      %592 = vmatmul.mubr.f32.gmra.mxu0 %v337
      %v593 = vpop.f32.mrf.mxu0
      %v594 = vadd.f32 %v380, %v593
      %v595 = vpop.f32.mrf.mxu0
      %596 = vmatprep.mubr.f32.mxu0 %v340
      %597 = vmatmul.mubr.f32.gmra.mxu0 %v339
      %v598 = vpop.f32.mrf.mxu0
      %v599 = vadd.f32 %v380, %v598
      %v600 = vpop.f32.mrf.mxu0
      %601 = vmatprep.mubr.f32.mxu0 %v342
      %602 = vmatmul.mubr.f32.gmra.mxu0 %v341
      %v603 = vpop.f32.mrf.mxu0
      %v604 = vadd.f32 %v380, %v603
      %v605 = vpop.f32.mrf.mxu0
      %606 = vdwg.mxu0
      %v607 = vmax.f32 %v449, 0.0
      %v608 = vmax.f32 %v454, 0.0
      %v609 = vmax.f32 %v459, 0.0
      %v610 = vmax.f32 %v464, 0.0
      %v611 = vmax.f32 %v469, 0.0
      %v612 = vmax.f32 %v474, 0.0
      %v613 = vmax.f32 %v479, 0.0
      %v614 = vmax.f32 %v484, 0.0
      %v615 = vmax.f32 %v489, 0.0
      %v616 = vmax.f32 %v494, 0.0
      %v617 = vmax.f32 %v499, 0.0
      %v618 = vmax.f32 %v504, 0.0
      %v619 = vmax.f32 %v509, 0.0
      %v620 = vmax.f32 %v514, 0.0
      %v621 = vmax.f32 %v519, 0.0
      %v622 = vmax.f32 %v524, 0.0
      %v623 = vmax.f32 %v529, 0.0
      %v624 = vmax.f32 %v534, 0.0
      %v625 = vmax.f32 %v539, 0.0
      %v626 = vmax.f32 %v544, 0.0
      %v627 = vmax.f32 %v549, 0.0
      %v628 = vmax.f32 %v554, 0.0
      %v629 = vmax.f32 %v559, 0.0
      %v630 = vmax.f32 %v564, 0.0
      %v631 = vmax.f32 %v569, 0.0
      %v632 = vmax.f32 %v574, 0.0
      %v633 = vmax.f32 %v579, 0.0
      %v634 = vmax.f32 %v584, 0.0
      %v635 = vmax.f32 %v589, 0.0
      %v636 = vmax.f32 %v594, 0.0
      %v637 = vmax.f32 %v599, 0.0
      %v638 = vmax.f32 %v604, 0.0
      %v639 = vld [vmem:[%s3] sm:$0xff]
      %v640 = vld [vmem:[%s3 + $0x8] sm:$0xff]
      %v641 = vld [vmem:[%s3 + $0x10] sm:$0xff]
      %v642 = vld [vmem:[%s3 + $0x18] sm:$0xff]
      %v643 = vld [vmem:[%s3 + $0x20] sm:$0xff]
      %v644 = vld [vmem:[%s3 + $0x28] sm:$0xff]
      %v645 = vld [vmem:[%s3 + $0x30] sm:$0xff]
      %v646 = vld [vmem:[%s3 + $0x38] sm:$0xff]
      %v647 = vld [vmem:[%s4] sm:$0x1]
      %v649 = vlaneseq
      %v650 = vshrl.u32 %v649, 7
      %v651 = vsub.s32 0, %v650
      %v652 = vrot.slane %v647, %v651
      %vm654 = vcmask 523264
      %v656 = vsel %vm654, %v607, 0
      %v659 = vsel %vm654, %v608, 0
      %v662 = vsel %vm654, %v609, 0
      %v665 = vsel %vm654, %v610, 0
      %v668 = vsel %vm654, %v611, 0
      %v671 = vsel %vm654, %v612, 0
      %v674 = vsel %vm654, %v613, 0
      %v677 = vsel %vm654, %v614, 0
      %v680 = vsel %vm654, %v615, 0
      %v683 = vsel %vm654, %v616, 0
      %v686 = vsel %vm654, %v617, 0
      %v689 = vsel %vm654, %v618, 0
      %v692 = vsel %vm654, %v619, 0
      %v695 = vsel %vm654, %v620, 0
      %v698 = vsel %vm654, %v621, 0
      %v701 = vsel %vm654, %v622, 0
      %v704 = vsel %vm654, %v623, 0
      %v707 = vsel %vm654, %v624, 0
      %v710 = vsel %vm654, %v625, 0
      %v713 = vsel %vm654, %v626, 0
      %v716 = vsel %vm654, %v627, 0
      %v719 = vsel %vm654, %v628, 0
      %v722 = vsel %vm654, %v629, 0
      %v725 = vsel %vm654, %v630, 0
      %v728 = vsel %vm654, %v631, 0
      %v731 = vsel %vm654, %v632, 0
      %v734 = vsel %vm654, %v633, 0
      %v737 = vsel %vm654, %v634, 0
      %v740 = vsel %vm654, %v635, 0
      %v743 = vsel %vm654, %v636, 0
      %v746 = vsel %vm654, %v637, 0
      %v749 = vsel %vm654, %v638, 0
      %751 = vmatprep.subr.mxu0 0.0
      %752 = vmatpush1.msra.mxu0 0.0
      %753 = vmatprep.subr.mxu0 0.0
      %754 = vmatpush1.msra.mxu0 0.0
      %755 = vmatprep.subr.mxu0 0.0
      %756 = vmatpush1.msra.mxu0 0.0
      %757 = vmatprep.subr.mxu0 0.0
      %758 = vmatpush1.msra.mxu0 0.0
      %759 = vmatprep.subr.mxu0 0.0
      %760 = vmatpush1.msra.mxu0 0.0
      %761 = vmatprep.subr.mxu0 0.0
      %762 = vmatpush1.msra.mxu0 0.0
      %763 = vmatprep.subr.mxu0 0.0
      %764 = vmatpush1.msra.mxu0 0.0
      %765 = vmatprep.subr.mxu0 0.0
      %766 = vmatpush1.msra.mxu0 0.0
      %767 = vmatprep.subr.mxu0 0.0
      %768 = vmatpush1.msra.mxu0 %v646
      %769 = vmatprep.subr.mxu0 0.0
      %770 = vmatpush1.msra.mxu0 %v645
      %771 = vmatprep.subr.mxu0 0.0
      %772 = vmatpush1.msra.mxu0 %v644
      %773 = vmatprep.subr.mxu0 0.0
      %774 = vmatpush1.msra.mxu0 %v643
      %775 = vmatprep.subr.mxu0 0.0
      %776 = vmatpush1.msra.mxu0 %v642
      %777 = vmatprep.subr.mxu0 0.0
      %778 = vmatpush1.msra.mxu0 %v641
      %779 = vmatprep.subr.mxu0 0.0
      %780 = vmatpush1.msra.mxu0 %v640
      %781 = vmatprep.subr.mxu0 0.0
      %782 = vmatpush1.msra.mxu0 %v639
      %783 = vmatprep.subr.mxu0 0.0
      %784 = vmatpush2.msra.mxu0 0.0
      %785 = vmatprep.subr.mxu0 0.0
      %786 = vmatpush2.msra.mxu0 0.0
      %787 = vmatprep.subr.mxu0 0.0
      %788 = vmatpush2.msra.mxu0 0.0
      %789 = vmatprep.subr.mxu0 0.0
      %790 = vmatpush2.msra.mxu0 0.0
      %791 = vmatprep.subr.mxu0 0.0
      %792 = vmatpush2.msra.mxu0 0.0
      %793 = vmatprep.subr.mxu0 0.0
      %794 = vmatpush2.msra.mxu0 0.0
      %795 = vmatprep.subr.mxu0 0.0
      %796 = vmatpush2.msra.mxu0 0.0
      %797 = vmatprep.subr.mxu0 0.0
      %798 = vmatpush2.msra.mxu0 0.0
      %799 = vmatprep.subr.mxu0 0.0
      %800 = vmatpush2.msra.mxu0 0.0
      %801 = vmatprep.subr.mxu0 0.0
      %802 = vmatpush2.msra.mxu0 0.0
      %803 = vmatprep.subr.mxu0 0.0
      %804 = vmatpush2.msra.mxu0 0.0
      %805 = vmatprep.subr.mxu0 0.0
      %806 = vmatpush2.msra.mxu0 0.0
      %807 = vmatprep.subr.mxu0 0.0
      %808 = vmatpush2.msra.mxu0 0.0
      %809 = vmatprep.subr.mxu0 0.0
      %810 = vmatpush2.msra.mxu0 0.0
      %811 = vmatprep.subr.mxu0 0.0
      %812 = vmatpush2.msra.mxu0 0.0
      %813 = vmatprep.subr.mxu0 0.0
      %814 = vmatpush2.msra.mxu0 0.0
      %815 = vmatprep.mubr.f32.mxu0 0.0
      %816 = vmatmul.mubr.f32.gmra.mxu0 %v656
      %v817 = vpop.f32.mrf.mxu0
      %v818 = vadd.f32 %v652, %v817
      %v819 = vpop.f32.mrf.mxu0
      %820 = vmatprep.mubr.f32.mxu0 0.0
      %821 = vmatmul.mubr.f32.gmra.mxu0 %v659
      %v822 = vpop.f32.mrf.mxu0
      %v823 = vadd.f32 %v652, %v822
      %v824 = vpop.f32.mrf.mxu0
      %825 = vmatprep.mubr.f32.mxu0 0.0
      %826 = vmatmul.mubr.f32.gmra.mxu0 %v662
      %v827 = vpop.f32.mrf.mxu0
      %v828 = vadd.f32 %v652, %v827
      %v829 = vpop.f32.mrf.mxu0
      %830 = vmatprep.mubr.f32.mxu0 0.0
      %831 = vmatmul.mubr.f32.gmra.mxu0 %v665
      %v832 = vpop.f32.mrf.mxu0
      %v833 = vadd.f32 %v652, %v832
      %v834 = vpop.f32.mrf.mxu0
      %835 = vmatprep.mubr.f32.mxu0 0.0
      %836 = vmatmul.mubr.f32.gmra.mxu0 %v668
      %v837 = vpop.f32.mrf.mxu0
      %v838 = vadd.f32 %v652, %v837
      %v839 = vpop.f32.mrf.mxu0
      %840 = vmatprep.mubr.f32.mxu0 0.0
      %841 = vmatmul.mubr.f32.gmra.mxu0 %v671
      %v842 = vpop.f32.mrf.mxu0
      %v843 = vadd.f32 %v652, %v842
      %v844 = vpop.f32.mrf.mxu0
      %845 = vmatprep.mubr.f32.mxu0 0.0
      %846 = vmatmul.mubr.f32.gmra.mxu0 %v674
      %v847 = vpop.f32.mrf.mxu0
      %v848 = vadd.f32 %v652, %v847
      %v849 = vpop.f32.mrf.mxu0
      %850 = vmatprep.mubr.f32.mxu0 0.0
      %851 = vmatmul.mubr.f32.gmra.mxu0 %v677
      %v852 = vpop.f32.mrf.mxu0
      %v853 = vadd.f32 %v652, %v852
      %v854 = vpop.f32.mrf.mxu0
      %855 = vmatprep.mubr.f32.mxu0 0.0
      %856 = vmatmul.mubr.f32.gmra.mxu0 %v680
      %v857 = vpop.f32.mrf.mxu0
      %v858 = vadd.f32 %v652, %v857
      %v859 = vpop.f32.mrf.mxu0
      %860 = vmatprep.mubr.f32.mxu0 0.0
      %861 = vmatmul.mubr.f32.gmra.mxu0 %v683
      %v862 = vpop.f32.mrf.mxu0
      %v863 = vadd.f32 %v652, %v862
      %v864 = vpop.f32.mrf.mxu0
      %865 = vmatprep.mubr.f32.mxu0 0.0
      %866 = vmatmul.mubr.f32.gmra.mxu0 %v686
      %v867 = vpop.f32.mrf.mxu0
      %v868 = vadd.f32 %v652, %v867
      %v869 = vpop.f32.mrf.mxu0
      %870 = vmatprep.mubr.f32.mxu0 0.0
      %871 = vmatmul.mubr.f32.gmra.mxu0 %v689
      %v872 = vpop.f32.mrf.mxu0
      %v873 = vadd.f32 %v652, %v872
      %v874 = vpop.f32.mrf.mxu0
      %875 = vmatprep.mubr.f32.mxu0 0.0
      %876 = vmatmul.mubr.f32.gmra.mxu0 %v692
      %v877 = vpop.f32.mrf.mxu0
      %v878 = vadd.f32 %v652, %v877
      %v879 = vpop.f32.mrf.mxu0
      %880 = vmatprep.mubr.f32.mxu0 0.0
      %881 = vmatmul.mubr.f32.gmra.mxu0 %v695
      %v882 = vpop.f32.mrf.mxu0
      %v883 = vadd.f32 %v652, %v882
      %v884 = vpop.f32.mrf.mxu0
      %885 = vmatprep.mubr.f32.mxu0 0.0
      %886 = vmatmul.mubr.f32.gmra.mxu0 %v698
      %v887 = vpop.f32.mrf.mxu0
      %v888 = vadd.f32 %v652, %v887
      %v889 = vpop.f32.mrf.mxu0
      %890 = vmatprep.mubr.f32.mxu0 0.0
      %891 = vmatmul.mubr.f32.gmra.mxu0 %v701
      %v892 = vpop.f32.mrf.mxu0
      %v893 = vadd.f32 %v652, %v892
      %v894 = vpop.f32.mrf.mxu0
      %895 = vmatprep.mubr.f32.mxu0 0.0
      %896 = vmatmul.mubr.f32.gmra.mxu0 %v704
      %v897 = vpop.f32.mrf.mxu0
      %v898 = vadd.f32 %v652, %v897
      %v899 = vpop.f32.mrf.mxu0
      %900 = vmatprep.mubr.f32.mxu0 0.0
      %901 = vmatmul.mubr.f32.gmra.mxu0 %v707
      %v902 = vpop.f32.mrf.mxu0
      %v903 = vadd.f32 %v652, %v902
      %v904 = vpop.f32.mrf.mxu0
      %905 = vmatprep.mubr.f32.mxu0 0.0
      %906 = vmatmul.mubr.f32.gmra.mxu0 %v710
      %v907 = vpop.f32.mrf.mxu0
      %v908 = vadd.f32 %v652, %v907
      %v909 = vpop.f32.mrf.mxu0
      %910 = vmatprep.mubr.f32.mxu0 0.0
      %911 = vmatmul.mubr.f32.gmra.mxu0 %v713
      %v912 = vpop.f32.mrf.mxu0
      %v913 = vadd.f32 %v652, %v912
      %v914 = vpop.f32.mrf.mxu0
      %915 = vmatprep.mubr.f32.mxu0 0.0
      %916 = vmatmul.mubr.f32.gmra.mxu0 %v716
      %v917 = vpop.f32.mrf.mxu0
      %v918 = vadd.f32 %v652, %v917
      %v919 = vpop.f32.mrf.mxu0
      %920 = vmatprep.mubr.f32.mxu0 0.0
      %921 = vmatmul.mubr.f32.gmra.mxu0 %v719
      %v922 = vpop.f32.mrf.mxu0
      %v923 = vadd.f32 %v652, %v922
      %v924 = vpop.f32.mrf.mxu0
      %925 = vmatprep.mubr.f32.mxu0 0.0
      %926 = vmatmul.mubr.f32.gmra.mxu0 %v722
      %v927 = vpop.f32.mrf.mxu0
      %v928 = vadd.f32 %v652, %v927
      %v929 = vpop.f32.mrf.mxu0
      %930 = vmatprep.mubr.f32.mxu0 0.0
      %931 = vmatmul.mubr.f32.gmra.mxu0 %v725
      %v932 = vpop.f32.mrf.mxu0
      %v933 = vadd.f32 %v652, %v932
      %v934 = vpop.f32.mrf.mxu0
      %935 = vmatprep.mubr.f32.mxu0 0.0
      %936 = vmatmul.mubr.f32.gmra.mxu0 %v728
      %v937 = vpop.f32.mrf.mxu0
      %v938 = vadd.f32 %v652, %v937
      %v939 = vpop.f32.mrf.mxu0
      %940 = vmatprep.mubr.f32.mxu0 0.0
      %941 = vmatmul.mubr.f32.gmra.mxu0 %v731
      %v942 = vpop.f32.mrf.mxu0
      %v943 = vadd.f32 %v652, %v942
      %v944 = vpop.f32.mrf.mxu0
      %945 = vmatprep.mubr.f32.mxu0 0.0
      %946 = vmatmul.mubr.f32.gmra.mxu0 %v734
      %v947 = vpop.f32.mrf.mxu0
      %v948 = vadd.f32 %v652, %v947
      %v949 = vpop.f32.mrf.mxu0
      %950 = vmatprep.mubr.f32.mxu0 0.0
      %951 = vmatmul.mubr.f32.gmra.mxu0 %v737
      %v952 = vpop.f32.mrf.mxu0
      %v953 = vadd.f32 %v652, %v952
      %v954 = vpop.f32.mrf.mxu0
      %955 = vmatprep.mubr.f32.mxu0 0.0
      %956 = vmatmul.mubr.f32.gmra.mxu0 %v740
      %v957 = vpop.f32.mrf.mxu0
      %v958 = vadd.f32 %v652, %v957
      %v959 = vpop.f32.mrf.mxu0
      %960 = vmatprep.mubr.f32.mxu0 0.0
      %961 = vmatmul.mubr.f32.gmra.mxu0 %v743
      %v962 = vpop.f32.mrf.mxu0
      %v963 = vadd.f32 %v652, %v962
      %v964 = vpop.f32.mrf.mxu0
      %965 = vmatprep.mubr.f32.mxu0 0.0
      %966 = vmatmul.mubr.f32.gmra.mxu0 %v746
      %v967 = vpop.f32.mrf.mxu0
      %v968 = vadd.f32 %v652, %v967
      %v969 = vpop.f32.mrf.mxu0
      %970 = vmatprep.mubr.f32.mxu0 0.0
      %971 = vmatmul.mubr.f32.gmra.mxu0 %v749
      %v972 = vpop.f32.mrf.mxu0
      %v973 = vadd.f32 %v652, %v972
      %v974 = vpop.f32.mrf.mxu0
      %975 = vdwg.mxu0
      %v976 = vmax.f32 %v818, 0.0
      %v977 = vmax.f32 %v823, 0.0
      %v978 = vmax.f32 %v828, 0.0
      %v979 = vmax.f32 %v833, 0.0
      %v980 = vmax.f32 %v838, 0.0
      %v981 = vmax.f32 %v843, 0.0
      %v982 = vmax.f32 %v848, 0.0
      %v983 = vmax.f32 %v853, 0.0
      %v984 = vmax.f32 %v858, 0.0
      %v985 = vmax.f32 %v863, 0.0
      %v986 = vmax.f32 %v868, 0.0
      %v987 = vmax.f32 %v873, 0.0
      %v988 = vmax.f32 %v878, 0.0
      %v989 = vmax.f32 %v883, 0.0
      %v990 = vmax.f32 %v888, 0.0
      %v991 = vmax.f32 %v893, 0.0
      %v992 = vmax.f32 %v898, 0.0
      %v993 = vmax.f32 %v903, 0.0
      %v994 = vmax.f32 %v908, 0.0
      %v995 = vmax.f32 %v913, 0.0
      %v996 = vmax.f32 %v918, 0.0
      %v997 = vmax.f32 %v923, 0.0
      %v998 = vmax.f32 %v928, 0.0
      %v999 = vmax.f32 %v933, 0.0
      %v1000 = vmax.f32 %v938, 0.0
      %v1001 = vmax.f32 %v943, 0.0
      %v1002 = vmax.f32 %v948, 0.0
      %v1003 = vmax.f32 %v953, 0.0
      %v1004 = vmax.f32 %v958, 0.0
      %v1005 = vmax.f32 %v963, 0.0
      %v1006 = vmax.f32 %v968, 0.0
      %v1007 = vmax.f32 %v973, 0.0
      %s1008 = scalar_lea.vmem [#allocation2], 48
      %vm1009 = vcmask 261120
      %1010 = vst.msk [vmem:[%s1008 + $0x2] sm:$0xff] %vm1009, %v976
      %1011 = vst.msk [vmem:[%s1008 + $0xa] sm:$0xff] %vm1009, %v977
      %1012 = vst.msk [vmem:[%s1008 + $0x1a] sm:$0xff] %vm1009, %v978
      %1013 = vst.msk [vmem:[%s1008 + $0x22] sm:$0xff] %vm1009, %v979
      %1014 = vst.msk [vmem:[%s1008 + $0x32] sm:$0xff] %vm1009, %v980
      %1015 = vst.msk [vmem:[%s1008 + $0x3a] sm:$0xff] %vm1009, %v981
      %1016 = vst.msk [vmem:[%s1008 + $0x4a] sm:$0xff] %vm1009, %v982
      %1017 = vst.msk [vmem:[%s1008 + $0x52] sm:$0xff] %vm1009, %v983
      %1018 = vst.msk [vmem:[%s1008 + $0x62] sm:$0xff] %vm1009, %v984
      %1019 = vst.msk [vmem:[%s1008 + $0x6a] sm:$0xff] %vm1009, %v985
      %1020 = vst.msk [vmem:[%s1008 + $0x7a] sm:$0xff] %vm1009, %v986
      %1021 = vst.msk [vmem:[%s1008 + $0x82] sm:$0xff] %vm1009, %v987
      %1022 = vst.msk [vmem:[%s1008 + $0x92] sm:$0xff] %vm1009, %v988
      %1023 = vst.msk [vmem:[%s1008 + $0x9a] sm:$0xff] %vm1009, %v989
      %1024 = vst.msk [vmem:[%s1008 + $0xaa] sm:$0xff] %vm1009, %v990
      %1025 = vst.msk [vmem:[%s1008 + $0xb2] sm:$0xff] %vm1009, %v991
      %1026 = vst.msk [vmem:[%s1008 + $0xc2] sm:$0xff] %vm1009, %v992
      %1027 = vst.msk [vmem:[%s1008 + $0xca] sm:$0xff] %vm1009, %v993
      %1028 = vst.msk [vmem:[%s1008 + $0xda] sm:$0xff] %vm1009, %v994
      %1029 = vst.msk [vmem:[%s1008 + $0xe2] sm:$0xff] %vm1009, %v995
      %1030 = vst.msk [vmem:[%s1008 + $0xf2] sm:$0xff] %vm1009, %v996
      %1031 = vst.msk [vmem:[%s1008 + $0xfa] sm:$0xff] %vm1009, %v997
      %1032 = vst.msk [vmem:[%s1008 + $0x10a] sm:$0xff] %vm1009, %v998
      %1033 = vst.msk [vmem:[%s1008 + $0x112] sm:$0xff] %vm1009, %v999
      %1034 = vst.msk [vmem:[%s1008 + $0x122] sm:$0xff] %vm1009, %v1000
      %1035 = vst.msk [vmem:[%s1008 + $0x12a] sm:$0xff] %vm1009, %v1001
      %1036 = vst.msk [vmem:[%s1008 + $0x13a] sm:$0xff] %vm1009, %v1002
      %1037 = vst.msk [vmem:[%s1008 + $0x142] sm:$0xff] %vm1009, %v1003
      %1038 = vst.msk [vmem:[%s1008 + $0x152] sm:$0xff] %vm1009, %v1004
      %1039 = vst.msk [vmem:[%s1008 + $0x15a] sm:$0xff] %vm1009, %v1005
      %1040 = vst.msk [vmem:[%s1008 + $0x16a] sm:$0xff] %vm1009, %v1006
      %1041 = vst.msk [vmem:[%s1008 + $0x172] sm:$0xff] %vm1009, %v1007
      %1042 = vst.msk [vmem:[#allocation2 + $0x2] sm:$0xff] %vm1009, %v976
      %1043 = vst.msk [vmem:[#allocation2 + $0xa] sm:$0xff] %vm1009, %v977
      %s1044 = scalar_lea.vmem [#allocation2], 432
      %1045 = vst.msk [vmem:[%s1044 + $0x2] sm:$0xff] %vm1009, %v1006
      %1046 = vst.msk [vmem:[%s1044 + $0xa] sm:$0xff] %vm1009, %v1007
      %s1047 = scalar_lea.vmem [#allocation2], 24
      %1048 = vst.msk [vmem:[%s1047 + $0x2] sm:$0xff] %vm1009, %v976
      %1049 = vst.msk [vmem:[%s1047 + $0xa] sm:$0xff] %vm1009, %v977
      %s1050 = scalar_lea.vmem [#allocation2], 456
      %1051 = vst.msk [vmem:[%s1050 + $0x2] sm:$0xff] %vm1009, %v1006
      %1052 = vst.msk [vmem:[%s1050 + $0xa] sm:$0xff] %vm1009, %v1007
      %v1053 = vld [vmem:[#allocation2 + $0x2] sm:$0x1]
      %v1054 = vld [vmem:[#allocation2 + $0x1a] sm:$0x1]
      %v1055 = vld [vmem:[#allocation2 + $0x32] sm:$0x1]
      %v1056 = vld [vmem:[#allocation2 + $0x4a] sm:$0x1]
      %v1057 = vld [vmem:[#allocation2 + $0x62] sm:$0x1]
      %v1058 = vld [vmem:[#allocation2 + $0x7a] sm:$0x1]
      %v1059 = vld [vmem:[#allocation2 + $0x92] sm:$0x1]
      %v1060 = vld [vmem:[#allocation2 + $0xaa] sm:$0x1]
      %v1061 = vld [vmem:[#allocation2 + $0xc2] sm:$0x1]
      %v1062 = vld [vmem:[#allocation2 + $0xda] sm:$0x1]
      %v1063 = vld [vmem:[#allocation2 + $0xf2] sm:$0x1]
      %v1064 = vld [vmem:[#allocation2 + $0x10a] sm:$0x1]
      %v1065 = vld [vmem:[#allocation2 + $0x122] sm:$0x1]
      %v1066 = vld [vmem:[#allocation2 + $0x13a] sm:$0x1]
      %v1067 = vld [vmem:[#allocation2 + $0x152] sm:$0x1]
      %v1068 = vld [vmem:[#allocation2 + $0x16a] sm:$0x1]
      %v1069 = vld [vmem:[#allocation2 + $0x182] sm:$0x1]
      %v1070 = vld [vmem:[#allocation2 + $0x19a] sm:$0x1]
      %v1071 = vld [vmem:[#allocation2 + $0x1b2] sm:$0x1]
      %v1072 = vld [vmem:[#allocation2 + $0x1ca] sm:$0x1]
      %v1073 = vld [vmem:[#allocation2 + $0x11] sm:$0x1]
      %v1074 = vld [vmem:[#allocation2 + $0x29] sm:$0x1]
      %v1075 = vld [vmem:[#allocation2 + $0x41] sm:$0x1]
      %v1076 = vld [vmem:[#allocation2 + $0x59] sm:$0x1]
      %v1077 = vld [vmem:[#allocation2 + $0x71] sm:$0x1]
      %v1078 = vld [vmem:[#allocation2 + $0x89] sm:$0x1]
      %v1079 = vld [vmem:[#allocation2 + $0xa1] sm:$0x1]
      %v1080 = vld [vmem:[#allocation2 + $0xb9] sm:$0x1]
      %v1081 = vld [vmem:[#allocation2 + $0xd1] sm:$0x1]
      %v1082 = vld [vmem:[#allocation2 + $0xe9] sm:$0x1]
      %v1083 = vld [vmem:[#allocation2 + $0x101] sm:$0x1]
      %v1084 = vld [vmem:[#allocation2 + $0x119] sm:$0x1]
      %v1085 = vld [vmem:[#allocation2 + $0x131] sm:$0x1]
      %v1086 = vld [vmem:[#allocation2 + $0x149] sm:$0x1]
      %v1087 = vld [vmem:[#allocation2 + $0x161] sm:$0x1]
      %v1088 = vld [vmem:[#allocation2 + $0x179] sm:$0x1]
      %v1089 = vld [vmem:[#allocation2 + $0x191] sm:$0x1]
      %v1090 = vld [vmem:[#allocation2 + $0x1a9] sm:$0x1]
      %v1091 = vld [vmem:[#allocation2 + $0x1c1] sm:$0x1]
      %v1092 = vld [vmem:[#allocation2 + $0x1d9] sm:$0x1]
      %vm1093 = vcmask 253952
      %1094 = vst.msk [vmem:[#allocation2] sm:$0x1] %vm1093, %v1053
      %1095 = vst.msk [vmem:[#allocation2 + $0x18] sm:$0x1] %vm1093, %v1054
      %1096 = vst.msk [vmem:[#allocation2 + $0x30] sm:$0x1] %vm1093, %v1055
      %1097 = vst.msk [vmem:[#allocation2 + $0x48] sm:$0x1] %vm1093, %v1056
      %1098 = vst.msk [vmem:[#allocation2 + $0x60] sm:$0x1] %vm1093, %v1057
      %1099 = vst.msk [vmem:[#allocation2 + $0x78] sm:$0x1] %vm1093, %v1058
      %1100 = vst.msk [vmem:[#allocation2 + $0x90] sm:$0x1] %vm1093, %v1059
      %1101 = vst.msk [vmem:[#allocation2 + $0xa8] sm:$0x1] %vm1093, %v1060
      %1102 = vst.msk [vmem:[#allocation2 + $0xc0] sm:$0x1] %vm1093, %v1061
      %1103 = vst.msk [vmem:[#allocation2 + $0xd8] sm:$0x1] %vm1093, %v1062
      %1104 = vst.msk [vmem:[#allocation2 + $0xf0] sm:$0x1] %vm1093, %v1063
      %1105 = vst.msk [vmem:[#allocation2 + $0x108] sm:$0x1] %vm1093, %v1064
      %1106 = vst.msk [vmem:[#allocation2 + $0x120] sm:$0x1] %vm1093, %v1065
      %1107 = vst.msk [vmem:[#allocation2 + $0x138] sm:$0x1] %vm1093, %v1066
      %1108 = vst.msk [vmem:[#allocation2 + $0x150] sm:$0x1] %vm1093, %v1067
      %1109 = vst.msk [vmem:[#allocation2 + $0x168] sm:$0x1] %vm1093, %v1068
      %1110 = vst.msk [vmem:[#allocation2 + $0x180] sm:$0x1] %vm1093, %v1069
      %1111 = vst.msk [vmem:[#allocation2 + $0x198] sm:$0x1] %vm1093, %v1070
      %1112 = vst.msk [vmem:[#allocation2 + $0x1b0] sm:$0x1] %vm1093, %v1071
      %1113 = vst.msk [vmem:[#allocation2 + $0x1c8] sm:$0x1] %vm1093, %v1072
      %1114 = vst.msk [vmem:[#allocation2 + $0x12] sm:$0x1] %vm1093, %v1073
      %1115 = vst.msk [vmem:[#allocation2 + $0x2a] sm:$0x1] %vm1093, %v1074
      %1116 = vst.msk [vmem:[#allocation2 + $0x42] sm:$0x1] %vm1093, %v1075
      %1117 = vst.msk [vmem:[#allocation2 + $0x5a] sm:$0x1] %vm1093, %v1076
      %1118 = vst.msk [vmem:[#allocation2 + $0x72] sm:$0x1] %vm1093, %v1077
      %1119 = vst.msk [vmem:[#allocation2 + $0x8a] sm:$0x1] %vm1093, %v1078
      %1120 = vst.msk [vmem:[#allocation2 + $0xa2] sm:$0x1] %vm1093, %v1079
      %1121 = vst.msk [vmem:[#allocation2 + $0xba] sm:$0x1] %vm1093, %v1080
      %1122 = vst.msk [vmem:[#allocation2 + $0xd2] sm:$0x1] %vm1093, %v1081
      %1123 = vst.msk [vmem:[#allocation2 + $0xea] sm:$0x1] %vm1093, %v1082
      %1124 = vst.msk [vmem:[#allocation2 + $0x102] sm:$0x1] %vm1093, %v1083
      %1125 = vst.msk [vmem:[#allocation2 + $0x11a] sm:$0x1] %vm1093, %v1084
      %1126 = vst.msk [vmem:[#allocation2 + $0x132] sm:$0x1] %vm1093, %v1085
      %1127 = vst.msk [vmem:[#allocation2 + $0x14a] sm:$0x1] %vm1093, %v1086
      %1128 = vst.msk [vmem:[#allocation2 + $0x162] sm:$0x1] %vm1093, %v1087
      %1129 = vst.msk [vmem:[#allocation2 + $0x17a] sm:$0x1] %vm1093, %v1088
      %1130 = vst.msk [vmem:[#allocation2 + $0x192] sm:$0x1] %vm1093, %v1089
      %1131 = vst.msk [vmem:[#allocation2 + $0x1aa] sm:$0x1] %vm1093, %v1090
      %1132 = vst.msk [vmem:[#allocation2 + $0x1c2] sm:$0x1] %vm1093, %v1091
      %1133 = vst.msk [vmem:[#allocation2 + $0x1da] sm:$0x1] %vm1093, %v1092
      %1134 = vst.msk [vmem:[#allocation2 + $0x1] sm:$0x1] %vm1093, %v1053
      %1135 = vst.msk [vmem:[#allocation2 + $0x19] sm:$0x1] %vm1093, %v1054
      %1136 = vst.msk [vmem:[#allocation2 + $0x31] sm:$0x1] %vm1093, %v1055
      %1137 = vst.msk [vmem:[#allocation2 + $0x49] sm:$0x1] %vm1093, %v1056
      %1138 = vst.msk [vmem:[#allocation2 + $0x61] sm:$0x1] %vm1093, %v1057
      %1139 = vst.msk [vmem:[#allocation2 + $0x79] sm:$0x1] %vm1093, %v1058
      %1140 = vst.msk [vmem:[#allocation2 + $0x91] sm:$0x1] %vm1093, %v1059
      %1141 = vst.msk [vmem:[#allocation2 + $0xa9] sm:$0x1] %vm1093, %v1060
      %1142 = vst.msk [vmem:[#allocation2 + $0xc1] sm:$0x1] %vm1093, %v1061
      %1143 = vst.msk [vmem:[#allocation2 + $0xd9] sm:$0x1] %vm1093, %v1062
      %1144 = vst.msk [vmem:[#allocation2 + $0xf1] sm:$0x1] %vm1093, %v1063
      %1145 = vst.msk [vmem:[#allocation2 + $0x109] sm:$0x1] %vm1093, %v1064
      %1146 = vst.msk [vmem:[#allocation2 + $0x121] sm:$0x1] %vm1093, %v1065
      %1147 = vst.msk [vmem:[#allocation2 + $0x139] sm:$0x1] %vm1093, %v1066
      %1148 = vst.msk [vmem:[#allocation2 + $0x151] sm:$0x1] %vm1093, %v1067
      %1149 = vst.msk [vmem:[#allocation2 + $0x169] sm:$0x1] %vm1093, %v1068
      %1150 = vst.msk [vmem:[#allocation2 + $0x181] sm:$0x1] %vm1093, %v1069
      %1151 = vst.msk [vmem:[#allocation2 + $0x199] sm:$0x1] %vm1093, %v1070
      %1152 = vst.msk [vmem:[#allocation2 + $0x1b1] sm:$0x1] %vm1093, %v1071
      %1153 = vst.msk [vmem:[#allocation2 + $0x1c9] sm:$0x1] %vm1093, %v1072
      %1154 = vst.msk [vmem:[#allocation2 + $0x13] sm:$0x1] %vm1093, %v1073
      %1155 = vst.msk [vmem:[#allocation2 + $0x2b] sm:$0x1] %vm1093, %v1074
      %1156 = vst.msk [vmem:[#allocation2 + $0x43] sm:$0x1] %vm1093, %v1075
      %1157 = vst.msk [vmem:[#allocation2 + $0x5b] sm:$0x1] %vm1093, %v1076
      %1158 = vst.msk [vmem:[#allocation2 + $0x73] sm:$0x1] %vm1093, %v1077
      %1159 = vst.msk [vmem:[#allocation2 + $0x8b] sm:$0x1] %vm1093, %v1078
      %1160 = vst.msk [vmem:[#allocation2 + $0xa3] sm:$0x1] %vm1093, %v1079
      %1161 = vst.msk [vmem:[#allocation2 + $0xbb] sm:$0x1] %vm1093, %v1080
      %1162 = vst.msk [vmem:[#allocation2 + $0xd3] sm:$0x1] %vm1093, %v1081
      %1163 = vst.msk [vmem:[#allocation2 + $0xeb] sm:$0x1] %vm1093, %v1082
      %1164 = vst.msk [vmem:[#allocation2 + $0x103] sm:$0x1] %vm1093, %v1083
      %1165 = vst.msk [vmem:[#allocation2 + $0x11b] sm:$0x1] %vm1093, %v1084
      %1166 = vst.msk [vmem:[#allocation2 + $0x133] sm:$0x1] %vm1093, %v1085
      %1167 = vst.msk [vmem:[#allocation2 + $0x14b] sm:$0x1] %vm1093, %v1086
      %1168 = vst.msk [vmem:[#allocation2 + $0x163] sm:$0x1] %vm1093, %v1087
      %1169 = vst.msk [vmem:[#allocation2 + $0x17b] sm:$0x1] %vm1093, %v1088
      %1170 = vst.msk [vmem:[#allocation2 + $0x193] sm:$0x1] %vm1093, %v1089
      %1171 = vst.msk [vmem:[#allocation2 + $0x1ab] sm:$0x1] %vm1093, %v1090
      %1172 = vst.msk [vmem:[#allocation2 + $0x1c3] sm:$0x1] %vm1093, %v1091
      %1173 = vst.msk [vmem:[#allocation2 + $0x1db] sm:$0x1] %vm1093, %v1092
      %v1174 = vld [vmem:[#allocation2] sm:$0xff]
      %v1175 = vld [vmem:[#allocation2 + $0x8] sm:$0xff]
      %v1176 = vld [vmem:[#allocation2 + $0x18] sm:$0xff]
      %v1177 = vld [vmem:[#allocation2 + $0x20] sm:$0xff]
      %v1178 = vld [vmem:[#allocation2 + $0x30] sm:$0xff]
      %v1179 = vld [vmem:[#allocation2 + $0x38] sm:$0xff]
      %v1180 = vld [vmem:[#allocation2 + $0x48] sm:$0xff]
      %v1181 = vld [vmem:[#allocation2 + $0x50] sm:$0xff]
      %v1182 = vld [vmem:[#allocation2 + $0x60] sm:$0xff]
      %v1183 = vld [vmem:[#allocation2 + $0x68] sm:$0xff]
      %v1184 = vld [vmem:[#allocation2 + $0x78] sm:$0xff]
      %v1185 = vld [vmem:[#allocation2 + $0x80] sm:$0xff]
      %v1186 = vld [vmem:[#allocation2 + $0x90] sm:$0xff]
      %v1187 = vld [vmem:[#allocation2 + $0x98] sm:$0xff]
      %v1188 = vld [vmem:[#allocation2 + $0xa8] sm:$0xff]
      %v1189 = vld [vmem:[#allocation2 + $0xb0] sm:$0xff]
      %v1190 = vld [vmem:[#allocation2 + $0xc0] sm:$0xff]
      %v1191 = vld [vmem:[#allocation2 + $0xc8] sm:$0xff]
      %v1192 = vld [vmem:[#allocation2 + $0xd8] sm:$0xff]
      %v1193 = vld [vmem:[#allocation2 + $0xe0] sm:$0xff]
      %v1194 = vld [vmem:[#allocation2 + $0xf0] sm:$0xff]
      %v1195 = vld [vmem:[#allocation2 + $0xf8] sm:$0xff]
      %v1196 = vld [vmem:[#allocation2 + $0x108] sm:$0xff]
      %v1197 = vld [vmem:[#allocation2 + $0x110] sm:$0xff]
      %v1198 = vld [vmem:[#allocation2 + $0x120] sm:$0xff]
      %v1199 = vld [vmem:[#allocation2 + $0x128] sm:$0xff]
      %v1200 = vld [vmem:[#allocation2 + $0x138] sm:$0xff]
      %v1201 = vld [vmem:[#allocation2 + $0x140] sm:$0xff]
      %v1202 = vld [vmem:[#allocation2 + $0x150] sm:$0xff]
      %v1203 = vld [vmem:[#allocation2 + $0x158] sm:$0xff]
      %v1204 = vld [vmem:[#allocation2 + $0x168] sm:$0xff]
      %v1205 = vld [vmem:[#allocation2 + $0x170] sm:$0xff]
      %1206 = vst.msk [vmem:[#allocation3] sm:$0xff] %vm1009, %v1174
      %1207 = vst.msk [vmem:[#allocation3 + $0x38] sm:$0xff] %vm1009, %v1175
      %1208 = vst.msk [vmem:[#allocation3 + $0x70] sm:$0xff] %vm1009, %v1176
      %1209 = vst.msk [vmem:[#allocation3 + $0xa8] sm:$0xff] %vm1009, %v1177
      %1210 = vst.msk [vmem:[#allocation3 + $0xe0] sm:$0xff] %vm1009, %v1178
      %1211 = vst.msk [vmem:[#allocation3 + $0x118] sm:$0xff] %vm1009, %v1179
      %1212 = vst.msk [vmem:[#allocation3 + $0x150] sm:$0xff] %vm1009, %v1180
      %1213 = vst.msk [vmem:[#allocation3 + $0x188] sm:$0xff] %vm1009, %v1181
      %1214 = vst.msk [vmem:[#allocation3 + $0x1c0] sm:$0xff] %vm1009, %v1182
      %1215 = vst.msk [vmem:[#allocation3 + $0x1f8] sm:$0xff] %vm1009, %v1183
      %1216 = vst.msk [vmem:[#allocation3 + $0x230] sm:$0xff] %vm1009, %v1184
      %1217 = vst.msk [vmem:[#allocation3 + $0x268] sm:$0xff] %vm1009, %v1185
      %1218 = vst.msk [vmem:[#allocation3 + $0x2a0] sm:$0xff] %vm1009, %v1186
      %1219 = vst.msk [vmem:[#allocation3 + $0x2d8] sm:$0xff] %vm1009, %v1187
      %1220 = vst.msk [vmem:[#allocation3 + $0x310] sm:$0xff] %vm1009, %v1188
      %1221 = vst.msk [vmem:[#allocation3 + $0x348] sm:$0xff] %vm1009, %v1189
      %1222 = vst.msk [vmem:[#allocation3 + $0x380] sm:$0xff] %vm1009, %v1190
      %1223 = vst.msk [vmem:[#allocation3 + $0x3b8] sm:$0xff] %vm1009, %v1191
      %1224 = vst.msk [vmem:[#allocation3 + $0x3f0] sm:$0xff] %vm1009, %v1192
      %1225 = vst.msk [vmem:[#allocation3 + $0x428] sm:$0xff] %vm1009, %v1193
      %1226 = vst.msk [vmem:[#allocation3 + $0x460] sm:$0xff] %vm1009, %v1194
      %1227 = vst.msk [vmem:[#allocation3 + $0x498] sm:$0xff] %vm1009, %v1195
      %1228 = vst.msk [vmem:[#allocation3 + $0x4d0] sm:$0xff] %vm1009, %v1196
      %1229 = vst.msk [vmem:[#allocation3 + $0x508] sm:$0xff] %vm1009, %v1197
      %1230 = vst.msk [vmem:[#allocation3 + $0x540] sm:$0xff] %vm1009, %v1198
      %1231 = vst.msk [vmem:[#allocation3 + $0x578] sm:$0xff] %vm1009, %v1199
      %1232 = vst.msk [vmem:[#allocation3 + $0x5b0] sm:$0xff] %vm1009, %v1200
      %1233 = vst.msk [vmem:[#allocation3 + $0x5e8] sm:$0xff] %vm1009, %v1201
      %1234 = vst.msk [vmem:[#allocation3 + $0x620] sm:$0xff] %vm1009, %v1202
      %1235 = vst.msk [vmem:[#allocation3 + $0x658] sm:$0xff] %vm1009, %v1203
      %1236 = vst.msk [vmem:[#allocation3 + $0x690] sm:$0xff] %vm1009, %v1204
      %1237 = vst.msk [vmem:[#allocation3 + $0x6c8] sm:$0xff] %vm1009, %v1205
      %v1238 = vld [vmem:[#allocation2 + $0x1] sm:$0xff]
      %v1239 = vld [vmem:[#allocation2 + $0x9] sm:$0xff]
      %v1240 = vld [vmem:[#allocation2 + $0x19] sm:$0xff]
      %v1241 = vld [vmem:[#allocation2 + $0x21] sm:$0xff]
      %v1242 = vld [vmem:[#allocation2 + $0x31] sm:$0xff]
      %v1243 = vld [vmem:[#allocation2 + $0x39] sm:$0xff]
      %v1244 = vld [vmem:[#allocation2 + $0x49] sm:$0xff]
      %v1245 = vld [vmem:[#allocation2 + $0x51] sm:$0xff]
      %v1246 = vld [vmem:[#allocation2 + $0x61] sm:$0xff]
      %v1247 = vld [vmem:[#allocation2 + $0x69] sm:$0xff]
      %v1248 = vld [vmem:[#allocation2 + $0x79] sm:$0xff]
      %v1249 = vld [vmem:[#allocation2 + $0x81] sm:$0xff]
      %v1250 = vld [vmem:[#allocation2 + $0x91] sm:$0xff]
      %v1251 = vld [vmem:[#allocation2 + $0x99] sm:$0xff]
      %v1252 = vld [vmem:[#allocation2 + $0xa9] sm:$0xff]
      %v1253 = vld [vmem:[#allocation2 + $0xb1] sm:$0xff]
      %v1254 = vld [vmem:[#allocation2 + $0xc1] sm:$0xff]
      %v1255 = vld [vmem:[#allocation2 + $0xc9] sm:$0xff]
      %v1256 = vld [vmem:[#allocation2 + $0xd9] sm:$0xff]
      %v1257 = vld [vmem:[#allocation2 + $0xe1] sm:$0xff]
      %v1258 = vld [vmem:[#allocation2 + $0xf1] sm:$0xff]
      %v1259 = vld [vmem:[#allocation2 + $0xf9] sm:$0xff]
      %v1260 = vld [vmem:[#allocation2 + $0x109] sm:$0xff]
      %v1261 = vld [vmem:[#allocation2 + $0x111] sm:$0xff]
      %v1262 = vld [vmem:[#allocation2 + $0x121] sm:$0xff]
      %v1263 = vld [vmem:[#allocation2 + $0x129] sm:$0xff]
      %v1264 = vld [vmem:[#allocation2 + $0x139] sm:$0xff]
      %v1265 = vld [vmem:[#allocation2 + $0x141] sm:$0xff]
      %v1266 = vld [vmem:[#allocation2 + $0x151] sm:$0xff]
      %v1267 = vld [vmem:[#allocation2 + $0x159] sm:$0xff]
      %v1268 = vld [vmem:[#allocation2 + $0x169] sm:$0xff]
      %v1269 = vld [vmem:[#allocation2 + $0x171] sm:$0xff]
      %1302 = vrot.lane.b32.xlu0 %v1238, 32
      %v1303 = vpop.permute.xlu0 %1302
      %1304 = vrot.lane.b32.xlu0 %v1239, 32
      %v1305 = vpop.permute.xlu0 %1304
      %1306 = vrot.lane.b32.xlu0 %v1240, 32
      %v1307 = vpop.permute.xlu0 %1306
      %1308 = vrot.lane.b32.xlu0 %v1241, 32
      %v1309 = vpop.permute.xlu0 %1308
      %1310 = vrot.lane.b32.xlu0 %v1242, 32
      %v1311 = vpop.permute.xlu0 %1310
      %1312 = vrot.lane.b32.xlu0 %v1243, 32
      %v1313 = vpop.permute.xlu0 %1312
      %1314 = vrot.lane.b32.xlu0 %v1244, 32
      %v1315 = vpop.permute.xlu0 %1314
      %1316 = vrot.lane.b32.xlu0 %v1245, 32
      %v1317 = vpop.permute.xlu0 %1316
      %1318 = vrot.lane.b32.xlu0 %v1246, 32
      %v1319 = vpop.permute.xlu0 %1318
      %1320 = vrot.lane.b32.xlu0 %v1247, 32
      %v1321 = vpop.permute.xlu0 %1320
      %1322 = vrot.lane.b32.xlu0 %v1248, 32
      %v1323 = vpop.permute.xlu0 %1322
      %1324 = vrot.lane.b32.xlu0 %v1249, 32
      %v1325 = vpop.permute.xlu0 %1324
      %1326 = vrot.lane.b32.xlu0 %v1250, 32
      %v1327 = vpop.permute.xlu0 %1326
      %1328 = vrot.lane.b32.xlu0 %v1251, 32
      %v1329 = vpop.permute.xlu0 %1328
      %1330 = vrot.lane.b32.xlu0 %v1252, 32
      %v1331 = vpop.permute.xlu0 %1330
      %1332 = vrot.lane.b32.xlu0 %v1253, 32
      %v1333 = vpop.permute.xlu0 %1332
      %1334 = vrot.lane.b32.xlu0 %v1254, 32
      %v1335 = vpop.permute.xlu0 %1334
      %1336 = vrot.lane.b32.xlu0 %v1255, 32
      %v1337 = vpop.permute.xlu0 %1336
      %1338 = vrot.lane.b32.xlu0 %v1256, 32
      %v1339 = vpop.permute.xlu0 %1338
      %1340 = vrot.lane.b32.xlu0 %v1257, 32
      %v1341 = vpop.permute.xlu0 %1340
      %1342 = vrot.lane.b32.xlu0 %v1258, 32
      %v1343 = vpop.permute.xlu0 %1342
      %1344 = vrot.lane.b32.xlu0 %v1259, 32
      %v1345 = vpop.permute.xlu0 %1344
      %1346 = vrot.lane.b32.xlu0 %v1260, 32
      %v1347 = vpop.permute.xlu0 %1346
      %1348 = vrot.lane.b32.xlu0 %v1261, 32
      %v1349 = vpop.permute.xlu0 %1348
      %1350 = vrot.lane.b32.xlu0 %v1262, 32
      %v1351 = vpop.permute.xlu0 %1350
      %1352 = vrot.lane.b32.xlu0 %v1263, 32
      %v1353 = vpop.permute.xlu0 %1352
      %1354 = vrot.lane.b32.xlu0 %v1264, 32
      %v1355 = vpop.permute.xlu0 %1354
      %1356 = vrot.lane.b32.xlu0 %v1265, 32
      %v1357 = vpop.permute.xlu0 %1356
      %1358 = vrot.lane.b32.xlu0 %v1266, 32
      %v1359 = vpop.permute.xlu0 %1358
      %1360 = vrot.lane.b32.xlu0 %v1267, 32
      %v1361 = vpop.permute.xlu0 %1360
      %1362 = vrot.lane.b32.xlu0 %v1268, 32
      %v1363 = vpop.permute.xlu0 %1362
      %1364 = vrot.lane.b32.xlu0 %v1269, 32
      %v1365 = vpop.permute.xlu0 %1364
      %vm1398 = vcmask 523520
      %1399 = vst.msk [vmem:[#allocation3] sm:$0xff] %vm1398, %v1303
      %1400 = vst.msk [vmem:[#allocation3 + $0x38] sm:$0xff] %vm1398, %v1305
      %1401 = vst.msk [vmem:[#allocation3 + $0x70] sm:$0xff] %vm1398, %v1307
      %1402 = vst.msk [vmem:[#allocation3 + $0xa8] sm:$0xff] %vm1398, %v1309
      %1403 = vst.msk [vmem:[#allocation3 + $0xe0] sm:$0xff] %vm1398, %v1311
      %1404 = vst.msk [vmem:[#allocation3 + $0x118] sm:$0xff] %vm1398, %v1313
      %1405 = vst.msk [vmem:[#allocation3 + $0x150] sm:$0xff] %vm1398, %v1315
      %1406 = vst.msk [vmem:[#allocation3 + $0x188] sm:$0xff] %vm1398, %v1317
      %1407 = vst.msk [vmem:[#allocation3 + $0x1c0] sm:$0xff] %vm1398, %v1319
      %1408 = vst.msk [vmem:[#allocation3 + $0x1f8] sm:$0xff] %vm1398, %v1321
      %1409 = vst.msk [vmem:[#allocation3 + $0x230] sm:$0xff] %vm1398, %v1323
      %1410 = vst.msk [vmem:[#allocation3 + $0x268] sm:$0xff] %vm1398, %v1325
      %1411 = vst.msk [vmem:[#allocation3 + $0x2a0] sm:$0xff] %vm1398, %v1327
      %1412 = vst.msk [vmem:[#allocation3 + $0x2d8] sm:$0xff] %vm1398, %v1329
      %1413 = vst.msk [vmem:[#allocation3 + $0x310] sm:$0xff] %vm1398, %v1331
      %1414 = vst.msk [vmem:[#allocation3 + $0x348] sm:$0xff] %vm1398, %v1333
      %1415 = vst.msk [vmem:[#allocation3 + $0x380] sm:$0xff] %vm1398, %v1335
      %1416 = vst.msk [vmem:[#allocation3 + $0x3b8] sm:$0xff] %vm1398, %v1337
      %1417 = vst.msk [vmem:[#allocation3 + $0x3f0] sm:$0xff] %vm1398, %v1339
      %1418 = vst.msk [vmem:[#allocation3 + $0x428] sm:$0xff] %vm1398, %v1341
      %1419 = vst.msk [vmem:[#allocation3 + $0x460] sm:$0xff] %vm1398, %v1343
      %1420 = vst.msk [vmem:[#allocation3 + $0x498] sm:$0xff] %vm1398, %v1345
      %1421 = vst.msk [vmem:[#allocation3 + $0x4d0] sm:$0xff] %vm1398, %v1347
      %1422 = vst.msk [vmem:[#allocation3 + $0x508] sm:$0xff] %vm1398, %v1349
      %1423 = vst.msk [vmem:[#allocation3 + $0x540] sm:$0xff] %vm1398, %v1351
      %1424 = vst.msk [vmem:[#allocation3 + $0x578] sm:$0xff] %vm1398, %v1353
      %1425 = vst.msk [vmem:[#allocation3 + $0x5b0] sm:$0xff] %vm1398, %v1355
      %1426 = vst.msk [vmem:[#allocation3 + $0x5e8] sm:$0xff] %vm1398, %v1357
      %1427 = vst.msk [vmem:[#allocation3 + $0x620] sm:$0xff] %vm1398, %v1359
      %1428 = vst.msk [vmem:[#allocation3 + $0x658] sm:$0xff] %vm1398, %v1361
      %1429 = vst.msk [vmem:[#allocation3 + $0x690] sm:$0xff] %vm1398, %v1363
      %1430 = vst.msk [vmem:[#allocation3 + $0x6c8] sm:$0xff] %vm1398, %v1365
      %v1431 = vld [vmem:[#allocation2 + $0x2] sm:$0xff]
      %v1432 = vld [vmem:[#allocation2 + $0xa] sm:$0xff]
      %v1433 = vld [vmem:[#allocation2 + $0x1a] sm:$0xff]
      %v1434 = vld [vmem:[#allocation2 + $0x22] sm:$0xff]
      %v1435 = vld [vmem:[#allocation2 + $0x32] sm:$0xff]
      %v1436 = vld [vmem:[#allocation2 + $0x3a] sm:$0xff]
      %v1437 = vld [vmem:[#allocation2 + $0x4a] sm:$0xff]
      %v1438 = vld [vmem:[#allocation2 + $0x52] sm:$0xff]
      %v1439 = vld [vmem:[#allocation2 + $0x62] sm:$0xff]
      %v1440 = vld [vmem:[#allocation2 + $0x6a] sm:$0xff]
      %v1441 = vld [vmem:[#allocation2 + $0x7a] sm:$0xff]
      %v1442 = vld [vmem:[#allocation2 + $0x82] sm:$0xff]
      %v1443 = vld [vmem:[#allocation2 + $0x92] sm:$0xff]
      %v1444 = vld [vmem:[#allocation2 + $0x9a] sm:$0xff]
      %v1445 = vld [vmem:[#allocation2 + $0xaa] sm:$0xff]
      %v1446 = vld [vmem:[#allocation2 + $0xb2] sm:$0xff]
      %v1447 = vld [vmem:[#allocation2 + $0xc2] sm:$0xff]
      %v1448 = vld [vmem:[#allocation2 + $0xca] sm:$0xff]
      %v1449 = vld [vmem:[#allocation2 + $0xda] sm:$0xff]
      %v1450 = vld [vmem:[#allocation2 + $0xe2] sm:$0xff]
      %v1451 = vld [vmem:[#allocation2 + $0xf2] sm:$0xff]
      %v1452 = vld [vmem:[#allocation2 + $0xfa] sm:$0xff]
      %v1453 = vld [vmem:[#allocation2 + $0x10a] sm:$0xff]
      %v1454 = vld [vmem:[#allocation2 + $0x112] sm:$0xff]
      %v1455 = vld [vmem:[#allocation2 + $0x122] sm:$0xff]
      %v1456 = vld [vmem:[#allocation2 + $0x12a] sm:$0xff]
      %v1457 = vld [vmem:[#allocation2 + $0x13a] sm:$0xff]
      %v1458 = vld [vmem:[#allocation2 + $0x142] sm:$0xff]
      %v1459 = vld [vmem:[#allocation2 + $0x152] sm:$0xff]
      %v1460 = vld [vmem:[#allocation2 + $0x15a] sm:$0xff]
      %v1461 = vld [vmem:[#allocation2 + $0x16a] sm:$0xff]
      %v1462 = vld [vmem:[#allocation2 + $0x172] sm:$0xff]
      %1495 = vrot.lane.b32.xlu0 %v1431, 64
      %v1496 = vpop.permute.xlu0 %1495
      %1497 = vrot.lane.b32.xlu0 %v1432, 64
      %v1498 = vpop.permute.xlu0 %1497
      %1499 = vrot.lane.b32.xlu0 %v1433, 64
      %v1500 = vpop.permute.xlu0 %1499
      %1501 = vrot.lane.b32.xlu0 %v1434, 64
      %v1502 = vpop.permute.xlu0 %1501
      %1503 = vrot.lane.b32.xlu0 %v1435, 64
      %v1504 = vpop.permute.xlu0 %1503
      %1505 = vrot.lane.b32.xlu0 %v1436, 64
      %v1506 = vpop.permute.xlu0 %1505
      %1507 = vrot.lane.b32.xlu0 %v1437, 64
      %v1508 = vpop.permute.xlu0 %1507
      %1509 = vrot.lane.b32.xlu0 %v1438, 64
      %v1510 = vpop.permute.xlu0 %1509
      %1511 = vrot.lane.b32.xlu0 %v1439, 64
      %v1512 = vpop.permute.xlu0 %1511
      %1513 = vrot.lane.b32.xlu0 %v1440, 64
      %v1514 = vpop.permute.xlu0 %1513
      %1515 = vrot.lane.b32.xlu0 %v1441, 64
      %v1516 = vpop.permute.xlu0 %1515
      %1517 = vrot.lane.b32.xlu0 %v1442, 64
      %v1518 = vpop.permute.xlu0 %1517
      %1519 = vrot.lane.b32.xlu0 %v1443, 64
      %v1520 = vpop.permute.xlu0 %1519
      %1521 = vrot.lane.b32.xlu0 %v1444, 64
      %v1522 = vpop.permute.xlu0 %1521
      %1523 = vrot.lane.b32.xlu0 %v1445, 64
      %v1524 = vpop.permute.xlu0 %1523
      %1525 = vrot.lane.b32.xlu0 %v1446, 64
      %v1526 = vpop.permute.xlu0 %1525
      %1527 = vrot.lane.b32.xlu0 %v1447, 64
      %v1528 = vpop.permute.xlu0 %1527
      %1529 = vrot.lane.b32.xlu0 %v1448, 64
      %v1530 = vpop.permute.xlu0 %1529
      %1531 = vrot.lane.b32.xlu0 %v1449, 64
      %v1532 = vpop.permute.xlu0 %1531
      %1533 = vrot.lane.b32.xlu0 %v1450, 64
      %v1534 = vpop.permute.xlu0 %1533
      %1535 = vrot.lane.b32.xlu0 %v1451, 64
      %v1536 = vpop.permute.xlu0 %1535
      %1537 = vrot.lane.b32.xlu0 %v1452, 64
      %v1538 = vpop.permute.xlu0 %1537
      %1539 = vrot.lane.b32.xlu0 %v1453, 64
      %v1540 = vpop.permute.xlu0 %1539
      %1541 = vrot.lane.b32.xlu0 %v1454, 64
      %v1542 = vpop.permute.xlu0 %1541
      %1543 = vrot.lane.b32.xlu0 %v1455, 64
      %v1544 = vpop.permute.xlu0 %1543
      %1545 = vrot.lane.b32.xlu0 %v1456, 64
      %v1546 = vpop.permute.xlu0 %1545
      %1547 = vrot.lane.b32.xlu0 %v1457, 64
      %v1548 = vpop.permute.xlu0 %1547
      %1549 = vrot.lane.b32.xlu0 %v1458, 64
      %v1550 = vpop.permute.xlu0 %1549
      %1551 = vrot.lane.b32.xlu0 %v1459, 64
      %v1552 = vpop.permute.xlu0 %1551
      %1553 = vrot.lane.b32.xlu0 %v1460, 64
      %v1554 = vpop.permute.xlu0 %1553
      %1555 = vrot.lane.b32.xlu0 %v1461, 64
      %v1556 = vpop.permute.xlu0 %1555
      %1557 = vrot.lane.b32.xlu0 %v1462, 64
      %v1558 = vpop.permute.xlu0 %1557
      %vm1591 = vcmask 785920
      %1592 = vst.msk [vmem:[#allocation3] sm:$0xff] %vm1591, %v1496
      %1593 = vst.msk [vmem:[#allocation3 + $0x38] sm:$0xff] %vm1591, %v1498
      %1594 = vst.msk [vmem:[#allocation3 + $0x70] sm:$0xff] %vm1591, %v1500
      %1595 = vst.msk [vmem:[#allocation3 + $0xa8] sm:$0xff] %vm1591, %v1502
      %1596 = vst.msk [vmem:[#allocation3 + $0xe0] sm:$0xff] %vm1591, %v1504
      %1597 = vst.msk [vmem:[#allocation3 + $0x118] sm:$0xff] %vm1591, %v1506
      %1598 = vst.msk [vmem:[#allocation3 + $0x150] sm:$0xff] %vm1591, %v1508
      %1599 = vst.msk [vmem:[#allocation3 + $0x188] sm:$0xff] %vm1591, %v1510
      %1600 = vst.msk [vmem:[#allocation3 + $0x1c0] sm:$0xff] %vm1591, %v1512
      %1601 = vst.msk [vmem:[#allocation3 + $0x1f8] sm:$0xff] %vm1591, %v1514
      %1602 = vst.msk [vmem:[#allocation3 + $0x230] sm:$0xff] %vm1591, %v1516
      %1603 = vst.msk [vmem:[#allocation3 + $0x268] sm:$0xff] %vm1591, %v1518
      %1604 = vst.msk [vmem:[#allocation3 + $0x2a0] sm:$0xff] %vm1591, %v1520
      %1605 = vst.msk [vmem:[#allocation3 + $0x2d8] sm:$0xff] %vm1591, %v1522
      %1606 = vst.msk [vmem:[#allocation3 + $0x310] sm:$0xff] %vm1591, %v1524
      %1607 = vst.msk [vmem:[#allocation3 + $0x348] sm:$0xff] %vm1591, %v1526
      %1608 = vst.msk [vmem:[#allocation3 + $0x380] sm:$0xff] %vm1591, %v1528
      %1609 = vst.msk [vmem:[#allocation3 + $0x3b8] sm:$0xff] %vm1591, %v1530
      %1610 = vst.msk [vmem:[#allocation3 + $0x3f0] sm:$0xff] %vm1591, %v1532
      %1611 = vst.msk [vmem:[#allocation3 + $0x428] sm:$0xff] %vm1591, %v1534
      %1612 = vst.msk [vmem:[#allocation3 + $0x460] sm:$0xff] %vm1591, %v1536
      %1613 = vst.msk [vmem:[#allocation3 + $0x498] sm:$0xff] %vm1591, %v1538
      %1614 = vst.msk [vmem:[#allocation3 + $0x4d0] sm:$0xff] %vm1591, %v1540
      %1615 = vst.msk [vmem:[#allocation3 + $0x508] sm:$0xff] %vm1591, %v1542
      %1616 = vst.msk [vmem:[#allocation3 + $0x540] sm:$0xff] %vm1591, %v1544
      %1617 = vst.msk [vmem:[#allocation3 + $0x578] sm:$0xff] %vm1591, %v1546
      %1618 = vst.msk [vmem:[#allocation3 + $0x5b0] sm:$0xff] %vm1591, %v1548
      %1619 = vst.msk [vmem:[#allocation3 + $0x5e8] sm:$0xff] %vm1591, %v1550
      %1620 = vst.msk [vmem:[#allocation3 + $0x620] sm:$0xff] %vm1591, %v1552
      %1621 = vst.msk [vmem:[#allocation3 + $0x658] sm:$0xff] %vm1591, %v1554
      %1622 = vst.msk [vmem:[#allocation3 + $0x690] sm:$0xff] %vm1591, %v1556
      %1623 = vst.msk [vmem:[#allocation3 + $0x6c8] sm:$0xff] %vm1591, %v1558
      %v1624 = vld [vmem:[#allocation2 + $0x3] sm:$0xff]
      %v1625 = vld [vmem:[#allocation2 + $0xb] sm:$0xff]
      %v1626 = vld [vmem:[#allocation2 + $0x1b] sm:$0xff]
      %v1627 = vld [vmem:[#allocation2 + $0x23] sm:$0xff]
      %v1628 = vld [vmem:[#allocation2 + $0x33] sm:$0xff]
      %v1629 = vld [vmem:[#allocation2 + $0x3b] sm:$0xff]
      %v1630 = vld [vmem:[#allocation2 + $0x4b] sm:$0xff]
      %v1631 = vld [vmem:[#allocation2 + $0x53] sm:$0xff]
      %v1632 = vld [vmem:[#allocation2 + $0x63] sm:$0xff]
      %v1633 = vld [vmem:[#allocation2 + $0x6b] sm:$0xff]
      %v1634 = vld [vmem:[#allocation2 + $0x7b] sm:$0xff]
      %v1635 = vld [vmem:[#allocation2 + $0x83] sm:$0xff]
      %v1636 = vld [vmem:[#allocation2 + $0x93] sm:$0xff]
      %v1637 = vld [vmem:[#allocation2 + $0x9b] sm:$0xff]
      %v1638 = vld [vmem:[#allocation2 + $0xab] sm:$0xff]
      %v1639 = vld [vmem:[#allocation2 + $0xb3] sm:$0xff]
      %v1640 = vld [vmem:[#allocation2 + $0xc3] sm:$0xff]
      %v1641 = vld [vmem:[#allocation2 + $0xcb] sm:$0xff]
      %v1642 = vld [vmem:[#allocation2 + $0xdb] sm:$0xff]
      %v1643 = vld [vmem:[#allocation2 + $0xe3] sm:$0xff]
      %v1644 = vld [vmem:[#allocation2 + $0xf3] sm:$0xff]
      %v1645 = vld [vmem:[#allocation2 + $0xfb] sm:$0xff]
      %v1646 = vld [vmem:[#allocation2 + $0x10b] sm:$0xff]
      %v1647 = vld [vmem:[#allocation2 + $0x113] sm:$0xff]
      %v1648 = vld [vmem:[#allocation2 + $0x123] sm:$0xff]
      %v1649 = vld [vmem:[#allocation2 + $0x12b] sm:$0xff]
      %v1650 = vld [vmem:[#allocation2 + $0x13b] sm:$0xff]
      %v1651 = vld [vmem:[#allocation2 + $0x143] sm:$0xff]
      %v1652 = vld [vmem:[#allocation2 + $0x153] sm:$0xff]
      %v1653 = vld [vmem:[#allocation2 + $0x15b] sm:$0xff]
      %v1654 = vld [vmem:[#allocation2 + $0x16b] sm:$0xff]
      %v1655 = vld [vmem:[#allocation2 + $0x173] sm:$0xff]
      %1688 = vrot.lane.b32.xlu0 %v1624, 96
      %v1689 = vpop.permute.xlu0 %1688
      %1690 = vrot.lane.b32.xlu0 %v1625, 96
      %v1691 = vpop.permute.xlu0 %1690
      %1692 = vrot.lane.b32.xlu0 %v1626, 96
      %v1693 = vpop.permute.xlu0 %1692
      %1694 = vrot.lane.b32.xlu0 %v1627, 96
      %v1695 = vpop.permute.xlu0 %1694
      %1696 = vrot.lane.b32.xlu0 %v1628, 96
      %v1697 = vpop.permute.xlu0 %1696
      %1698 = vrot.lane.b32.xlu0 %v1629, 96
      %v1699 = vpop.permute.xlu0 %1698
      %1700 = vrot.lane.b32.xlu0 %v1630, 96
      %v1701 = vpop.permute.xlu0 %1700
      %1702 = vrot.lane.b32.xlu0 %v1631, 96
      %v1703 = vpop.permute.xlu0 %1702
      %1704 = vrot.lane.b32.xlu0 %v1632, 96
      %v1705 = vpop.permute.xlu0 %1704
      %1706 = vrot.lane.b32.xlu0 %v1633, 96
      %v1707 = vpop.permute.xlu0 %1706
      %1708 = vrot.lane.b32.xlu0 %v1634, 96
      %v1709 = vpop.permute.xlu0 %1708
      %1710 = vrot.lane.b32.xlu0 %v1635, 96
      %v1711 = vpop.permute.xlu0 %1710
      %1712 = vrot.lane.b32.xlu0 %v1636, 96
      %v1713 = vpop.permute.xlu0 %1712
      %1714 = vrot.lane.b32.xlu0 %v1637, 96
      %v1715 = vpop.permute.xlu0 %1714
      %1716 = vrot.lane.b32.xlu0 %v1638, 96
      %v1717 = vpop.permute.xlu0 %1716
      %1718 = vrot.lane.b32.xlu0 %v1639, 96
      %v1719 = vpop.permute.xlu0 %1718
      %1720 = vrot.lane.b32.xlu0 %v1640, 96
      %v1721 = vpop.permute.xlu0 %1720
      %1722 = vrot.lane.b32.xlu0 %v1641, 96
      %v1723 = vpop.permute.xlu0 %1722
      %1724 = vrot.lane.b32.xlu0 %v1642, 96
      %v1725 = vpop.permute.xlu0 %1724
      %1726 = vrot.lane.b32.xlu0 %v1643, 96
      %v1727 = vpop.permute.xlu0 %1726
      %1728 = vrot.lane.b32.xlu0 %v1644, 96
      %v1729 = vpop.permute.xlu0 %1728
      %1730 = vrot.lane.b32.xlu0 %v1645, 96
      %v1731 = vpop.permute.xlu0 %1730
      %1732 = vrot.lane.b32.xlu0 %v1646, 96
      %v1733 = vpop.permute.xlu0 %1732
      %1734 = vrot.lane.b32.xlu0 %v1647, 96
      %v1735 = vpop.permute.xlu0 %1734
      %1736 = vrot.lane.b32.xlu0 %v1648, 96
      %v1737 = vpop.permute.xlu0 %1736
      %1738 = vrot.lane.b32.xlu0 %v1649, 96
      %v1739 = vpop.permute.xlu0 %1738
      %1740 = vrot.lane.b32.xlu0 %v1650, 96
      %v1741 = vpop.permute.xlu0 %1740
      %1742 = vrot.lane.b32.xlu0 %v1651, 96
      %v1743 = vpop.permute.xlu0 %1742
      %1744 = vrot.lane.b32.xlu0 %v1652, 96
      %v1745 = vpop.permute.xlu0 %1744
      %1746 = vrot.lane.b32.xlu0 %v1653, 96
      %v1747 = vpop.permute.xlu0 %1746
      %1748 = vrot.lane.b32.xlu0 %v1654, 96
      %v1749 = vpop.permute.xlu0 %1748
      %1750 = vrot.lane.b32.xlu0 %v1655, 96
      %v1751 = vpop.permute.xlu0 %1750
      %vm1784 = vcmask 1048320
      %1785 = vst.msk [vmem:[#allocation3] sm:$0xff] %vm1784, %v1689
      %1786 = vst.msk [vmem:[#allocation3 + $0x38] sm:$0xff] %vm1784, %v1691
      %1787 = vst.msk [vmem:[#allocation3 + $0x70] sm:$0xff] %vm1784, %v1693
      %1788 = vst.msk [vmem:[#allocation3 + $0xa8] sm:$0xff] %vm1784, %v1695
      %1789 = vst.msk [vmem:[#allocation3 + $0xe0] sm:$0xff] %vm1784, %v1697
      %1790 = vst.msk [vmem:[#allocation3 + $0x118] sm:$0xff] %vm1784, %v1699
      %1791 = vst.msk [vmem:[#allocation3 + $0x150] sm:$0xff] %vm1784, %v1701
      %1792 = vst.msk [vmem:[#allocation3 + $0x188] sm:$0xff] %vm1784, %v1703
      %1793 = vst.msk [vmem:[#allocation3 + $0x1c0] sm:$0xff] %vm1784, %v1705
      %1794 = vst.msk [vmem:[#allocation3 + $0x1f8] sm:$0xff] %vm1784, %v1707
      %1795 = vst.msk [vmem:[#allocation3 + $0x230] sm:$0xff] %vm1784, %v1709
      %1796 = vst.msk [vmem:[#allocation3 + $0x268] sm:$0xff] %vm1784, %v1711
      %1797 = vst.msk [vmem:[#allocation3 + $0x2a0] sm:$0xff] %vm1784, %v1713
      %1798 = vst.msk [vmem:[#allocation3 + $0x2d8] sm:$0xff] %vm1784, %v1715
      %1799 = vst.msk [vmem:[#allocation3 + $0x310] sm:$0xff] %vm1784, %v1717
      %1800 = vst.msk [vmem:[#allocation3 + $0x348] sm:$0xff] %vm1784, %v1719
      %1801 = vst.msk [vmem:[#allocation3 + $0x380] sm:$0xff] %vm1784, %v1721
      %1802 = vst.msk [vmem:[#allocation3 + $0x3b8] sm:$0xff] %vm1784, %v1723
      %1803 = vst.msk [vmem:[#allocation3 + $0x3f0] sm:$0xff] %vm1784, %v1725
      %1804 = vst.msk [vmem:[#allocation3 + $0x428] sm:$0xff] %vm1784, %v1727
      %1805 = vst.msk [vmem:[#allocation3 + $0x460] sm:$0xff] %vm1784, %v1729
      %1806 = vst.msk [vmem:[#allocation3 + $0x498] sm:$0xff] %vm1784, %v1731
      %1807 = vst.msk [vmem:[#allocation3 + $0x4d0] sm:$0xff] %vm1784, %v1733
      %1808 = vst.msk [vmem:[#allocation3 + $0x508] sm:$0xff] %vm1784, %v1735
      %1809 = vst.msk [vmem:[#allocation3 + $0x540] sm:$0xff] %vm1784, %v1737
      %1810 = vst.msk [vmem:[#allocation3 + $0x578] sm:$0xff] %vm1784, %v1739
      %1811 = vst.msk [vmem:[#allocation3 + $0x5b0] sm:$0xff] %vm1784, %v1741
      %1812 = vst.msk [vmem:[#allocation3 + $0x5e8] sm:$0xff] %vm1784, %v1743
      %1813 = vst.msk [vmem:[#allocation3 + $0x620] sm:$0xff] %vm1784, %v1745
      %1814 = vst.msk [vmem:[#allocation3 + $0x658] sm:$0xff] %vm1784, %v1747
      %1815 = vst.msk [vmem:[#allocation3 + $0x690] sm:$0xff] %vm1784, %v1749
      %1816 = vst.msk [vmem:[#allocation3 + $0x6c8] sm:$0xff] %vm1784, %v1751
      %v1817 = vld [vmem:[#allocation2 + $0x4] sm:$0xff]
      %v1818 = vld [vmem:[#allocation2 + $0xc] sm:$0xff]
      %v1819 = vld [vmem:[#allocation2 + $0x1c] sm:$0xff]
      %v1820 = vld [vmem:[#allocation2 + $0x24] sm:$0xff]
      %v1821 = vld [vmem:[#allocation2 + $0x34] sm:$0xff]
      %v1822 = vld [vmem:[#allocation2 + $0x3c] sm:$0xff]
      %v1823 = vld [vmem:[#allocation2 + $0x4c] sm:$0xff]
      %v1824 = vld [vmem:[#allocation2 + $0x54] sm:$0xff]
      %v1825 = vld [vmem:[#allocation2 + $0x64] sm:$0xff]
      %v1826 = vld [vmem:[#allocation2 + $0x6c] sm:$0xff]
      %v1827 = vld [vmem:[#allocation2 + $0x7c] sm:$0xff]
      %v1828 = vld [vmem:[#allocation2 + $0x84] sm:$0xff]
      %v1829 = vld [vmem:[#allocation2 + $0x94] sm:$0xff]
      %v1830 = vld [vmem:[#allocation2 + $0x9c] sm:$0xff]
      %v1831 = vld [vmem:[#allocation2 + $0xac] sm:$0xff]
      %v1832 = vld [vmem:[#allocation2 + $0xb4] sm:$0xff]
      %v1833 = vld [vmem:[#allocation2 + $0xc4] sm:$0xff]
      %v1834 = vld [vmem:[#allocation2 + $0xcc] sm:$0xff]
      %v1835 = vld [vmem:[#allocation2 + $0xdc] sm:$0xff]
      %v1836 = vld [vmem:[#allocation2 + $0xe4] sm:$0xff]
      %v1837 = vld [vmem:[#allocation2 + $0xf4] sm:$0xff]
      %v1838 = vld [vmem:[#allocation2 + $0xfc] sm:$0xff]
      %v1839 = vld [vmem:[#allocation2 + $0x10c] sm:$0xff]
      %v1840 = vld [vmem:[#allocation2 + $0x114] sm:$0xff]
      %v1841 = vld [vmem:[#allocation2 + $0x124] sm:$0xff]
      %v1842 = vld [vmem:[#allocation2 + $0x12c] sm:$0xff]
      %v1843 = vld [vmem:[#allocation2 + $0x13c] sm:$0xff]
      %v1844 = vld [vmem:[#allocation2 + $0x144] sm:$0xff]
      %v1845 = vld [vmem:[#allocation2 + $0x154] sm:$0xff]
      %v1846 = vld [vmem:[#allocation2 + $0x15c] sm:$0xff]
      %v1847 = vld [vmem:[#allocation2 + $0x16c] sm:$0xff]
      %v1848 = vld [vmem:[#allocation2 + $0x174] sm:$0xff]
      %1849 = vst.msk [vmem:[#allocation3 + $0x8] sm:$0xff] %vm1009, %v1817
      %1850 = vst.msk [vmem:[#allocation3 + $0x40] sm:$0xff] %vm1009, %v1818
      %1851 = vst.msk [vmem:[#allocation3 + $0x78] sm:$0xff] %vm1009, %v1819
      %1852 = vst.msk [vmem:[#allocation3 + $0xb0] sm:$0xff] %vm1009, %v1820
      %1853 = vst.msk [vmem:[#allocation3 + $0xe8] sm:$0xff] %vm1009, %v1821
      %1854 = vst.msk [vmem:[#allocation3 + $0x120] sm:$0xff] %vm1009, %v1822
      %1855 = vst.msk [vmem:[#allocation3 + $0x158] sm:$0xff] %vm1009, %v1823
      %1856 = vst.msk [vmem:[#allocation3 + $0x190] sm:$0xff] %vm1009, %v1824
      %1857 = vst.msk [vmem:[#allocation3 + $0x1c8] sm:$0xff] %vm1009, %v1825
      %1858 = vst.msk [vmem:[#allocation3 + $0x200] sm:$0xff] %vm1009, %v1826
      %1859 = vst.msk [vmem:[#allocation3 + $0x238] sm:$0xff] %vm1009, %v1827
      %1860 = vst.msk [vmem:[#allocation3 + $0x270] sm:$0xff] %vm1009, %v1828
      %1861 = vst.msk [vmem:[#allocation3 + $0x2a8] sm:$0xff] %vm1009, %v1829
      %1862 = vst.msk [vmem:[#allocation3 + $0x2e0] sm:$0xff] %vm1009, %v1830
      %1863 = vst.msk [vmem:[#allocation3 + $0x318] sm:$0xff] %vm1009, %v1831
      %1864 = vst.msk [vmem:[#allocation3 + $0x350] sm:$0xff] %vm1009, %v1832
      %1865 = vst.msk [vmem:[#allocation3 + $0x388] sm:$0xff] %vm1009, %v1833
      %1866 = vst.msk [vmem:[#allocation3 + $0x3c0] sm:$0xff] %vm1009, %v1834
      %1867 = vst.msk [vmem:[#allocation3 + $0x3f8] sm:$0xff] %vm1009, %v1835
      %1868 = vst.msk [vmem:[#allocation3 + $0x430] sm:$0xff] %vm1009, %v1836
      %1869 = vst.msk [vmem:[#allocation3 + $0x468] sm:$0xff] %vm1009, %v1837
      %1870 = vst.msk [vmem:[#allocation3 + $0x4a0] sm:$0xff] %vm1009, %v1838
      %1871 = vst.msk [vmem:[#allocation3 + $0x4d8] sm:$0xff] %vm1009, %v1839
      %1872 = vst.msk [vmem:[#allocation3 + $0x510] sm:$0xff] %vm1009, %v1840
      %1873 = vst.msk [vmem:[#allocation3 + $0x548] sm:$0xff] %vm1009, %v1841
      %1874 = vst.msk [vmem:[#allocation3 + $0x580] sm:$0xff] %vm1009, %v1842
      %1875 = vst.msk [vmem:[#allocation3 + $0x5b8] sm:$0xff] %vm1009, %v1843
      %1876 = vst.msk [vmem:[#allocation3 + $0x5f0] sm:$0xff] %vm1009, %v1844
      %1877 = vst.msk [vmem:[#allocation3 + $0x628] sm:$0xff] %vm1009, %v1845
      %1878 = vst.msk [vmem:[#allocation3 + $0x660] sm:$0xff] %vm1009, %v1846
      %1879 = vst.msk [vmem:[#allocation3 + $0x698] sm:$0xff] %vm1009, %v1847
      %1880 = vst.msk [vmem:[#allocation3 + $0x6d0] sm:$0xff] %vm1009, %v1848
      %v1881 = vld [vmem:[%s1047] sm:$0xff]
      %v1882 = vld [vmem:[%s1047 + $0x8] sm:$0xff]
      %v1883 = vld [vmem:[%s1047 + $0x18] sm:$0xff]
      %v1884 = vld [vmem:[%s1047 + $0x20] sm:$0xff]
      %v1885 = vld [vmem:[%s1047 + $0x30] sm:$0xff]
      %v1886 = vld [vmem:[%s1047 + $0x38] sm:$0xff]
      %v1887 = vld [vmem:[%s1047 + $0x48] sm:$0xff]
      %v1888 = vld [vmem:[%s1047 + $0x50] sm:$0xff]
      %v1889 = vld [vmem:[%s1047 + $0x60] sm:$0xff]
      %v1890 = vld [vmem:[%s1047 + $0x68] sm:$0xff]
      %v1891 = vld [vmem:[%s1047 + $0x78] sm:$0xff]
      %v1892 = vld [vmem:[%s1047 + $0x80] sm:$0xff]
      %v1893 = vld [vmem:[%s1047 + $0x90] sm:$0xff]
      %v1894 = vld [vmem:[%s1047 + $0x98] sm:$0xff]
      %v1895 = vld [vmem:[%s1047 + $0xa8] sm:$0xff]
      %v1896 = vld [vmem:[%s1047 + $0xb0] sm:$0xff]
      %v1897 = vld [vmem:[%s1047 + $0xc0] sm:$0xff]
      %v1898 = vld [vmem:[%s1047 + $0xc8] sm:$0xff]
      %v1899 = vld [vmem:[%s1047 + $0xd8] sm:$0xff]
      %v1900 = vld [vmem:[%s1047 + $0xe0] sm:$0xff]
      %v1901 = vld [vmem:[%s1047 + $0xf0] sm:$0xff]
      %v1902 = vld [vmem:[%s1047 + $0xf8] sm:$0xff]
      %v1903 = vld [vmem:[%s1047 + $0x108] sm:$0xff]
      %v1904 = vld [vmem:[%s1047 + $0x110] sm:$0xff]
      %v1905 = vld [vmem:[%s1047 + $0x120] sm:$0xff]
      %v1906 = vld [vmem:[%s1047 + $0x128] sm:$0xff]
      %v1907 = vld [vmem:[%s1047 + $0x138] sm:$0xff]
      %v1908 = vld [vmem:[%s1047 + $0x140] sm:$0xff]
      %v1909 = vld [vmem:[%s1047 + $0x150] sm:$0xff]
      %v1910 = vld [vmem:[%s1047 + $0x158] sm:$0xff]
      %v1911 = vld [vmem:[%s1047 + $0x168] sm:$0xff]
      %v1912 = vld [vmem:[%s1047 + $0x170] sm:$0xff]
      %1945 = vrot.lane.b32.xlu0 %v1881, 32
      %v1946 = vpop.permute.xlu0 %1945
      %1947 = vrot.lane.b32.xlu0 %v1882, 32
      %v1948 = vpop.permute.xlu0 %1947
      %1949 = vrot.lane.b32.xlu0 %v1883, 32
      %v1950 = vpop.permute.xlu0 %1949
      %1951 = vrot.lane.b32.xlu0 %v1884, 32
      %v1952 = vpop.permute.xlu0 %1951
      %1953 = vrot.lane.b32.xlu0 %v1885, 32
      %v1954 = vpop.permute.xlu0 %1953
      %1955 = vrot.lane.b32.xlu0 %v1886, 32
      %v1956 = vpop.permute.xlu0 %1955
      %1957 = vrot.lane.b32.xlu0 %v1887, 32
      %v1958 = vpop.permute.xlu0 %1957
      %1959 = vrot.lane.b32.xlu0 %v1888, 32
      %v1960 = vpop.permute.xlu0 %1959
      %1961 = vrot.lane.b32.xlu0 %v1889, 32
      %v1962 = vpop.permute.xlu0 %1961
      %1963 = vrot.lane.b32.xlu0 %v1890, 32
      %v1964 = vpop.permute.xlu0 %1963
      %1965 = vrot.lane.b32.xlu0 %v1891, 32
      %v1966 = vpop.permute.xlu0 %1965
      %1967 = vrot.lane.b32.xlu0 %v1892, 32
      %v1968 = vpop.permute.xlu0 %1967
      %1969 = vrot.lane.b32.xlu0 %v1893, 32
      %v1970 = vpop.permute.xlu0 %1969
      %1971 = vrot.lane.b32.xlu0 %v1894, 32
      %v1972 = vpop.permute.xlu0 %1971
      %1973 = vrot.lane.b32.xlu0 %v1895, 32
      %v1974 = vpop.permute.xlu0 %1973
      %1975 = vrot.lane.b32.xlu0 %v1896, 32
      %v1976 = vpop.permute.xlu0 %1975
      %1977 = vrot.lane.b32.xlu0 %v1897, 32
      %v1978 = vpop.permute.xlu0 %1977
      %1979 = vrot.lane.b32.xlu0 %v1898, 32
      %v1980 = vpop.permute.xlu0 %1979
      %1981 = vrot.lane.b32.xlu0 %v1899, 32
      %v1982 = vpop.permute.xlu0 %1981
      %1983 = vrot.lane.b32.xlu0 %v1900, 32
      %v1984 = vpop.permute.xlu0 %1983
      %1985 = vrot.lane.b32.xlu0 %v1901, 32
      %v1986 = vpop.permute.xlu0 %1985
      %1987 = vrot.lane.b32.xlu0 %v1902, 32
      %v1988 = vpop.permute.xlu0 %1987
      %1989 = vrot.lane.b32.xlu0 %v1903, 32
      %v1990 = vpop.permute.xlu0 %1989
      %1991 = vrot.lane.b32.xlu0 %v1904, 32
      %v1992 = vpop.permute.xlu0 %1991
      %1993 = vrot.lane.b32.xlu0 %v1905, 32
      %v1994 = vpop.permute.xlu0 %1993
      %1995 = vrot.lane.b32.xlu0 %v1906, 32
      %v1996 = vpop.permute.xlu0 %1995
      %1997 = vrot.lane.b32.xlu0 %v1907, 32
      %v1998 = vpop.permute.xlu0 %1997
      %1999 = vrot.lane.b32.xlu0 %v1908, 32
      %v2000 = vpop.permute.xlu0 %1999
      %2001 = vrot.lane.b32.xlu0 %v1909, 32
      %v2002 = vpop.permute.xlu0 %2001
      %2003 = vrot.lane.b32.xlu0 %v1910, 32
      %v2004 = vpop.permute.xlu0 %2003
      %2005 = vrot.lane.b32.xlu0 %v1911, 32
      %v2006 = vpop.permute.xlu0 %2005
      %2007 = vrot.lane.b32.xlu0 %v1912, 32
      %v2008 = vpop.permute.xlu0 %2007
      %2041 = vst.msk [vmem:[#allocation3 + $0x8] sm:$0xff] %vm1398, %v1946
      %2042 = vst.msk [vmem:[#allocation3 + $0x40] sm:$0xff] %vm1398, %v1948
      %2043 = vst.msk [vmem:[#allocation3 + $0x78] sm:$0xff] %vm1398, %v1950
      %2044 = vst.msk [vmem:[#allocation3 + $0xb0] sm:$0xff] %vm1398, %v1952
      %2045 = vst.msk [vmem:[#allocation3 + $0xe8] sm:$0xff] %vm1398, %v1954
      %2046 = vst.msk [vmem:[#allocation3 + $0x120] sm:$0xff] %vm1398, %v1956
      %2047 = vst.msk [vmem:[#allocation3 + $0x158] sm:$0xff] %vm1398, %v1958
      %2048 = vst.msk [vmem:[#allocation3 + $0x190] sm:$0xff] %vm1398, %v1960
      %2049 = vst.msk [vmem:[#allocation3 + $0x1c8] sm:$0xff] %vm1398, %v1962
      %2050 = vst.msk [vmem:[#allocation3 + $0x200] sm:$0xff] %vm1398, %v1964
      %2051 = vst.msk [vmem:[#allocation3 + $0x238] sm:$0xff] %vm1398, %v1966
      %2052 = vst.msk [vmem:[#allocation3 + $0x270] sm:$0xff] %vm1398, %v1968
      %2053 = vst.msk [vmem:[#allocation3 + $0x2a8] sm:$0xff] %vm1398, %v1970
      %2054 = vst.msk [vmem:[#allocation3 + $0x2e0] sm:$0xff] %vm1398, %v1972
      %2055 = vst.msk [vmem:[#allocation3 + $0x318] sm:$0xff] %vm1398, %v1974
      %2056 = vst.msk [vmem:[#allocation3 + $0x350] sm:$0xff] %vm1398, %v1976
      %2057 = vst.msk [vmem:[#allocation3 + $0x388] sm:$0xff] %vm1398, %v1978
      %2058 = vst.msk [vmem:[#allocation3 + $0x3c0] sm:$0xff] %vm1398, %v1980
      %2059 = vst.msk [vmem:[#allocation3 + $0x3f8] sm:$0xff] %vm1398, %v1982
      %2060 = vst.msk [vmem:[#allocation3 + $0x430] sm:$0xff] %vm1398, %v1984
      %2061 = vst.msk [vmem:[#allocation3 + $0x468] sm:$0xff] %vm1398, %v1986
      %2062 = vst.msk [vmem:[#allocation3 + $0x4a0] sm:$0xff] %vm1398, %v1988
      %2063 = vst.msk [vmem:[#allocation3 + $0x4d8] sm:$0xff] %vm1398, %v1990
      %2064 = vst.msk [vmem:[#allocation3 + $0x510] sm:$0xff] %vm1398, %v1992
      %2065 = vst.msk [vmem:[#allocation3 + $0x548] sm:$0xff] %vm1398, %v1994
      %2066 = vst.msk [vmem:[#allocation3 + $0x580] sm:$0xff] %vm1398, %v1996
      %2067 = vst.msk [vmem:[#allocation3 + $0x5b8] sm:$0xff] %vm1398, %v1998
      %2068 = vst.msk [vmem:[#allocation3 + $0x5f0] sm:$0xff] %vm1398, %v2000
      %2069 = vst.msk [vmem:[#allocation3 + $0x628] sm:$0xff] %vm1398, %v2002
      %2070 = vst.msk [vmem:[#allocation3 + $0x660] sm:$0xff] %vm1398, %v2004
      %2071 = vst.msk [vmem:[#allocation3 + $0x698] sm:$0xff] %vm1398, %v2006
      %2072 = vst.msk [vmem:[#allocation3 + $0x6d0] sm:$0xff] %vm1398, %v2008
      %v2073 = vld [vmem:[%s1047 + $0x1] sm:$0xff]
      %v2074 = vld [vmem:[%s1047 + $0x9] sm:$0xff]
      %v2075 = vld [vmem:[%s1047 + $0x19] sm:$0xff]
      %v2076 = vld [vmem:[%s1047 + $0x21] sm:$0xff]
      %v2077 = vld [vmem:[%s1047 + $0x31] sm:$0xff]
      %v2078 = vld [vmem:[%s1047 + $0x39] sm:$0xff]
      %v2079 = vld [vmem:[%s1047 + $0x49] sm:$0xff]
      %v2080 = vld [vmem:[%s1047 + $0x51] sm:$0xff]
      %v2081 = vld [vmem:[%s1047 + $0x61] sm:$0xff]
      %v2082 = vld [vmem:[%s1047 + $0x69] sm:$0xff]
      %v2083 = vld [vmem:[%s1047 + $0x79] sm:$0xff]
      %v2084 = vld [vmem:[%s1047 + $0x81] sm:$0xff]
      %v2085 = vld [vmem:[%s1047 + $0x91] sm:$0xff]
      %v2086 = vld [vmem:[%s1047 + $0x99] sm:$0xff]
      %v2087 = vld [vmem:[%s1047 + $0xa9] sm:$0xff]
      %v2088 = vld [vmem:[%s1047 + $0xb1] sm:$0xff]
      %v2089 = vld [vmem:[%s1047 + $0xc1] sm:$0xff]
      %v2090 = vld [vmem:[%s1047 + $0xc9] sm:$0xff]
      %v2091 = vld [vmem:[%s1047 + $0xd9] sm:$0xff]
      %v2092 = vld [vmem:[%s1047 + $0xe1] sm:$0xff]
      %v2093 = vld [vmem:[%s1047 + $0xf1] sm:$0xff]
      %v2094 = vld [vmem:[%s1047 + $0xf9] sm:$0xff]
      %v2095 = vld [vmem:[%s1047 + $0x109] sm:$0xff]
      %v2096 = vld [vmem:[%s1047 + $0x111] sm:$0xff]
      %v2097 = vld [vmem:[%s1047 + $0x121] sm:$0xff]
      %v2098 = vld [vmem:[%s1047 + $0x129] sm:$0xff]
      %v2099 = vld [vmem:[%s1047 + $0x139] sm:$0xff]
      %v2100 = vld [vmem:[%s1047 + $0x141] sm:$0xff]
      %v2101 = vld [vmem:[%s1047 + $0x151] sm:$0xff]
      %v2102 = vld [vmem:[%s1047 + $0x159] sm:$0xff]
      %v2103 = vld [vmem:[%s1047 + $0x169] sm:$0xff]
      %v2104 = vld [vmem:[%s1047 + $0x171] sm:$0xff]
      %2137 = vrot.lane.b32.xlu0 %v2073, 64
      %v2138 = vpop.permute.xlu0 %2137
      %2139 = vrot.lane.b32.xlu0 %v2074, 64
      %v2140 = vpop.permute.xlu0 %2139
      %2141 = vrot.lane.b32.xlu0 %v2075, 64
      %v2142 = vpop.permute.xlu0 %2141
      %2143 = vrot.lane.b32.xlu0 %v2076, 64
      %v2144 = vpop.permute.xlu0 %2143
      %2145 = vrot.lane.b32.xlu0 %v2077, 64
      %v2146 = vpop.permute.xlu0 %2145
      %2147 = vrot.lane.b32.xlu0 %v2078, 64
      %v2148 = vpop.permute.xlu0 %2147
      %2149 = vrot.lane.b32.xlu0 %v2079, 64
      %v2150 = vpop.permute.xlu0 %2149
      %2151 = vrot.lane.b32.xlu0 %v2080, 64
      %v2152 = vpop.permute.xlu0 %2151
      %2153 = vrot.lane.b32.xlu0 %v2081, 64
      %v2154 = vpop.permute.xlu0 %2153
      %2155 = vrot.lane.b32.xlu0 %v2082, 64
      %v2156 = vpop.permute.xlu0 %2155
      %2157 = vrot.lane.b32.xlu0 %v2083, 64
      %v2158 = vpop.permute.xlu0 %2157
      %2159 = vrot.lane.b32.xlu0 %v2084, 64
      %v2160 = vpop.permute.xlu0 %2159
      %2161 = vrot.lane.b32.xlu0 %v2085, 64
      %v2162 = vpop.permute.xlu0 %2161
      %2163 = vrot.lane.b32.xlu0 %v2086, 64
      %v2164 = vpop.permute.xlu0 %2163
      %2165 = vrot.lane.b32.xlu0 %v2087, 64
      %v2166 = vpop.permute.xlu0 %2165
      %2167 = vrot.lane.b32.xlu0 %v2088, 64
      %v2168 = vpop.permute.xlu0 %2167
      %2169 = vrot.lane.b32.xlu0 %v2089, 64
      %v2170 = vpop.permute.xlu0 %2169
      %2171 = vrot.lane.b32.xlu0 %v2090, 64
      %v2172 = vpop.permute.xlu0 %2171
      %2173 = vrot.lane.b32.xlu0 %v2091, 64
      %v2174 = vpop.permute.xlu0 %2173
      %2175 = vrot.lane.b32.xlu0 %v2092, 64
      %v2176 = vpop.permute.xlu0 %2175
      %2177 = vrot.lane.b32.xlu0 %v2093, 64
      %v2178 = vpop.permute.xlu0 %2177
      %2179 = vrot.lane.b32.xlu0 %v2094, 64
      %v2180 = vpop.permute.xlu0 %2179
      %2181 = vrot.lane.b32.xlu0 %v2095, 64
      %v2182 = vpop.permute.xlu0 %2181
      %2183 = vrot.lane.b32.xlu0 %v2096, 64
      %v2184 = vpop.permute.xlu0 %2183
      %2185 = vrot.lane.b32.xlu0 %v2097, 64
      %v2186 = vpop.permute.xlu0 %2185
      %2187 = vrot.lane.b32.xlu0 %v2098, 64
      %v2188 = vpop.permute.xlu0 %2187
      %2189 = vrot.lane.b32.xlu0 %v2099, 64
      %v2190 = vpop.permute.xlu0 %2189
      %2191 = vrot.lane.b32.xlu0 %v2100, 64
      %v2192 = vpop.permute.xlu0 %2191
      %2193 = vrot.lane.b32.xlu0 %v2101, 64
      %v2194 = vpop.permute.xlu0 %2193
      %2195 = vrot.lane.b32.xlu0 %v2102, 64
      %v2196 = vpop.permute.xlu0 %2195
      %2197 = vrot.lane.b32.xlu0 %v2103, 64
      %v2198 = vpop.permute.xlu0 %2197
      %2199 = vrot.lane.b32.xlu0 %v2104, 64
      %v2200 = vpop.permute.xlu0 %2199
      %2233 = vst.msk [vmem:[#allocation3 + $0x8] sm:$0xff] %vm1591, %v2138
      %2234 = vst.msk [vmem:[#allocation3 + $0x40] sm:$0xff] %vm1591, %v2140
      %2235 = vst.msk [vmem:[#allocation3 + $0x78] sm:$0xff] %vm1591, %v2142
      %2236 = vst.msk [vmem:[#allocation3 + $0xb0] sm:$0xff] %vm1591, %v2144
      %2237 = vst.msk [vmem:[#allocation3 + $0xe8] sm:$0xff] %vm1591, %v2146
      %2238 = vst.msk [vmem:[#allocation3 + $0x120] sm:$0xff] %vm1591, %v2148
      %2239 = vst.msk [vmem:[#allocation3 + $0x158] sm:$0xff] %vm1591, %v2150
      %2240 = vst.msk [vmem:[#allocation3 + $0x190] sm:$0xff] %vm1591, %v2152
      %2241 = vst.msk [vmem:[#allocation3 + $0x1c8] sm:$0xff] %vm1591, %v2154
      %2242 = vst.msk [vmem:[#allocation3 + $0x200] sm:$0xff] %vm1591, %v2156
      %2243 = vst.msk [vmem:[#allocation3 + $0x238] sm:$0xff] %vm1591, %v2158
      %2244 = vst.msk [vmem:[#allocation3 + $0x270] sm:$0xff] %vm1591, %v2160
      %2245 = vst.msk [vmem:[#allocation3 + $0x2a8] sm:$0xff] %vm1591, %v2162
      %2246 = vst.msk [vmem:[#allocation3 + $0x2e0] sm:$0xff] %vm1591, %v2164
      %2247 = vst.msk [vmem:[#allocation3 + $0x318] sm:$0xff] %vm1591, %v2166
      %2248 = vst.msk [vmem:[#allocation3 + $0x350] sm:$0xff] %vm1591, %v2168
      %2249 = vst.msk [vmem:[#allocation3 + $0x388] sm:$0xff] %vm1591, %v2170
      %2250 = vst.msk [vmem:[#allocation3 + $0x3c0] sm:$0xff] %vm1591, %v2172
      %2251 = vst.msk [vmem:[#allocation3 + $0x3f8] sm:$0xff] %vm1591, %v2174
      %2252 = vst.msk [vmem:[#allocation3 + $0x430] sm:$0xff] %vm1591, %v2176
      %2253 = vst.msk [vmem:[#allocation3 + $0x468] sm:$0xff] %vm1591, %v2178
      %2254 = vst.msk [vmem:[#allocation3 + $0x4a0] sm:$0xff] %vm1591, %v2180
      %2255 = vst.msk [vmem:[#allocation3 + $0x4d8] sm:$0xff] %vm1591, %v2182
      %2256 = vst.msk [vmem:[#allocation3 + $0x510] sm:$0xff] %vm1591, %v2184
      %2257 = vst.msk [vmem:[#allocation3 + $0x548] sm:$0xff] %vm1591, %v2186
      %2258 = vst.msk [vmem:[#allocation3 + $0x580] sm:$0xff] %vm1591, %v2188
      %2259 = vst.msk [vmem:[#allocation3 + $0x5b8] sm:$0xff] %vm1591, %v2190
      %2260 = vst.msk [vmem:[#allocation3 + $0x5f0] sm:$0xff] %vm1591, %v2192
      %2261 = vst.msk [vmem:[#allocation3 + $0x628] sm:$0xff] %vm1591, %v2194
      %2262 = vst.msk [vmem:[#allocation3 + $0x660] sm:$0xff] %vm1591, %v2196
      %2263 = vst.msk [vmem:[#allocation3 + $0x698] sm:$0xff] %vm1591, %v2198
      %2264 = vst.msk [vmem:[#allocation3 + $0x6d0] sm:$0xff] %vm1591, %v2200
      %v2265 = vld [vmem:[%s1047 + $0x2] sm:$0xff]
      %v2266 = vld [vmem:[%s1047 + $0xa] sm:$0xff]
      %v2267 = vld [vmem:[%s1047 + $0x1a] sm:$0xff]
      %v2268 = vld [vmem:[%s1047 + $0x22] sm:$0xff]
      %v2269 = vld [vmem:[%s1047 + $0x32] sm:$0xff]
      %v2270 = vld [vmem:[%s1047 + $0x3a] sm:$0xff]
      %v2271 = vld [vmem:[%s1047 + $0x4a] sm:$0xff]
      %v2272 = vld [vmem:[%s1047 + $0x52] sm:$0xff]
      %v2273 = vld [vmem:[%s1047 + $0x62] sm:$0xff]
      %v2274 = vld [vmem:[%s1047 + $0x6a] sm:$0xff]
      %v2275 = vld [vmem:[%s1047 + $0x7a] sm:$0xff]
      %v2276 = vld [vmem:[%s1047 + $0x82] sm:$0xff]
      %v2277 = vld [vmem:[%s1047 + $0x92] sm:$0xff]
      %v2278 = vld [vmem:[%s1047 + $0x9a] sm:$0xff]
      %v2279 = vld [vmem:[%s1047 + $0xaa] sm:$0xff]
      %v2280 = vld [vmem:[%s1047 + $0xb2] sm:$0xff]
      %v2281 = vld [vmem:[%s1047 + $0xc2] sm:$0xff]
      %v2282 = vld [vmem:[%s1047 + $0xca] sm:$0xff]
      %v2283 = vld [vmem:[%s1047 + $0xda] sm:$0xff]
      %v2284 = vld [vmem:[%s1047 + $0xe2] sm:$0xff]
      %v2285 = vld [vmem:[%s1047 + $0xf2] sm:$0xff]
      %v2286 = vld [vmem:[%s1047 + $0xfa] sm:$0xff]
      %v2287 = vld [vmem:[%s1047 + $0x10a] sm:$0xff]
      %v2288 = vld [vmem:[%s1047 + $0x112] sm:$0xff]
      %v2289 = vld [vmem:[%s1047 + $0x122] sm:$0xff]
      %v2290 = vld [vmem:[%s1047 + $0x12a] sm:$0xff]
      %v2291 = vld [vmem:[%s1047 + $0x13a] sm:$0xff]
      %v2292 = vld [vmem:[%s1047 + $0x142] sm:$0xff]
      %v2293 = vld [vmem:[%s1047 + $0x152] sm:$0xff]
      %v2294 = vld [vmem:[%s1047 + $0x15a] sm:$0xff]
      %v2295 = vld [vmem:[%s1047 + $0x16a] sm:$0xff]
      %v2296 = vld [vmem:[%s1047 + $0x172] sm:$0xff]
      %2329 = vrot.lane.b32.xlu0 %v2265, 96
      %v2330 = vpop.permute.xlu0 %2329
      %2331 = vrot.lane.b32.xlu0 %v2266, 96
      %v2332 = vpop.permute.xlu0 %2331
      %2333 = vrot.lane.b32.xlu0 %v2267, 96
      %v2334 = vpop.permute.xlu0 %2333
      %2335 = vrot.lane.b32.xlu0 %v2268, 96
      %v2336 = vpop.permute.xlu0 %2335
      %2337 = vrot.lane.b32.xlu0 %v2269, 96
      %v2338 = vpop.permute.xlu0 %2337
      %2339 = vrot.lane.b32.xlu0 %v2270, 96
      %v2340 = vpop.permute.xlu0 %2339
      %2341 = vrot.lane.b32.xlu0 %v2271, 96
      %v2342 = vpop.permute.xlu0 %2341
      %2343 = vrot.lane.b32.xlu0 %v2272, 96
      %v2344 = vpop.permute.xlu0 %2343
      %2345 = vrot.lane.b32.xlu0 %v2273, 96
      %v2346 = vpop.permute.xlu0 %2345
      %2347 = vrot.lane.b32.xlu0 %v2274, 96
      %v2348 = vpop.permute.xlu0 %2347
      %2349 = vrot.lane.b32.xlu0 %v2275, 96
      %v2350 = vpop.permute.xlu0 %2349
      %2351 = vrot.lane.b32.xlu0 %v2276, 96
      %v2352 = vpop.permute.xlu0 %2351
      %2353 = vrot.lane.b32.xlu0 %v2277, 96
      %v2354 = vpop.permute.xlu0 %2353
      %2355 = vrot.lane.b32.xlu0 %v2278, 96
      %v2356 = vpop.permute.xlu0 %2355
      %2357 = vrot.lane.b32.xlu0 %v2279, 96
      %v2358 = vpop.permute.xlu0 %2357
      %2359 = vrot.lane.b32.xlu0 %v2280, 96
      %v2360 = vpop.permute.xlu0 %2359
      %2361 = vrot.lane.b32.xlu0 %v2281, 96
      %v2362 = vpop.permute.xlu0 %2361
      %2363 = vrot.lane.b32.xlu0 %v2282, 96
      %v2364 = vpop.permute.xlu0 %2363
      %2365 = vrot.lane.b32.xlu0 %v2283, 96
      %v2366 = vpop.permute.xlu0 %2365
      %2367 = vrot.lane.b32.xlu0 %v2284, 96
      %v2368 = vpop.permute.xlu0 %2367
      %2369 = vrot.lane.b32.xlu0 %v2285, 96
      %v2370 = vpop.permute.xlu0 %2369
      %2371 = vrot.lane.b32.xlu0 %v2286, 96
      %v2372 = vpop.permute.xlu0 %2371
      %2373 = vrot.lane.b32.xlu0 %v2287, 96
      %v2374 = vpop.permute.xlu0 %2373
      %2375 = vrot.lane.b32.xlu0 %v2288, 96
      %v2376 = vpop.permute.xlu0 %2375
      %2377 = vrot.lane.b32.xlu0 %v2289, 96
      %v2378 = vpop.permute.xlu0 %2377
      %2379 = vrot.lane.b32.xlu0 %v2290, 96
      %v2380 = vpop.permute.xlu0 %2379
      %2381 = vrot.lane.b32.xlu0 %v2291, 96
      %v2382 = vpop.permute.xlu0 %2381
      %2383 = vrot.lane.b32.xlu0 %v2292, 96
      %v2384 = vpop.permute.xlu0 %2383
      %2385 = vrot.lane.b32.xlu0 %v2293, 96
      %v2386 = vpop.permute.xlu0 %2385
      %2387 = vrot.lane.b32.xlu0 %v2294, 96
      %v2388 = vpop.permute.xlu0 %2387
      %2389 = vrot.lane.b32.xlu0 %v2295, 96
      %v2390 = vpop.permute.xlu0 %2389
      %2391 = vrot.lane.b32.xlu0 %v2296, 96
      %v2392 = vpop.permute.xlu0 %2391
      %2425 = vst.msk [vmem:[#allocation3 + $0x8] sm:$0xff] %vm1784, %v2330
      %2426 = vst.msk [vmem:[#allocation3 + $0x40] sm:$0xff] %vm1784, %v2332
      %2427 = vst.msk [vmem:[#allocation3 + $0x78] sm:$0xff] %vm1784, %v2334
      %2428 = vst.msk [vmem:[#allocation3 + $0xb0] sm:$0xff] %vm1784, %v2336
      %2429 = vst.msk [vmem:[#allocation3 + $0xe8] sm:$0xff] %vm1784, %v2338
      %2430 = vst.msk [vmem:[#allocation3 + $0x120] sm:$0xff] %vm1784, %v2340
      %2431 = vst.msk [vmem:[#allocation3 + $0x158] sm:$0xff] %vm1784, %v2342
      %2432 = vst.msk [vmem:[#allocation3 + $0x190] sm:$0xff] %vm1784, %v2344
      %2433 = vst.msk [vmem:[#allocation3 + $0x1c8] sm:$0xff] %vm1784, %v2346
      %2434 = vst.msk [vmem:[#allocation3 + $0x200] sm:$0xff] %vm1784, %v2348
      %2435 = vst.msk [vmem:[#allocation3 + $0x238] sm:$0xff] %vm1784, %v2350
      %2436 = vst.msk [vmem:[#allocation3 + $0x270] sm:$0xff] %vm1784, %v2352
      %2437 = vst.msk [vmem:[#allocation3 + $0x2a8] sm:$0xff] %vm1784, %v2354
      %2438 = vst.msk [vmem:[#allocation3 + $0x2e0] sm:$0xff] %vm1784, %v2356
      %2439 = vst.msk [vmem:[#allocation3 + $0x318] sm:$0xff] %vm1784, %v2358
      %2440 = vst.msk [vmem:[#allocation3 + $0x350] sm:$0xff] %vm1784, %v2360
      %2441 = vst.msk [vmem:[#allocation3 + $0x388] sm:$0xff] %vm1784, %v2362
      %2442 = vst.msk [vmem:[#allocation3 + $0x3c0] sm:$0xff] %vm1784, %v2364
      %2443 = vst.msk [vmem:[#allocation3 + $0x3f8] sm:$0xff] %vm1784, %v2366
      %2444 = vst.msk [vmem:[#allocation3 + $0x430] sm:$0xff] %vm1784, %v2368
      %2445 = vst.msk [vmem:[#allocation3 + $0x468] sm:$0xff] %vm1784, %v2370
      %2446 = vst.msk [vmem:[#allocation3 + $0x4a0] sm:$0xff] %vm1784, %v2372
      %2447 = vst.msk [vmem:[#allocation3 + $0x4d8] sm:$0xff] %vm1784, %v2374
      %2448 = vst.msk [vmem:[#allocation3 + $0x510] sm:$0xff] %vm1784, %v2376
      %2449 = vst.msk [vmem:[#allocation3 + $0x548] sm:$0xff] %vm1784, %v2378
      %2450 = vst.msk [vmem:[#allocation3 + $0x580] sm:$0xff] %vm1784, %v2380
      %2451 = vst.msk [vmem:[#allocation3 + $0x5b8] sm:$0xff] %vm1784, %v2382
      %2452 = vst.msk [vmem:[#allocation3 + $0x5f0] sm:$0xff] %vm1784, %v2384
      %2453 = vst.msk [vmem:[#allocation3 + $0x628] sm:$0xff] %vm1784, %v2386
      %2454 = vst.msk [vmem:[#allocation3 + $0x660] sm:$0xff] %vm1784, %v2388
      %2455 = vst.msk [vmem:[#allocation3 + $0x698] sm:$0xff] %vm1784, %v2390
      %2456 = vst.msk [vmem:[#allocation3 + $0x6d0] sm:$0xff] %vm1784, %v2392
      %v2457 = vld [vmem:[%s1047 + $0x3] sm:$0xff]
      %v2458 = vld [vmem:[%s1047 + $0xb] sm:$0xff]
      %v2459 = vld [vmem:[%s1047 + $0x1b] sm:$0xff]
      %v2460 = vld [vmem:[%s1047 + $0x23] sm:$0xff]
      %v2461 = vld [vmem:[%s1047 + $0x33] sm:$0xff]
      %v2462 = vld [vmem:[%s1047 + $0x3b] sm:$0xff]
      %v2463 = vld [vmem:[%s1047 + $0x4b] sm:$0xff]
      %v2464 = vld [vmem:[%s1047 + $0x53] sm:$0xff]
      %v2465 = vld [vmem:[%s1047 + $0x63] sm:$0xff]
      %v2466 = vld [vmem:[%s1047 + $0x6b] sm:$0xff]
      %v2467 = vld [vmem:[%s1047 + $0x7b] sm:$0xff]
      %v2468 = vld [vmem:[%s1047 + $0x83] sm:$0xff]
      %v2469 = vld [vmem:[%s1047 + $0x93] sm:$0xff]
      %v2470 = vld [vmem:[%s1047 + $0x9b] sm:$0xff]
      %v2471 = vld [vmem:[%s1047 + $0xab] sm:$0xff]
      %v2472 = vld [vmem:[%s1047 + $0xb3] sm:$0xff]
      %v2473 = vld [vmem:[%s1047 + $0xc3] sm:$0xff]
      %v2474 = vld [vmem:[%s1047 + $0xcb] sm:$0xff]
      %v2475 = vld [vmem:[%s1047 + $0xdb] sm:$0xff]
      %v2476 = vld [vmem:[%s1047 + $0xe3] sm:$0xff]
      %v2477 = vld [vmem:[%s1047 + $0xf3] sm:$0xff]
      %v2478 = vld [vmem:[%s1047 + $0xfb] sm:$0xff]
      %v2479 = vld [vmem:[%s1047 + $0x10b] sm:$0xff]
      %v2480 = vld [vmem:[%s1047 + $0x113] sm:$0xff]
      %v2481 = vld [vmem:[%s1047 + $0x123] sm:$0xff]
      %v2482 = vld [vmem:[%s1047 + $0x12b] sm:$0xff]
      %v2483 = vld [vmem:[%s1047 + $0x13b] sm:$0xff]
      %v2484 = vld [vmem:[%s1047 + $0x143] sm:$0xff]
      %v2485 = vld [vmem:[%s1047 + $0x153] sm:$0xff]
      %v2486 = vld [vmem:[%s1047 + $0x15b] sm:$0xff]
      %v2487 = vld [vmem:[%s1047 + $0x16b] sm:$0xff]
      %v2488 = vld [vmem:[%s1047 + $0x173] sm:$0xff]
      %2489 = vst.msk [vmem:[#allocation3 + $0x10] sm:$0xff] %vm1009, %v2457
      %2490 = vst.msk [vmem:[#allocation3 + $0x48] sm:$0xff] %vm1009, %v2458
      %2491 = vst.msk [vmem:[#allocation3 + $0x80] sm:$0xff] %vm1009, %v2459
      %2492 = vst.msk [vmem:[#allocation3 + $0xb8] sm:$0xff] %vm1009, %v2460
      %2493 = vst.msk [vmem:[#allocation3 + $0xf0] sm:$0xff] %vm1009, %v2461
      %2494 = vst.msk [vmem:[#allocation3 + $0x128] sm:$0xff] %vm1009, %v2462
      %2495 = vst.msk [vmem:[#allocation3 + $0x160] sm:$0xff] %vm1009, %v2463
      %2496 = vst.msk [vmem:[#allocation3 + $0x198] sm:$0xff] %vm1009, %v2464
      %2497 = vst.msk [vmem:[#allocation3 + $0x1d0] sm:$0xff] %vm1009, %v2465
      %2498 = vst.msk [vmem:[#allocation3 + $0x208] sm:$0xff] %vm1009, %v2466
      %2499 = vst.msk [vmem:[#allocation3 + $0x240] sm:$0xff] %vm1009, %v2467
      %2500 = vst.msk [vmem:[#allocation3 + $0x278] sm:$0xff] %vm1009, %v2468
      %2501 = vst.msk [vmem:[#allocation3 + $0x2b0] sm:$0xff] %vm1009, %v2469
      %2502 = vst.msk [vmem:[#allocation3 + $0x2e8] sm:$0xff] %vm1009, %v2470
      %2503 = vst.msk [vmem:[#allocation3 + $0x320] sm:$0xff] %vm1009, %v2471
      %2504 = vst.msk [vmem:[#allocation3 + $0x358] sm:$0xff] %vm1009, %v2472
      %2505 = vst.msk [vmem:[#allocation3 + $0x390] sm:$0xff] %vm1009, %v2473
      %2506 = vst.msk [vmem:[#allocation3 + $0x3c8] sm:$0xff] %vm1009, %v2474
      %2507 = vst.msk [vmem:[#allocation3 + $0x400] sm:$0xff] %vm1009, %v2475
      %2508 = vst.msk [vmem:[#allocation3 + $0x438] sm:$0xff] %vm1009, %v2476
      %2509 = vst.msk [vmem:[#allocation3 + $0x470] sm:$0xff] %vm1009, %v2477
      %2510 = vst.msk [vmem:[#allocation3 + $0x4a8] sm:$0xff] %vm1009, %v2478
      %2511 = vst.msk [vmem:[#allocation3 + $0x4e0] sm:$0xff] %vm1009, %v2479
      %2512 = vst.msk [vmem:[#allocation3 + $0x518] sm:$0xff] %vm1009, %v2480
      %2513 = vst.msk [vmem:[#allocation3 + $0x550] sm:$0xff] %vm1009, %v2481
      %2514 = vst.msk [vmem:[#allocation3 + $0x588] sm:$0xff] %vm1009, %v2482
      %2515 = vst.msk [vmem:[#allocation3 + $0x5c0] sm:$0xff] %vm1009, %v2483
      %2516 = vst.msk [vmem:[#allocation3 + $0x5f8] sm:$0xff] %vm1009, %v2484
      %2517 = vst.msk [vmem:[#allocation3 + $0x630] sm:$0xff] %vm1009, %v2485
      %2518 = vst.msk [vmem:[#allocation3 + $0x668] sm:$0xff] %vm1009, %v2486
      %2519 = vst.msk [vmem:[#allocation3 + $0x6a0] sm:$0xff] %vm1009, %v2487
      %2520 = vst.msk [vmem:[#allocation3 + $0x6d8] sm:$0xff] %vm1009, %v2488
      %v2521 = vld [vmem:[%s1047 + $0x4] sm:$0xff]
      %v2522 = vld [vmem:[%s1047 + $0xc] sm:$0xff]
      %v2523 = vld [vmem:[%s1047 + $0x1c] sm:$0xff]
      %v2524 = vld [vmem:[%s1047 + $0x24] sm:$0xff]
      %v2525 = vld [vmem:[%s1047 + $0x34] sm:$0xff]
      %v2526 = vld [vmem:[%s1047 + $0x3c] sm:$0xff]
      %v2527 = vld [vmem:[%s1047 + $0x4c] sm:$0xff]
      %v2528 = vld [vmem:[%s1047 + $0x54] sm:$0xff]
      %v2529 = vld [vmem:[%s1047 + $0x64] sm:$0xff]
      %v2530 = vld [vmem:[%s1047 + $0x6c] sm:$0xff]
      %v2531 = vld [vmem:[%s1047 + $0x7c] sm:$0xff]
      %v2532 = vld [vmem:[%s1047 + $0x84] sm:$0xff]
      %v2533 = vld [vmem:[%s1047 + $0x94] sm:$0xff]
      %v2534 = vld [vmem:[%s1047 + $0x9c] sm:$0xff]
      %v2535 = vld [vmem:[%s1047 + $0xac] sm:$0xff]
      %v2536 = vld [vmem:[%s1047 + $0xb4] sm:$0xff]
      %v2537 = vld [vmem:[%s1047 + $0xc4] sm:$0xff]
      %v2538 = vld [vmem:[%s1047 + $0xcc] sm:$0xff]
      %v2539 = vld [vmem:[%s1047 + $0xdc] sm:$0xff]
      %v2540 = vld [vmem:[%s1047 + $0xe4] sm:$0xff]
      %v2541 = vld [vmem:[%s1047 + $0xf4] sm:$0xff]
      %v2542 = vld [vmem:[%s1047 + $0xfc] sm:$0xff]
      %v2543 = vld [vmem:[%s1047 + $0x10c] sm:$0xff]
      %v2544 = vld [vmem:[%s1047 + $0x114] sm:$0xff]
      %v2545 = vld [vmem:[%s1047 + $0x124] sm:$0xff]
      %v2546 = vld [vmem:[%s1047 + $0x12c] sm:$0xff]
      %v2547 = vld [vmem:[%s1047 + $0x13c] sm:$0xff]
      %v2548 = vld [vmem:[%s1047 + $0x144] sm:$0xff]
      %v2549 = vld [vmem:[%s1047 + $0x154] sm:$0xff]
      %v2550 = vld [vmem:[%s1047 + $0x15c] sm:$0xff]
      %v2551 = vld [vmem:[%s1047 + $0x16c] sm:$0xff]
      %v2552 = vld [vmem:[%s1047 + $0x174] sm:$0xff]
      %2585 = vrot.lane.b32.xlu0 %v2521, 32
      %v2586 = vpop.permute.xlu0 %2585
      %2587 = vrot.lane.b32.xlu0 %v2522, 32
      %v2588 = vpop.permute.xlu0 %2587
      %2589 = vrot.lane.b32.xlu0 %v2523, 32
      %v2590 = vpop.permute.xlu0 %2589
      %2591 = vrot.lane.b32.xlu0 %v2524, 32
      %v2592 = vpop.permute.xlu0 %2591
      %2593 = vrot.lane.b32.xlu0 %v2525, 32
      %v2594 = vpop.permute.xlu0 %2593
      %2595 = vrot.lane.b32.xlu0 %v2526, 32
      %v2596 = vpop.permute.xlu0 %2595
      %2597 = vrot.lane.b32.xlu0 %v2527, 32
      %v2598 = vpop.permute.xlu0 %2597
      %2599 = vrot.lane.b32.xlu0 %v2528, 32
      %v2600 = vpop.permute.xlu0 %2599
      %2601 = vrot.lane.b32.xlu0 %v2529, 32
      %v2602 = vpop.permute.xlu0 %2601
      %2603 = vrot.lane.b32.xlu0 %v2530, 32
      %v2604 = vpop.permute.xlu0 %2603
      %2605 = vrot.lane.b32.xlu0 %v2531, 32
      %v2606 = vpop.permute.xlu0 %2605
      %2607 = vrot.lane.b32.xlu0 %v2532, 32
      %v2608 = vpop.permute.xlu0 %2607
      %2609 = vrot.lane.b32.xlu0 %v2533, 32
      %v2610 = vpop.permute.xlu0 %2609
      %2611 = vrot.lane.b32.xlu0 %v2534, 32
      %v2612 = vpop.permute.xlu0 %2611
      %2613 = vrot.lane.b32.xlu0 %v2535, 32
      %v2614 = vpop.permute.xlu0 %2613
      %2615 = vrot.lane.b32.xlu0 %v2536, 32
      %v2616 = vpop.permute.xlu0 %2615
      %2617 = vrot.lane.b32.xlu0 %v2537, 32
      %v2618 = vpop.permute.xlu0 %2617
      %2619 = vrot.lane.b32.xlu0 %v2538, 32
      %v2620 = vpop.permute.xlu0 %2619
      %2621 = vrot.lane.b32.xlu0 %v2539, 32
      %v2622 = vpop.permute.xlu0 %2621
      %2623 = vrot.lane.b32.xlu0 %v2540, 32
      %v2624 = vpop.permute.xlu0 %2623
      %2625 = vrot.lane.b32.xlu0 %v2541, 32
      %v2626 = vpop.permute.xlu0 %2625
      %2627 = vrot.lane.b32.xlu0 %v2542, 32
      %v2628 = vpop.permute.xlu0 %2627
      %2629 = vrot.lane.b32.xlu0 %v2543, 32
      %v2630 = vpop.permute.xlu0 %2629
      %2631 = vrot.lane.b32.xlu0 %v2544, 32
      %v2632 = vpop.permute.xlu0 %2631
      %2633 = vrot.lane.b32.xlu0 %v2545, 32
      %v2634 = vpop.permute.xlu0 %2633
      %2635 = vrot.lane.b32.xlu0 %v2546, 32
      %v2636 = vpop.permute.xlu0 %2635
      %2637 = vrot.lane.b32.xlu0 %v2547, 32
      %v2638 = vpop.permute.xlu0 %2637
      %2639 = vrot.lane.b32.xlu0 %v2548, 32
      %v2640 = vpop.permute.xlu0 %2639
      %2641 = vrot.lane.b32.xlu0 %v2549, 32
      %v2642 = vpop.permute.xlu0 %2641
      %2643 = vrot.lane.b32.xlu0 %v2550, 32
      %v2644 = vpop.permute.xlu0 %2643
      %2645 = vrot.lane.b32.xlu0 %v2551, 32
      %v2646 = vpop.permute.xlu0 %2645
      %2647 = vrot.lane.b32.xlu0 %v2552, 32
      %v2648 = vpop.permute.xlu0 %2647
      %2681 = vst.msk [vmem:[#allocation3 + $0x10] sm:$0xff] %vm1398, %v2586
      %2682 = vst.msk [vmem:[#allocation3 + $0x48] sm:$0xff] %vm1398, %v2588
      %2683 = vst.msk [vmem:[#allocation3 + $0x80] sm:$0xff] %vm1398, %v2590
      %2684 = vst.msk [vmem:[#allocation3 + $0xb8] sm:$0xff] %vm1398, %v2592
      %2685 = vst.msk [vmem:[#allocation3 + $0xf0] sm:$0xff] %vm1398, %v2594
      %2686 = vst.msk [vmem:[#allocation3 + $0x128] sm:$0xff] %vm1398, %v2596
      %2687 = vst.msk [vmem:[#allocation3 + $0x160] sm:$0xff] %vm1398, %v2598
      %2688 = vst.msk [vmem:[#allocation3 + $0x198] sm:$0xff] %vm1398, %v2600
      %2689 = vst.msk [vmem:[#allocation3 + $0x1d0] sm:$0xff] %vm1398, %v2602
      %2690 = vst.msk [vmem:[#allocation3 + $0x208] sm:$0xff] %vm1398, %v2604
      %2691 = vst.msk [vmem:[#allocation3 + $0x240] sm:$0xff] %vm1398, %v2606
      %2692 = vst.msk [vmem:[#allocation3 + $0x278] sm:$0xff] %vm1398, %v2608
      %2693 = vst.msk [vmem:[#allocation3 + $0x2b0] sm:$0xff] %vm1398, %v2610
      %2694 = vst.msk [vmem:[#allocation3 + $0x2e8] sm:$0xff] %vm1398, %v2612
      %2695 = vst.msk [vmem:[#allocation3 + $0x320] sm:$0xff] %vm1398, %v2614
      %2696 = vst.msk [vmem:[#allocation3 + $0x358] sm:$0xff] %vm1398, %v2616
      %2697 = vst.msk [vmem:[#allocation3 + $0x390] sm:$0xff] %vm1398, %v2618
      %2698 = vst.msk [vmem:[#allocation3 + $0x3c8] sm:$0xff] %vm1398, %v2620
      %2699 = vst.msk [vmem:[#allocation3 + $0x400] sm:$0xff] %vm1398, %v2622
      %2700 = vst.msk [vmem:[#allocation3 + $0x438] sm:$0xff] %vm1398, %v2624
      %2701 = vst.msk [vmem:[#allocation3 + $0x470] sm:$0xff] %vm1398, %v2626
      %2702 = vst.msk [vmem:[#allocation3 + $0x4a8] sm:$0xff] %vm1398, %v2628
      %2703 = vst.msk [vmem:[#allocation3 + $0x4e0] sm:$0xff] %vm1398, %v2630
      %2704 = vst.msk [vmem:[#allocation3 + $0x518] sm:$0xff] %vm1398, %v2632
      %2705 = vst.msk [vmem:[#allocation3 + $0x550] sm:$0xff] %vm1398, %v2634
      %2706 = vst.msk [vmem:[#allocation3 + $0x588] sm:$0xff] %vm1398, %v2636
      %2707 = vst.msk [vmem:[#allocation3 + $0x5c0] sm:$0xff] %vm1398, %v2638
      %2708 = vst.msk [vmem:[#allocation3 + $0x5f8] sm:$0xff] %vm1398, %v2640
      %2709 = vst.msk [vmem:[#allocation3 + $0x630] sm:$0xff] %vm1398, %v2642
      %2710 = vst.msk [vmem:[#allocation3 + $0x668] sm:$0xff] %vm1398, %v2644
      %2711 = vst.msk [vmem:[#allocation3 + $0x6a0] sm:$0xff] %vm1398, %v2646
      %2712 = vst.msk [vmem:[#allocation3 + $0x6d8] sm:$0xff] %vm1398, %v2648
      %v2713 = vld [vmem:[%s1008] sm:$0xff]
      %v2714 = vld [vmem:[%s1008 + $0x8] sm:$0xff]
      %v2715 = vld [vmem:[%s1008 + $0x18] sm:$0xff]
      %v2716 = vld [vmem:[%s1008 + $0x20] sm:$0xff]
      %v2717 = vld [vmem:[%s1008 + $0x30] sm:$0xff]
      %v2718 = vld [vmem:[%s1008 + $0x38] sm:$0xff]
      %v2719 = vld [vmem:[%s1008 + $0x48] sm:$0xff]
      %v2720 = vld [vmem:[%s1008 + $0x50] sm:$0xff]
      %v2721 = vld [vmem:[%s1008 + $0x60] sm:$0xff]
      %v2722 = vld [vmem:[%s1008 + $0x68] sm:$0xff]
      %v2723 = vld [vmem:[%s1008 + $0x78] sm:$0xff]
      %v2724 = vld [vmem:[%s1008 + $0x80] sm:$0xff]
      %v2725 = vld [vmem:[%s1008 + $0x90] sm:$0xff]
      %v2726 = vld [vmem:[%s1008 + $0x98] sm:$0xff]
      %v2727 = vld [vmem:[%s1008 + $0xa8] sm:$0xff]
      %v2728 = vld [vmem:[%s1008 + $0xb0] sm:$0xff]
      %v2729 = vld [vmem:[%s1008 + $0xc0] sm:$0xff]
      %v2730 = vld [vmem:[%s1008 + $0xc8] sm:$0xff]
      %v2731 = vld [vmem:[%s1008 + $0xd8] sm:$0xff]
      %v2732 = vld [vmem:[%s1008 + $0xe0] sm:$0xff]
      %v2733 = vld [vmem:[%s1008 + $0xf0] sm:$0xff]
      %v2734 = vld [vmem:[%s1008 + $0xf8] sm:$0xff]
      %v2735 = vld [vmem:[%s1008 + $0x108] sm:$0xff]
      %v2736 = vld [vmem:[%s1008 + $0x110] sm:$0xff]
      %v2737 = vld [vmem:[%s1008 + $0x120] sm:$0xff]
      %v2738 = vld [vmem:[%s1008 + $0x128] sm:$0xff]
      %v2739 = vld [vmem:[%s1008 + $0x138] sm:$0xff]
      %v2740 = vld [vmem:[%s1008 + $0x140] sm:$0xff]
      %v2741 = vld [vmem:[%s1008 + $0x150] sm:$0xff]
      %v2742 = vld [vmem:[%s1008 + $0x158] sm:$0xff]
      %v2743 = vld [vmem:[%s1008 + $0x168] sm:$0xff]
      %v2744 = vld [vmem:[%s1008 + $0x170] sm:$0xff]
      %2777 = vrot.lane.b32.xlu0 %v2713, 64
      %v2778 = vpop.permute.xlu0 %2777
      %2779 = vrot.lane.b32.xlu0 %v2714, 64
      %v2780 = vpop.permute.xlu0 %2779
      %2781 = vrot.lane.b32.xlu0 %v2715, 64
      %v2782 = vpop.permute.xlu0 %2781
      %2783 = vrot.lane.b32.xlu0 %v2716, 64
      %v2784 = vpop.permute.xlu0 %2783
      %2785 = vrot.lane.b32.xlu0 %v2717, 64
      %v2786 = vpop.permute.xlu0 %2785
      %2787 = vrot.lane.b32.xlu0 %v2718, 64
      %v2788 = vpop.permute.xlu0 %2787
      %2789 = vrot.lane.b32.xlu0 %v2719, 64
      %v2790 = vpop.permute.xlu0 %2789
      %2791 = vrot.lane.b32.xlu0 %v2720, 64
      %v2792 = vpop.permute.xlu0 %2791
      %2793 = vrot.lane.b32.xlu0 %v2721, 64
      %v2794 = vpop.permute.xlu0 %2793
      %2795 = vrot.lane.b32.xlu0 %v2722, 64
      %v2796 = vpop.permute.xlu0 %2795
      %2797 = vrot.lane.b32.xlu0 %v2723, 64
      %v2798 = vpop.permute.xlu0 %2797
      %2799 = vrot.lane.b32.xlu0 %v2724, 64
      %v2800 = vpop.permute.xlu0 %2799
      %2801 = vrot.lane.b32.xlu0 %v2725, 64
      %v2802 = vpop.permute.xlu0 %2801
      %2803 = vrot.lane.b32.xlu0 %v2726, 64
      %v2804 = vpop.permute.xlu0 %2803
      %2805 = vrot.lane.b32.xlu0 %v2727, 64
      %v2806 = vpop.permute.xlu0 %2805
      %2807 = vrot.lane.b32.xlu0 %v2728, 64
      %v2808 = vpop.permute.xlu0 %2807
      %2809 = vrot.lane.b32.xlu0 %v2729, 64
      %v2810 = vpop.permute.xlu0 %2809
      %2811 = vrot.lane.b32.xlu0 %v2730, 64
      %v2812 = vpop.permute.xlu0 %2811
      %2813 = vrot.lane.b32.xlu0 %v2731, 64
      %v2814 = vpop.permute.xlu0 %2813
      %2815 = vrot.lane.b32.xlu0 %v2732, 64
      %v2816 = vpop.permute.xlu0 %2815
      %2817 = vrot.lane.b32.xlu0 %v2733, 64
      %v2818 = vpop.permute.xlu0 %2817
      %2819 = vrot.lane.b32.xlu0 %v2734, 64
      %v2820 = vpop.permute.xlu0 %2819
      %2821 = vrot.lane.b32.xlu0 %v2735, 64
      %v2822 = vpop.permute.xlu0 %2821
      %2823 = vrot.lane.b32.xlu0 %v2736, 64
      %v2824 = vpop.permute.xlu0 %2823
      %2825 = vrot.lane.b32.xlu0 %v2737, 64
      %v2826 = vpop.permute.xlu0 %2825
      %2827 = vrot.lane.b32.xlu0 %v2738, 64
      %v2828 = vpop.permute.xlu0 %2827
      %2829 = vrot.lane.b32.xlu0 %v2739, 64
      %v2830 = vpop.permute.xlu0 %2829
      %2831 = vrot.lane.b32.xlu0 %v2740, 64
      %v2832 = vpop.permute.xlu0 %2831
      %2833 = vrot.lane.b32.xlu0 %v2741, 64
      %v2834 = vpop.permute.xlu0 %2833
      %2835 = vrot.lane.b32.xlu0 %v2742, 64
      %v2836 = vpop.permute.xlu0 %2835
      %2837 = vrot.lane.b32.xlu0 %v2743, 64
      %v2838 = vpop.permute.xlu0 %2837
      %2839 = vrot.lane.b32.xlu0 %v2744, 64
      %v2840 = vpop.permute.xlu0 %2839
      %2873 = vst.msk [vmem:[#allocation3 + $0x10] sm:$0xff] %vm1591, %v2778
      %2874 = vst.msk [vmem:[#allocation3 + $0x48] sm:$0xff] %vm1591, %v2780
      %2875 = vst.msk [vmem:[#allocation3 + $0x80] sm:$0xff] %vm1591, %v2782
      %2876 = vst.msk [vmem:[#allocation3 + $0xb8] sm:$0xff] %vm1591, %v2784
      %2877 = vst.msk [vmem:[#allocation3 + $0xf0] sm:$0xff] %vm1591, %v2786
      %2878 = vst.msk [vmem:[#allocation3 + $0x128] sm:$0xff] %vm1591, %v2788
      %2879 = vst.msk [vmem:[#allocation3 + $0x160] sm:$0xff] %vm1591, %v2790
      %2880 = vst.msk [vmem:[#allocation3 + $0x198] sm:$0xff] %vm1591, %v2792
      %2881 = vst.msk [vmem:[#allocation3 + $0x1d0] sm:$0xff] %vm1591, %v2794
      %2882 = vst.msk [vmem:[#allocation3 + $0x208] sm:$0xff] %vm1591, %v2796
      %2883 = vst.msk [vmem:[#allocation3 + $0x240] sm:$0xff] %vm1591, %v2798
      %2884 = vst.msk [vmem:[#allocation3 + $0x278] sm:$0xff] %vm1591, %v2800
      %2885 = vst.msk [vmem:[#allocation3 + $0x2b0] sm:$0xff] %vm1591, %v2802
      %2886 = vst.msk [vmem:[#allocation3 + $0x2e8] sm:$0xff] %vm1591, %v2804
      %2887 = vst.msk [vmem:[#allocation3 + $0x320] sm:$0xff] %vm1591, %v2806
      %2888 = vst.msk [vmem:[#allocation3 + $0x358] sm:$0xff] %vm1591, %v2808
      %2889 = vst.msk [vmem:[#allocation3 + $0x390] sm:$0xff] %vm1591, %v2810
      %2890 = vst.msk [vmem:[#allocation3 + $0x3c8] sm:$0xff] %vm1591, %v2812
      %2891 = vst.msk [vmem:[#allocation3 + $0x400] sm:$0xff] %vm1591, %v2814
      %2892 = vst.msk [vmem:[#allocation3 + $0x438] sm:$0xff] %vm1591, %v2816
      %2893 = vst.msk [vmem:[#allocation3 + $0x470] sm:$0xff] %vm1591, %v2818
      %2894 = vst.msk [vmem:[#allocation3 + $0x4a8] sm:$0xff] %vm1591, %v2820
      %2895 = vst.msk [vmem:[#allocation3 + $0x4e0] sm:$0xff] %vm1591, %v2822
      %2896 = vst.msk [vmem:[#allocation3 + $0x518] sm:$0xff] %vm1591, %v2824
      %2897 = vst.msk [vmem:[#allocation3 + $0x550] sm:$0xff] %vm1591, %v2826
      %2898 = vst.msk [vmem:[#allocation3 + $0x588] sm:$0xff] %vm1591, %v2828
      %2899 = vst.msk [vmem:[#allocation3 + $0x5c0] sm:$0xff] %vm1591, %v2830
      %2900 = vst.msk [vmem:[#allocation3 + $0x5f8] sm:$0xff] %vm1591, %v2832
      %2901 = vst.msk [vmem:[#allocation3 + $0x630] sm:$0xff] %vm1591, %v2834
      %2902 = vst.msk [vmem:[#allocation3 + $0x668] sm:$0xff] %vm1591, %v2836
      %2903 = vst.msk [vmem:[#allocation3 + $0x6a0] sm:$0xff] %vm1591, %v2838
      %2904 = vst.msk [vmem:[#allocation3 + $0x6d8] sm:$0xff] %vm1591, %v2840
      %v2905 = vld [vmem:[%s1008 + $0x1] sm:$0xff]
      %v2906 = vld [vmem:[%s1008 + $0x9] sm:$0xff]
      %v2907 = vld [vmem:[%s1008 + $0x19] sm:$0xff]
      %v2908 = vld [vmem:[%s1008 + $0x21] sm:$0xff]
      %v2909 = vld [vmem:[%s1008 + $0x31] sm:$0xff]
      %v2910 = vld [vmem:[%s1008 + $0x39] sm:$0xff]
      %v2911 = vld [vmem:[%s1008 + $0x49] sm:$0xff]
      %v2912 = vld [vmem:[%s1008 + $0x51] sm:$0xff]
      %v2913 = vld [vmem:[%s1008 + $0x61] sm:$0xff]
      %v2914 = vld [vmem:[%s1008 + $0x69] sm:$0xff]
      %v2915 = vld [vmem:[%s1008 + $0x79] sm:$0xff]
      %v2916 = vld [vmem:[%s1008 + $0x81] sm:$0xff]
      %v2917 = vld [vmem:[%s1008 + $0x91] sm:$0xff]
      %v2918 = vld [vmem:[%s1008 + $0x99] sm:$0xff]
      %v2919 = vld [vmem:[%s1008 + $0xa9] sm:$0xff]
      %v2920 = vld [vmem:[%s1008 + $0xb1] sm:$0xff]
      %v2921 = vld [vmem:[%s1008 + $0xc1] sm:$0xff]
      %v2922 = vld [vmem:[%s1008 + $0xc9] sm:$0xff]
      %v2923 = vld [vmem:[%s1008 + $0xd9] sm:$0xff]
      %v2924 = vld [vmem:[%s1008 + $0xe1] sm:$0xff]
      %v2925 = vld [vmem:[%s1008 + $0xf1] sm:$0xff]
      %v2926 = vld [vmem:[%s1008 + $0xf9] sm:$0xff]
      %v2927 = vld [vmem:[%s1008 + $0x109] sm:$0xff]
      %v2928 = vld [vmem:[%s1008 + $0x111] sm:$0xff]
      %v2929 = vld [vmem:[%s1008 + $0x121] sm:$0xff]
      %v2930 = vld [vmem:[%s1008 + $0x129] sm:$0xff]
      %v2931 = vld [vmem:[%s1008 + $0x139] sm:$0xff]
      %v2932 = vld [vmem:[%s1008 + $0x141] sm:$0xff]
      %v2933 = vld [vmem:[%s1008 + $0x151] sm:$0xff]
      %v2934 = vld [vmem:[%s1008 + $0x159] sm:$0xff]
      %v2935 = vld [vmem:[%s1008 + $0x169] sm:$0xff]
      %v2936 = vld [vmem:[%s1008 + $0x171] sm:$0xff]
      %2969 = vrot.lane.b32.xlu0 %v2905, 96
      %v2970 = vpop.permute.xlu0 %2969
      %2971 = vrot.lane.b32.xlu0 %v2906, 96
      %v2972 = vpop.permute.xlu0 %2971
      %2973 = vrot.lane.b32.xlu0 %v2907, 96
      %v2974 = vpop.permute.xlu0 %2973
      %2975 = vrot.lane.b32.xlu0 %v2908, 96
      %v2976 = vpop.permute.xlu0 %2975
      %2977 = vrot.lane.b32.xlu0 %v2909, 96
      %v2978 = vpop.permute.xlu0 %2977
      %2979 = vrot.lane.b32.xlu0 %v2910, 96
      %v2980 = vpop.permute.xlu0 %2979
      %2981 = vrot.lane.b32.xlu0 %v2911, 96
      %v2982 = vpop.permute.xlu0 %2981
      %2983 = vrot.lane.b32.xlu0 %v2912, 96
      %v2984 = vpop.permute.xlu0 %2983
      %2985 = vrot.lane.b32.xlu0 %v2913, 96
      %v2986 = vpop.permute.xlu0 %2985
      %2987 = vrot.lane.b32.xlu0 %v2914, 96
      %v2988 = vpop.permute.xlu0 %2987
      %2989 = vrot.lane.b32.xlu0 %v2915, 96
      %v2990 = vpop.permute.xlu0 %2989
      %2991 = vrot.lane.b32.xlu0 %v2916, 96
      %v2992 = vpop.permute.xlu0 %2991
      %2993 = vrot.lane.b32.xlu0 %v2917, 96
      %v2994 = vpop.permute.xlu0 %2993
      %2995 = vrot.lane.b32.xlu0 %v2918, 96
      %v2996 = vpop.permute.xlu0 %2995
      %2997 = vrot.lane.b32.xlu0 %v2919, 96
      %v2998 = vpop.permute.xlu0 %2997
      %2999 = vrot.lane.b32.xlu0 %v2920, 96
      %v3000 = vpop.permute.xlu0 %2999
      %3001 = vrot.lane.b32.xlu0 %v2921, 96
      %v3002 = vpop.permute.xlu0 %3001
      %3003 = vrot.lane.b32.xlu0 %v2922, 96
      %v3004 = vpop.permute.xlu0 %3003
      %3005 = vrot.lane.b32.xlu0 %v2923, 96
      %v3006 = vpop.permute.xlu0 %3005
      %3007 = vrot.lane.b32.xlu0 %v2924, 96
      %v3008 = vpop.permute.xlu0 %3007
      %3009 = vrot.lane.b32.xlu0 %v2925, 96
      %v3010 = vpop.permute.xlu0 %3009
      %3011 = vrot.lane.b32.xlu0 %v2926, 96
      %v3012 = vpop.permute.xlu0 %3011
      %3013 = vrot.lane.b32.xlu0 %v2927, 96
      %v3014 = vpop.permute.xlu0 %3013
      %3015 = vrot.lane.b32.xlu0 %v2928, 96
      %v3016 = vpop.permute.xlu0 %3015
      %3017 = vrot.lane.b32.xlu0 %v2929, 96
      %v3018 = vpop.permute.xlu0 %3017
      %3019 = vrot.lane.b32.xlu0 %v2930, 96
      %v3020 = vpop.permute.xlu0 %3019
      %3021 = vrot.lane.b32.xlu0 %v2931, 96
      %v3022 = vpop.permute.xlu0 %3021
      %3023 = vrot.lane.b32.xlu0 %v2932, 96
      %v3024 = vpop.permute.xlu0 %3023
      %3025 = vrot.lane.b32.xlu0 %v2933, 96
      %v3026 = vpop.permute.xlu0 %3025
      %3027 = vrot.lane.b32.xlu0 %v2934, 96
      %v3028 = vpop.permute.xlu0 %3027
      %3029 = vrot.lane.b32.xlu0 %v2935, 96
      %v3030 = vpop.permute.xlu0 %3029
      %3031 = vrot.lane.b32.xlu0 %v2936, 96
      %v3032 = vpop.permute.xlu0 %3031
      %3065 = vst.msk [vmem:[#allocation3 + $0x10] sm:$0xff] %vm1784, %v2970
      %3066 = vst.msk [vmem:[#allocation3 + $0x48] sm:$0xff] %vm1784, %v2972
      %3067 = vst.msk [vmem:[#allocation3 + $0x80] sm:$0xff] %vm1784, %v2974
      %3068 = vst.msk [vmem:[#allocation3 + $0xb8] sm:$0xff] %vm1784, %v2976
      %3069 = vst.msk [vmem:[#allocation3 + $0xf0] sm:$0xff] %vm1784, %v2978
      %3070 = vst.msk [vmem:[#allocation3 + $0x128] sm:$0xff] %vm1784, %v2980
      %3071 = vst.msk [vmem:[#allocation3 + $0x160] sm:$0xff] %vm1784, %v2982
      %3072 = vst.msk [vmem:[#allocation3 + $0x198] sm:$0xff] %vm1784, %v2984
      %3073 = vst.msk [vmem:[#allocation3 + $0x1d0] sm:$0xff] %vm1784, %v2986
      %3074 = vst.msk [vmem:[#allocation3 + $0x208] sm:$0xff] %vm1784, %v2988
      %3075 = vst.msk [vmem:[#allocation3 + $0x240] sm:$0xff] %vm1784, %v2990
      %3076 = vst.msk [vmem:[#allocation3 + $0x278] sm:$0xff] %vm1784, %v2992
      %3077 = vst.msk [vmem:[#allocation3 + $0x2b0] sm:$0xff] %vm1784, %v2994
      %3078 = vst.msk [vmem:[#allocation3 + $0x2e8] sm:$0xff] %vm1784, %v2996
      %3079 = vst.msk [vmem:[#allocation3 + $0x320] sm:$0xff] %vm1784, %v2998
      %3080 = vst.msk [vmem:[#allocation3 + $0x358] sm:$0xff] %vm1784, %v3000
      %3081 = vst.msk [vmem:[#allocation3 + $0x390] sm:$0xff] %vm1784, %v3002
      %3082 = vst.msk [vmem:[#allocation3 + $0x3c8] sm:$0xff] %vm1784, %v3004
      %3083 = vst.msk [vmem:[#allocation3 + $0x400] sm:$0xff] %vm1784, %v3006
      %3084 = vst.msk [vmem:[#allocation3 + $0x438] sm:$0xff] %vm1784, %v3008
      %3085 = vst.msk [vmem:[#allocation3 + $0x470] sm:$0xff] %vm1784, %v3010
      %3086 = vst.msk [vmem:[#allocation3 + $0x4a8] sm:$0xff] %vm1784, %v3012
      %3087 = vst.msk [vmem:[#allocation3 + $0x4e0] sm:$0xff] %vm1784, %v3014
      %3088 = vst.msk [vmem:[#allocation3 + $0x518] sm:$0xff] %vm1784, %v3016
      %3089 = vst.msk [vmem:[#allocation3 + $0x550] sm:$0xff] %vm1784, %v3018
      %3090 = vst.msk [vmem:[#allocation3 + $0x588] sm:$0xff] %vm1784, %v3020
      %3091 = vst.msk [vmem:[#allocation3 + $0x5c0] sm:$0xff] %vm1784, %v3022
      %3092 = vst.msk [vmem:[#allocation3 + $0x5f8] sm:$0xff] %vm1784, %v3024
      %3093 = vst.msk [vmem:[#allocation3 + $0x630] sm:$0xff] %vm1784, %v3026
      %3094 = vst.msk [vmem:[#allocation3 + $0x668] sm:$0xff] %vm1784, %v3028
      %3095 = vst.msk [vmem:[#allocation3 + $0x6a0] sm:$0xff] %vm1784, %v3030
      %3096 = vst.msk [vmem:[#allocation3 + $0x6d8] sm:$0xff] %vm1784, %v3032
      %v3097 = vld [vmem:[%s1008 + $0x2] sm:$0xff]
      %v3098 = vld [vmem:[%s1008 + $0xa] sm:$0xff]
      %v3099 = vld [vmem:[%s1008 + $0x1a] sm:$0xff]
      %v3100 = vld [vmem:[%s1008 + $0x22] sm:$0xff]
      %v3101 = vld [vmem:[%s1008 + $0x32] sm:$0xff]
      %v3102 = vld [vmem:[%s1008 + $0x3a] sm:$0xff]
      %v3103 = vld [vmem:[%s1008 + $0x4a] sm:$0xff]
      %v3104 = vld [vmem:[%s1008 + $0x52] sm:$0xff]
      %v3105 = vld [vmem:[%s1008 + $0x62] sm:$0xff]
      %v3106 = vld [vmem:[%s1008 + $0x6a] sm:$0xff]
      %v3107 = vld [vmem:[%s1008 + $0x7a] sm:$0xff]
      %v3108 = vld [vmem:[%s1008 + $0x82] sm:$0xff]
      %v3109 = vld [vmem:[%s1008 + $0x92] sm:$0xff]
      %v3110 = vld [vmem:[%s1008 + $0x9a] sm:$0xff]
      %v3111 = vld [vmem:[%s1008 + $0xaa] sm:$0xff]
      %v3112 = vld [vmem:[%s1008 + $0xb2] sm:$0xff]
      %v3113 = vld [vmem:[%s1008 + $0xc2] sm:$0xff]
      %v3114 = vld [vmem:[%s1008 + $0xca] sm:$0xff]
      %v3115 = vld [vmem:[%s1008 + $0xda] sm:$0xff]
      %v3116 = vld [vmem:[%s1008 + $0xe2] sm:$0xff]
      %v3117 = vld [vmem:[%s1008 + $0xf2] sm:$0xff]
      %v3118 = vld [vmem:[%s1008 + $0xfa] sm:$0xff]
      %v3119 = vld [vmem:[%s1008 + $0x10a] sm:$0xff]
      %v3120 = vld [vmem:[%s1008 + $0x112] sm:$0xff]
      %v3121 = vld [vmem:[%s1008 + $0x122] sm:$0xff]
      %v3122 = vld [vmem:[%s1008 + $0x12a] sm:$0xff]
      %v3123 = vld [vmem:[%s1008 + $0x13a] sm:$0xff]
      %v3124 = vld [vmem:[%s1008 + $0x142] sm:$0xff]
      %v3125 = vld [vmem:[%s1008 + $0x152] sm:$0xff]
      %v3126 = vld [vmem:[%s1008 + $0x15a] sm:$0xff]
      %v3127 = vld [vmem:[%s1008 + $0x16a] sm:$0xff]
      %v3128 = vld [vmem:[%s1008 + $0x172] sm:$0xff]
      %3129 = vst.msk [vmem:[#allocation3 + $0x18] sm:$0xff] %vm1009, %v3097
      %3130 = vst.msk [vmem:[#allocation3 + $0x50] sm:$0xff] %vm1009, %v3098
      %3131 = vst.msk [vmem:[#allocation3 + $0x88] sm:$0xff] %vm1009, %v3099
      %3132 = vst.msk [vmem:[#allocation3 + $0xc0] sm:$0xff] %vm1009, %v3100
      %3133 = vst.msk [vmem:[#allocation3 + $0xf8] sm:$0xff] %vm1009, %v3101
      %3134 = vst.msk [vmem:[#allocation3 + $0x130] sm:$0xff] %vm1009, %v3102
      %3135 = vst.msk [vmem:[#allocation3 + $0x168] sm:$0xff] %vm1009, %v3103
      %3136 = vst.msk [vmem:[#allocation3 + $0x1a0] sm:$0xff] %vm1009, %v3104
      %3137 = vst.msk [vmem:[#allocation3 + $0x1d8] sm:$0xff] %vm1009, %v3105
      %3138 = vst.msk [vmem:[#allocation3 + $0x210] sm:$0xff] %vm1009, %v3106
      %3139 = vst.msk [vmem:[#allocation3 + $0x248] sm:$0xff] %vm1009, %v3107
      %3140 = vst.msk [vmem:[#allocation3 + $0x280] sm:$0xff] %vm1009, %v3108
      %3141 = vst.msk [vmem:[#allocation3 + $0x2b8] sm:$0xff] %vm1009, %v3109
      %3142 = vst.msk [vmem:[#allocation3 + $0x2f0] sm:$0xff] %vm1009, %v3110
      %3143 = vst.msk [vmem:[#allocation3 + $0x328] sm:$0xff] %vm1009, %v3111
      %3144 = vst.msk [vmem:[#allocation3 + $0x360] sm:$0xff] %vm1009, %v3112
      %3145 = vst.msk [vmem:[#allocation3 + $0x398] sm:$0xff] %vm1009, %v3113
      %3146 = vst.msk [vmem:[#allocation3 + $0x3d0] sm:$0xff] %vm1009, %v3114
      %3147 = vst.msk [vmem:[#allocation3 + $0x408] sm:$0xff] %vm1009, %v3115
      %3148 = vst.msk [vmem:[#allocation3 + $0x440] sm:$0xff] %vm1009, %v3116
      %3149 = vst.msk [vmem:[#allocation3 + $0x478] sm:$0xff] %vm1009, %v3117
      %3150 = vst.msk [vmem:[#allocation3 + $0x4b0] sm:$0xff] %vm1009, %v3118
      %3151 = vst.msk [vmem:[#allocation3 + $0x4e8] sm:$0xff] %vm1009, %v3119
      %3152 = vst.msk [vmem:[#allocation3 + $0x520] sm:$0xff] %vm1009, %v3120
      %3153 = vst.msk [vmem:[#allocation3 + $0x558] sm:$0xff] %vm1009, %v3121
      %3154 = vst.msk [vmem:[#allocation3 + $0x590] sm:$0xff] %vm1009, %v3122
      %3155 = vst.msk [vmem:[#allocation3 + $0x5c8] sm:$0xff] %vm1009, %v3123
      %3156 = vst.msk [vmem:[#allocation3 + $0x600] sm:$0xff] %vm1009, %v3124
      %3157 = vst.msk [vmem:[#allocation3 + $0x638] sm:$0xff] %vm1009, %v3125
      %3158 = vst.msk [vmem:[#allocation3 + $0x670] sm:$0xff] %vm1009, %v3126
      %3159 = vst.msk [vmem:[#allocation3 + $0x6a8] sm:$0xff] %vm1009, %v3127
      %3160 = vst.msk [vmem:[#allocation3 + $0x6e0] sm:$0xff] %vm1009, %v3128
      %v3161 = vld [vmem:[%s1008 + $0x3] sm:$0xff]
      %v3162 = vld [vmem:[%s1008 + $0xb] sm:$0xff]
      %v3163 = vld [vmem:[%s1008 + $0x1b] sm:$0xff]
      %v3164 = vld [vmem:[%s1008 + $0x23] sm:$0xff]
      %v3165 = vld [vmem:[%s1008 + $0x33] sm:$0xff]
      %v3166 = vld [vmem:[%s1008 + $0x3b] sm:$0xff]
      %v3167 = vld [vmem:[%s1008 + $0x4b] sm:$0xff]
      %v3168 = vld [vmem:[%s1008 + $0x53] sm:$0xff]
      %v3169 = vld [vmem:[%s1008 + $0x63] sm:$0xff]
      %v3170 = vld [vmem:[%s1008 + $0x6b] sm:$0xff]
      %v3171 = vld [vmem:[%s1008 + $0x7b] sm:$0xff]
      %v3172 = vld [vmem:[%s1008 + $0x83] sm:$0xff]
      %v3173 = vld [vmem:[%s1008 + $0x93] sm:$0xff]
      %v3174 = vld [vmem:[%s1008 + $0x9b] sm:$0xff]
      %v3175 = vld [vmem:[%s1008 + $0xab] sm:$0xff]
      %v3176 = vld [vmem:[%s1008 + $0xb3] sm:$0xff]
      %v3177 = vld [vmem:[%s1008 + $0xc3] sm:$0xff]
      %v3178 = vld [vmem:[%s1008 + $0xcb] sm:$0xff]
      %v3179 = vld [vmem:[%s1008 + $0xdb] sm:$0xff]
      %v3180 = vld [vmem:[%s1008 + $0xe3] sm:$0xff]
      %v3181 = vld [vmem:[%s1008 + $0xf3] sm:$0xff]
      %v3182 = vld [vmem:[%s1008 + $0xfb] sm:$0xff]
      %v3183 = vld [vmem:[%s1008 + $0x10b] sm:$0xff]
      %v3184 = vld [vmem:[%s1008 + $0x113] sm:$0xff]
      %v3185 = vld [vmem:[%s1008 + $0x123] sm:$0xff]
      %v3186 = vld [vmem:[%s1008 + $0x12b] sm:$0xff]
      %v3187 = vld [vmem:[%s1008 + $0x13b] sm:$0xff]
      %v3188 = vld [vmem:[%s1008 + $0x143] sm:$0xff]
      %v3189 = vld [vmem:[%s1008 + $0x153] sm:$0xff]
      %v3190 = vld [vmem:[%s1008 + $0x15b] sm:$0xff]
      %v3191 = vld [vmem:[%s1008 + $0x16b] sm:$0xff]
      %v3192 = vld [vmem:[%s1008 + $0x173] sm:$0xff]
      %3225 = vrot.lane.b32.xlu0 %v3161, 32
      %v3226 = vpop.permute.xlu0 %3225
      %3227 = vrot.lane.b32.xlu0 %v3162, 32
      %v3228 = vpop.permute.xlu0 %3227
      %3229 = vrot.lane.b32.xlu0 %v3163, 32
      %v3230 = vpop.permute.xlu0 %3229
      %3231 = vrot.lane.b32.xlu0 %v3164, 32
      %v3232 = vpop.permute.xlu0 %3231
      %3233 = vrot.lane.b32.xlu0 %v3165, 32
      %v3234 = vpop.permute.xlu0 %3233
      %3235 = vrot.lane.b32.xlu0 %v3166, 32
      %v3236 = vpop.permute.xlu0 %3235
      %3237 = vrot.lane.b32.xlu0 %v3167, 32
      %v3238 = vpop.permute.xlu0 %3237
      %3239 = vrot.lane.b32.xlu0 %v3168, 32
      %v3240 = vpop.permute.xlu0 %3239
      %3241 = vrot.lane.b32.xlu0 %v3169, 32
      %v3242 = vpop.permute.xlu0 %3241
      %3243 = vrot.lane.b32.xlu0 %v3170, 32
      %v3244 = vpop.permute.xlu0 %3243
      %3245 = vrot.lane.b32.xlu0 %v3171, 32
      %v3246 = vpop.permute.xlu0 %3245
      %3247 = vrot.lane.b32.xlu0 %v3172, 32
      %v3248 = vpop.permute.xlu0 %3247
      %3249 = vrot.lane.b32.xlu0 %v3173, 32
      %v3250 = vpop.permute.xlu0 %3249
      %3251 = vrot.lane.b32.xlu0 %v3174, 32
      %v3252 = vpop.permute.xlu0 %3251
      %3253 = vrot.lane.b32.xlu0 %v3175, 32
      %v3254 = vpop.permute.xlu0 %3253
      %3255 = vrot.lane.b32.xlu0 %v3176, 32
      %v3256 = vpop.permute.xlu0 %3255
      %3257 = vrot.lane.b32.xlu0 %v3177, 32
      %v3258 = vpop.permute.xlu0 %3257
      %3259 = vrot.lane.b32.xlu0 %v3178, 32
      %v3260 = vpop.permute.xlu0 %3259
      %3261 = vrot.lane.b32.xlu0 %v3179, 32
      %v3262 = vpop.permute.xlu0 %3261
      %3263 = vrot.lane.b32.xlu0 %v3180, 32
      %v3264 = vpop.permute.xlu0 %3263
      %3265 = vrot.lane.b32.xlu0 %v3181, 32
      %v3266 = vpop.permute.xlu0 %3265
      %3267 = vrot.lane.b32.xlu0 %v3182, 32
      %v3268 = vpop.permute.xlu0 %3267
      %3269 = vrot.lane.b32.xlu0 %v3183, 32
      %v3270 = vpop.permute.xlu0 %3269
      %3271 = vrot.lane.b32.xlu0 %v3184, 32
      %v3272 = vpop.permute.xlu0 %3271
      %3273 = vrot.lane.b32.xlu0 %v3185, 32
      %v3274 = vpop.permute.xlu0 %3273
      %3275 = vrot.lane.b32.xlu0 %v3186, 32
      %v3276 = vpop.permute.xlu0 %3275
      %3277 = vrot.lane.b32.xlu0 %v3187, 32
      %v3278 = vpop.permute.xlu0 %3277
      %3279 = vrot.lane.b32.xlu0 %v3188, 32
      %v3280 = vpop.permute.xlu0 %3279
      %3281 = vrot.lane.b32.xlu0 %v3189, 32
      %v3282 = vpop.permute.xlu0 %3281
      %3283 = vrot.lane.b32.xlu0 %v3190, 32
      %v3284 = vpop.permute.xlu0 %3283
      %3285 = vrot.lane.b32.xlu0 %v3191, 32
      %v3286 = vpop.permute.xlu0 %3285
      %3287 = vrot.lane.b32.xlu0 %v3192, 32
      %v3288 = vpop.permute.xlu0 %3287
      %3321 = vst.msk [vmem:[#allocation3 + $0x18] sm:$0xff] %vm1398, %v3226
      %3322 = vst.msk [vmem:[#allocation3 + $0x50] sm:$0xff] %vm1398, %v3228
      %3323 = vst.msk [vmem:[#allocation3 + $0x88] sm:$0xff] %vm1398, %v3230
      %3324 = vst.msk [vmem:[#allocation3 + $0xc0] sm:$0xff] %vm1398, %v3232
      %3325 = vst.msk [vmem:[#allocation3 + $0xf8] sm:$0xff] %vm1398, %v3234
      %3326 = vst.msk [vmem:[#allocation3 + $0x130] sm:$0xff] %vm1398, %v3236
      %3327 = vst.msk [vmem:[#allocation3 + $0x168] sm:$0xff] %vm1398, %v3238
      %3328 = vst.msk [vmem:[#allocation3 + $0x1a0] sm:$0xff] %vm1398, %v3240
      %3329 = vst.msk [vmem:[#allocation3 + $0x1d8] sm:$0xff] %vm1398, %v3242
      %3330 = vst.msk [vmem:[#allocation3 + $0x210] sm:$0xff] %vm1398, %v3244
      %3331 = vst.msk [vmem:[#allocation3 + $0x248] sm:$0xff] %vm1398, %v3246
      %3332 = vst.msk [vmem:[#allocation3 + $0x280] sm:$0xff] %vm1398, %v3248
      %3333 = vst.msk [vmem:[#allocation3 + $0x2b8] sm:$0xff] %vm1398, %v3250
      %3334 = vst.msk [vmem:[#allocation3 + $0x2f0] sm:$0xff] %vm1398, %v3252
      %3335 = vst.msk [vmem:[#allocation3 + $0x328] sm:$0xff] %vm1398, %v3254
      %3336 = vst.msk [vmem:[#allocation3 + $0x360] sm:$0xff] %vm1398, %v3256
      %3337 = vst.msk [vmem:[#allocation3 + $0x398] sm:$0xff] %vm1398, %v3258
      %3338 = vst.msk [vmem:[#allocation3 + $0x3d0] sm:$0xff] %vm1398, %v3260
      %3339 = vst.msk [vmem:[#allocation3 + $0x408] sm:$0xff] %vm1398, %v3262
      %3340 = vst.msk [vmem:[#allocation3 + $0x440] sm:$0xff] %vm1398, %v3264
      %3341 = vst.msk [vmem:[#allocation3 + $0x478] sm:$0xff] %vm1398, %v3266
      %3342 = vst.msk [vmem:[#allocation3 + $0x4b0] sm:$0xff] %vm1398, %v3268
      %3343 = vst.msk [vmem:[#allocation3 + $0x4e8] sm:$0xff] %vm1398, %v3270
      %3344 = vst.msk [vmem:[#allocation3 + $0x520] sm:$0xff] %vm1398, %v3272
      %3345 = vst.msk [vmem:[#allocation3 + $0x558] sm:$0xff] %vm1398, %v3274
      %3346 = vst.msk [vmem:[#allocation3 + $0x590] sm:$0xff] %vm1398, %v3276
      %3347 = vst.msk [vmem:[#allocation3 + $0x5c8] sm:$0xff] %vm1398, %v3278
      %3348 = vst.msk [vmem:[#allocation3 + $0x600] sm:$0xff] %vm1398, %v3280
      %3349 = vst.msk [vmem:[#allocation3 + $0x638] sm:$0xff] %vm1398, %v3282
      %3350 = vst.msk [vmem:[#allocation3 + $0x670] sm:$0xff] %vm1398, %v3284
      %3351 = vst.msk [vmem:[#allocation3 + $0x6a8] sm:$0xff] %vm1398, %v3286
      %3352 = vst.msk [vmem:[#allocation3 + $0x6e0] sm:$0xff] %vm1398, %v3288
      %v3353 = vld [vmem:[%s1008 + $0x4] sm:$0xff]
      %v3354 = vld [vmem:[%s1008 + $0xc] sm:$0xff]
      %v3355 = vld [vmem:[%s1008 + $0x1c] sm:$0xff]
      %v3356 = vld [vmem:[%s1008 + $0x24] sm:$0xff]
      %v3357 = vld [vmem:[%s1008 + $0x34] sm:$0xff]
      %v3358 = vld [vmem:[%s1008 + $0x3c] sm:$0xff]
      %v3359 = vld [vmem:[%s1008 + $0x4c] sm:$0xff]
      %v3360 = vld [vmem:[%s1008 + $0x54] sm:$0xff]
      %v3361 = vld [vmem:[%s1008 + $0x64] sm:$0xff]
      %v3362 = vld [vmem:[%s1008 + $0x6c] sm:$0xff]
      %v3363 = vld [vmem:[%s1008 + $0x7c] sm:$0xff]
      %v3364 = vld [vmem:[%s1008 + $0x84] sm:$0xff]
      %v3365 = vld [vmem:[%s1008 + $0x94] sm:$0xff]
      %v3366 = vld [vmem:[%s1008 + $0x9c] sm:$0xff]
      %v3367 = vld [vmem:[%s1008 + $0xac] sm:$0xff]
      %v3368 = vld [vmem:[%s1008 + $0xb4] sm:$0xff]
      %v3369 = vld [vmem:[%s1008 + $0xc4] sm:$0xff]
      %v3370 = vld [vmem:[%s1008 + $0xcc] sm:$0xff]
      %v3371 = vld [vmem:[%s1008 + $0xdc] sm:$0xff]
      %v3372 = vld [vmem:[%s1008 + $0xe4] sm:$0xff]
      %v3373 = vld [vmem:[%s1008 + $0xf4] sm:$0xff]
      %v3374 = vld [vmem:[%s1008 + $0xfc] sm:$0xff]
      %v3375 = vld [vmem:[%s1008 + $0x10c] sm:$0xff]
      %v3376 = vld [vmem:[%s1008 + $0x114] sm:$0xff]
      %v3377 = vld [vmem:[%s1008 + $0x124] sm:$0xff]
      %v3378 = vld [vmem:[%s1008 + $0x12c] sm:$0xff]
      %v3379 = vld [vmem:[%s1008 + $0x13c] sm:$0xff]
      %v3380 = vld [vmem:[%s1008 + $0x144] sm:$0xff]
      %v3381 = vld [vmem:[%s1008 + $0x154] sm:$0xff]
      %v3382 = vld [vmem:[%s1008 + $0x15c] sm:$0xff]
      %v3383 = vld [vmem:[%s1008 + $0x16c] sm:$0xff]
      %v3384 = vld [vmem:[%s1008 + $0x174] sm:$0xff]
      %3417 = vrot.lane.b32.xlu0 %v3353, 64
      %v3418 = vpop.permute.xlu0 %3417
      %3419 = vrot.lane.b32.xlu0 %v3354, 64
      %v3420 = vpop.permute.xlu0 %3419
      %3421 = vrot.lane.b32.xlu0 %v3355, 64
      %v3422 = vpop.permute.xlu0 %3421
      %3423 = vrot.lane.b32.xlu0 %v3356, 64
      %v3424 = vpop.permute.xlu0 %3423
      %3425 = vrot.lane.b32.xlu0 %v3357, 64
      %v3426 = vpop.permute.xlu0 %3425
      %3427 = vrot.lane.b32.xlu0 %v3358, 64
      %v3428 = vpop.permute.xlu0 %3427
      %3429 = vrot.lane.b32.xlu0 %v3359, 64
      %v3430 = vpop.permute.xlu0 %3429
      %3431 = vrot.lane.b32.xlu0 %v3360, 64
      %v3432 = vpop.permute.xlu0 %3431
      %3433 = vrot.lane.b32.xlu0 %v3361, 64
      %v3434 = vpop.permute.xlu0 %3433
      %3435 = vrot.lane.b32.xlu0 %v3362, 64
      %v3436 = vpop.permute.xlu0 %3435
      %3437 = vrot.lane.b32.xlu0 %v3363, 64
      %v3438 = vpop.permute.xlu0 %3437
      %3439 = vrot.lane.b32.xlu0 %v3364, 64
      %v3440 = vpop.permute.xlu0 %3439
      %3441 = vrot.lane.b32.xlu0 %v3365, 64
      %v3442 = vpop.permute.xlu0 %3441
      %3443 = vrot.lane.b32.xlu0 %v3366, 64
      %v3444 = vpop.permute.xlu0 %3443
      %3445 = vrot.lane.b32.xlu0 %v3367, 64
      %v3446 = vpop.permute.xlu0 %3445
      %3447 = vrot.lane.b32.xlu0 %v3368, 64
      %v3448 = vpop.permute.xlu0 %3447
      %3449 = vrot.lane.b32.xlu0 %v3369, 64
      %v3450 = vpop.permute.xlu0 %3449
      %3451 = vrot.lane.b32.xlu0 %v3370, 64
      %v3452 = vpop.permute.xlu0 %3451
      %3453 = vrot.lane.b32.xlu0 %v3371, 64
      %v3454 = vpop.permute.xlu0 %3453
      %3455 = vrot.lane.b32.xlu0 %v3372, 64
      %v3456 = vpop.permute.xlu0 %3455
      %3457 = vrot.lane.b32.xlu0 %v3373, 64
      %v3458 = vpop.permute.xlu0 %3457
      %3459 = vrot.lane.b32.xlu0 %v3374, 64
      %v3460 = vpop.permute.xlu0 %3459
      %3461 = vrot.lane.b32.xlu0 %v3375, 64
      %v3462 = vpop.permute.xlu0 %3461
      %3463 = vrot.lane.b32.xlu0 %v3376, 64
      %v3464 = vpop.permute.xlu0 %3463
      %3465 = vrot.lane.b32.xlu0 %v3377, 64
      %v3466 = vpop.permute.xlu0 %3465
      %3467 = vrot.lane.b32.xlu0 %v3378, 64
      %v3468 = vpop.permute.xlu0 %3467
      %3469 = vrot.lane.b32.xlu0 %v3379, 64
      %v3470 = vpop.permute.xlu0 %3469
      %3471 = vrot.lane.b32.xlu0 %v3380, 64
      %v3472 = vpop.permute.xlu0 %3471
      %3473 = vrot.lane.b32.xlu0 %v3381, 64
      %v3474 = vpop.permute.xlu0 %3473
      %3475 = vrot.lane.b32.xlu0 %v3382, 64
      %v3476 = vpop.permute.xlu0 %3475
      %3477 = vrot.lane.b32.xlu0 %v3383, 64
      %v3478 = vpop.permute.xlu0 %3477
      %3479 = vrot.lane.b32.xlu0 %v3384, 64
      %v3480 = vpop.permute.xlu0 %3479
      %3513 = vst.msk [vmem:[#allocation3 + $0x18] sm:$0xff] %vm1591, %v3418
      %3514 = vst.msk [vmem:[#allocation3 + $0x50] sm:$0xff] %vm1591, %v3420
      %3515 = vst.msk [vmem:[#allocation3 + $0x88] sm:$0xff] %vm1591, %v3422
      %3516 = vst.msk [vmem:[#allocation3 + $0xc0] sm:$0xff] %vm1591, %v3424
      %3517 = vst.msk [vmem:[#allocation3 + $0xf8] sm:$0xff] %vm1591, %v3426
      %3518 = vst.msk [vmem:[#allocation3 + $0x130] sm:$0xff] %vm1591, %v3428
      %3519 = vst.msk [vmem:[#allocation3 + $0x168] sm:$0xff] %vm1591, %v3430
      %3520 = vst.msk [vmem:[#allocation3 + $0x1a0] sm:$0xff] %vm1591, %v3432
      %3521 = vst.msk [vmem:[#allocation3 + $0x1d8] sm:$0xff] %vm1591, %v3434
      %3522 = vst.msk [vmem:[#allocation3 + $0x210] sm:$0xff] %vm1591, %v3436
      %3523 = vst.msk [vmem:[#allocation3 + $0x248] sm:$0xff] %vm1591, %v3438
      %3524 = vst.msk [vmem:[#allocation3 + $0x280] sm:$0xff] %vm1591, %v3440
      %3525 = vst.msk [vmem:[#allocation3 + $0x2b8] sm:$0xff] %vm1591, %v3442
      %3526 = vst.msk [vmem:[#allocation3 + $0x2f0] sm:$0xff] %vm1591, %v3444
      %3527 = vst.msk [vmem:[#allocation3 + $0x328] sm:$0xff] %vm1591, %v3446
      %3528 = vst.msk [vmem:[#allocation3 + $0x360] sm:$0xff] %vm1591, %v3448
      %3529 = vst.msk [vmem:[#allocation3 + $0x398] sm:$0xff] %vm1591, %v3450
      %3530 = vst.msk [vmem:[#allocation3 + $0x3d0] sm:$0xff] %vm1591, %v3452
      %3531 = vst.msk [vmem:[#allocation3 + $0x408] sm:$0xff] %vm1591, %v3454
      %3532 = vst.msk [vmem:[#allocation3 + $0x440] sm:$0xff] %vm1591, %v3456
      %3533 = vst.msk [vmem:[#allocation3 + $0x478] sm:$0xff] %vm1591, %v3458
      %3534 = vst.msk [vmem:[#allocation3 + $0x4b0] sm:$0xff] %vm1591, %v3460
      %3535 = vst.msk [vmem:[#allocation3 + $0x4e8] sm:$0xff] %vm1591, %v3462
      %3536 = vst.msk [vmem:[#allocation3 + $0x520] sm:$0xff] %vm1591, %v3464
      %3537 = vst.msk [vmem:[#allocation3 + $0x558] sm:$0xff] %vm1591, %v3466
      %3538 = vst.msk [vmem:[#allocation3 + $0x590] sm:$0xff] %vm1591, %v3468
      %3539 = vst.msk [vmem:[#allocation3 + $0x5c8] sm:$0xff] %vm1591, %v3470
      %3540 = vst.msk [vmem:[#allocation3 + $0x600] sm:$0xff] %vm1591, %v3472
      %3541 = vst.msk [vmem:[#allocation3 + $0x638] sm:$0xff] %vm1591, %v3474
      %3542 = vst.msk [vmem:[#allocation3 + $0x670] sm:$0xff] %vm1591, %v3476
      %3543 = vst.msk [vmem:[#allocation3 + $0x6a8] sm:$0xff] %vm1591, %v3478
      %3544 = vst.msk [vmem:[#allocation3 + $0x6e0] sm:$0xff] %vm1591, %v3480
      %s3545 = scalar_lea.vmem [#allocation2], 72
      %v3546 = vld [vmem:[%s3545] sm:$0xff]
      %v3547 = vld [vmem:[%s3545 + $0x8] sm:$0xff]
      %v3548 = vld [vmem:[%s3545 + $0x18] sm:$0xff]
      %v3549 = vld [vmem:[%s3545 + $0x20] sm:$0xff]
      %v3550 = vld [vmem:[%s3545 + $0x30] sm:$0xff]
      %v3551 = vld [vmem:[%s3545 + $0x38] sm:$0xff]
      %v3552 = vld [vmem:[%s3545 + $0x48] sm:$0xff]
      %v3553 = vld [vmem:[%s3545 + $0x50] sm:$0xff]
      %v3554 = vld [vmem:[%s3545 + $0x60] sm:$0xff]
      %v3555 = vld [vmem:[%s3545 + $0x68] sm:$0xff]
      %v3556 = vld [vmem:[%s3545 + $0x78] sm:$0xff]
      %v3557 = vld [vmem:[%s3545 + $0x80] sm:$0xff]
      %v3558 = vld [vmem:[%s3545 + $0x90] sm:$0xff]
      %v3559 = vld [vmem:[%s3545 + $0x98] sm:$0xff]
      %v3560 = vld [vmem:[%s3545 + $0xa8] sm:$0xff]
      %v3561 = vld [vmem:[%s3545 + $0xb0] sm:$0xff]
      %v3562 = vld [vmem:[%s3545 + $0xc0] sm:$0xff]
      %v3563 = vld [vmem:[%s3545 + $0xc8] sm:$0xff]
      %v3564 = vld [vmem:[%s3545 + $0xd8] sm:$0xff]
      %v3565 = vld [vmem:[%s3545 + $0xe0] sm:$0xff]
      %v3566 = vld [vmem:[%s3545 + $0xf0] sm:$0xff]
      %v3567 = vld [vmem:[%s3545 + $0xf8] sm:$0xff]
      %v3568 = vld [vmem:[%s3545 + $0x108] sm:$0xff]
      %v3569 = vld [vmem:[%s3545 + $0x110] sm:$0xff]
      %v3570 = vld [vmem:[%s3545 + $0x120] sm:$0xff]
      %v3571 = vld [vmem:[%s3545 + $0x128] sm:$0xff]
      %v3572 = vld [vmem:[%s3545 + $0x138] sm:$0xff]
      %v3573 = vld [vmem:[%s3545 + $0x140] sm:$0xff]
      %v3574 = vld [vmem:[%s3545 + $0x150] sm:$0xff]
      %v3575 = vld [vmem:[%s3545 + $0x158] sm:$0xff]
      %v3576 = vld [vmem:[%s3545 + $0x168] sm:$0xff]
      %v3577 = vld [vmem:[%s3545 + $0x170] sm:$0xff]
      %3610 = vrot.lane.b32.xlu0 %v3546, 96
      %v3611 = vpop.permute.xlu0 %3610
      %3612 = vrot.lane.b32.xlu0 %v3547, 96
      %v3613 = vpop.permute.xlu0 %3612
      %3614 = vrot.lane.b32.xlu0 %v3548, 96
      %v3615 = vpop.permute.xlu0 %3614
      %3616 = vrot.lane.b32.xlu0 %v3549, 96
      %v3617 = vpop.permute.xlu0 %3616
      %3618 = vrot.lane.b32.xlu0 %v3550, 96
      %v3619 = vpop.permute.xlu0 %3618
      %3620 = vrot.lane.b32.xlu0 %v3551, 96
      %v3621 = vpop.permute.xlu0 %3620
      %3622 = vrot.lane.b32.xlu0 %v3552, 96
      %v3623 = vpop.permute.xlu0 %3622
      %3624 = vrot.lane.b32.xlu0 %v3553, 96
      %v3625 = vpop.permute.xlu0 %3624
      %3626 = vrot.lane.b32.xlu0 %v3554, 96
      %v3627 = vpop.permute.xlu0 %3626
      %3628 = vrot.lane.b32.xlu0 %v3555, 96
      %v3629 = vpop.permute.xlu0 %3628
      %3630 = vrot.lane.b32.xlu0 %v3556, 96
      %v3631 = vpop.permute.xlu0 %3630
      %3632 = vrot.lane.b32.xlu0 %v3557, 96
      %v3633 = vpop.permute.xlu0 %3632
      %3634 = vrot.lane.b32.xlu0 %v3558, 96
      %v3635 = vpop.permute.xlu0 %3634
      %3636 = vrot.lane.b32.xlu0 %v3559, 96
      %v3637 = vpop.permute.xlu0 %3636
      %3638 = vrot.lane.b32.xlu0 %v3560, 96
      %v3639 = vpop.permute.xlu0 %3638
      %3640 = vrot.lane.b32.xlu0 %v3561, 96
      %v3641 = vpop.permute.xlu0 %3640
      %3642 = vrot.lane.b32.xlu0 %v3562, 96
      %v3643 = vpop.permute.xlu0 %3642
      %3644 = vrot.lane.b32.xlu0 %v3563, 96
      %v3645 = vpop.permute.xlu0 %3644
      %3646 = vrot.lane.b32.xlu0 %v3564, 96
      %v3647 = vpop.permute.xlu0 %3646
      %3648 = vrot.lane.b32.xlu0 %v3565, 96
      %v3649 = vpop.permute.xlu0 %3648
      %3650 = vrot.lane.b32.xlu0 %v3566, 96
      %v3651 = vpop.permute.xlu0 %3650
      %3652 = vrot.lane.b32.xlu0 %v3567, 96
      %v3653 = vpop.permute.xlu0 %3652
      %3654 = vrot.lane.b32.xlu0 %v3568, 96
      %v3655 = vpop.permute.xlu0 %3654
      %3656 = vrot.lane.b32.xlu0 %v3569, 96
      %v3657 = vpop.permute.xlu0 %3656
      %3658 = vrot.lane.b32.xlu0 %v3570, 96
      %v3659 = vpop.permute.xlu0 %3658
      %3660 = vrot.lane.b32.xlu0 %v3571, 96
      %v3661 = vpop.permute.xlu0 %3660
      %3662 = vrot.lane.b32.xlu0 %v3572, 96
      %v3663 = vpop.permute.xlu0 %3662
      %3664 = vrot.lane.b32.xlu0 %v3573, 96
      %v3665 = vpop.permute.xlu0 %3664
      %3666 = vrot.lane.b32.xlu0 %v3574, 96
      %v3667 = vpop.permute.xlu0 %3666
      %3668 = vrot.lane.b32.xlu0 %v3575, 96
      %v3669 = vpop.permute.xlu0 %3668
      %3670 = vrot.lane.b32.xlu0 %v3576, 96
      %v3671 = vpop.permute.xlu0 %3670
      %3672 = vrot.lane.b32.xlu0 %v3577, 96
      %v3673 = vpop.permute.xlu0 %3672
      %3706 = vst.msk [vmem:[#allocation3 + $0x18] sm:$0xff] %vm1784, %v3611
      %3707 = vst.msk [vmem:[#allocation3 + $0x50] sm:$0xff] %vm1784, %v3613
      %3708 = vst.msk [vmem:[#allocation3 + $0x88] sm:$0xff] %vm1784, %v3615
      %3709 = vst.msk [vmem:[#allocation3 + $0xc0] sm:$0xff] %vm1784, %v3617
      %3710 = vst.msk [vmem:[#allocation3 + $0xf8] sm:$0xff] %vm1784, %v3619
      %3711 = vst.msk [vmem:[#allocation3 + $0x130] sm:$0xff] %vm1784, %v3621
      %3712 = vst.msk [vmem:[#allocation3 + $0x168] sm:$0xff] %vm1784, %v3623
      %3713 = vst.msk [vmem:[#allocation3 + $0x1a0] sm:$0xff] %vm1784, %v3625
      %3714 = vst.msk [vmem:[#allocation3 + $0x1d8] sm:$0xff] %vm1784, %v3627
      %3715 = vst.msk [vmem:[#allocation3 + $0x210] sm:$0xff] %vm1784, %v3629
      %3716 = vst.msk [vmem:[#allocation3 + $0x248] sm:$0xff] %vm1784, %v3631
      %3717 = vst.msk [vmem:[#allocation3 + $0x280] sm:$0xff] %vm1784, %v3633
      %3718 = vst.msk [vmem:[#allocation3 + $0x2b8] sm:$0xff] %vm1784, %v3635
      %3719 = vst.msk [vmem:[#allocation3 + $0x2f0] sm:$0xff] %vm1784, %v3637
      %3720 = vst.msk [vmem:[#allocation3 + $0x328] sm:$0xff] %vm1784, %v3639
      %3721 = vst.msk [vmem:[#allocation3 + $0x360] sm:$0xff] %vm1784, %v3641
      %3722 = vst.msk [vmem:[#allocation3 + $0x398] sm:$0xff] %vm1784, %v3643
      %3723 = vst.msk [vmem:[#allocation3 + $0x3d0] sm:$0xff] %vm1784, %v3645
      %3724 = vst.msk [vmem:[#allocation3 + $0x408] sm:$0xff] %vm1784, %v3647
      %3725 = vst.msk [vmem:[#allocation3 + $0x440] sm:$0xff] %vm1784, %v3649
      %3726 = vst.msk [vmem:[#allocation3 + $0x478] sm:$0xff] %vm1784, %v3651
      %3727 = vst.msk [vmem:[#allocation3 + $0x4b0] sm:$0xff] %vm1784, %v3653
      %3728 = vst.msk [vmem:[#allocation3 + $0x4e8] sm:$0xff] %vm1784, %v3655
      %3729 = vst.msk [vmem:[#allocation3 + $0x520] sm:$0xff] %vm1784, %v3657
      %3730 = vst.msk [vmem:[#allocation3 + $0x558] sm:$0xff] %vm1784, %v3659
      %3731 = vst.msk [vmem:[#allocation3 + $0x590] sm:$0xff] %vm1784, %v3661
      %3732 = vst.msk [vmem:[#allocation3 + $0x5c8] sm:$0xff] %vm1784, %v3663
      %3733 = vst.msk [vmem:[#allocation3 + $0x600] sm:$0xff] %vm1784, %v3665
      %3734 = vst.msk [vmem:[#allocation3 + $0x638] sm:$0xff] %vm1784, %v3667
      %3735 = vst.msk [vmem:[#allocation3 + $0x670] sm:$0xff] %vm1784, %v3669
      %3736 = vst.msk [vmem:[#allocation3 + $0x6a8] sm:$0xff] %vm1784, %v3671
      %3737 = vst.msk [vmem:[#allocation3 + $0x6e0] sm:$0xff] %vm1784, %v3673
      %v3738 = vld [vmem:[%s3545 + $0x1] sm:$0xff]
      %v3739 = vld [vmem:[%s3545 + $0x9] sm:$0xff]
      %v3740 = vld [vmem:[%s3545 + $0x19] sm:$0xff]
      %v3741 = vld [vmem:[%s3545 + $0x21] sm:$0xff]
      %v3742 = vld [vmem:[%s3545 + $0x31] sm:$0xff]
      %v3743 = vld [vmem:[%s3545 + $0x39] sm:$0xff]
      %v3744 = vld [vmem:[%s3545 + $0x49] sm:$0xff]
      %v3745 = vld [vmem:[%s3545 + $0x51] sm:$0xff]
      %v3746 = vld [vmem:[%s3545 + $0x61] sm:$0xff]
      %v3747 = vld [vmem:[%s3545 + $0x69] sm:$0xff]
      %v3748 = vld [vmem:[%s3545 + $0x79] sm:$0xff]
      %v3749 = vld [vmem:[%s3545 + $0x81] sm:$0xff]
      %v3750 = vld [vmem:[%s3545 + $0x91] sm:$0xff]
      %v3751 = vld [vmem:[%s3545 + $0x99] sm:$0xff]
      %v3752 = vld [vmem:[%s3545 + $0xa9] sm:$0xff]
      %v3753 = vld [vmem:[%s3545 + $0xb1] sm:$0xff]
      %v3754 = vld [vmem:[%s3545 + $0xc1] sm:$0xff]
      %v3755 = vld [vmem:[%s3545 + $0xc9] sm:$0xff]
      %v3756 = vld [vmem:[%s3545 + $0xd9] sm:$0xff]
      %v3757 = vld [vmem:[%s3545 + $0xe1] sm:$0xff]
      %v3758 = vld [vmem:[%s3545 + $0xf1] sm:$0xff]
      %v3759 = vld [vmem:[%s3545 + $0xf9] sm:$0xff]
      %v3760 = vld [vmem:[%s3545 + $0x109] sm:$0xff]
      %v3761 = vld [vmem:[%s3545 + $0x111] sm:$0xff]
      %v3762 = vld [vmem:[%s3545 + $0x121] sm:$0xff]
      %v3763 = vld [vmem:[%s3545 + $0x129] sm:$0xff]
      %v3764 = vld [vmem:[%s3545 + $0x139] sm:$0xff]
      %v3765 = vld [vmem:[%s3545 + $0x141] sm:$0xff]
      %v3766 = vld [vmem:[%s3545 + $0x151] sm:$0xff]
      %v3767 = vld [vmem:[%s3545 + $0x159] sm:$0xff]
      %v3768 = vld [vmem:[%s3545 + $0x169] sm:$0xff]
      %v3769 = vld [vmem:[%s3545 + $0x171] sm:$0xff]
      %3770 = vst.msk [vmem:[#allocation3 + $0x20] sm:$0xff] %vm1009, %v3738
      %3771 = vst.msk [vmem:[#allocation3 + $0x58] sm:$0xff] %vm1009, %v3739
      %3772 = vst.msk [vmem:[#allocation3 + $0x90] sm:$0xff] %vm1009, %v3740
      %3773 = vst.msk [vmem:[#allocation3 + $0xc8] sm:$0xff] %vm1009, %v3741
      %3774 = vst.msk [vmem:[#allocation3 + $0x100] sm:$0xff] %vm1009, %v3742
      %3775 = vst.msk [vmem:[#allocation3 + $0x138] sm:$0xff] %vm1009, %v3743
      %3776 = vst.msk [vmem:[#allocation3 + $0x170] sm:$0xff] %vm1009, %v3744
      %3777 = vst.msk [vmem:[#allocation3 + $0x1a8] sm:$0xff] %vm1009, %v3745
      %3778 = vst.msk [vmem:[#allocation3 + $0x1e0] sm:$0xff] %vm1009, %v3746
      %3779 = vst.msk [vmem:[#allocation3 + $0x218] sm:$0xff] %vm1009, %v3747
      %3780 = vst.msk [vmem:[#allocation3 + $0x250] sm:$0xff] %vm1009, %v3748
      %3781 = vst.msk [vmem:[#allocation3 + $0x288] sm:$0xff] %vm1009, %v3749
      %3782 = vst.msk [vmem:[#allocation3 + $0x2c0] sm:$0xff] %vm1009, %v3750
      %3783 = vst.msk [vmem:[#allocation3 + $0x2f8] sm:$0xff] %vm1009, %v3751
      %3784 = vst.msk [vmem:[#allocation3 + $0x330] sm:$0xff] %vm1009, %v3752
      %3785 = vst.msk [vmem:[#allocation3 + $0x368] sm:$0xff] %vm1009, %v3753
      %3786 = vst.msk [vmem:[#allocation3 + $0x3a0] sm:$0xff] %vm1009, %v3754
      %3787 = vst.msk [vmem:[#allocation3 + $0x3d8] sm:$0xff] %vm1009, %v3755
      %3788 = vst.msk [vmem:[#allocation3 + $0x410] sm:$0xff] %vm1009, %v3756
      %3789 = vst.msk [vmem:[#allocation3 + $0x448] sm:$0xff] %vm1009, %v3757
      %3790 = vst.msk [vmem:[#allocation3 + $0x480] sm:$0xff] %vm1009, %v3758
      %3791 = vst.msk [vmem:[#allocation3 + $0x4b8] sm:$0xff] %vm1009, %v3759
      %3792 = vst.msk [vmem:[#allocation3 + $0x4f0] sm:$0xff] %vm1009, %v3760
      %3793 = vst.msk [vmem:[#allocation3 + $0x528] sm:$0xff] %vm1009, %v3761
      %3794 = vst.msk [vmem:[#allocation3 + $0x560] sm:$0xff] %vm1009, %v3762
      %3795 = vst.msk [vmem:[#allocation3 + $0x598] sm:$0xff] %vm1009, %v3763
      %3796 = vst.msk [vmem:[#allocation3 + $0x5d0] sm:$0xff] %vm1009, %v3764
      %3797 = vst.msk [vmem:[#allocation3 + $0x608] sm:$0xff] %vm1009, %v3765
      %3798 = vst.msk [vmem:[#allocation3 + $0x640] sm:$0xff] %vm1009, %v3766
      %3799 = vst.msk [vmem:[#allocation3 + $0x678] sm:$0xff] %vm1009, %v3767
      %3800 = vst.msk [vmem:[#allocation3 + $0x6b0] sm:$0xff] %vm1009, %v3768
      %3801 = vst.msk [vmem:[#allocation3 + $0x6e8] sm:$0xff] %vm1009, %v3769
      %v3802 = vld [vmem:[%s3545 + $0x2] sm:$0xff]
      %v3803 = vld [vmem:[%s3545 + $0xa] sm:$0xff]
      %v3804 = vld [vmem:[%s3545 + $0x1a] sm:$0xff]
      %v3805 = vld [vmem:[%s3545 + $0x22] sm:$0xff]
      %v3806 = vld [vmem:[%s3545 + $0x32] sm:$0xff]
      %v3807 = vld [vmem:[%s3545 + $0x3a] sm:$0xff]
      %v3808 = vld [vmem:[%s3545 + $0x4a] sm:$0xff]
      %v3809 = vld [vmem:[%s3545 + $0x52] sm:$0xff]
      %v3810 = vld [vmem:[%s3545 + $0x62] sm:$0xff]
      %v3811 = vld [vmem:[%s3545 + $0x6a] sm:$0xff]
      %v3812 = vld [vmem:[%s3545 + $0x7a] sm:$0xff]
      %v3813 = vld [vmem:[%s3545 + $0x82] sm:$0xff]
      %v3814 = vld [vmem:[%s3545 + $0x92] sm:$0xff]
      %v3815 = vld [vmem:[%s3545 + $0x9a] sm:$0xff]
      %v3816 = vld [vmem:[%s3545 + $0xaa] sm:$0xff]
      %v3817 = vld [vmem:[%s3545 + $0xb2] sm:$0xff]
      %v3818 = vld [vmem:[%s3545 + $0xc2] sm:$0xff]
      %v3819 = vld [vmem:[%s3545 + $0xca] sm:$0xff]
      %v3820 = vld [vmem:[%s3545 + $0xda] sm:$0xff]
      %v3821 = vld [vmem:[%s3545 + $0xe2] sm:$0xff]
      %v3822 = vld [vmem:[%s3545 + $0xf2] sm:$0xff]
      %v3823 = vld [vmem:[%s3545 + $0xfa] sm:$0xff]
      %v3824 = vld [vmem:[%s3545 + $0x10a] sm:$0xff]
      %v3825 = vld [vmem:[%s3545 + $0x112] sm:$0xff]
      %v3826 = vld [vmem:[%s3545 + $0x122] sm:$0xff]
      %v3827 = vld [vmem:[%s3545 + $0x12a] sm:$0xff]
      %v3828 = vld [vmem:[%s3545 + $0x13a] sm:$0xff]
      %v3829 = vld [vmem:[%s3545 + $0x142] sm:$0xff]
      %v3830 = vld [vmem:[%s3545 + $0x152] sm:$0xff]
      %v3831 = vld [vmem:[%s3545 + $0x15a] sm:$0xff]
      %v3832 = vld [vmem:[%s3545 + $0x16a] sm:$0xff]
      %v3833 = vld [vmem:[%s3545 + $0x172] sm:$0xff]
      %3866 = vrot.lane.b32.xlu0 %v3802, 32
      %v3867 = vpop.permute.xlu0 %3866
      %3868 = vrot.lane.b32.xlu0 %v3803, 32
      %v3869 = vpop.permute.xlu0 %3868
      %3870 = vrot.lane.b32.xlu0 %v3804, 32
      %v3871 = vpop.permute.xlu0 %3870
      %3872 = vrot.lane.b32.xlu0 %v3805, 32
      %v3873 = vpop.permute.xlu0 %3872
      %3874 = vrot.lane.b32.xlu0 %v3806, 32
      %v3875 = vpop.permute.xlu0 %3874
      %3876 = vrot.lane.b32.xlu0 %v3807, 32
      %v3877 = vpop.permute.xlu0 %3876
      %3878 = vrot.lane.b32.xlu0 %v3808, 32
      %v3879 = vpop.permute.xlu0 %3878
      %3880 = vrot.lane.b32.xlu0 %v3809, 32
      %v3881 = vpop.permute.xlu0 %3880
      %3882 = vrot.lane.b32.xlu0 %v3810, 32
      %v3883 = vpop.permute.xlu0 %3882
      %3884 = vrot.lane.b32.xlu0 %v3811, 32
      %v3885 = vpop.permute.xlu0 %3884
      %3886 = vrot.lane.b32.xlu0 %v3812, 32
      %v3887 = vpop.permute.xlu0 %3886
      %3888 = vrot.lane.b32.xlu0 %v3813, 32
      %v3889 = vpop.permute.xlu0 %3888
      %3890 = vrot.lane.b32.xlu0 %v3814, 32
      %v3891 = vpop.permute.xlu0 %3890
      %3892 = vrot.lane.b32.xlu0 %v3815, 32
      %v3893 = vpop.permute.xlu0 %3892
      %3894 = vrot.lane.b32.xlu0 %v3816, 32
      %v3895 = vpop.permute.xlu0 %3894
      %3896 = vrot.lane.b32.xlu0 %v3817, 32
      %v3897 = vpop.permute.xlu0 %3896
      %3898 = vrot.lane.b32.xlu0 %v3818, 32
      %v3899 = vpop.permute.xlu0 %3898
      %3900 = vrot.lane.b32.xlu0 %v3819, 32
      %v3901 = vpop.permute.xlu0 %3900
      %3902 = vrot.lane.b32.xlu0 %v3820, 32
      %v3903 = vpop.permute.xlu0 %3902
      %3904 = vrot.lane.b32.xlu0 %v3821, 32
      %v3905 = vpop.permute.xlu0 %3904
      %3906 = vrot.lane.b32.xlu0 %v3822, 32
      %v3907 = vpop.permute.xlu0 %3906
      %3908 = vrot.lane.b32.xlu0 %v3823, 32
      %v3909 = vpop.permute.xlu0 %3908
      %3910 = vrot.lane.b32.xlu0 %v3824, 32
      %v3911 = vpop.permute.xlu0 %3910
      %3912 = vrot.lane.b32.xlu0 %v3825, 32
      %v3913 = vpop.permute.xlu0 %3912
      %3914 = vrot.lane.b32.xlu0 %v3826, 32
      %v3915 = vpop.permute.xlu0 %3914
      %3916 = vrot.lane.b32.xlu0 %v3827, 32
      %v3917 = vpop.permute.xlu0 %3916
      %3918 = vrot.lane.b32.xlu0 %v3828, 32
      %v3919 = vpop.permute.xlu0 %3918
      %3920 = vrot.lane.b32.xlu0 %v3829, 32
      %v3921 = vpop.permute.xlu0 %3920
      %3922 = vrot.lane.b32.xlu0 %v3830, 32
      %v3923 = vpop.permute.xlu0 %3922
      %3924 = vrot.lane.b32.xlu0 %v3831, 32
      %v3925 = vpop.permute.xlu0 %3924
      %3926 = vrot.lane.b32.xlu0 %v3832, 32
      %v3927 = vpop.permute.xlu0 %3926
      %3928 = vrot.lane.b32.xlu0 %v3833, 32
      %v3929 = vpop.permute.xlu0 %3928
      %3962 = vst.msk [vmem:[#allocation3 + $0x20] sm:$0xff] %vm1398, %v3867
      %3963 = vst.msk [vmem:[#allocation3 + $0x58] sm:$0xff] %vm1398, %v3869
      %3964 = vst.msk [vmem:[#allocation3 + $0x90] sm:$0xff] %vm1398, %v3871
      %3965 = vst.msk [vmem:[#allocation3 + $0xc8] sm:$0xff] %vm1398, %v3873
      %3966 = vst.msk [vmem:[#allocation3 + $0x100] sm:$0xff] %vm1398, %v3875
      %3967 = vst.msk [vmem:[#allocation3 + $0x138] sm:$0xff] %vm1398, %v3877
      %3968 = vst.msk [vmem:[#allocation3 + $0x170] sm:$0xff] %vm1398, %v3879
      %3969 = vst.msk [vmem:[#allocation3 + $0x1a8] sm:$0xff] %vm1398, %v3881
      %3970 = vst.msk [vmem:[#allocation3 + $0x1e0] sm:$0xff] %vm1398, %v3883
      %3971 = vst.msk [vmem:[#allocation3 + $0x218] sm:$0xff] %vm1398, %v3885
      %3972 = vst.msk [vmem:[#allocation3 + $0x250] sm:$0xff] %vm1398, %v3887
      %3973 = vst.msk [vmem:[#allocation3 + $0x288] sm:$0xff] %vm1398, %v3889
      %3974 = vst.msk [vmem:[#allocation3 + $0x2c0] sm:$0xff] %vm1398, %v3891
      %3975 = vst.msk [vmem:[#allocation3 + $0x2f8] sm:$0xff] %vm1398, %v3893
      %3976 = vst.msk [vmem:[#allocation3 + $0x330] sm:$0xff] %vm1398, %v3895
      %3977 = vst.msk [vmem:[#allocation3 + $0x368] sm:$0xff] %vm1398, %v3897
      %3978 = vst.msk [vmem:[#allocation3 + $0x3a0] sm:$0xff] %vm1398, %v3899
      %3979 = vst.msk [vmem:[#allocation3 + $0x3d8] sm:$0xff] %vm1398, %v3901
      %3980 = vst.msk [vmem:[#allocation3 + $0x410] sm:$0xff] %vm1398, %v3903
      %3981 = vst.msk [vmem:[#allocation3 + $0x448] sm:$0xff] %vm1398, %v3905
      %3982 = vst.msk [vmem:[#allocation3 + $0x480] sm:$0xff] %vm1398, %v3907
      %3983 = vst.msk [vmem:[#allocation3 + $0x4b8] sm:$0xff] %vm1398, %v3909
      %3984 = vst.msk [vmem:[#allocation3 + $0x4f0] sm:$0xff] %vm1398, %v3911
      %3985 = vst.msk [vmem:[#allocation3 + $0x528] sm:$0xff] %vm1398, %v3913
      %3986 = vst.msk [vmem:[#allocation3 + $0x560] sm:$0xff] %vm1398, %v3915
      %3987 = vst.msk [vmem:[#allocation3 + $0x598] sm:$0xff] %vm1398, %v3917
      %3988 = vst.msk [vmem:[#allocation3 + $0x5d0] sm:$0xff] %vm1398, %v3919
      %3989 = vst.msk [vmem:[#allocation3 + $0x608] sm:$0xff] %vm1398, %v3921
      %3990 = vst.msk [vmem:[#allocation3 + $0x640] sm:$0xff] %vm1398, %v3923
      %3991 = vst.msk [vmem:[#allocation3 + $0x678] sm:$0xff] %vm1398, %v3925
      %3992 = vst.msk [vmem:[#allocation3 + $0x6b0] sm:$0xff] %vm1398, %v3927
      %3993 = vst.msk [vmem:[#allocation3 + $0x6e8] sm:$0xff] %vm1398, %v3929
      %v3994 = vld [vmem:[%s3545 + $0x3] sm:$0xff]
      %v3995 = vld [vmem:[%s3545 + $0xb] sm:$0xff]
      %v3996 = vld [vmem:[%s3545 + $0x1b] sm:$0xff]
      %v3997 = vld [vmem:[%s3545 + $0x23] sm:$0xff]
      %v3998 = vld [vmem:[%s3545 + $0x33] sm:$0xff]
      %v3999 = vld [vmem:[%s3545 + $0x3b] sm:$0xff]
      %v4000 = vld [vmem:[%s3545 + $0x4b] sm:$0xff]
      %v4001 = vld [vmem:[%s3545 + $0x53] sm:$0xff]
      %v4002 = vld [vmem:[%s3545 + $0x63] sm:$0xff]
      %v4003 = vld [vmem:[%s3545 + $0x6b] sm:$0xff]
      %v4004 = vld [vmem:[%s3545 + $0x7b] sm:$0xff]
      %v4005 = vld [vmem:[%s3545 + $0x83] sm:$0xff]
      %v4006 = vld [vmem:[%s3545 + $0x93] sm:$0xff]
      %v4007 = vld [vmem:[%s3545 + $0x9b] sm:$0xff]
      %v4008 = vld [vmem:[%s3545 + $0xab] sm:$0xff]
      %v4009 = vld [vmem:[%s3545 + $0xb3] sm:$0xff]
      %v4010 = vld [vmem:[%s3545 + $0xc3] sm:$0xff]
      %v4011 = vld [vmem:[%s3545 + $0xcb] sm:$0xff]
      %v4012 = vld [vmem:[%s3545 + $0xdb] sm:$0xff]
      %v4013 = vld [vmem:[%s3545 + $0xe3] sm:$0xff]
      %v4014 = vld [vmem:[%s3545 + $0xf3] sm:$0xff]
      %v4015 = vld [vmem:[%s3545 + $0xfb] sm:$0xff]
      %v4016 = vld [vmem:[%s3545 + $0x10b] sm:$0xff]
      %v4017 = vld [vmem:[%s3545 + $0x113] sm:$0xff]
      %v4018 = vld [vmem:[%s3545 + $0x123] sm:$0xff]
      %v4019 = vld [vmem:[%s3545 + $0x12b] sm:$0xff]
      %v4020 = vld [vmem:[%s3545 + $0x13b] sm:$0xff]
      %v4021 = vld [vmem:[%s3545 + $0x143] sm:$0xff]
      %v4022 = vld [vmem:[%s3545 + $0x153] sm:$0xff]
      %v4023 = vld [vmem:[%s3545 + $0x15b] sm:$0xff]
      %v4024 = vld [vmem:[%s3545 + $0x16b] sm:$0xff]
      %v4025 = vld [vmem:[%s3545 + $0x173] sm:$0xff]
      %4058 = vrot.lane.b32.xlu0 %v3994, 64
      %v4059 = vpop.permute.xlu0 %4058
      %4060 = vrot.lane.b32.xlu0 %v3995, 64
      %v4061 = vpop.permute.xlu0 %4060
      %4062 = vrot.lane.b32.xlu0 %v3996, 64
      %v4063 = vpop.permute.xlu0 %4062
      %4064 = vrot.lane.b32.xlu0 %v3997, 64
      %v4065 = vpop.permute.xlu0 %4064
      %4066 = vrot.lane.b32.xlu0 %v3998, 64
      %v4067 = vpop.permute.xlu0 %4066
      %4068 = vrot.lane.b32.xlu0 %v3999, 64
      %v4069 = vpop.permute.xlu0 %4068
      %4070 = vrot.lane.b32.xlu0 %v4000, 64
      %v4071 = vpop.permute.xlu0 %4070
      %4072 = vrot.lane.b32.xlu0 %v4001, 64
      %v4073 = vpop.permute.xlu0 %4072
      %4074 = vrot.lane.b32.xlu0 %v4002, 64
      %v4075 = vpop.permute.xlu0 %4074
      %4076 = vrot.lane.b32.xlu0 %v4003, 64
      %v4077 = vpop.permute.xlu0 %4076
      %4078 = vrot.lane.b32.xlu0 %v4004, 64
      %v4079 = vpop.permute.xlu0 %4078
      %4080 = vrot.lane.b32.xlu0 %v4005, 64
      %v4081 = vpop.permute.xlu0 %4080
      %4082 = vrot.lane.b32.xlu0 %v4006, 64
      %v4083 = vpop.permute.xlu0 %4082
      %4084 = vrot.lane.b32.xlu0 %v4007, 64
      %v4085 = vpop.permute.xlu0 %4084
      %4086 = vrot.lane.b32.xlu0 %v4008, 64
      %v4087 = vpop.permute.xlu0 %4086
      %4088 = vrot.lane.b32.xlu0 %v4009, 64
      %v4089 = vpop.permute.xlu0 %4088
      %4090 = vrot.lane.b32.xlu0 %v4010, 64
      %v4091 = vpop.permute.xlu0 %4090
      %4092 = vrot.lane.b32.xlu0 %v4011, 64
      %v4093 = vpop.permute.xlu0 %4092
      %4094 = vrot.lane.b32.xlu0 %v4012, 64
      %v4095 = vpop.permute.xlu0 %4094
      %4096 = vrot.lane.b32.xlu0 %v4013, 64
      %v4097 = vpop.permute.xlu0 %4096
      %4098 = vrot.lane.b32.xlu0 %v4014, 64
      %v4099 = vpop.permute.xlu0 %4098
      %4100 = vrot.lane.b32.xlu0 %v4015, 64
      %v4101 = vpop.permute.xlu0 %4100
      %4102 = vrot.lane.b32.xlu0 %v4016, 64
      %v4103 = vpop.permute.xlu0 %4102
      %4104 = vrot.lane.b32.xlu0 %v4017, 64
      %v4105 = vpop.permute.xlu0 %4104
      %4106 = vrot.lane.b32.xlu0 %v4018, 64
      %v4107 = vpop.permute.xlu0 %4106
      %4108 = vrot.lane.b32.xlu0 %v4019, 64
      %v4109 = vpop.permute.xlu0 %4108
      %4110 = vrot.lane.b32.xlu0 %v4020, 64
      %v4111 = vpop.permute.xlu0 %4110
      %4112 = vrot.lane.b32.xlu0 %v4021, 64
      %v4113 = vpop.permute.xlu0 %4112
      %4114 = vrot.lane.b32.xlu0 %v4022, 64
      %v4115 = vpop.permute.xlu0 %4114
      %4116 = vrot.lane.b32.xlu0 %v4023, 64
      %v4117 = vpop.permute.xlu0 %4116
      %4118 = vrot.lane.b32.xlu0 %v4024, 64
      %v4119 = vpop.permute.xlu0 %4118
      %4120 = vrot.lane.b32.xlu0 %v4025, 64
      %v4121 = vpop.permute.xlu0 %4120
      %4154 = vst.msk [vmem:[#allocation3 + $0x20] sm:$0xff] %vm1591, %v4059
      %4155 = vst.msk [vmem:[#allocation3 + $0x58] sm:$0xff] %vm1591, %v4061
      %4156 = vst.msk [vmem:[#allocation3 + $0x90] sm:$0xff] %vm1591, %v4063
      %4157 = vst.msk [vmem:[#allocation3 + $0xc8] sm:$0xff] %vm1591, %v4065
      %4158 = vst.msk [vmem:[#allocation3 + $0x100] sm:$0xff] %vm1591, %v4067
      %4159 = vst.msk [vmem:[#allocation3 + $0x138] sm:$0xff] %vm1591, %v4069
      %4160 = vst.msk [vmem:[#allocation3 + $0x170] sm:$0xff] %vm1591, %v4071
      %4161 = vst.msk [vmem:[#allocation3 + $0x1a8] sm:$0xff] %vm1591, %v4073
      %4162 = vst.msk [vmem:[#allocation3 + $0x1e0] sm:$0xff] %vm1591, %v4075
      %4163 = vst.msk [vmem:[#allocation3 + $0x218] sm:$0xff] %vm1591, %v4077
      %4164 = vst.msk [vmem:[#allocation3 + $0x250] sm:$0xff] %vm1591, %v4079
      %4165 = vst.msk [vmem:[#allocation3 + $0x288] sm:$0xff] %vm1591, %v4081
      %4166 = vst.msk [vmem:[#allocation3 + $0x2c0] sm:$0xff] %vm1591, %v4083
      %4167 = vst.msk [vmem:[#allocation3 + $0x2f8] sm:$0xff] %vm1591, %v4085
      %4168 = vst.msk [vmem:[#allocation3 + $0x330] sm:$0xff] %vm1591, %v4087
      %4169 = vst.msk [vmem:[#allocation3 + $0x368] sm:$0xff] %vm1591, %v4089
      %4170 = vst.msk [vmem:[#allocation3 + $0x3a0] sm:$0xff] %vm1591, %v4091
      %4171 = vst.msk [vmem:[#allocation3 + $0x3d8] sm:$0xff] %vm1591, %v4093
      %4172 = vst.msk [vmem:[#allocation3 + $0x410] sm:$0xff] %vm1591, %v4095
      %4173 = vst.msk [vmem:[#allocation3 + $0x448] sm:$0xff] %vm1591, %v4097
      %4174 = vst.msk [vmem:[#allocation3 + $0x480] sm:$0xff] %vm1591, %v4099
      %4175 = vst.msk [vmem:[#allocation3 + $0x4b8] sm:$0xff] %vm1591, %v4101
      %4176 = vst.msk [vmem:[#allocation3 + $0x4f0] sm:$0xff] %vm1591, %v4103
      %4177 = vst.msk [vmem:[#allocation3 + $0x528] sm:$0xff] %vm1591, %v4105
      %4178 = vst.msk [vmem:[#allocation3 + $0x560] sm:$0xff] %vm1591, %v4107
      %4179 = vst.msk [vmem:[#allocation3 + $0x598] sm:$0xff] %vm1591, %v4109
      %4180 = vst.msk [vmem:[#allocation3 + $0x5d0] sm:$0xff] %vm1591, %v4111
      %4181 = vst.msk [vmem:[#allocation3 + $0x608] sm:$0xff] %vm1591, %v4113
      %4182 = vst.msk [vmem:[#allocation3 + $0x640] sm:$0xff] %vm1591, %v4115
      %4183 = vst.msk [vmem:[#allocation3 + $0x678] sm:$0xff] %vm1591, %v4117
      %4184 = vst.msk [vmem:[#allocation3 + $0x6b0] sm:$0xff] %vm1591, %v4119
      %4185 = vst.msk [vmem:[#allocation3 + $0x6e8] sm:$0xff] %vm1591, %v4121
      %v4186 = vld [vmem:[%s3545 + $0x4] sm:$0xff]
      %v4187 = vld [vmem:[%s3545 + $0xc] sm:$0xff]
      %v4188 = vld [vmem:[%s3545 + $0x1c] sm:$0xff]
      %v4189 = vld [vmem:[%s3545 + $0x24] sm:$0xff]
      %v4190 = vld [vmem:[%s3545 + $0x34] sm:$0xff]
      %v4191 = vld [vmem:[%s3545 + $0x3c] sm:$0xff]
      %v4192 = vld [vmem:[%s3545 + $0x4c] sm:$0xff]
      %v4193 = vld [vmem:[%s3545 + $0x54] sm:$0xff]
      %v4194 = vld [vmem:[%s3545 + $0x64] sm:$0xff]
      %v4195 = vld [vmem:[%s3545 + $0x6c] sm:$0xff]
      %v4196 = vld [vmem:[%s3545 + $0x7c] sm:$0xff]
      %v4197 = vld [vmem:[%s3545 + $0x84] sm:$0xff]
      %v4198 = vld [vmem:[%s3545 + $0x94] sm:$0xff]
      %v4199 = vld [vmem:[%s3545 + $0x9c] sm:$0xff]
      %v4200 = vld [vmem:[%s3545 + $0xac] sm:$0xff]
      %v4201 = vld [vmem:[%s3545 + $0xb4] sm:$0xff]
      %v4202 = vld [vmem:[%s3545 + $0xc4] sm:$0xff]
      %v4203 = vld [vmem:[%s3545 + $0xcc] sm:$0xff]
      %v4204 = vld [vmem:[%s3545 + $0xdc] sm:$0xff]
      %v4205 = vld [vmem:[%s3545 + $0xe4] sm:$0xff]
      %v4206 = vld [vmem:[%s3545 + $0xf4] sm:$0xff]
      %v4207 = vld [vmem:[%s3545 + $0xfc] sm:$0xff]
      %v4208 = vld [vmem:[%s3545 + $0x10c] sm:$0xff]
      %v4209 = vld [vmem:[%s3545 + $0x114] sm:$0xff]
      %v4210 = vld [vmem:[%s3545 + $0x124] sm:$0xff]
      %v4211 = vld [vmem:[%s3545 + $0x12c] sm:$0xff]
      %v4212 = vld [vmem:[%s3545 + $0x13c] sm:$0xff]
      %v4213 = vld [vmem:[%s3545 + $0x144] sm:$0xff]
      %v4214 = vld [vmem:[%s3545 + $0x154] sm:$0xff]
      %v4215 = vld [vmem:[%s3545 + $0x15c] sm:$0xff]
      %v4216 = vld [vmem:[%s3545 + $0x16c] sm:$0xff]
      %v4217 = vld [vmem:[%s3545 + $0x174] sm:$0xff]
      %4250 = vrot.lane.b32.xlu0 %v4186, 96
      %v4251 = vpop.permute.xlu0 %4250
      %4252 = vrot.lane.b32.xlu0 %v4187, 96
      %v4253 = vpop.permute.xlu0 %4252
      %4254 = vrot.lane.b32.xlu0 %v4188, 96
      %v4255 = vpop.permute.xlu0 %4254
      %4256 = vrot.lane.b32.xlu0 %v4189, 96
      %v4257 = vpop.permute.xlu0 %4256
      %4258 = vrot.lane.b32.xlu0 %v4190, 96
      %v4259 = vpop.permute.xlu0 %4258
      %4260 = vrot.lane.b32.xlu0 %v4191, 96
      %v4261 = vpop.permute.xlu0 %4260
      %4262 = vrot.lane.b32.xlu0 %v4192, 96
      %v4263 = vpop.permute.xlu0 %4262
      %4264 = vrot.lane.b32.xlu0 %v4193, 96
      %v4265 = vpop.permute.xlu0 %4264
      %4266 = vrot.lane.b32.xlu0 %v4194, 96
      %v4267 = vpop.permute.xlu0 %4266
      %4268 = vrot.lane.b32.xlu0 %v4195, 96
      %v4269 = vpop.permute.xlu0 %4268
      %4270 = vrot.lane.b32.xlu0 %v4196, 96
      %v4271 = vpop.permute.xlu0 %4270
      %4272 = vrot.lane.b32.xlu0 %v4197, 96
      %v4273 = vpop.permute.xlu0 %4272
      %4274 = vrot.lane.b32.xlu0 %v4198, 96
      %v4275 = vpop.permute.xlu0 %4274
      %4276 = vrot.lane.b32.xlu0 %v4199, 96
      %v4277 = vpop.permute.xlu0 %4276
      %4278 = vrot.lane.b32.xlu0 %v4200, 96
      %v4279 = vpop.permute.xlu0 %4278
      %4280 = vrot.lane.b32.xlu0 %v4201, 96
      %v4281 = vpop.permute.xlu0 %4280
      %4282 = vrot.lane.b32.xlu0 %v4202, 96
      %v4283 = vpop.permute.xlu0 %4282
      %4284 = vrot.lane.b32.xlu0 %v4203, 96
      %v4285 = vpop.permute.xlu0 %4284
      %4286 = vrot.lane.b32.xlu0 %v4204, 96
      %v4287 = vpop.permute.xlu0 %4286
      %4288 = vrot.lane.b32.xlu0 %v4205, 96
      %v4289 = vpop.permute.xlu0 %4288
      %4290 = vrot.lane.b32.xlu0 %v4206, 96
      %v4291 = vpop.permute.xlu0 %4290
      %4292 = vrot.lane.b32.xlu0 %v4207, 96
      %v4293 = vpop.permute.xlu0 %4292
      %4294 = vrot.lane.b32.xlu0 %v4208, 96
      %v4295 = vpop.permute.xlu0 %4294
      %4296 = vrot.lane.b32.xlu0 %v4209, 96
      %v4297 = vpop.permute.xlu0 %4296
      %4298 = vrot.lane.b32.xlu0 %v4210, 96
      %v4299 = vpop.permute.xlu0 %4298
      %4300 = vrot.lane.b32.xlu0 %v4211, 96
      %v4301 = vpop.permute.xlu0 %4300
      %4302 = vrot.lane.b32.xlu0 %v4212, 96
      %v4303 = vpop.permute.xlu0 %4302
      %4304 = vrot.lane.b32.xlu0 %v4213, 96
      %v4305 = vpop.permute.xlu0 %4304
      %4306 = vrot.lane.b32.xlu0 %v4214, 96
      %v4307 = vpop.permute.xlu0 %4306
      %4308 = vrot.lane.b32.xlu0 %v4215, 96
      %v4309 = vpop.permute.xlu0 %4308
      %4310 = vrot.lane.b32.xlu0 %v4216, 96
      %v4311 = vpop.permute.xlu0 %4310
      %4312 = vrot.lane.b32.xlu0 %v4217, 96
      %v4313 = vpop.permute.xlu0 %4312
      %4346 = vst.msk [vmem:[#allocation3 + $0x20] sm:$0xff] %vm1784, %v4251
      %4347 = vst.msk [vmem:[#allocation3 + $0x58] sm:$0xff] %vm1784, %v4253
      %4348 = vst.msk [vmem:[#allocation3 + $0x90] sm:$0xff] %vm1784, %v4255
      %4349 = vst.msk [vmem:[#allocation3 + $0xc8] sm:$0xff] %vm1784, %v4257
      %4350 = vst.msk [vmem:[#allocation3 + $0x100] sm:$0xff] %vm1784, %v4259
      %4351 = vst.msk [vmem:[#allocation3 + $0x138] sm:$0xff] %vm1784, %v4261
      %4352 = vst.msk [vmem:[#allocation3 + $0x170] sm:$0xff] %vm1784, %v4263
      %4353 = vst.msk [vmem:[#allocation3 + $0x1a8] sm:$0xff] %vm1784, %v4265
      %4354 = vst.msk [vmem:[#allocation3 + $0x1e0] sm:$0xff] %vm1784, %v4267
      %4355 = vst.msk [vmem:[#allocation3 + $0x218] sm:$0xff] %vm1784, %v4269
      %4356 = vst.msk [vmem:[#allocation3 + $0x250] sm:$0xff] %vm1784, %v4271
      %4357 = vst.msk [vmem:[#allocation3 + $0x288] sm:$0xff] %vm1784, %v4273
      %4358 = vst.msk [vmem:[#allocation3 + $0x2c0] sm:$0xff] %vm1784, %v4275
      %4359 = vst.msk [vmem:[#allocation3 + $0x2f8] sm:$0xff] %vm1784, %v4277
      %4360 = vst.msk [vmem:[#allocation3 + $0x330] sm:$0xff] %vm1784, %v4279
      %4361 = vst.msk [vmem:[#allocation3 + $0x368] sm:$0xff] %vm1784, %v4281
      %4362 = vst.msk [vmem:[#allocation3 + $0x3a0] sm:$0xff] %vm1784, %v4283
      %4363 = vst.msk [vmem:[#allocation3 + $0x3d8] sm:$0xff] %vm1784, %v4285
      %4364 = vst.msk [vmem:[#allocation3 + $0x410] sm:$0xff] %vm1784, %v4287
      %4365 = vst.msk [vmem:[#allocation3 + $0x448] sm:$0xff] %vm1784, %v4289
      %4366 = vst.msk [vmem:[#allocation3 + $0x480] sm:$0xff] %vm1784, %v4291
      %4367 = vst.msk [vmem:[#allocation3 + $0x4b8] sm:$0xff] %vm1784, %v4293
      %4368 = vst.msk [vmem:[#allocation3 + $0x4f0] sm:$0xff] %vm1784, %v4295
      %4369 = vst.msk [vmem:[#allocation3 + $0x528] sm:$0xff] %vm1784, %v4297
      %4370 = vst.msk [vmem:[#allocation3 + $0x560] sm:$0xff] %vm1784, %v4299
      %4371 = vst.msk [vmem:[#allocation3 + $0x598] sm:$0xff] %vm1784, %v4301
      %4372 = vst.msk [vmem:[#allocation3 + $0x5d0] sm:$0xff] %vm1784, %v4303
      %4373 = vst.msk [vmem:[#allocation3 + $0x608] sm:$0xff] %vm1784, %v4305
      %4374 = vst.msk [vmem:[#allocation3 + $0x640] sm:$0xff] %vm1784, %v4307
      %4375 = vst.msk [vmem:[#allocation3 + $0x678] sm:$0xff] %vm1784, %v4309
      %4376 = vst.msk [vmem:[#allocation3 + $0x6b0] sm:$0xff] %vm1784, %v4311
      %4377 = vst.msk [vmem:[#allocation3 + $0x6e8] sm:$0xff] %vm1784, %v4313
      %s4378 = scalar_lea.vmem [#allocation2], 96
      %v4379 = vld [vmem:[%s4378] sm:$0xff]
      %v4380 = vld [vmem:[%s4378 + $0x8] sm:$0xff]
      %v4381 = vld [vmem:[%s4378 + $0x18] sm:$0xff]
      %v4382 = vld [vmem:[%s4378 + $0x20] sm:$0xff]
      %v4383 = vld [vmem:[%s4378 + $0x30] sm:$0xff]
      %v4384 = vld [vmem:[%s4378 + $0x38] sm:$0xff]
      %v4385 = vld [vmem:[%s4378 + $0x48] sm:$0xff]
      %v4386 = vld [vmem:[%s4378 + $0x50] sm:$0xff]
      %v4387 = vld [vmem:[%s4378 + $0x60] sm:$0xff]
      %v4388 = vld [vmem:[%s4378 + $0x68] sm:$0xff]
      %v4389 = vld [vmem:[%s4378 + $0x78] sm:$0xff]
      %v4390 = vld [vmem:[%s4378 + $0x80] sm:$0xff]
      %v4391 = vld [vmem:[%s4378 + $0x90] sm:$0xff]
      %v4392 = vld [vmem:[%s4378 + $0x98] sm:$0xff]
      %v4393 = vld [vmem:[%s4378 + $0xa8] sm:$0xff]
      %v4394 = vld [vmem:[%s4378 + $0xb0] sm:$0xff]
      %v4395 = vld [vmem:[%s4378 + $0xc0] sm:$0xff]
      %v4396 = vld [vmem:[%s4378 + $0xc8] sm:$0xff]
      %v4397 = vld [vmem:[%s4378 + $0xd8] sm:$0xff]
      %v4398 = vld [vmem:[%s4378 + $0xe0] sm:$0xff]
      %v4399 = vld [vmem:[%s4378 + $0xf0] sm:$0xff]
      %v4400 = vld [vmem:[%s4378 + $0xf8] sm:$0xff]
      %v4401 = vld [vmem:[%s4378 + $0x108] sm:$0xff]
      %v4402 = vld [vmem:[%s4378 + $0x110] sm:$0xff]
      %v4403 = vld [vmem:[%s4378 + $0x120] sm:$0xff]
      %v4404 = vld [vmem:[%s4378 + $0x128] sm:$0xff]
      %v4405 = vld [vmem:[%s4378 + $0x138] sm:$0xff]
      %v4406 = vld [vmem:[%s4378 + $0x140] sm:$0xff]
      %v4407 = vld [vmem:[%s4378 + $0x150] sm:$0xff]
      %v4408 = vld [vmem:[%s4378 + $0x158] sm:$0xff]
      %v4409 = vld [vmem:[%s4378 + $0x168] sm:$0xff]
      %v4410 = vld [vmem:[%s4378 + $0x170] sm:$0xff]
      %4411 = vst.msk [vmem:[#allocation3 + $0x28] sm:$0xff] %vm1009, %v4379
      %4412 = vst.msk [vmem:[#allocation3 + $0x60] sm:$0xff] %vm1009, %v4380
      %4413 = vst.msk [vmem:[#allocation3 + $0x98] sm:$0xff] %vm1009, %v4381
      %4414 = vst.msk [vmem:[#allocation3 + $0xd0] sm:$0xff] %vm1009, %v4382
      %4415 = vst.msk [vmem:[#allocation3 + $0x108] sm:$0xff] %vm1009, %v4383
      %4416 = vst.msk [vmem:[#allocation3 + $0x140] sm:$0xff] %vm1009, %v4384
      %4417 = vst.msk [vmem:[#allocation3 + $0x178] sm:$0xff] %vm1009, %v4385
      %4418 = vst.msk [vmem:[#allocation3 + $0x1b0] sm:$0xff] %vm1009, %v4386
      %4419 = vst.msk [vmem:[#allocation3 + $0x1e8] sm:$0xff] %vm1009, %v4387
      %4420 = vst.msk [vmem:[#allocation3 + $0x220] sm:$0xff] %vm1009, %v4388
      %4421 = vst.msk [vmem:[#allocation3 + $0x258] sm:$0xff] %vm1009, %v4389
      %4422 = vst.msk [vmem:[#allocation3 + $0x290] sm:$0xff] %vm1009, %v4390
      %4423 = vst.msk [vmem:[#allocation3 + $0x2c8] sm:$0xff] %vm1009, %v4391
      %4424 = vst.msk [vmem:[#allocation3 + $0x300] sm:$0xff] %vm1009, %v4392
      %4425 = vst.msk [vmem:[#allocation3 + $0x338] sm:$0xff] %vm1009, %v4393
      %4426 = vst.msk [vmem:[#allocation3 + $0x370] sm:$0xff] %vm1009, %v4394
      %4427 = vst.msk [vmem:[#allocation3 + $0x3a8] sm:$0xff] %vm1009, %v4395
      %4428 = vst.msk [vmem:[#allocation3 + $0x3e0] sm:$0xff] %vm1009, %v4396
      %4429 = vst.msk [vmem:[#allocation3 + $0x418] sm:$0xff] %vm1009, %v4397
      %4430 = vst.msk [vmem:[#allocation3 + $0x450] sm:$0xff] %vm1009, %v4398
      %4431 = vst.msk [vmem:[#allocation3 + $0x488] sm:$0xff] %vm1009, %v4399
      %4432 = vst.msk [vmem:[#allocation3 + $0x4c0] sm:$0xff] %vm1009, %v4400
      %4433 = vst.msk [vmem:[#allocation3 + $0x4f8] sm:$0xff] %vm1009, %v4401
      %4434 = vst.msk [vmem:[#allocation3 + $0x530] sm:$0xff] %vm1009, %v4402
      %4435 = vst.msk [vmem:[#allocation3 + $0x568] sm:$0xff] %vm1009, %v4403
      %4436 = vst.msk [vmem:[#allocation3 + $0x5a0] sm:$0xff] %vm1009, %v4404
      %4437 = vst.msk [vmem:[#allocation3 + $0x5d8] sm:$0xff] %vm1009, %v4405
      %4438 = vst.msk [vmem:[#allocation3 + $0x610] sm:$0xff] %vm1009, %v4406
      %4439 = vst.msk [vmem:[#allocation3 + $0x648] sm:$0xff] %vm1009, %v4407
      %4440 = vst.msk [vmem:[#allocation3 + $0x680] sm:$0xff] %vm1009, %v4408
      %4441 = vst.msk [vmem:[#allocation3 + $0x6b8] sm:$0xff] %vm1009, %v4409
      %4442 = vst.msk [vmem:[#allocation3 + $0x6f0] sm:$0xff] %vm1009, %v4410
      %v4443 = vld [vmem:[%s4378 + $0x1] sm:$0xff]
      %v4444 = vld [vmem:[%s4378 + $0x9] sm:$0xff]
      %v4445 = vld [vmem:[%s4378 + $0x19] sm:$0xff]
      %v4446 = vld [vmem:[%s4378 + $0x21] sm:$0xff]
      %v4447 = vld [vmem:[%s4378 + $0x31] sm:$0xff]
      %v4448 = vld [vmem:[%s4378 + $0x39] sm:$0xff]
      %v4449 = vld [vmem:[%s4378 + $0x49] sm:$0xff]
      %v4450 = vld [vmem:[%s4378 + $0x51] sm:$0xff]
      %v4451 = vld [vmem:[%s4378 + $0x61] sm:$0xff]
      %v4452 = vld [vmem:[%s4378 + $0x69] sm:$0xff]
      %v4453 = vld [vmem:[%s4378 + $0x79] sm:$0xff]
      %v4454 = vld [vmem:[%s4378 + $0x81] sm:$0xff]
      %v4455 = vld [vmem:[%s4378 + $0x91] sm:$0xff]
      %v4456 = vld [vmem:[%s4378 + $0x99] sm:$0xff]
      %v4457 = vld [vmem:[%s4378 + $0xa9] sm:$0xff]
      %v4458 = vld [vmem:[%s4378 + $0xb1] sm:$0xff]
      %v4459 = vld [vmem:[%s4378 + $0xc1] sm:$0xff]
      %v4460 = vld [vmem:[%s4378 + $0xc9] sm:$0xff]
      %v4461 = vld [vmem:[%s4378 + $0xd9] sm:$0xff]
      %v4462 = vld [vmem:[%s4378 + $0xe1] sm:$0xff]
      %v4463 = vld [vmem:[%s4378 + $0xf1] sm:$0xff]
      %v4464 = vld [vmem:[%s4378 + $0xf9] sm:$0xff]
      %v4465 = vld [vmem:[%s4378 + $0x109] sm:$0xff]
      %v4466 = vld [vmem:[%s4378 + $0x111] sm:$0xff]
      %v4467 = vld [vmem:[%s4378 + $0x121] sm:$0xff]
      %v4468 = vld [vmem:[%s4378 + $0x129] sm:$0xff]
      %v4469 = vld [vmem:[%s4378 + $0x139] sm:$0xff]
      %v4470 = vld [vmem:[%s4378 + $0x141] sm:$0xff]
      %v4471 = vld [vmem:[%s4378 + $0x151] sm:$0xff]
      %v4472 = vld [vmem:[%s4378 + $0x159] sm:$0xff]
      %v4473 = vld [vmem:[%s4378 + $0x169] sm:$0xff]
      %v4474 = vld [vmem:[%s4378 + $0x171] sm:$0xff]
      %4507 = vrot.lane.b32.xlu0 %v4443, 32
      %v4508 = vpop.permute.xlu0 %4507
      %4509 = vrot.lane.b32.xlu0 %v4444, 32
      %v4510 = vpop.permute.xlu0 %4509
      %4511 = vrot.lane.b32.xlu0 %v4445, 32
      %v4512 = vpop.permute.xlu0 %4511
      %4513 = vrot.lane.b32.xlu0 %v4446, 32
      %v4514 = vpop.permute.xlu0 %4513
      %4515 = vrot.lane.b32.xlu0 %v4447, 32
      %v4516 = vpop.permute.xlu0 %4515
      %4517 = vrot.lane.b32.xlu0 %v4448, 32
      %v4518 = vpop.permute.xlu0 %4517
      %4519 = vrot.lane.b32.xlu0 %v4449, 32
      %v4520 = vpop.permute.xlu0 %4519
      %4521 = vrot.lane.b32.xlu0 %v4450, 32
      %v4522 = vpop.permute.xlu0 %4521
      %4523 = vrot.lane.b32.xlu0 %v4451, 32
      %v4524 = vpop.permute.xlu0 %4523
      %4525 = vrot.lane.b32.xlu0 %v4452, 32
      %v4526 = vpop.permute.xlu0 %4525
      %4527 = vrot.lane.b32.xlu0 %v4453, 32
      %v4528 = vpop.permute.xlu0 %4527
      %4529 = vrot.lane.b32.xlu0 %v4454, 32
      %v4530 = vpop.permute.xlu0 %4529
      %4531 = vrot.lane.b32.xlu0 %v4455, 32
      %v4532 = vpop.permute.xlu0 %4531
      %4533 = vrot.lane.b32.xlu0 %v4456, 32
      %v4534 = vpop.permute.xlu0 %4533
      %4535 = vrot.lane.b32.xlu0 %v4457, 32
      %v4536 = vpop.permute.xlu0 %4535
      %4537 = vrot.lane.b32.xlu0 %v4458, 32
      %v4538 = vpop.permute.xlu0 %4537
      %4539 = vrot.lane.b32.xlu0 %v4459, 32
      %v4540 = vpop.permute.xlu0 %4539
      %4541 = vrot.lane.b32.xlu0 %v4460, 32
      %v4542 = vpop.permute.xlu0 %4541
      %4543 = vrot.lane.b32.xlu0 %v4461, 32
      %v4544 = vpop.permute.xlu0 %4543
      %4545 = vrot.lane.b32.xlu0 %v4462, 32
      %v4546 = vpop.permute.xlu0 %4545
      %4547 = vrot.lane.b32.xlu0 %v4463, 32
      %v4548 = vpop.permute.xlu0 %4547
      %4549 = vrot.lane.b32.xlu0 %v4464, 32
      %v4550 = vpop.permute.xlu0 %4549
      %4551 = vrot.lane.b32.xlu0 %v4465, 32
      %v4552 = vpop.permute.xlu0 %4551
      %4553 = vrot.lane.b32.xlu0 %v4466, 32
      %v4554 = vpop.permute.xlu0 %4553
      %4555 = vrot.lane.b32.xlu0 %v4467, 32
      %v4556 = vpop.permute.xlu0 %4555
      %4557 = vrot.lane.b32.xlu0 %v4468, 32
      %v4558 = vpop.permute.xlu0 %4557
      %4559 = vrot.lane.b32.xlu0 %v4469, 32
      %v4560 = vpop.permute.xlu0 %4559
      %4561 = vrot.lane.b32.xlu0 %v4470, 32
      %v4562 = vpop.permute.xlu0 %4561
      %4563 = vrot.lane.b32.xlu0 %v4471, 32
      %v4564 = vpop.permute.xlu0 %4563
      %4565 = vrot.lane.b32.xlu0 %v4472, 32
      %v4566 = vpop.permute.xlu0 %4565
      %4567 = vrot.lane.b32.xlu0 %v4473, 32
      %v4568 = vpop.permute.xlu0 %4567
      %4569 = vrot.lane.b32.xlu0 %v4474, 32
      %v4570 = vpop.permute.xlu0 %4569
      %4603 = vst.msk [vmem:[#allocation3 + $0x28] sm:$0xff] %vm1398, %v4508
      %4604 = vst.msk [vmem:[#allocation3 + $0x60] sm:$0xff] %vm1398, %v4510
      %4605 = vst.msk [vmem:[#allocation3 + $0x98] sm:$0xff] %vm1398, %v4512
      %4606 = vst.msk [vmem:[#allocation3 + $0xd0] sm:$0xff] %vm1398, %v4514
      %4607 = vst.msk [vmem:[#allocation3 + $0x108] sm:$0xff] %vm1398, %v4516
      %4608 = vst.msk [vmem:[#allocation3 + $0x140] sm:$0xff] %vm1398, %v4518
      %4609 = vst.msk [vmem:[#allocation3 + $0x178] sm:$0xff] %vm1398, %v4520
      %4610 = vst.msk [vmem:[#allocation3 + $0x1b0] sm:$0xff] %vm1398, %v4522
      %4611 = vst.msk [vmem:[#allocation3 + $0x1e8] sm:$0xff] %vm1398, %v4524
      %4612 = vst.msk [vmem:[#allocation3 + $0x220] sm:$0xff] %vm1398, %v4526
      %4613 = vst.msk [vmem:[#allocation3 + $0x258] sm:$0xff] %vm1398, %v4528
      %4614 = vst.msk [vmem:[#allocation3 + $0x290] sm:$0xff] %vm1398, %v4530
      %4615 = vst.msk [vmem:[#allocation3 + $0x2c8] sm:$0xff] %vm1398, %v4532
      %4616 = vst.msk [vmem:[#allocation3 + $0x300] sm:$0xff] %vm1398, %v4534
      %4617 = vst.msk [vmem:[#allocation3 + $0x338] sm:$0xff] %vm1398, %v4536
      %4618 = vst.msk [vmem:[#allocation3 + $0x370] sm:$0xff] %vm1398, %v4538
      %4619 = vst.msk [vmem:[#allocation3 + $0x3a8] sm:$0xff] %vm1398, %v4540
      %4620 = vst.msk [vmem:[#allocation3 + $0x3e0] sm:$0xff] %vm1398, %v4542
      %4621 = vst.msk [vmem:[#allocation3 + $0x418] sm:$0xff] %vm1398, %v4544
      %4622 = vst.msk [vmem:[#allocation3 + $0x450] sm:$0xff] %vm1398, %v4546
      %4623 = vst.msk [vmem:[#allocation3 + $0x488] sm:$0xff] %vm1398, %v4548
      %4624 = vst.msk [vmem:[#allocation3 + $0x4c0] sm:$0xff] %vm1398, %v4550
      %4625 = vst.msk [vmem:[#allocation3 + $0x4f8] sm:$0xff] %vm1398, %v4552
      %4626 = vst.msk [vmem:[#allocation3 + $0x530] sm:$0xff] %vm1398, %v4554
      %4627 = vst.msk [vmem:[#allocation3 + $0x568] sm:$0xff] %vm1398, %v4556
      %4628 = vst.msk [vmem:[#allocation3 + $0x5a0] sm:$0xff] %vm1398, %v4558
      %4629 = vst.msk [vmem:[#allocation3 + $0x5d8] sm:$0xff] %vm1398, %v4560
      %4630 = vst.msk [vmem:[#allocation3 + $0x610] sm:$0xff] %vm1398, %v4562
      %4631 = vst.msk [vmem:[#allocation3 + $0x648] sm:$0xff] %vm1398, %v4564
      %4632 = vst.msk [vmem:[#allocation3 + $0x680] sm:$0xff] %vm1398, %v4566
      %4633 = vst.msk [vmem:[#allocation3 + $0x6b8] sm:$0xff] %vm1398, %v4568
      %4634 = vst.msk [vmem:[#allocation3 + $0x6f0] sm:$0xff] %vm1398, %v4570
      %v4635 = vld [vmem:[%s4378 + $0x2] sm:$0xff]
      %v4636 = vld [vmem:[%s4378 + $0xa] sm:$0xff]
      %v4637 = vld [vmem:[%s4378 + $0x1a] sm:$0xff]
      %v4638 = vld [vmem:[%s4378 + $0x22] sm:$0xff]
      %v4639 = vld [vmem:[%s4378 + $0x32] sm:$0xff]
      %v4640 = vld [vmem:[%s4378 + $0x3a] sm:$0xff]
      %v4641 = vld [vmem:[%s4378 + $0x4a] sm:$0xff]
      %v4642 = vld [vmem:[%s4378 + $0x52] sm:$0xff]
      %v4643 = vld [vmem:[%s4378 + $0x62] sm:$0xff]
      %v4644 = vld [vmem:[%s4378 + $0x6a] sm:$0xff]
      %v4645 = vld [vmem:[%s4378 + $0x7a] sm:$0xff]
      %v4646 = vld [vmem:[%s4378 + $0x82] sm:$0xff]
      %v4647 = vld [vmem:[%s4378 + $0x92] sm:$0xff]
      %v4648 = vld [vmem:[%s4378 + $0x9a] sm:$0xff]
      %v4649 = vld [vmem:[%s4378 + $0xaa] sm:$0xff]
      %v4650 = vld [vmem:[%s4378 + $0xb2] sm:$0xff]
      %v4651 = vld [vmem:[%s4378 + $0xc2] sm:$0xff]
      %v4652 = vld [vmem:[%s4378 + $0xca] sm:$0xff]
      %v4653 = vld [vmem:[%s4378 + $0xda] sm:$0xff]
      %v4654 = vld [vmem:[%s4378 + $0xe2] sm:$0xff]
      %v4655 = vld [vmem:[%s4378 + $0xf2] sm:$0xff]
      %v4656 = vld [vmem:[%s4378 + $0xfa] sm:$0xff]
      %v4657 = vld [vmem:[%s4378 + $0x10a] sm:$0xff]
      %v4658 = vld [vmem:[%s4378 + $0x112] sm:$0xff]
      %v4659 = vld [vmem:[%s4378 + $0x122] sm:$0xff]
      %v4660 = vld [vmem:[%s4378 + $0x12a] sm:$0xff]
      %v4661 = vld [vmem:[%s4378 + $0x13a] sm:$0xff]
      %v4662 = vld [vmem:[%s4378 + $0x142] sm:$0xff]
      %v4663 = vld [vmem:[%s4378 + $0x152] sm:$0xff]
      %v4664 = vld [vmem:[%s4378 + $0x15a] sm:$0xff]
      %v4665 = vld [vmem:[%s4378 + $0x16a] sm:$0xff]
      %v4666 = vld [vmem:[%s4378 + $0x172] sm:$0xff]
      %4699 = vrot.lane.b32.xlu0 %v4635, 64
      %v4700 = vpop.permute.xlu0 %4699
      %4701 = vrot.lane.b32.xlu0 %v4636, 64
      %v4702 = vpop.permute.xlu0 %4701
      %4703 = vrot.lane.b32.xlu0 %v4637, 64
      %v4704 = vpop.permute.xlu0 %4703
      %4705 = vrot.lane.b32.xlu0 %v4638, 64
      %v4706 = vpop.permute.xlu0 %4705
      %4707 = vrot.lane.b32.xlu0 %v4639, 64
      %v4708 = vpop.permute.xlu0 %4707
      %4709 = vrot.lane.b32.xlu0 %v4640, 64
      %v4710 = vpop.permute.xlu0 %4709
      %4711 = vrot.lane.b32.xlu0 %v4641, 64
      %v4712 = vpop.permute.xlu0 %4711
      %4713 = vrot.lane.b32.xlu0 %v4642, 64
      %v4714 = vpop.permute.xlu0 %4713
      %4715 = vrot.lane.b32.xlu0 %v4643, 64
      %v4716 = vpop.permute.xlu0 %4715
      %4717 = vrot.lane.b32.xlu0 %v4644, 64
      %v4718 = vpop.permute.xlu0 %4717
      %4719 = vrot.lane.b32.xlu0 %v4645, 64
      %v4720 = vpop.permute.xlu0 %4719
      %4721 = vrot.lane.b32.xlu0 %v4646, 64
      %v4722 = vpop.permute.xlu0 %4721
      %4723 = vrot.lane.b32.xlu0 %v4647, 64
      %v4724 = vpop.permute.xlu0 %4723
      %4725 = vrot.lane.b32.xlu0 %v4648, 64
      %v4726 = vpop.permute.xlu0 %4725
      %4727 = vrot.lane.b32.xlu0 %v4649, 64
      %v4728 = vpop.permute.xlu0 %4727
      %4729 = vrot.lane.b32.xlu0 %v4650, 64
      %v4730 = vpop.permute.xlu0 %4729
      %4731 = vrot.lane.b32.xlu0 %v4651, 64
      %v4732 = vpop.permute.xlu0 %4731
      %4733 = vrot.lane.b32.xlu0 %v4652, 64
      %v4734 = vpop.permute.xlu0 %4733
      %4735 = vrot.lane.b32.xlu0 %v4653, 64
      %v4736 = vpop.permute.xlu0 %4735
      %4737 = vrot.lane.b32.xlu0 %v4654, 64
      %v4738 = vpop.permute.xlu0 %4737
      %4739 = vrot.lane.b32.xlu0 %v4655, 64
      %v4740 = vpop.permute.xlu0 %4739
      %4741 = vrot.lane.b32.xlu0 %v4656, 64
      %v4742 = vpop.permute.xlu0 %4741
      %4743 = vrot.lane.b32.xlu0 %v4657, 64
      %v4744 = vpop.permute.xlu0 %4743
      %4745 = vrot.lane.b32.xlu0 %v4658, 64
      %v4746 = vpop.permute.xlu0 %4745
      %4747 = vrot.lane.b32.xlu0 %v4659, 64
      %v4748 = vpop.permute.xlu0 %4747
      %4749 = vrot.lane.b32.xlu0 %v4660, 64
      %v4750 = vpop.permute.xlu0 %4749
      %4751 = vrot.lane.b32.xlu0 %v4661, 64
      %v4752 = vpop.permute.xlu0 %4751
      %4753 = vrot.lane.b32.xlu0 %v4662, 64
      %v4754 = vpop.permute.xlu0 %4753
      %4755 = vrot.lane.b32.xlu0 %v4663, 64
      %v4756 = vpop.permute.xlu0 %4755
      %4757 = vrot.lane.b32.xlu0 %v4664, 64
      %v4758 = vpop.permute.xlu0 %4757
      %4759 = vrot.lane.b32.xlu0 %v4665, 64
      %v4760 = vpop.permute.xlu0 %4759
      %4761 = vrot.lane.b32.xlu0 %v4666, 64
      %v4762 = vpop.permute.xlu0 %4761
      %4795 = vst.msk [vmem:[#allocation3 + $0x28] sm:$0xff] %vm1591, %v4700
      %4796 = vst.msk [vmem:[#allocation3 + $0x60] sm:$0xff] %vm1591, %v4702
      %4797 = vst.msk [vmem:[#allocation3 + $0x98] sm:$0xff] %vm1591, %v4704
      %4798 = vst.msk [vmem:[#allocation3 + $0xd0] sm:$0xff] %vm1591, %v4706
      %4799 = vst.msk [vmem:[#allocation3 + $0x108] sm:$0xff] %vm1591, %v4708
      %4800 = vst.msk [vmem:[#allocation3 + $0x140] sm:$0xff] %vm1591, %v4710
      %4801 = vst.msk [vmem:[#allocation3 + $0x178] sm:$0xff] %vm1591, %v4712
      %4802 = vst.msk [vmem:[#allocation3 + $0x1b0] sm:$0xff] %vm1591, %v4714
      %4803 = vst.msk [vmem:[#allocation3 + $0x1e8] sm:$0xff] %vm1591, %v4716
      %4804 = vst.msk [vmem:[#allocation3 + $0x220] sm:$0xff] %vm1591, %v4718
      %4805 = vst.msk [vmem:[#allocation3 + $0x258] sm:$0xff] %vm1591, %v4720
      %4806 = vst.msk [vmem:[#allocation3 + $0x290] sm:$0xff] %vm1591, %v4722
      %4807 = vst.msk [vmem:[#allocation3 + $0x2c8] sm:$0xff] %vm1591, %v4724
      %4808 = vst.msk [vmem:[#allocation3 + $0x300] sm:$0xff] %vm1591, %v4726
      %4809 = vst.msk [vmem:[#allocation3 + $0x338] sm:$0xff] %vm1591, %v4728
      %4810 = vst.msk [vmem:[#allocation3 + $0x370] sm:$0xff] %vm1591, %v4730
      %4811 = vst.msk [vmem:[#allocation3 + $0x3a8] sm:$0xff] %vm1591, %v4732
      %4812 = vst.msk [vmem:[#allocation3 + $0x3e0] sm:$0xff] %vm1591, %v4734
      %4813 = vst.msk [vmem:[#allocation3 + $0x418] sm:$0xff] %vm1591, %v4736
      %4814 = vst.msk [vmem:[#allocation3 + $0x450] sm:$0xff] %vm1591, %v4738
      %4815 = vst.msk [vmem:[#allocation3 + $0x488] sm:$0xff] %vm1591, %v4740
      %4816 = vst.msk [vmem:[#allocation3 + $0x4c0] sm:$0xff] %vm1591, %v4742
      %4817 = vst.msk [vmem:[#allocation3 + $0x4f8] sm:$0xff] %vm1591, %v4744
      %4818 = vst.msk [vmem:[#allocation3 + $0x530] sm:$0xff] %vm1591, %v4746
      %4819 = vst.msk [vmem:[#allocation3 + $0x568] sm:$0xff] %vm1591, %v4748
      %4820 = vst.msk [vmem:[#allocation3 + $0x5a0] sm:$0xff] %vm1591, %v4750
      %4821 = vst.msk [vmem:[#allocation3 + $0x5d8] sm:$0xff] %vm1591, %v4752
      %4822 = vst.msk [vmem:[#allocation3 + $0x610] sm:$0xff] %vm1591, %v4754
      %4823 = vst.msk [vmem:[#allocation3 + $0x648] sm:$0xff] %vm1591, %v4756
      %4824 = vst.msk [vmem:[#allocation3 + $0x680] sm:$0xff] %vm1591, %v4758
      %4825 = vst.msk [vmem:[#allocation3 + $0x6b8] sm:$0xff] %vm1591, %v4760
      %4826 = vst.msk [vmem:[#allocation3 + $0x6f0] sm:$0xff] %vm1591, %v4762
      %v4827 = vld [vmem:[%s4378 + $0x3] sm:$0xff]
      %v4828 = vld [vmem:[%s4378 + $0xb] sm:$0xff]
      %v4829 = vld [vmem:[%s4378 + $0x1b] sm:$0xff]
      %v4830 = vld [vmem:[%s4378 + $0x23] sm:$0xff]
      %v4831 = vld [vmem:[%s4378 + $0x33] sm:$0xff]
      %v4832 = vld [vmem:[%s4378 + $0x3b] sm:$0xff]
      %v4833 = vld [vmem:[%s4378 + $0x4b] sm:$0xff]
      %v4834 = vld [vmem:[%s4378 + $0x53] sm:$0xff]
      %v4835 = vld [vmem:[%s4378 + $0x63] sm:$0xff]
      %v4836 = vld [vmem:[%s4378 + $0x6b] sm:$0xff]
      %v4837 = vld [vmem:[%s4378 + $0x7b] sm:$0xff]
      %v4838 = vld [vmem:[%s4378 + $0x83] sm:$0xff]
      %v4839 = vld [vmem:[%s4378 + $0x93] sm:$0xff]
      %v4840 = vld [vmem:[%s4378 + $0x9b] sm:$0xff]
      %v4841 = vld [vmem:[%s4378 + $0xab] sm:$0xff]
      %v4842 = vld [vmem:[%s4378 + $0xb3] sm:$0xff]
      %v4843 = vld [vmem:[%s4378 + $0xc3] sm:$0xff]
      %v4844 = vld [vmem:[%s4378 + $0xcb] sm:$0xff]
      %v4845 = vld [vmem:[%s4378 + $0xdb] sm:$0xff]
      %v4846 = vld [vmem:[%s4378 + $0xe3] sm:$0xff]
      %v4847 = vld [vmem:[%s4378 + $0xf3] sm:$0xff]
      %v4848 = vld [vmem:[%s4378 + $0xfb] sm:$0xff]
      %v4849 = vld [vmem:[%s4378 + $0x10b] sm:$0xff]
      %v4850 = vld [vmem:[%s4378 + $0x113] sm:$0xff]
      %v4851 = vld [vmem:[%s4378 + $0x123] sm:$0xff]
      %v4852 = vld [vmem:[%s4378 + $0x12b] sm:$0xff]
      %v4853 = vld [vmem:[%s4378 + $0x13b] sm:$0xff]
      %v4854 = vld [vmem:[%s4378 + $0x143] sm:$0xff]
      %v4855 = vld [vmem:[%s4378 + $0x153] sm:$0xff]
      %v4856 = vld [vmem:[%s4378 + $0x15b] sm:$0xff]
      %v4857 = vld [vmem:[%s4378 + $0x16b] sm:$0xff]
      %v4858 = vld [vmem:[%s4378 + $0x173] sm:$0xff]
      %4891 = vrot.lane.b32.xlu0 %v4827, 96
      %v4892 = vpop.permute.xlu0 %4891
      %4893 = vrot.lane.b32.xlu0 %v4828, 96
      %v4894 = vpop.permute.xlu0 %4893
      %4895 = vrot.lane.b32.xlu0 %v4829, 96
      %v4896 = vpop.permute.xlu0 %4895
      %4897 = vrot.lane.b32.xlu0 %v4830, 96
      %v4898 = vpop.permute.xlu0 %4897
      %4899 = vrot.lane.b32.xlu0 %v4831, 96
      %v4900 = vpop.permute.xlu0 %4899
      %4901 = vrot.lane.b32.xlu0 %v4832, 96
      %v4902 = vpop.permute.xlu0 %4901
      %4903 = vrot.lane.b32.xlu0 %v4833, 96
      %v4904 = vpop.permute.xlu0 %4903
      %4905 = vrot.lane.b32.xlu0 %v4834, 96
      %v4906 = vpop.permute.xlu0 %4905
      %4907 = vrot.lane.b32.xlu0 %v4835, 96
      %v4908 = vpop.permute.xlu0 %4907
      %4909 = vrot.lane.b32.xlu0 %v4836, 96
      %v4910 = vpop.permute.xlu0 %4909
      %4911 = vrot.lane.b32.xlu0 %v4837, 96
      %v4912 = vpop.permute.xlu0 %4911
      %4913 = vrot.lane.b32.xlu0 %v4838, 96
      %v4914 = vpop.permute.xlu0 %4913
      %4915 = vrot.lane.b32.xlu0 %v4839, 96
      %v4916 = vpop.permute.xlu0 %4915
      %4917 = vrot.lane.b32.xlu0 %v4840, 96
      %v4918 = vpop.permute.xlu0 %4917
      %4919 = vrot.lane.b32.xlu0 %v4841, 96
      %v4920 = vpop.permute.xlu0 %4919
      %4921 = vrot.lane.b32.xlu0 %v4842, 96
      %v4922 = vpop.permute.xlu0 %4921
      %4923 = vrot.lane.b32.xlu0 %v4843, 96
      %v4924 = vpop.permute.xlu0 %4923
      %4925 = vrot.lane.b32.xlu0 %v4844, 96
      %v4926 = vpop.permute.xlu0 %4925
      %4927 = vrot.lane.b32.xlu0 %v4845, 96
      %v4928 = vpop.permute.xlu0 %4927
      %4929 = vrot.lane.b32.xlu0 %v4846, 96
      %v4930 = vpop.permute.xlu0 %4929
      %4931 = vrot.lane.b32.xlu0 %v4847, 96
      %v4932 = vpop.permute.xlu0 %4931
      %4933 = vrot.lane.b32.xlu0 %v4848, 96
      %v4934 = vpop.permute.xlu0 %4933
      %4935 = vrot.lane.b32.xlu0 %v4849, 96
      %v4936 = vpop.permute.xlu0 %4935
      %4937 = vrot.lane.b32.xlu0 %v4850, 96
      %v4938 = vpop.permute.xlu0 %4937
      %4939 = vrot.lane.b32.xlu0 %v4851, 96
      %v4940 = vpop.permute.xlu0 %4939
      %4941 = vrot.lane.b32.xlu0 %v4852, 96
      %v4942 = vpop.permute.xlu0 %4941
      %4943 = vrot.lane.b32.xlu0 %v4853, 96
      %v4944 = vpop.permute.xlu0 %4943
      %4945 = vrot.lane.b32.xlu0 %v4854, 96
      %v4946 = vpop.permute.xlu0 %4945
      %4947 = vrot.lane.b32.xlu0 %v4855, 96
      %v4948 = vpop.permute.xlu0 %4947
      %4949 = vrot.lane.b32.xlu0 %v4856, 96
      %v4950 = vpop.permute.xlu0 %4949
      %4951 = vrot.lane.b32.xlu0 %v4857, 96
      %v4952 = vpop.permute.xlu0 %4951
      %4953 = vrot.lane.b32.xlu0 %v4858, 96
      %v4954 = vpop.permute.xlu0 %4953
      %4987 = vst.msk [vmem:[#allocation3 + $0x28] sm:$0xff] %vm1784, %v4892
      %4988 = vst.msk [vmem:[#allocation3 + $0x60] sm:$0xff] %vm1784, %v4894
      %4989 = vst.msk [vmem:[#allocation3 + $0x98] sm:$0xff] %vm1784, %v4896
      %4990 = vst.msk [vmem:[#allocation3 + $0xd0] sm:$0xff] %vm1784, %v4898
      %4991 = vst.msk [vmem:[#allocation3 + $0x108] sm:$0xff] %vm1784, %v4900
      %4992 = vst.msk [vmem:[#allocation3 + $0x140] sm:$0xff] %vm1784, %v4902
      %4993 = vst.msk [vmem:[#allocation3 + $0x178] sm:$0xff] %vm1784, %v4904
      %4994 = vst.msk [vmem:[#allocation3 + $0x1b0] sm:$0xff] %vm1784, %v4906
      %4995 = vst.msk [vmem:[#allocation3 + $0x1e8] sm:$0xff] %vm1784, %v4908
      %4996 = vst.msk [vmem:[#allocation3 + $0x220] sm:$0xff] %vm1784, %v4910
      %4997 = vst.msk [vmem:[#allocation3 + $0x258] sm:$0xff] %vm1784, %v4912
      %4998 = vst.msk [vmem:[#allocation3 + $0x290] sm:$0xff] %vm1784, %v4914
      %4999 = vst.msk [vmem:[#allocation3 + $0x2c8] sm:$0xff] %vm1784, %v4916
      %5000 = vst.msk [vmem:[#allocation3 + $0x300] sm:$0xff] %vm1784, %v4918
      %5001 = vst.msk [vmem:[#allocation3 + $0x338] sm:$0xff] %vm1784, %v4920
      %5002 = vst.msk [vmem:[#allocation3 + $0x370] sm:$0xff] %vm1784, %v4922
      %5003 = vst.msk [vmem:[#allocation3 + $0x3a8] sm:$0xff] %vm1784, %v4924
      %5004 = vst.msk [vmem:[#allocation3 + $0x3e0] sm:$0xff] %vm1784, %v4926
      %5005 = vst.msk [vmem:[#allocation3 + $0x418] sm:$0xff] %vm1784, %v4928
      %5006 = vst.msk [vmem:[#allocation3 + $0x450] sm:$0xff] %vm1784, %v4930
      %5007 = vst.msk [vmem:[#allocation3 + $0x488] sm:$0xff] %vm1784, %v4932
      %5008 = vst.msk [vmem:[#allocation3 + $0x4c0] sm:$0xff] %vm1784, %v4934
      %5009 = vst.msk [vmem:[#allocation3 + $0x4f8] sm:$0xff] %vm1784, %v4936
      %5010 = vst.msk [vmem:[#allocation3 + $0x530] sm:$0xff] %vm1784, %v4938
      %5011 = vst.msk [vmem:[#allocation3 + $0x568] sm:$0xff] %vm1784, %v4940
      %5012 = vst.msk [vmem:[#allocation3 + $0x5a0] sm:$0xff] %vm1784, %v4942
      %5013 = vst.msk [vmem:[#allocation3 + $0x5d8] sm:$0xff] %vm1784, %v4944
      %5014 = vst.msk [vmem:[#allocation3 + $0x610] sm:$0xff] %vm1784, %v4946
      %5015 = vst.msk [vmem:[#allocation3 + $0x648] sm:$0xff] %vm1784, %v4948
      %5016 = vst.msk [vmem:[#allocation3 + $0x680] sm:$0xff] %vm1784, %v4950
      %5017 = vst.msk [vmem:[#allocation3 + $0x6b8] sm:$0xff] %vm1784, %v4952
      %5018 = vst.msk [vmem:[#allocation3 + $0x6f0] sm:$0xff] %vm1784, %v4954
      %v5019 = vld [vmem:[%s4378 + $0x4] sm:$0xff]
      %v5020 = vld [vmem:[%s4378 + $0xc] sm:$0xff]
      %v5021 = vld [vmem:[%s4378 + $0x1c] sm:$0xff]
      %v5022 = vld [vmem:[%s4378 + $0x24] sm:$0xff]
      %v5023 = vld [vmem:[%s4378 + $0x34] sm:$0xff]
      %v5024 = vld [vmem:[%s4378 + $0x3c] sm:$0xff]
      %v5025 = vld [vmem:[%s4378 + $0x4c] sm:$0xff]
      %v5026 = vld [vmem:[%s4378 + $0x54] sm:$0xff]
      %v5027 = vld [vmem:[%s4378 + $0x64] sm:$0xff]
      %v5028 = vld [vmem:[%s4378 + $0x6c] sm:$0xff]
      %v5029 = vld [vmem:[%s4378 + $0x7c] sm:$0xff]
      %v5030 = vld [vmem:[%s4378 + $0x84] sm:$0xff]
      %v5031 = vld [vmem:[%s4378 + $0x94] sm:$0xff]
      %v5032 = vld [vmem:[%s4378 + $0x9c] sm:$0xff]
      %v5033 = vld [vmem:[%s4378 + $0xac] sm:$0xff]
      %v5034 = vld [vmem:[%s4378 + $0xb4] sm:$0xff]
      %v5035 = vld [vmem:[%s4378 + $0xc4] sm:$0xff]
      %v5036 = vld [vmem:[%s4378 + $0xcc] sm:$0xff]
      %v5037 = vld [vmem:[%s4378 + $0xdc] sm:$0xff]
      %v5038 = vld [vmem:[%s4378 + $0xe4] sm:$0xff]
      %v5039 = vld [vmem:[%s4378 + $0xf4] sm:$0xff]
      %v5040 = vld [vmem:[%s4378 + $0xfc] sm:$0xff]
      %v5041 = vld [vmem:[%s4378 + $0x10c] sm:$0xff]
      %v5042 = vld [vmem:[%s4378 + $0x114] sm:$0xff]
      %v5043 = vld [vmem:[%s4378 + $0x124] sm:$0xff]
      %v5044 = vld [vmem:[%s4378 + $0x12c] sm:$0xff]
      %v5045 = vld [vmem:[%s4378 + $0x13c] sm:$0xff]
      %v5046 = vld [vmem:[%s4378 + $0x144] sm:$0xff]
      %v5047 = vld [vmem:[%s4378 + $0x154] sm:$0xff]
      %v5048 = vld [vmem:[%s4378 + $0x15c] sm:$0xff]
      %v5049 = vld [vmem:[%s4378 + $0x16c] sm:$0xff]
      %v5050 = vld [vmem:[%s4378 + $0x174] sm:$0xff]
      %5051 = vst.msk [vmem:[#allocation3 + $0x30] sm:$0xff] %vm1009, %v5019
      %5052 = vst.msk [vmem:[#allocation3 + $0x68] sm:$0xff] %vm1009, %v5020
      %5053 = vst.msk [vmem:[#allocation3 + $0xa0] sm:$0xff] %vm1009, %v5021
      %5054 = vst.msk [vmem:[#allocation3 + $0xd8] sm:$0xff] %vm1009, %v5022
      %5055 = vst.msk [vmem:[#allocation3 + $0x110] sm:$0xff] %vm1009, %v5023
      %5056 = vst.msk [vmem:[#allocation3 + $0x148] sm:$0xff] %vm1009, %v5024
      %5057 = vst.msk [vmem:[#allocation3 + $0x180] sm:$0xff] %vm1009, %v5025
      %5058 = vst.msk [vmem:[#allocation3 + $0x1b8] sm:$0xff] %vm1009, %v5026
      %5059 = vst.msk [vmem:[#allocation3 + $0x1f0] sm:$0xff] %vm1009, %v5027
      %5060 = vst.msk [vmem:[#allocation3 + $0x228] sm:$0xff] %vm1009, %v5028
      %5061 = vst.msk [vmem:[#allocation3 + $0x260] sm:$0xff] %vm1009, %v5029
      %5062 = vst.msk [vmem:[#allocation3 + $0x298] sm:$0xff] %vm1009, %v5030
      %5063 = vst.msk [vmem:[#allocation3 + $0x2d0] sm:$0xff] %vm1009, %v5031
      %5064 = vst.msk [vmem:[#allocation3 + $0x308] sm:$0xff] %vm1009, %v5032
      %5065 = vst.msk [vmem:[#allocation3 + $0x340] sm:$0xff] %vm1009, %v5033
      %5066 = vst.msk [vmem:[#allocation3 + $0x378] sm:$0xff] %vm1009, %v5034
      %5067 = vst.msk [vmem:[#allocation3 + $0x3b0] sm:$0xff] %vm1009, %v5035
      %5068 = vst.msk [vmem:[#allocation3 + $0x3e8] sm:$0xff] %vm1009, %v5036
      %5069 = vst.msk [vmem:[#allocation3 + $0x420] sm:$0xff] %vm1009, %v5037
      %5070 = vst.msk [vmem:[#allocation3 + $0x458] sm:$0xff] %vm1009, %v5038
      %5071 = vst.msk [vmem:[#allocation3 + $0x490] sm:$0xff] %vm1009, %v5039
      %5072 = vst.msk [vmem:[#allocation3 + $0x4c8] sm:$0xff] %vm1009, %v5040
      %5073 = vst.msk [vmem:[#allocation3 + $0x500] sm:$0xff] %vm1009, %v5041
      %5074 = vst.msk [vmem:[#allocation3 + $0x538] sm:$0xff] %vm1009, %v5042
      %5075 = vst.msk [vmem:[#allocation3 + $0x570] sm:$0xff] %vm1009, %v5043
      %5076 = vst.msk [vmem:[#allocation3 + $0x5a8] sm:$0xff] %vm1009, %v5044
      %5077 = vst.msk [vmem:[#allocation3 + $0x5e0] sm:$0xff] %vm1009, %v5045
      %5078 = vst.msk [vmem:[#allocation3 + $0x618] sm:$0xff] %vm1009, %v5046
      %5079 = vst.msk [vmem:[#allocation3 + $0x650] sm:$0xff] %vm1009, %v5047
      %5080 = vst.msk [vmem:[#allocation3 + $0x688] sm:$0xff] %vm1009, %v5048
      %5081 = vst.msk [vmem:[#allocation3 + $0x6c0] sm:$0xff] %vm1009, %v5049
      %5082 = vst.msk [vmem:[#allocation3 + $0x6f8] sm:$0xff] %vm1009, %v5050
      %v5083 = vld [vmem:[#allocation3] sm:$0xff]
      %v5084 = vld [vmem:[#allocation3 + $0x8] sm:$0xff]
      %v5085 = vld [vmem:[#allocation3 + $0x10] sm:$0xff]
      %v5086 = vld [vmem:[#allocation3 + $0x18] sm:$0xff]
      %v5087 = vld [vmem:[#allocation3 + $0x20] sm:$0xff]
      %v5088 = vld [vmem:[#allocation3 + $0x28] sm:$0xff]
      %v5089 = vld [vmem:[#allocation3 + $0x30] sm:$0xff]
      %v5090 = vld [vmem:[#allocation3 + $0x38] sm:$0xff]
      %v5091 = vld [vmem:[#allocation3 + $0x40] sm:$0xff]
      %v5092 = vld [vmem:[#allocation3 + $0x48] sm:$0xff]
      %v5093 = vld [vmem:[#allocation3 + $0x50] sm:$0xff]
      %v5094 = vld [vmem:[#allocation3 + $0x58] sm:$0xff]
      %v5095 = vld [vmem:[#allocation3 + $0x60] sm:$0xff]
      %v5096 = vld [vmem:[#allocation3 + $0x68] sm:$0xff]
      %v5097 = vld [vmem:[#allocation3 + $0x70] sm:$0xff]
      %v5098 = vld [vmem:[#allocation3 + $0x78] sm:$0xff]
      %v5099 = vld [vmem:[#allocation3 + $0x80] sm:$0xff]
      %v5100 = vld [vmem:[#allocation3 + $0x88] sm:$0xff]
      %v5101 = vld [vmem:[#allocation3 + $0x90] sm:$0xff]
      %v5102 = vld [vmem:[#allocation3 + $0x98] sm:$0xff]
      %v5103 = vld [vmem:[#allocation3 + $0xa0] sm:$0xff]
      %v5104 = vld [vmem:[#allocation3 + $0xa8] sm:$0xff]
      %v5105 = vld [vmem:[#allocation3 + $0xb0] sm:$0xff]
      %v5106 = vld [vmem:[#allocation3 + $0xb8] sm:$0xff]
      %v5107 = vld [vmem:[#allocation3 + $0xc0] sm:$0xff]
      %v5108 = vld [vmem:[#allocation3 + $0xc8] sm:$0xff]
      %v5109 = vld [vmem:[#allocation3 + $0xd0] sm:$0xff]
      %v5110 = vld [vmem:[#allocation3 + $0xd8] sm:$0xff]
      %v5111 = vld [vmem:[#allocation3 + $0xe0] sm:$0xff]
      %v5112 = vld [vmem:[#allocation3 + $0xe8] sm:$0xff]
      %v5113 = vld [vmem:[#allocation3 + $0xf0] sm:$0xff]
      %v5114 = vld [vmem:[#allocation3 + $0xf8] sm:$0xff]
      %v5115 = vld [vmem:[#allocation3 + $0x100] sm:$0xff]
      %v5116 = vld [vmem:[#allocation3 + $0x108] sm:$0xff]
      %v5117 = vld [vmem:[#allocation3 + $0x110] sm:$0xff]
      %v5118 = vld [vmem:[#allocation3 + $0x118] sm:$0xff]
      %v5119 = vld [vmem:[#allocation3 + $0x120] sm:$0xff]
      %v5120 = vld [vmem:[#allocation3 + $0x128] sm:$0xff]
      %v5121 = vld [vmem:[#allocation3 + $0x130] sm:$0xff]
      %v5122 = vld [vmem:[#allocation3 + $0x138] sm:$0xff]
      %v5123 = vld [vmem:[#allocation3 + $0x140] sm:$0xff]
      %v5124 = vld [vmem:[#allocation3 + $0x148] sm:$0xff]
      %v5125 = vld [vmem:[#allocation3 + $0x150] sm:$0xff]
      %v5126 = vld [vmem:[#allocation3 + $0x158] sm:$0xff]
      %v5127 = vld [vmem:[#allocation3 + $0x160] sm:$0xff]
      %v5128 = vld [vmem:[#allocation3 + $0x168] sm:$0xff]
      %v5129 = vld [vmem:[#allocation3 + $0x170] sm:$0xff]
      %v5130 = vld [vmem:[#allocation3 + $0x178] sm:$0xff]
      %v5131 = vld [vmem:[#allocation3 + $0x180] sm:$0xff]
      %v5132 = vld [vmem:[#allocation3 + $0x188] sm:$0xff]
      %v5133 = vld [vmem:[#allocation3 + $0x190] sm:$0xff]
      %v5134 = vld [vmem:[#allocation3 + $0x198] sm:$0xff]
      %v5135 = vld [vmem:[#allocation3 + $0x1a0] sm:$0xff]
      %v5136 = vld [vmem:[#allocation3 + $0x1a8] sm:$0xff]
      %v5137 = vld [vmem:[#allocation3 + $0x1b0] sm:$0xff]
      %v5138 = vld [vmem:[#allocation3 + $0x1b8] sm:$0xff]
      %v5139 = vld [vmem:[#allocation3 + $0x1c0] sm:$0xff]
      %v5140 = vld [vmem:[#allocation3 + $0x1c8] sm:$0xff]
      %v5141 = vld [vmem:[#allocation3 + $0x1d0] sm:$0xff]
      %v5142 = vld [vmem:[#allocation3 + $0x1d8] sm:$0xff]
      %v5143 = vld [vmem:[#allocation3 + $0x1e0] sm:$0xff]
      %v5144 = vld [vmem:[#allocation3 + $0x1e8] sm:$0xff]
      %v5145 = vld [vmem:[#allocation3 + $0x1f0] sm:$0xff]
      %v5146 = vld [vmem:[#allocation3 + $0x1f8] sm:$0xff]
      %v5147 = vld [vmem:[#allocation3 + $0x200] sm:$0xff]
      %v5148 = vld [vmem:[#allocation3 + $0x208] sm:$0xff]
      %v5149 = vld [vmem:[#allocation3 + $0x210] sm:$0xff]
      %v5150 = vld [vmem:[#allocation3 + $0x218] sm:$0xff]
      %v5151 = vld [vmem:[#allocation3 + $0x220] sm:$0xff]
      %v5152 = vld [vmem:[#allocation3 + $0x228] sm:$0xff]
      %v5153 = vld [vmem:[#allocation3 + $0x230] sm:$0xff]
      %v5154 = vld [vmem:[#allocation3 + $0x238] sm:$0xff]
      %v5155 = vld [vmem:[#allocation3 + $0x240] sm:$0xff]
      %v5156 = vld [vmem:[#allocation3 + $0x248] sm:$0xff]
      %v5157 = vld [vmem:[#allocation3 + $0x250] sm:$0xff]
      %v5158 = vld [vmem:[#allocation3 + $0x258] sm:$0xff]
      %v5159 = vld [vmem:[#allocation3 + $0x260] sm:$0xff]
      %v5160 = vld [vmem:[#allocation3 + $0x268] sm:$0xff]
      %v5161 = vld [vmem:[#allocation3 + $0x270] sm:$0xff]
      %v5162 = vld [vmem:[#allocation3 + $0x278] sm:$0xff]
      %v5163 = vld [vmem:[#allocation3 + $0x280] sm:$0xff]
      %v5164 = vld [vmem:[#allocation3 + $0x288] sm:$0xff]
      %v5165 = vld [vmem:[#allocation3 + $0x290] sm:$0xff]
      %v5166 = vld [vmem:[#allocation3 + $0x298] sm:$0xff]
      %v5167 = vld [vmem:[#allocation3 + $0x2a0] sm:$0xff]
      %v5168 = vld [vmem:[#allocation3 + $0x2a8] sm:$0xff]
      %v5169 = vld [vmem:[#allocation3 + $0x2b0] sm:$0xff]
      %v5170 = vld [vmem:[#allocation3 + $0x2b8] sm:$0xff]
      %v5171 = vld [vmem:[#allocation3 + $0x2c0] sm:$0xff]
      %v5172 = vld [vmem:[#allocation3 + $0x2c8] sm:$0xff]
      %v5173 = vld [vmem:[#allocation3 + $0x2d0] sm:$0xff]
      %v5174 = vld [vmem:[#allocation3 + $0x2d8] sm:$0xff]
      %v5175 = vld [vmem:[#allocation3 + $0x2e0] sm:$0xff]
      %v5176 = vld [vmem:[#allocation3 + $0x2e8] sm:$0xff]
      %v5177 = vld [vmem:[#allocation3 + $0x2f0] sm:$0xff]
      %v5178 = vld [vmem:[#allocation3 + $0x2f8] sm:$0xff]
      %v5179 = vld [vmem:[#allocation3 + $0x300] sm:$0xff]
      %v5180 = vld [vmem:[#allocation3 + $0x308] sm:$0xff]
      %v5181 = vld [vmem:[#allocation3 + $0x310] sm:$0xff]
      %v5182 = vld [vmem:[#allocation3 + $0x318] sm:$0xff]
      %v5183 = vld [vmem:[#allocation3 + $0x320] sm:$0xff]
      %v5184 = vld [vmem:[#allocation3 + $0x328] sm:$0xff]
      %v5185 = vld [vmem:[#allocation3 + $0x330] sm:$0xff]
      %v5186 = vld [vmem:[#allocation3 + $0x338] sm:$0xff]
      %v5187 = vld [vmem:[#allocation3 + $0x340] sm:$0xff]
      %v5188 = vld [vmem:[#allocation3 + $0x348] sm:$0xff]
      %v5189 = vld [vmem:[#allocation3 + $0x350] sm:$0xff]
      %v5190 = vld [vmem:[#allocation3 + $0x358] sm:$0xff]
      %v5191 = vld [vmem:[#allocation3 + $0x360] sm:$0xff]
      %v5192 = vld [vmem:[#allocation3 + $0x368] sm:$0xff]
      %v5193 = vld [vmem:[#allocation3 + $0x370] sm:$0xff]
      %v5194 = vld [vmem:[#allocation3 + $0x378] sm:$0xff]
      %v5195 = vld [vmem:[#allocation3 + $0x380] sm:$0xff]
      %v5196 = vld [vmem:[#allocation3 + $0x388] sm:$0xff]
      %v5197 = vld [vmem:[#allocation3 + $0x390] sm:$0xff]
      %v5198 = vld [vmem:[#allocation3 + $0x398] sm:$0xff]
      %v5199 = vld [vmem:[#allocation3 + $0x3a0] sm:$0xff]
      %v5200 = vld [vmem:[#allocation3 + $0x3a8] sm:$0xff]
      %v5201 = vld [vmem:[#allocation3 + $0x3b0] sm:$0xff]
      %v5202 = vld [vmem:[#allocation3 + $0x3b8] sm:$0xff]
      %v5203 = vld [vmem:[#allocation3 + $0x3c0] sm:$0xff]
      %v5204 = vld [vmem:[#allocation3 + $0x3c8] sm:$0xff]
      %v5205 = vld [vmem:[#allocation3 + $0x3d0] sm:$0xff]
      %v5206 = vld [vmem:[#allocation3 + $0x3d8] sm:$0xff]
      %v5207 = vld [vmem:[#allocation3 + $0x3e0] sm:$0xff]
      %v5208 = vld [vmem:[#allocation3 + $0x3e8] sm:$0xff]
      %v5209 = vld [vmem:[#allocation3 + $0x3f0] sm:$0xff]
      %v5210 = vld [vmem:[#allocation3 + $0x3f8] sm:$0xff]
      %v5211 = vld [vmem:[#allocation3 + $0x400] sm:$0xff]
      %v5212 = vld [vmem:[#allocation3 + $0x408] sm:$0xff]
      %v5213 = vld [vmem:[#allocation3 + $0x410] sm:$0xff]
      %v5214 = vld [vmem:[#allocation3 + $0x418] sm:$0xff]
      %v5215 = vld [vmem:[#allocation3 + $0x420] sm:$0xff]
      %v5216 = vld [vmem:[#allocation3 + $0x428] sm:$0xff]
      %v5217 = vld [vmem:[#allocation3 + $0x430] sm:$0xff]
      %v5218 = vld [vmem:[#allocation3 + $0x438] sm:$0xff]
      %v5219 = vld [vmem:[#allocation3 + $0x440] sm:$0xff]
      %v5220 = vld [vmem:[#allocation3 + $0x448] sm:$0xff]
      %v5221 = vld [vmem:[#allocation3 + $0x450] sm:$0xff]
      %v5222 = vld [vmem:[#allocation3 + $0x458] sm:$0xff]
      %v5223 = vld [vmem:[#allocation3 + $0x460] sm:$0xff]
      %v5224 = vld [vmem:[#allocation3 + $0x468] sm:$0xff]
      %v5225 = vld [vmem:[#allocation3 + $0x470] sm:$0xff]
      %v5226 = vld [vmem:[#allocation3 + $0x478] sm:$0xff]
      %v5227 = vld [vmem:[#allocation3 + $0x480] sm:$0xff]
      %v5228 = vld [vmem:[#allocation3 + $0x488] sm:$0xff]
      %v5229 = vld [vmem:[#allocation3 + $0x490] sm:$0xff]
      %v5230 = vld [vmem:[#allocation3 + $0x498] sm:$0xff]
      %v5231 = vld [vmem:[#allocation3 + $0x4a0] sm:$0xff]
      %v5232 = vld [vmem:[#allocation3 + $0x4a8] sm:$0xff]
      %v5233 = vld [vmem:[#allocation3 + $0x4b0] sm:$0xff]
      %v5234 = vld [vmem:[#allocation3 + $0x4b8] sm:$0xff]
      %v5235 = vld [vmem:[#allocation3 + $0x4c0] sm:$0xff]
      %v5236 = vld [vmem:[#allocation3 + $0x4c8] sm:$0xff]
      %v5237 = vld [vmem:[#allocation3 + $0x4d0] sm:$0xff]
      %v5238 = vld [vmem:[#allocation3 + $0x4d8] sm:$0xff]
      %v5239 = vld [vmem:[#allocation3 + $0x4e0] sm:$0xff]
      %v5240 = vld [vmem:[#allocation3 + $0x4e8] sm:$0xff]
      %v5241 = vld [vmem:[#allocation3 + $0x4f0] sm:$0xff]
      %v5242 = vld [vmem:[#allocation3 + $0x4f8] sm:$0xff]
      %v5243 = vld [vmem:[#allocation3 + $0x500] sm:$0xff]
      %v5244 = vld [vmem:[#allocation3 + $0x508] sm:$0xff]
      %v5245 = vld [vmem:[#allocation3 + $0x510] sm:$0xff]
      %v5246 = vld [vmem:[#allocation3 + $0x518] sm:$0xff]
      %v5247 = vld [vmem:[#allocation3 + $0x520] sm:$0xff]
      %v5248 = vld [vmem:[#allocation3 + $0x528] sm:$0xff]
      %v5249 = vld [vmem:[#allocation3 + $0x530] sm:$0xff]
      %v5250 = vld [vmem:[#allocation3 + $0x538] sm:$0xff]
      %v5251 = vld [vmem:[#allocation3 + $0x540] sm:$0xff]
      %v5252 = vld [vmem:[#allocation3 + $0x548] sm:$0xff]
      %v5253 = vld [vmem:[#allocation3 + $0x550] sm:$0xff]
      %v5254 = vld [vmem:[#allocation3 + $0x558] sm:$0xff]
      %v5255 = vld [vmem:[#allocation3 + $0x560] sm:$0xff]
      %v5256 = vld [vmem:[#allocation3 + $0x568] sm:$0xff]
      %v5257 = vld [vmem:[#allocation3 + $0x570] sm:$0xff]
      %v5258 = vld [vmem:[#allocation3 + $0x578] sm:$0xff]
      %v5259 = vld [vmem:[#allocation3 + $0x580] sm:$0xff]
      %v5260 = vld [vmem:[#allocation3 + $0x588] sm:$0xff]
      %v5261 = vld [vmem:[#allocation3 + $0x590] sm:$0xff]
      %v5262 = vld [vmem:[#allocation3 + $0x598] sm:$0xff]
      %v5263 = vld [vmem:[#allocation3 + $0x5a0] sm:$0xff]
      %v5264 = vld [vmem:[#allocation3 + $0x5a8] sm:$0xff]
      %v5265 = vld [vmem:[#allocation3 + $0x5b0] sm:$0xff]
      %v5266 = vld [vmem:[#allocation3 + $0x5b8] sm:$0xff]
      %v5267 = vld [vmem:[#allocation3 + $0x5c0] sm:$0xff]
      %v5268 = vld [vmem:[#allocation3 + $0x5c8] sm:$0xff]
      %v5269 = vld [vmem:[#allocation3 + $0x5d0] sm:$0xff]
      %v5270 = vld [vmem:[#allocation3 + $0x5d8] sm:$0xff]
      %v5271 = vld [vmem:[#allocation3 + $0x5e0] sm:$0xff]
      %v5272 = vld [vmem:[#allocation3 + $0x5e8] sm:$0xff]
      %v5273 = vld [vmem:[#allocation3 + $0x5f0] sm:$0xff]
      %v5274 = vld [vmem:[#allocation3 + $0x5f8] sm:$0xff]
      %v5275 = vld [vmem:[#allocation3 + $0x600] sm:$0xff]
      %v5276 = vld [vmem:[#allocation3 + $0x608] sm:$0xff]
      %v5277 = vld [vmem:[#allocation3 + $0x610] sm:$0xff]
      %v5278 = vld [vmem:[#allocation3 + $0x618] sm:$0xff]
      %v5279 = vld [vmem:[#allocation3 + $0x620] sm:$0xff]
      %v5280 = vld [vmem:[#allocation3 + $0x628] sm:$0xff]
      %v5281 = vld [vmem:[#allocation3 + $0x630] sm:$0xff]
      %v5282 = vld [vmem:[#allocation3 + $0x638] sm:$0xff]
      %v5283 = vld [vmem:[#allocation3 + $0x640] sm:$0xff]
      %v5284 = vld [vmem:[#allocation3 + $0x648] sm:$0xff]
      %v5285 = vld [vmem:[#allocation3 + $0x650] sm:$0xff]
      %v5286 = vld [vmem:[#allocation3 + $0x658] sm:$0xff]
      %v5287 = vld [vmem:[#allocation3 + $0x660] sm:$0xff]
      %v5288 = vld [vmem:[#allocation3 + $0x668] sm:$0xff]
      %v5289 = vld [vmem:[#allocation3 + $0x670] sm:$0xff]
      %v5290 = vld [vmem:[#allocation3 + $0x678] sm:$0xff]
      %v5291 = vld [vmem:[#allocation3 + $0x680] sm:$0xff]
      %v5292 = vld [vmem:[#allocation3 + $0x688] sm:$0xff]
      %v5293 = vld [vmem:[#allocation3 + $0x690] sm:$0xff]
      %v5294 = vld [vmem:[#allocation3 + $0x698] sm:$0xff]
      %v5295 = vld [vmem:[#allocation3 + $0x6a0] sm:$0xff]
      %v5296 = vld [vmem:[#allocation3 + $0x6a8] sm:$0xff]
      %v5297 = vld [vmem:[#allocation3 + $0x6b0] sm:$0xff]
      %v5298 = vld [vmem:[#allocation3 + $0x6b8] sm:$0xff]
      %v5299 = vld [vmem:[#allocation3 + $0x6c0] sm:$0xff]
      %v5300 = vld [vmem:[#allocation3 + $0x6c8] sm:$0xff]
      %v5301 = vld [vmem:[#allocation3 + $0x6d0] sm:$0xff]
      %v5302 = vld [vmem:[#allocation3 + $0x6d8] sm:$0xff]
      %v5303 = vld [vmem:[#allocation3 + $0x6e0] sm:$0xff]
      %v5304 = vld [vmem:[#allocation3 + $0x6e8] sm:$0xff]
      %v5305 = vld [vmem:[#allocation3 + $0x6f0] sm:$0xff]
      %v5306 = vld [vmem:[#allocation3 + $0x6f8] sm:$0xff]
      %v5307 = vld [vmem:[%s5] sm:$0xff]
      %v5308 = vld [vmem:[%s5 + $0x8] sm:$0xff]
      %v5309 = vld [vmem:[%s5 + $0x10] sm:$0xff]
      %v5310 = vld [vmem:[%s5 + $0x18] sm:$0xff]
      %v5311 = vld [vmem:[%s5 + $0x20] sm:$0xff]
      %v5312 = vld [vmem:[%s5 + $0x28] sm:$0xff]
      %v5313 = vld [vmem:[%s5 + $0x30] sm:$0xff]
      %v5314 = vld [vmem:[%s5 + $0x38] sm:$0xff]
      %v5315 = vld [vmem:[%s5 + $0x40] sm:$0xff]
      %v5316 = vld [vmem:[%s5 + $0x48] sm:$0xff]
      %v5317 = vld [vmem:[%s5 + $0x50] sm:$0xff]
      %v5318 = vld [vmem:[%s5 + $0x58] sm:$0xff]
      %v5319 = vld [vmem:[%s5 + $0x60] sm:$0xff]
      %v5320 = vld [vmem:[%s5 + $0x68] sm:$0xff]
      %v5321 = vld [vmem:[%s5 + $0x70] sm:$0xff]
      %v5322 = vld [vmem:[%s5 + $0x78] sm:$0xff]
      %v5323 = vld [vmem:[%s5 + $0x80] sm:$0xff]
      %v5324 = vld [vmem:[%s5 + $0x88] sm:$0xff]
      %v5325 = vld [vmem:[%s5 + $0x90] sm:$0xff]
      %v5326 = vld [vmem:[%s5 + $0x98] sm:$0xff]
      %v5327 = vld [vmem:[%s5 + $0xa0] sm:$0xff]
      %v5328 = vld [vmem:[%s5 + $0xa8] sm:$0xff]
      %v5329 = vld [vmem:[%s5 + $0xb0] sm:$0xff]
      %v5330 = vld [vmem:[%s5 + $0xb8] sm:$0xff]
      %v5331 = vld [vmem:[%s5 + $0xc0] sm:$0xff]
      %v5332 = vld [vmem:[%s5 + $0xc8] sm:$0xff]
      %v5333 = vld [vmem:[%s5 + $0xd0] sm:$0xff]
      %v5334 = vld [vmem:[%s5 + $0xd8] sm:$0xff]
      %v5335 = vld [vmem:[%s5 + $0xe0] sm:$0xff]
      %v5336 = vld [vmem:[%s5 + $0xe8] sm:$0xff]
      %v5337 = vld [vmem:[%s5 + $0xf0] sm:$0xff]
      %v5338 = vld [vmem:[%s5 + $0xf8] sm:$0xff]
      %v5339 = vld [vmem:[%s5 + $0x100] sm:$0xff]
      %v5340 = vld [vmem:[%s5 + $0x108] sm:$0xff]
      %v5341 = vld [vmem:[%s5 + $0x110] sm:$0xff]
      %v5342 = vld [vmem:[%s5 + $0x118] sm:$0xff]
      %v5343 = vld [vmem:[%s5 + $0x120] sm:$0xff]
      %v5344 = vld [vmem:[%s5 + $0x128] sm:$0xff]
      %v5345 = vld [vmem:[%s5 + $0x130] sm:$0xff]
      %v5346 = vld [vmem:[%s5 + $0x138] sm:$0xff]
      %v5347 = vld [vmem:[%s5 + $0x140] sm:$0xff]
      %v5348 = vld [vmem:[%s5 + $0x148] sm:$0xff]
      %v5349 = vld [vmem:[%s5 + $0x150] sm:$0xff]
      %v5350 = vld [vmem:[%s5 + $0x158] sm:$0xff]
      %v5351 = vld [vmem:[%s5 + $0x160] sm:$0xff]
      %v5352 = vld [vmem:[%s5 + $0x168] sm:$0xff]
      %v5353 = vld [vmem:[%s5 + $0x170] sm:$0xff]
      %v5354 = vld [vmem:[%s5 + $0x178] sm:$0xff]
      %v5355 = vld [vmem:[%s5 + $0x180] sm:$0xff]
      %v5356 = vld [vmem:[%s5 + $0x188] sm:$0xff]
      %v5357 = vld [vmem:[%s5 + $0x190] sm:$0xff]
      %v5358 = vld [vmem:[%s5 + $0x198] sm:$0xff]
      %v5359 = vld [vmem:[%s5 + $0x1a0] sm:$0xff]
      %v5360 = vld [vmem:[%s5 + $0x1a8] sm:$0xff]
      %v5361 = vld [vmem:[%s5 + $0x1b0] sm:$0xff]
      %v5362 = vld [vmem:[%s5 + $0x1b8] sm:$0xff]
      %v5363 = vld [vmem:[%s5 + $0x1c0] sm:$0xff]
      %v5364 = vld [vmem:[%s5 + $0x1c8] sm:$0xff]
      %v5365 = vld [vmem:[%s5 + $0x1d0] sm:$0xff]
      %v5366 = vld [vmem:[%s5 + $0x1d8] sm:$0xff]
      %v5367 = vld [vmem:[%s5 + $0x1e0] sm:$0xff]
      %v5368 = vld [vmem:[%s5 + $0x1e8] sm:$0xff]
      %v5369 = vld [vmem:[%s5 + $0x1f0] sm:$0xff]
      %v5370 = vld [vmem:[%s5 + $0x1f8] sm:$0xff]
      %v5371 = vld [vmem:[%s5 + $0x200] sm:$0xff]
      %v5372 = vld [vmem:[%s5 + $0x208] sm:$0xff]
      %v5373 = vld [vmem:[%s5 + $0x210] sm:$0xff]
      %v5374 = vld [vmem:[%s5 + $0x218] sm:$0xff]
      %v5375 = vld [vmem:[%s5 + $0x220] sm:$0xff]
      %v5376 = vld [vmem:[%s5 + $0x228] sm:$0xff]
      %v5377 = vld [vmem:[%s5 + $0x230] sm:$0xff]
      %v5378 = vld [vmem:[%s5 + $0x238] sm:$0xff]
      %v5379 = vld [vmem:[%s5 + $0x240] sm:$0xff]
      %v5380 = vld [vmem:[%s5 + $0x248] sm:$0xff]
      %v5381 = vld [vmem:[%s5 + $0x250] sm:$0xff]
      %v5382 = vld [vmem:[%s5 + $0x258] sm:$0xff]
      %v5383 = vld [vmem:[%s5 + $0x260] sm:$0xff]
      %v5384 = vld [vmem:[%s5 + $0x268] sm:$0xff]
      %v5385 = vld [vmem:[%s5 + $0x270] sm:$0xff]
      %v5386 = vld [vmem:[%s5 + $0x278] sm:$0xff]
      %v5387 = vld [vmem:[%s5 + $0x280] sm:$0xff]
      %v5388 = vld [vmem:[%s5 + $0x288] sm:$0xff]
      %v5389 = vld [vmem:[%s5 + $0x290] sm:$0xff]
      %v5390 = vld [vmem:[%s5 + $0x298] sm:$0xff]
      %v5391 = vld [vmem:[%s5 + $0x2a0] sm:$0xff]
      %v5392 = vld [vmem:[%s5 + $0x2a8] sm:$0xff]
      %v5393 = vld [vmem:[%s5 + $0x2b0] sm:$0xff]
      %v5394 = vld [vmem:[%s5 + $0x2b8] sm:$0xff]
      %v5395 = vld [vmem:[%s5 + $0x2c0] sm:$0xff]
      %v5396 = vld [vmem:[%s5 + $0x2c8] sm:$0xff]
      %v5397 = vld [vmem:[%s5 + $0x2d0] sm:$0xff]
      %v5398 = vld [vmem:[%s5 + $0x2d8] sm:$0xff]
      %v5399 = vld [vmem:[%s5 + $0x2e0] sm:$0xff]
      %v5400 = vld [vmem:[%s5 + $0x2e8] sm:$0xff]
      %v5401 = vld [vmem:[%s5 + $0x2f0] sm:$0xff]
      %v5402 = vld [vmem:[%s5 + $0x2f8] sm:$0xff]
      %v5403 = vld [vmem:[%s5 + $0x300] sm:$0xff]
      %v5404 = vld [vmem:[%s5 + $0x308] sm:$0xff]
      %v5405 = vld [vmem:[%s5 + $0x310] sm:$0xff]
      %v5406 = vld [vmem:[%s5 + $0x318] sm:$0xff]
      %v5407 = vld [vmem:[%s6] sm:$0x1]
      %v5409 = vlaneseq
      %v5410 = vshrl.u32 %v5409, 7
      %v5411 = vsub.s32 0, %v5410
      %v5412 = vrot.slane %v5407, %v5411
      %v5415 = vsel %vm1009, %v5089, 0
      %v5418 = vsel %vm1009, %v5096, 0
      %v5421 = vsel %vm1009, %v5103, 0
      %v5424 = vsel %vm1009, %v5110, 0
      %v5427 = vsel %vm1009, %v5117, 0
      %v5430 = vsel %vm1009, %v5124, 0
      %v5433 = vsel %vm1009, %v5131, 0
      %v5436 = vsel %vm1009, %v5138, 0
      %v5439 = vsel %vm1009, %v5145, 0
      %v5442 = vsel %vm1009, %v5152, 0
      %v5445 = vsel %vm1009, %v5159, 0
      %v5448 = vsel %vm1009, %v5166, 0
      %v5451 = vsel %vm1009, %v5173, 0
      %v5454 = vsel %vm1009, %v5180, 0
      %v5457 = vsel %vm1009, %v5187, 0
      %v5460 = vsel %vm1009, %v5194, 0
      %v5463 = vsel %vm1009, %v5201, 0
      %v5466 = vsel %vm1009, %v5208, 0
      %v5469 = vsel %vm1009, %v5215, 0
      %v5472 = vsel %vm1009, %v5222, 0
      %v5475 = vsel %vm1009, %v5229, 0
      %v5478 = vsel %vm1009, %v5236, 0
      %v5481 = vsel %vm1009, %v5243, 0
      %v5484 = vsel %vm1009, %v5250, 0
      %v5487 = vsel %vm1009, %v5257, 0
      %v5490 = vsel %vm1009, %v5264, 0
      %v5493 = vsel %vm1009, %v5271, 0
      %v5496 = vsel %vm1009, %v5278, 0
      %v5499 = vsel %vm1009, %v5285, 0
      %v5502 = vsel %vm1009, %v5292, 0
      %v5505 = vsel %vm1009, %v5299, 0
      %v5508 = vsel %vm1009, %v5306, 0
      %5510 = vmatprep.subr.mxu0 0.0
      %5511 = vmatpush1.msra.mxu0 %v5322
      %5512 = vmatprep.subr.mxu0 0.0
      %5513 = vmatpush1.msra.mxu0 %v5321
      %5514 = vmatprep.subr.mxu0 0.0
      %5515 = vmatpush1.msra.mxu0 %v5320
      %5516 = vmatprep.subr.mxu0 0.0
      %5517 = vmatpush1.msra.mxu0 %v5319
      %5518 = vmatprep.subr.mxu0 0.0
      %5519 = vmatpush1.msra.mxu0 %v5318
      %5520 = vmatprep.subr.mxu0 0.0
      %5521 = vmatpush1.msra.mxu0 %v5317
      %5522 = vmatprep.subr.mxu0 0.0
      %5523 = vmatpush1.msra.mxu0 %v5316
      %5524 = vmatprep.subr.mxu0 0.0
      %5525 = vmatpush1.msra.mxu0 %v5315
      %5526 = vmatprep.subr.mxu0 0.0
      %5527 = vmatpush1.msra.mxu0 %v5314
      %5528 = vmatprep.subr.mxu0 0.0
      %5529 = vmatpush1.msra.mxu0 %v5313
      %5530 = vmatprep.subr.mxu0 0.0
      %5531 = vmatpush1.msra.mxu0 %v5312
      %5532 = vmatprep.subr.mxu0 0.0
      %5533 = vmatpush1.msra.mxu0 %v5311
      %5534 = vmatprep.subr.mxu0 0.0
      %5535 = vmatpush1.msra.mxu0 %v5310
      %5536 = vmatprep.subr.mxu0 0.0
      %5537 = vmatpush1.msra.mxu0 %v5309
      %5538 = vmatprep.subr.mxu0 0.0
      %5539 = vmatpush1.msra.mxu0 %v5308
      %5540 = vmatprep.subr.mxu0 0.0
      %5541 = vmatpush1.msra.mxu0 %v5307
      %5542 = vmatprep.subr.mxu0 0.0
      %5543 = vmatpush2.msra.mxu0 %v5338
      %5544 = vmatprep.subr.mxu0 0.0
      %5545 = vmatpush2.msra.mxu0 %v5337
      %5546 = vmatprep.subr.mxu0 0.0
      %5547 = vmatpush2.msra.mxu0 %v5336
      %5548 = vmatprep.subr.mxu0 0.0
      %5549 = vmatpush2.msra.mxu0 %v5335
      %5550 = vmatprep.subr.mxu0 0.0
      %5551 = vmatpush2.msra.mxu0 %v5334
      %5552 = vmatprep.subr.mxu0 0.0
      %5553 = vmatpush2.msra.mxu0 %v5333
      %5554 = vmatprep.subr.mxu0 0.0
      %5555 = vmatpush2.msra.mxu0 %v5332
      %5556 = vmatprep.subr.mxu0 0.0
      %5557 = vmatpush2.msra.mxu0 %v5331
      %5558 = vmatprep.subr.mxu0 0.0
      %5559 = vmatpush2.msra.mxu0 %v5330
      %5560 = vmatprep.subr.mxu0 0.0
      %5561 = vmatpush2.msra.mxu0 %v5329
      %5562 = vmatprep.subr.mxu0 0.0
      %5563 = vmatpush2.msra.mxu0 %v5328
      %5564 = vmatprep.subr.mxu0 0.0
      %5565 = vmatpush2.msra.mxu0 %v5327
      %5566 = vmatprep.subr.mxu0 0.0
      %5567 = vmatpush2.msra.mxu0 %v5326
      %5568 = vmatprep.subr.mxu0 0.0
      %5569 = vmatpush2.msra.mxu0 %v5325
      %5570 = vmatprep.subr.mxu0 0.0
      %5571 = vmatpush2.msra.mxu0 %v5324
      %5572 = vmatprep.subr.mxu0 0.0
      %5573 = vmatpush2.msra.mxu0 %v5323
      %5574 = vmatprep.mubr.f32.mxu0 %v5084
      %5575 = vmatmul.mubr.f32.gmra.mxu0 %v5083
      %v5576 = vpop.f32.mrf.mxu0
      %v5577 = vadd.f32 %v5412, %v5576
      %v5578 = vpop.f32.mrf.mxu0
      %5579 = vmatprep.mubr.f32.mxu0 %v5091
      %5580 = vmatmul.mubr.f32.gmra.mxu0 %v5090
      %v5581 = vpop.f32.mrf.mxu0
      %v5582 = vadd.f32 %v5412, %v5581
      %v5583 = vpop.f32.mrf.mxu0
      %5584 = vmatprep.mubr.f32.mxu0 %v5098
      %5585 = vmatmul.mubr.f32.gmra.mxu0 %v5097
      %v5586 = vpop.f32.mrf.mxu0
      %v5587 = vadd.f32 %v5412, %v5586
      %v5588 = vpop.f32.mrf.mxu0
      %5589 = vmatprep.mubr.f32.mxu0 %v5105
      %5590 = vmatmul.mubr.f32.gmra.mxu0 %v5104
      %v5591 = vpop.f32.mrf.mxu0
      %v5592 = vadd.f32 %v5412, %v5591
      %v5593 = vpop.f32.mrf.mxu0
      %5594 = vmatprep.mubr.f32.mxu0 %v5112
      %5595 = vmatmul.mubr.f32.gmra.mxu0 %v5111
      %v5596 = vpop.f32.mrf.mxu0
      %v5597 = vadd.f32 %v5412, %v5596
      %v5598 = vpop.f32.mrf.mxu0
      %5599 = vmatprep.mubr.f32.mxu0 %v5119
      %5600 = vmatmul.mubr.f32.gmra.mxu0 %v5118
      %v5601 = vpop.f32.mrf.mxu0
      %v5602 = vadd.f32 %v5412, %v5601
      %v5603 = vpop.f32.mrf.mxu0
      %5604 = vmatprep.mubr.f32.mxu0 %v5126
      %5605 = vmatmul.mubr.f32.gmra.mxu0 %v5125
      %v5606 = vpop.f32.mrf.mxu0
      %v5607 = vadd.f32 %v5412, %v5606
      %v5608 = vpop.f32.mrf.mxu0
      %5609 = vmatprep.mubr.f32.mxu0 %v5133
      %5610 = vmatmul.mubr.f32.gmra.mxu0 %v5132
      %v5611 = vpop.f32.mrf.mxu0
      %v5612 = vadd.f32 %v5412, %v5611
      %v5613 = vpop.f32.mrf.mxu0
      %5614 = vmatprep.mubr.f32.mxu0 %v5140
      %5615 = vmatmul.mubr.f32.gmra.mxu0 %v5139
      %v5616 = vpop.f32.mrf.mxu0
      %v5617 = vadd.f32 %v5412, %v5616
      %v5618 = vpop.f32.mrf.mxu0
      %5619 = vmatprep.mubr.f32.mxu0 %v5147
      %5620 = vmatmul.mubr.f32.gmra.mxu0 %v5146
      %v5621 = vpop.f32.mrf.mxu0
      %v5622 = vadd.f32 %v5412, %v5621
      %v5623 = vpop.f32.mrf.mxu0
      %5624 = vmatprep.mubr.f32.mxu0 %v5154
      %5625 = vmatmul.mubr.f32.gmra.mxu0 %v5153
      %v5626 = vpop.f32.mrf.mxu0
      %v5627 = vadd.f32 %v5412, %v5626
      %v5628 = vpop.f32.mrf.mxu0
      %5629 = vmatprep.mubr.f32.mxu0 %v5161
      %5630 = vmatmul.mubr.f32.gmra.mxu0 %v5160
      %v5631 = vpop.f32.mrf.mxu0
      %v5632 = vadd.f32 %v5412, %v5631
      %v5633 = vpop.f32.mrf.mxu0
      %5634 = vmatprep.mubr.f32.mxu0 %v5168
      %5635 = vmatmul.mubr.f32.gmra.mxu0 %v5167
      %v5636 = vpop.f32.mrf.mxu0
      %v5637 = vadd.f32 %v5412, %v5636
      %v5638 = vpop.f32.mrf.mxu0
      %5639 = vmatprep.mubr.f32.mxu0 %v5175
      %5640 = vmatmul.mubr.f32.gmra.mxu0 %v5174
      %v5641 = vpop.f32.mrf.mxu0
      %v5642 = vadd.f32 %v5412, %v5641
      %v5643 = vpop.f32.mrf.mxu0
      %5644 = vmatprep.mubr.f32.mxu0 %v5182
      %5645 = vmatmul.mubr.f32.gmra.mxu0 %v5181
      %v5646 = vpop.f32.mrf.mxu0
      %v5647 = vadd.f32 %v5412, %v5646
      %v5648 = vpop.f32.mrf.mxu0
      %5649 = vmatprep.mubr.f32.mxu0 %v5189
      %5650 = vmatmul.mubr.f32.gmra.mxu0 %v5188
      %v5651 = vpop.f32.mrf.mxu0
      %v5652 = vadd.f32 %v5412, %v5651
      %v5653 = vpop.f32.mrf.mxu0
      %5654 = vmatprep.mubr.f32.mxu0 %v5196
      %5655 = vmatmul.mubr.f32.gmra.mxu0 %v5195
      %v5656 = vpop.f32.mrf.mxu0
      %v5657 = vadd.f32 %v5412, %v5656
      %v5658 = vpop.f32.mrf.mxu0
      %5659 = vmatprep.mubr.f32.mxu0 %v5203
      %5660 = vmatmul.mubr.f32.gmra.mxu0 %v5202
      %v5661 = vpop.f32.mrf.mxu0
      %v5662 = vadd.f32 %v5412, %v5661
      %v5663 = vpop.f32.mrf.mxu0
      %5664 = vmatprep.mubr.f32.mxu0 %v5210
      %5665 = vmatmul.mubr.f32.gmra.mxu0 %v5209
      %v5666 = vpop.f32.mrf.mxu0
      %v5667 = vadd.f32 %v5412, %v5666
      %v5668 = vpop.f32.mrf.mxu0
      %5669 = vmatprep.mubr.f32.mxu0 %v5217
      %5670 = vmatmul.mubr.f32.gmra.mxu0 %v5216
      %v5671 = vpop.f32.mrf.mxu0
      %v5672 = vadd.f32 %v5412, %v5671
      %v5673 = vpop.f32.mrf.mxu0
      %5674 = vmatprep.mubr.f32.mxu0 %v5224
      %5675 = vmatmul.mubr.f32.gmra.mxu0 %v5223
      %v5676 = vpop.f32.mrf.mxu0
      %v5677 = vadd.f32 %v5412, %v5676
      %v5678 = vpop.f32.mrf.mxu0
      %5679 = vmatprep.mubr.f32.mxu0 %v5231
      %5680 = vmatmul.mubr.f32.gmra.mxu0 %v5230
      %v5681 = vpop.f32.mrf.mxu0
      %v5682 = vadd.f32 %v5412, %v5681
      %v5683 = vpop.f32.mrf.mxu0
      %5684 = vmatprep.mubr.f32.mxu0 %v5238
      %5685 = vmatmul.mubr.f32.gmra.mxu0 %v5237
      %v5686 = vpop.f32.mrf.mxu0
      %v5687 = vadd.f32 %v5412, %v5686
      %v5688 = vpop.f32.mrf.mxu0
      %5689 = vmatprep.mubr.f32.mxu0 %v5245
      %5690 = vmatmul.mubr.f32.gmra.mxu0 %v5244
      %v5691 = vpop.f32.mrf.mxu0
      %v5692 = vadd.f32 %v5412, %v5691
      %v5693 = vpop.f32.mrf.mxu0
      %5694 = vmatprep.mubr.f32.mxu0 %v5252
      %5695 = vmatmul.mubr.f32.gmra.mxu0 %v5251
      %v5696 = vpop.f32.mrf.mxu0
      %v5697 = vadd.f32 %v5412, %v5696
      %v5698 = vpop.f32.mrf.mxu0
      %5699 = vmatprep.mubr.f32.mxu0 %v5259
      %5700 = vmatmul.mubr.f32.gmra.mxu0 %v5258
      %v5701 = vpop.f32.mrf.mxu0
      %v5702 = vadd.f32 %v5412, %v5701
      %v5703 = vpop.f32.mrf.mxu0
      %5704 = vmatprep.mubr.f32.mxu0 %v5266
      %5705 = vmatmul.mubr.f32.gmra.mxu0 %v5265
      %v5706 = vpop.f32.mrf.mxu0
      %v5707 = vadd.f32 %v5412, %v5706
      %v5708 = vpop.f32.mrf.mxu0
      %5709 = vmatprep.mubr.f32.mxu0 %v5273
      %5710 = vmatmul.mubr.f32.gmra.mxu0 %v5272
      %v5711 = vpop.f32.mrf.mxu0
      %v5712 = vadd.f32 %v5412, %v5711
      %v5713 = vpop.f32.mrf.mxu0
      %5714 = vmatprep.mubr.f32.mxu0 %v5280
      %5715 = vmatmul.mubr.f32.gmra.mxu0 %v5279
      %v5716 = vpop.f32.mrf.mxu0
      %v5717 = vadd.f32 %v5412, %v5716
      %v5718 = vpop.f32.mrf.mxu0
      %5719 = vmatprep.mubr.f32.mxu0 %v5287
      %5720 = vmatmul.mubr.f32.gmra.mxu0 %v5286
      %v5721 = vpop.f32.mrf.mxu0
      %v5722 = vadd.f32 %v5412, %v5721
      %v5723 = vpop.f32.mrf.mxu0
      %5724 = vmatprep.mubr.f32.mxu0 %v5294
      %5725 = vmatmul.mubr.f32.gmra.mxu0 %v5293
      %v5726 = vpop.f32.mrf.mxu0
      %v5727 = vadd.f32 %v5412, %v5726
      %v5728 = vpop.f32.mrf.mxu0
      %5729 = vmatprep.mubr.f32.mxu0 %v5301
      %5730 = vmatmul.mubr.f32.gmra.mxu0 %v5300
      %v5731 = vpop.f32.mrf.mxu0
      %v5732 = vadd.f32 %v5412, %v5731
      %v5733 = vpop.f32.mrf.mxu0
      %5734 = vdwg.mxu0
      %5735 = vmatprep.subr.mxu0 0.0
      %5736 = vmatpush1.msra.mxu0 %v5354
      %5737 = vmatprep.subr.mxu0 0.0
      %5738 = vmatpush1.msra.mxu0 %v5353
      %5739 = vmatprep.subr.mxu0 0.0
      %5740 = vmatpush1.msra.mxu0 %v5352
      %5741 = vmatprep.subr.mxu0 0.0
      %5742 = vmatpush1.msra.mxu0 %v5351
      %5743 = vmatprep.subr.mxu0 0.0
      %5744 = vmatpush1.msra.mxu0 %v5350
      %5745 = vmatprep.subr.mxu0 0.0
      %5746 = vmatpush1.msra.mxu0 %v5349
      %5747 = vmatprep.subr.mxu0 0.0
      %5748 = vmatpush1.msra.mxu0 %v5348
      %5749 = vmatprep.subr.mxu0 0.0
      %5750 = vmatpush1.msra.mxu0 %v5347
      %5751 = vmatprep.subr.mxu0 0.0
      %5752 = vmatpush1.msra.mxu0 %v5346
      %5753 = vmatprep.subr.mxu0 0.0
      %5754 = vmatpush1.msra.mxu0 %v5345
      %5755 = vmatprep.subr.mxu0 0.0
      %5756 = vmatpush1.msra.mxu0 %v5344
      %5757 = vmatprep.subr.mxu0 0.0
      %5758 = vmatpush1.msra.mxu0 %v5343
      %5759 = vmatprep.subr.mxu0 0.0
      %5760 = vmatpush1.msra.mxu0 %v5342
      %5761 = vmatprep.subr.mxu0 0.0
      %5762 = vmatpush1.msra.mxu0 %v5341
      %5763 = vmatprep.subr.mxu0 0.0
      %5764 = vmatpush1.msra.mxu0 %v5340
      %5765 = vmatprep.subr.mxu0 0.0
      %5766 = vmatpush1.msra.mxu0 %v5339
      %5767 = vmatprep.subr.mxu0 0.0
      %5768 = vmatpush2.msra.mxu0 %v5370
      %5769 = vmatprep.subr.mxu0 0.0
      %5770 = vmatpush2.msra.mxu0 %v5369
      %5771 = vmatprep.subr.mxu0 0.0
      %5772 = vmatpush2.msra.mxu0 %v5368
      %5773 = vmatprep.subr.mxu0 0.0
      %5774 = vmatpush2.msra.mxu0 %v5367
      %5775 = vmatprep.subr.mxu0 0.0
      %5776 = vmatpush2.msra.mxu0 %v5366
      %5777 = vmatprep.subr.mxu0 0.0
      %5778 = vmatpush2.msra.mxu0 %v5365
      %5779 = vmatprep.subr.mxu0 0.0
      %5780 = vmatpush2.msra.mxu0 %v5364
      %5781 = vmatprep.subr.mxu0 0.0
      %5782 = vmatpush2.msra.mxu0 %v5363
      %5783 = vmatprep.subr.mxu0 0.0
      %5784 = vmatpush2.msra.mxu0 %v5362
      %5785 = vmatprep.subr.mxu0 0.0
      %5786 = vmatpush2.msra.mxu0 %v5361
      %5787 = vmatprep.subr.mxu0 0.0
      %5788 = vmatpush2.msra.mxu0 %v5360
      %5789 = vmatprep.subr.mxu0 0.0
      %5790 = vmatpush2.msra.mxu0 %v5359
      %5791 = vmatprep.subr.mxu0 0.0
      %5792 = vmatpush2.msra.mxu0 %v5358
      %5793 = vmatprep.subr.mxu0 0.0
      %5794 = vmatpush2.msra.mxu0 %v5357
      %5795 = vmatprep.subr.mxu0 0.0
      %5796 = vmatpush2.msra.mxu0 %v5356
      %5797 = vmatprep.subr.mxu0 0.0
      %5798 = vmatpush2.msra.mxu0 %v5355
      %5799 = vmatprep.mubr.f32.mxu0 %v5086
      %5800 = vmatmul.mubr.f32.gmra.mxu0 %v5085
      %v5801 = vpop.f32.mrf.mxu0
      %v5802 = vadd.f32 %v5577, %v5801
      %v5803 = vpop.f32.mrf.mxu0
      %5804 = vmatprep.mubr.f32.mxu0 %v5093
      %5805 = vmatmul.mubr.f32.gmra.mxu0 %v5092
      %v5806 = vpop.f32.mrf.mxu0
      %v5807 = vadd.f32 %v5582, %v5806
      %v5808 = vpop.f32.mrf.mxu0
      %5809 = vmatprep.mubr.f32.mxu0 %v5100
      %5810 = vmatmul.mubr.f32.gmra.mxu0 %v5099
      %v5811 = vpop.f32.mrf.mxu0
      %v5812 = vadd.f32 %v5587, %v5811
      %v5813 = vpop.f32.mrf.mxu0
      %5814 = vmatprep.mubr.f32.mxu0 %v5107
      %5815 = vmatmul.mubr.f32.gmra.mxu0 %v5106
      %v5816 = vpop.f32.mrf.mxu0
      %v5817 = vadd.f32 %v5592, %v5816
      %v5818 = vpop.f32.mrf.mxu0
      %5819 = vmatprep.mubr.f32.mxu0 %v5114
      %5820 = vmatmul.mubr.f32.gmra.mxu0 %v5113
      %v5821 = vpop.f32.mrf.mxu0
      %v5822 = vadd.f32 %v5597, %v5821
      %v5823 = vpop.f32.mrf.mxu0
      %5824 = vmatprep.mubr.f32.mxu0 %v5121
      %5825 = vmatmul.mubr.f32.gmra.mxu0 %v5120
      %v5826 = vpop.f32.mrf.mxu0
      %v5827 = vadd.f32 %v5602, %v5826
      %v5828 = vpop.f32.mrf.mxu0
      %5829 = vmatprep.mubr.f32.mxu0 %v5128
      %5830 = vmatmul.mubr.f32.gmra.mxu0 %v5127
      %v5831 = vpop.f32.mrf.mxu0
      %v5832 = vadd.f32 %v5607, %v5831
      %v5833 = vpop.f32.mrf.mxu0
      %5834 = vmatprep.mubr.f32.mxu0 %v5135
      %5835 = vmatmul.mubr.f32.gmra.mxu0 %v5134
      %v5836 = vpop.f32.mrf.mxu0
      %v5837 = vadd.f32 %v5612, %v5836
      %v5838 = vpop.f32.mrf.mxu0
      %5839 = vmatprep.mubr.f32.mxu0 %v5142
      %5840 = vmatmul.mubr.f32.gmra.mxu0 %v5141
      %v5841 = vpop.f32.mrf.mxu0
      %v5842 = vadd.f32 %v5617, %v5841
      %v5843 = vpop.f32.mrf.mxu0
      %5844 = vmatprep.mubr.f32.mxu0 %v5149
      %5845 = vmatmul.mubr.f32.gmra.mxu0 %v5148
      %v5846 = vpop.f32.mrf.mxu0
      %v5847 = vadd.f32 %v5622, %v5846
      %v5848 = vpop.f32.mrf.mxu0
      %5849 = vmatprep.mubr.f32.mxu0 %v5156
      %5850 = vmatmul.mubr.f32.gmra.mxu0 %v5155
      %v5851 = vpop.f32.mrf.mxu0
      %v5852 = vadd.f32 %v5627, %v5851
      %v5853 = vpop.f32.mrf.mxu0
      %5854 = vmatprep.mubr.f32.mxu0 %v5163
      %5855 = vmatmul.mubr.f32.gmra.mxu0 %v5162
      %v5856 = vpop.f32.mrf.mxu0
      %v5857 = vadd.f32 %v5632, %v5856
      %v5858 = vpop.f32.mrf.mxu0
      %5859 = vmatprep.mubr.f32.mxu0 %v5170
      %5860 = vmatmul.mubr.f32.gmra.mxu0 %v5169
      %v5861 = vpop.f32.mrf.mxu0
      %v5862 = vadd.f32 %v5637, %v5861
      %v5863 = vpop.f32.mrf.mxu0
      %5864 = vmatprep.mubr.f32.mxu0 %v5177
      %5865 = vmatmul.mubr.f32.gmra.mxu0 %v5176
      %v5866 = vpop.f32.mrf.mxu0
      %v5867 = vadd.f32 %v5642, %v5866
      %v5868 = vpop.f32.mrf.mxu0
      %5869 = vmatprep.mubr.f32.mxu0 %v5184
      %5870 = vmatmul.mubr.f32.gmra.mxu0 %v5183
      %v5871 = vpop.f32.mrf.mxu0
      %v5872 = vadd.f32 %v5647, %v5871
      %v5873 = vpop.f32.mrf.mxu0
      %5874 = vmatprep.mubr.f32.mxu0 %v5191
      %5875 = vmatmul.mubr.f32.gmra.mxu0 %v5190
      %v5876 = vpop.f32.mrf.mxu0
      %v5877 = vadd.f32 %v5652, %v5876
      %v5878 = vpop.f32.mrf.mxu0
      %5879 = vmatprep.mubr.f32.mxu0 %v5198
      %5880 = vmatmul.mubr.f32.gmra.mxu0 %v5197
      %v5881 = vpop.f32.mrf.mxu0
      %v5882 = vadd.f32 %v5657, %v5881
      %v5883 = vpop.f32.mrf.mxu0
      %5884 = vmatprep.mubr.f32.mxu0 %v5205
      %5885 = vmatmul.mubr.f32.gmra.mxu0 %v5204
      %v5886 = vpop.f32.mrf.mxu0
      %v5887 = vadd.f32 %v5662, %v5886
      %v5888 = vpop.f32.mrf.mxu0
      %5889 = vmatprep.mubr.f32.mxu0 %v5212
      %5890 = vmatmul.mubr.f32.gmra.mxu0 %v5211
      %v5891 = vpop.f32.mrf.mxu0
      %v5892 = vadd.f32 %v5667, %v5891
      %v5893 = vpop.f32.mrf.mxu0
      %5894 = vmatprep.mubr.f32.mxu0 %v5219
      %5895 = vmatmul.mubr.f32.gmra.mxu0 %v5218
      %v5896 = vpop.f32.mrf.mxu0
      %v5897 = vadd.f32 %v5672, %v5896
      %v5898 = vpop.f32.mrf.mxu0
      %5899 = vmatprep.mubr.f32.mxu0 %v5226
      %5900 = vmatmul.mubr.f32.gmra.mxu0 %v5225
      %v5901 = vpop.f32.mrf.mxu0
      %v5902 = vadd.f32 %v5677, %v5901
      %v5903 = vpop.f32.mrf.mxu0
      %5904 = vmatprep.mubr.f32.mxu0 %v5233
      %5905 = vmatmul.mubr.f32.gmra.mxu0 %v5232
      %v5906 = vpop.f32.mrf.mxu0
      %v5907 = vadd.f32 %v5682, %v5906
      %v5908 = vpop.f32.mrf.mxu0
      %5909 = vmatprep.mubr.f32.mxu0 %v5240
      %5910 = vmatmul.mubr.f32.gmra.mxu0 %v5239
      %v5911 = vpop.f32.mrf.mxu0
      %v5912 = vadd.f32 %v5687, %v5911
      %v5913 = vpop.f32.mrf.mxu0
      %5914 = vmatprep.mubr.f32.mxu0 %v5247
      %5915 = vmatmul.mubr.f32.gmra.mxu0 %v5246
      %v5916 = vpop.f32.mrf.mxu0
      %v5917 = vadd.f32 %v5692, %v5916
      %v5918 = vpop.f32.mrf.mxu0
      %5919 = vmatprep.mubr.f32.mxu0 %v5254
      %5920 = vmatmul.mubr.f32.gmra.mxu0 %v5253
      %v5921 = vpop.f32.mrf.mxu0
      %v5922 = vadd.f32 %v5697, %v5921
      %v5923 = vpop.f32.mrf.mxu0
      %5924 = vmatprep.mubr.f32.mxu0 %v5261
      %5925 = vmatmul.mubr.f32.gmra.mxu0 %v5260
      %v5926 = vpop.f32.mrf.mxu0
      %v5927 = vadd.f32 %v5702, %v5926
      %v5928 = vpop.f32.mrf.mxu0
      %5929 = vmatprep.mubr.f32.mxu0 %v5268
      %5930 = vmatmul.mubr.f32.gmra.mxu0 %v5267
      %v5931 = vpop.f32.mrf.mxu0
      %v5932 = vadd.f32 %v5707, %v5931
      %v5933 = vpop.f32.mrf.mxu0
      %5934 = vmatprep.mubr.f32.mxu0 %v5275
      %5935 = vmatmul.mubr.f32.gmra.mxu0 %v5274
      %v5936 = vpop.f32.mrf.mxu0
      %v5937 = vadd.f32 %v5712, %v5936
      %v5938 = vpop.f32.mrf.mxu0
      %5939 = vmatprep.mubr.f32.mxu0 %v5282
      %5940 = vmatmul.mubr.f32.gmra.mxu0 %v5281
      %v5941 = vpop.f32.mrf.mxu0
      %v5942 = vadd.f32 %v5717, %v5941
      %v5943 = vpop.f32.mrf.mxu0
      %5944 = vmatprep.mubr.f32.mxu0 %v5289
      %5945 = vmatmul.mubr.f32.gmra.mxu0 %v5288
      %v5946 = vpop.f32.mrf.mxu0
      %v5947 = vadd.f32 %v5722, %v5946
      %v5948 = vpop.f32.mrf.mxu0
      %5949 = vmatprep.mubr.f32.mxu0 %v5296
      %5950 = vmatmul.mubr.f32.gmra.mxu0 %v5295
      %v5951 = vpop.f32.mrf.mxu0
      %v5952 = vadd.f32 %v5727, %v5951
      %v5953 = vpop.f32.mrf.mxu0
      %5954 = vmatprep.mubr.f32.mxu0 %v5303
      %5955 = vmatmul.mubr.f32.gmra.mxu0 %v5302
      %v5956 = vpop.f32.mrf.mxu0
      %v5957 = vadd.f32 %v5732, %v5956
      %v5958 = vpop.f32.mrf.mxu0
      %5959 = vdwg.mxu0
      %5960 = vmatprep.subr.mxu0 0.0
      %5961 = vmatpush1.msra.mxu0 %v5386
      %5962 = vmatprep.subr.mxu0 0.0
      %5963 = vmatpush1.msra.mxu0 %v5385
      %5964 = vmatprep.subr.mxu0 0.0
      %5965 = vmatpush1.msra.mxu0 %v5384
      %5966 = vmatprep.subr.mxu0 0.0
      %5967 = vmatpush1.msra.mxu0 %v5383
      %5968 = vmatprep.subr.mxu0 0.0
      %5969 = vmatpush1.msra.mxu0 %v5382
      %5970 = vmatprep.subr.mxu0 0.0
      %5971 = vmatpush1.msra.mxu0 %v5381
      %5972 = vmatprep.subr.mxu0 0.0
      %5973 = vmatpush1.msra.mxu0 %v5380
      %5974 = vmatprep.subr.mxu0 0.0
      %5975 = vmatpush1.msra.mxu0 %v5379
      %5976 = vmatprep.subr.mxu0 0.0
      %5977 = vmatpush1.msra.mxu0 %v5378
      %5978 = vmatprep.subr.mxu0 0.0
      %5979 = vmatpush1.msra.mxu0 %v5377
      %5980 = vmatprep.subr.mxu0 0.0
      %5981 = vmatpush1.msra.mxu0 %v5376
      %5982 = vmatprep.subr.mxu0 0.0
      %5983 = vmatpush1.msra.mxu0 %v5375
      %5984 = vmatprep.subr.mxu0 0.0
      %5985 = vmatpush1.msra.mxu0 %v5374
      %5986 = vmatprep.subr.mxu0 0.0
      %5987 = vmatpush1.msra.mxu0 %v5373
      %5988 = vmatprep.subr.mxu0 0.0
      %5989 = vmatpush1.msra.mxu0 %v5372
      %5990 = vmatprep.subr.mxu0 0.0
      %5991 = vmatpush1.msra.mxu0 %v5371
      %5992 = vmatprep.subr.mxu0 0.0
      %5993 = vmatpush2.msra.mxu0 %v5402
      %5994 = vmatprep.subr.mxu0 0.0
      %5995 = vmatpush2.msra.mxu0 %v5401
      %5996 = vmatprep.subr.mxu0 0.0
      %5997 = vmatpush2.msra.mxu0 %v5400
      %5998 = vmatprep.subr.mxu0 0.0
      %5999 = vmatpush2.msra.mxu0 %v5399
      %6000 = vmatprep.subr.mxu0 0.0
      %6001 = vmatpush2.msra.mxu0 %v5398
      %6002 = vmatprep.subr.mxu0 0.0
      %6003 = vmatpush2.msra.mxu0 %v5397
      %6004 = vmatprep.subr.mxu0 0.0
      %6005 = vmatpush2.msra.mxu0 %v5396
      %6006 = vmatprep.subr.mxu0 0.0
      %6007 = vmatpush2.msra.mxu0 %v5395
      %6008 = vmatprep.subr.mxu0 0.0
      %6009 = vmatpush2.msra.mxu0 %v5394
      %6010 = vmatprep.subr.mxu0 0.0
      %6011 = vmatpush2.msra.mxu0 %v5393
      %6012 = vmatprep.subr.mxu0 0.0
      %6013 = vmatpush2.msra.mxu0 %v5392
      %6014 = vmatprep.subr.mxu0 0.0
      %6015 = vmatpush2.msra.mxu0 %v5391
      %6016 = vmatprep.subr.mxu0 0.0
      %6017 = vmatpush2.msra.mxu0 %v5390
      %6018 = vmatprep.subr.mxu0 0.0
      %6019 = vmatpush2.msra.mxu0 %v5389
      %6020 = vmatprep.subr.mxu0 0.0
      %6021 = vmatpush2.msra.mxu0 %v5388
      %6022 = vmatprep.subr.mxu0 0.0
      %6023 = vmatpush2.msra.mxu0 %v5387
      %6024 = vmatprep.mubr.f32.mxu0 %v5088
      %6025 = vmatmul.mubr.f32.gmra.mxu0 %v5087
      %v6026 = vpop.f32.mrf.mxu0
      %v6027 = vadd.f32 %v5802, %v6026
      %v6028 = vpop.f32.mrf.mxu0
      %6029 = vmatprep.mubr.f32.mxu0 %v5095
      %6030 = vmatmul.mubr.f32.gmra.mxu0 %v5094
      %v6031 = vpop.f32.mrf.mxu0
      %v6032 = vadd.f32 %v5807, %v6031
      %v6033 = vpop.f32.mrf.mxu0
      %6034 = vmatprep.mubr.f32.mxu0 %v5102
      %6035 = vmatmul.mubr.f32.gmra.mxu0 %v5101
      %v6036 = vpop.f32.mrf.mxu0
      %v6037 = vadd.f32 %v5812, %v6036
      %v6038 = vpop.f32.mrf.mxu0
      %6039 = vmatprep.mubr.f32.mxu0 %v5109
      %6040 = vmatmul.mubr.f32.gmra.mxu0 %v5108
      %v6041 = vpop.f32.mrf.mxu0
      %v6042 = vadd.f32 %v5817, %v6041
      %v6043 = vpop.f32.mrf.mxu0
      %6044 = vmatprep.mubr.f32.mxu0 %v5116
      %6045 = vmatmul.mubr.f32.gmra.mxu0 %v5115
      %v6046 = vpop.f32.mrf.mxu0
      %v6047 = vadd.f32 %v5822, %v6046
      %v6048 = vpop.f32.mrf.mxu0
      %6049 = vmatprep.mubr.f32.mxu0 %v5123
      %6050 = vmatmul.mubr.f32.gmra.mxu0 %v5122
      %v6051 = vpop.f32.mrf.mxu0
      %v6052 = vadd.f32 %v5827, %v6051
      %v6053 = vpop.f32.mrf.mxu0
      %6054 = vmatprep.mubr.f32.mxu0 %v5130
      %6055 = vmatmul.mubr.f32.gmra.mxu0 %v5129
      %v6056 = vpop.f32.mrf.mxu0
      %v6057 = vadd.f32 %v5832, %v6056
      %v6058 = vpop.f32.mrf.mxu0
      %6059 = vmatprep.mubr.f32.mxu0 %v5137
      %6060 = vmatmul.mubr.f32.gmra.mxu0 %v5136
      %v6061 = vpop.f32.mrf.mxu0
      %v6062 = vadd.f32 %v5837, %v6061
      %v6063 = vpop.f32.mrf.mxu0
      %6064 = vmatprep.mubr.f32.mxu0 %v5144
      %6065 = vmatmul.mubr.f32.gmra.mxu0 %v5143
      %v6066 = vpop.f32.mrf.mxu0
      %v6067 = vadd.f32 %v5842, %v6066
      %v6068 = vpop.f32.mrf.mxu0
      %6069 = vmatprep.mubr.f32.mxu0 %v5151
      %6070 = vmatmul.mubr.f32.gmra.mxu0 %v5150
      %v6071 = vpop.f32.mrf.mxu0
      %v6072 = vadd.f32 %v5847, %v6071
      %v6073 = vpop.f32.mrf.mxu0
      %6074 = vmatprep.mubr.f32.mxu0 %v5158
      %6075 = vmatmul.mubr.f32.gmra.mxu0 %v5157
      %v6076 = vpop.f32.mrf.mxu0
      %v6077 = vadd.f32 %v5852, %v6076
      %v6078 = vpop.f32.mrf.mxu0
      %6079 = vmatprep.mubr.f32.mxu0 %v5165
      %6080 = vmatmul.mubr.f32.gmra.mxu0 %v5164
      %v6081 = vpop.f32.mrf.mxu0
      %v6082 = vadd.f32 %v5857, %v6081
      %v6083 = vpop.f32.mrf.mxu0
      %6084 = vmatprep.mubr.f32.mxu0 %v5172
      %6085 = vmatmul.mubr.f32.gmra.mxu0 %v5171
      %v6086 = vpop.f32.mrf.mxu0
      %v6087 = vadd.f32 %v5862, %v6086
      %v6088 = vpop.f32.mrf.mxu0
      %6089 = vmatprep.mubr.f32.mxu0 %v5179
      %6090 = vmatmul.mubr.f32.gmra.mxu0 %v5178
      %v6091 = vpop.f32.mrf.mxu0
      %v6092 = vadd.f32 %v5867, %v6091
      %v6093 = vpop.f32.mrf.mxu0
      %6094 = vmatprep.mubr.f32.mxu0 %v5186
      %6095 = vmatmul.mubr.f32.gmra.mxu0 %v5185
      %v6096 = vpop.f32.mrf.mxu0
      %v6097 = vadd.f32 %v5872, %v6096
      %v6098 = vpop.f32.mrf.mxu0
      %6099 = vmatprep.mubr.f32.mxu0 %v5193
      %6100 = vmatmul.mubr.f32.gmra.mxu0 %v5192
      %v6101 = vpop.f32.mrf.mxu0
      %v6102 = vadd.f32 %v5877, %v6101
      %v6103 = vpop.f32.mrf.mxu0
      %6104 = vmatprep.mubr.f32.mxu0 %v5200
      %6105 = vmatmul.mubr.f32.gmra.mxu0 %v5199
      %v6106 = vpop.f32.mrf.mxu0
      %v6107 = vadd.f32 %v5882, %v6106
      %v6108 = vpop.f32.mrf.mxu0
      %6109 = vmatprep.mubr.f32.mxu0 %v5207
      %6110 = vmatmul.mubr.f32.gmra.mxu0 %v5206
      %v6111 = vpop.f32.mrf.mxu0
      %v6112 = vadd.f32 %v5887, %v6111
      %v6113 = vpop.f32.mrf.mxu0
      %6114 = vmatprep.mubr.f32.mxu0 %v5214
      %6115 = vmatmul.mubr.f32.gmra.mxu0 %v5213
      %v6116 = vpop.f32.mrf.mxu0
      %v6117 = vadd.f32 %v5892, %v6116
      %v6118 = vpop.f32.mrf.mxu0
      %6119 = vmatprep.mubr.f32.mxu0 %v5221
      %6120 = vmatmul.mubr.f32.gmra.mxu0 %v5220
      %v6121 = vpop.f32.mrf.mxu0
      %v6122 = vadd.f32 %v5897, %v6121
      %v6123 = vpop.f32.mrf.mxu0
      %6124 = vmatprep.mubr.f32.mxu0 %v5228
      %6125 = vmatmul.mubr.f32.gmra.mxu0 %v5227
      %v6126 = vpop.f32.mrf.mxu0
      %v6127 = vadd.f32 %v5902, %v6126
      %v6128 = vpop.f32.mrf.mxu0
      %6129 = vmatprep.mubr.f32.mxu0 %v5235
      %6130 = vmatmul.mubr.f32.gmra.mxu0 %v5234
      %v6131 = vpop.f32.mrf.mxu0
      %v6132 = vadd.f32 %v5907, %v6131
      %v6133 = vpop.f32.mrf.mxu0
      %6134 = vmatprep.mubr.f32.mxu0 %v5242
      %6135 = vmatmul.mubr.f32.gmra.mxu0 %v5241
      %v6136 = vpop.f32.mrf.mxu0
      %v6137 = vadd.f32 %v5912, %v6136
      %v6138 = vpop.f32.mrf.mxu0
      %6139 = vmatprep.mubr.f32.mxu0 %v5249
      %6140 = vmatmul.mubr.f32.gmra.mxu0 %v5248
      %v6141 = vpop.f32.mrf.mxu0
      %v6142 = vadd.f32 %v5917, %v6141
      %v6143 = vpop.f32.mrf.mxu0
      %6144 = vmatprep.mubr.f32.mxu0 %v5256
      %6145 = vmatmul.mubr.f32.gmra.mxu0 %v5255
      %v6146 = vpop.f32.mrf.mxu0
      %v6147 = vadd.f32 %v5922, %v6146
      %v6148 = vpop.f32.mrf.mxu0
      %6149 = vmatprep.mubr.f32.mxu0 %v5263
      %6150 = vmatmul.mubr.f32.gmra.mxu0 %v5262
      %v6151 = vpop.f32.mrf.mxu0
      %v6152 = vadd.f32 %v5927, %v6151
      %v6153 = vpop.f32.mrf.mxu0
      %6154 = vmatprep.mubr.f32.mxu0 %v5270
      %6155 = vmatmul.mubr.f32.gmra.mxu0 %v5269
      %v6156 = vpop.f32.mrf.mxu0
      %v6157 = vadd.f32 %v5932, %v6156
      %v6158 = vpop.f32.mrf.mxu0
      %6159 = vmatprep.mubr.f32.mxu0 %v5277
      %6160 = vmatmul.mubr.f32.gmra.mxu0 %v5276
      %v6161 = vpop.f32.mrf.mxu0
      %v6162 = vadd.f32 %v5937, %v6161
      %v6163 = vpop.f32.mrf.mxu0
      %6164 = vmatprep.mubr.f32.mxu0 %v5284
      %6165 = vmatmul.mubr.f32.gmra.mxu0 %v5283
      %v6166 = vpop.f32.mrf.mxu0
      %v6167 = vadd.f32 %v5942, %v6166
      %v6168 = vpop.f32.mrf.mxu0
      %6169 = vmatprep.mubr.f32.mxu0 %v5291
      %6170 = vmatmul.mubr.f32.gmra.mxu0 %v5290
      %v6171 = vpop.f32.mrf.mxu0
      %v6172 = vadd.f32 %v5947, %v6171
      %v6173 = vpop.f32.mrf.mxu0
      %6174 = vmatprep.mubr.f32.mxu0 %v5298
      %6175 = vmatmul.mubr.f32.gmra.mxu0 %v5297
      %v6176 = vpop.f32.mrf.mxu0
      %v6177 = vadd.f32 %v5952, %v6176
      %v6178 = vpop.f32.mrf.mxu0
      %6179 = vmatprep.mubr.f32.mxu0 %v5305
      %6180 = vmatmul.mubr.f32.gmra.mxu0 %v5304
      %v6181 = vpop.f32.mrf.mxu0
      %v6182 = vadd.f32 %v5957, %v6181
      %v6183 = vpop.f32.mrf.mxu0
      %6184 = vdwg.mxu0
      %6185 = vmatprep.subr.mxu0 0.0
      %6186 = vmatpush1.msra.mxu0 0.0
      %6187 = vmatprep.subr.mxu0 0.0
      %6188 = vmatpush1.msra.mxu0 0.0
      %6189 = vmatprep.subr.mxu0 0.0
      %6190 = vmatpush1.msra.mxu0 0.0
      %6191 = vmatprep.subr.mxu0 0.0
      %6192 = vmatpush1.msra.mxu0 0.0
      %6193 = vmatprep.subr.mxu0 0.0
      %6194 = vmatpush1.msra.mxu0 0.0
      %6195 = vmatprep.subr.mxu0 0.0
      %6196 = vmatpush1.msra.mxu0 0.0
      %6197 = vmatprep.subr.mxu0 0.0
      %6198 = vmatpush1.msra.mxu0 0.0
      %6199 = vmatprep.subr.mxu0 0.0
      %6200 = vmatpush1.msra.mxu0 0.0
      %6201 = vmatprep.subr.mxu0 0.0
      %6202 = vmatpush1.msra.mxu0 0.0
      %6203 = vmatprep.subr.mxu0 0.0
      %6204 = vmatpush1.msra.mxu0 0.0
      %6205 = vmatprep.subr.mxu0 0.0
      %6206 = vmatpush1.msra.mxu0 0.0
      %6207 = vmatprep.subr.mxu0 0.0
      %6208 = vmatpush1.msra.mxu0 0.0
      %6209 = vmatprep.subr.mxu0 0.0
      %6210 = vmatpush1.msra.mxu0 %v5406
      %6211 = vmatprep.subr.mxu0 0.0
      %6212 = vmatpush1.msra.mxu0 %v5405
      %6213 = vmatprep.subr.mxu0 0.0
      %6214 = vmatpush1.msra.mxu0 %v5404
      %6215 = vmatprep.subr.mxu0 0.0
      %6216 = vmatpush1.msra.mxu0 %v5403
      %6217 = vmatprep.subr.mxu0 0.0
      %6218 = vmatpush2.msra.mxu0 0.0
      %6219 = vmatprep.subr.mxu0 0.0
      %6220 = vmatpush2.msra.mxu0 0.0
      %6221 = vmatprep.subr.mxu0 0.0
      %6222 = vmatpush2.msra.mxu0 0.0
      %6223 = vmatprep.subr.mxu0 0.0
      %6224 = vmatpush2.msra.mxu0 0.0
      %6225 = vmatprep.subr.mxu0 0.0
      %6226 = vmatpush2.msra.mxu0 0.0
      %6227 = vmatprep.subr.mxu0 0.0
      %6228 = vmatpush2.msra.mxu0 0.0
      %6229 = vmatprep.subr.mxu0 0.0
      %6230 = vmatpush2.msra.mxu0 0.0
      %6231 = vmatprep.subr.mxu0 0.0
      %6232 = vmatpush2.msra.mxu0 0.0
      %6233 = vmatprep.subr.mxu0 0.0
      %6234 = vmatpush2.msra.mxu0 0.0
      %6235 = vmatprep.subr.mxu0 0.0
      %6236 = vmatpush2.msra.mxu0 0.0
      %6237 = vmatprep.subr.mxu0 0.0
      %6238 = vmatpush2.msra.mxu0 0.0
      %6239 = vmatprep.subr.mxu0 0.0
      %6240 = vmatpush2.msra.mxu0 0.0
      %6241 = vmatprep.subr.mxu0 0.0
      %6242 = vmatpush2.msra.mxu0 0.0
      %6243 = vmatprep.subr.mxu0 0.0
      %6244 = vmatpush2.msra.mxu0 0.0
      %6245 = vmatprep.subr.mxu0 0.0
      %6246 = vmatpush2.msra.mxu0 0.0
      %6247 = vmatprep.subr.mxu0 0.0
      %6248 = vmatpush2.msra.mxu0 0.0
      %6249 = vmatprep.mubr.f32.mxu0 0.0
      %6250 = vmatmul.mubr.f32.gmra.mxu0 %v5415
      %v6251 = vpop.f32.mrf.mxu0
      %v6252 = vadd.f32 %v6027, %v6251
      %v6253 = vpop.f32.mrf.mxu0
      %6254 = vmatprep.mubr.f32.mxu0 0.0
      %6255 = vmatmul.mubr.f32.gmra.mxu0 %v5418
      %v6256 = vpop.f32.mrf.mxu0
      %v6257 = vadd.f32 %v6032, %v6256
      %v6258 = vpop.f32.mrf.mxu0
      %6259 = vmatprep.mubr.f32.mxu0 0.0
      %6260 = vmatmul.mubr.f32.gmra.mxu0 %v5421
      %v6261 = vpop.f32.mrf.mxu0
      %v6262 = vadd.f32 %v6037, %v6261
      %v6263 = vpop.f32.mrf.mxu0
      %6264 = vmatprep.mubr.f32.mxu0 0.0
      %6265 = vmatmul.mubr.f32.gmra.mxu0 %v5424
      %v6266 = vpop.f32.mrf.mxu0
      %v6267 = vadd.f32 %v6042, %v6266
      %v6268 = vpop.f32.mrf.mxu0
      %6269 = vmatprep.mubr.f32.mxu0 0.0
      %6270 = vmatmul.mubr.f32.gmra.mxu0 %v5427
      %v6271 = vpop.f32.mrf.mxu0
      %v6272 = vadd.f32 %v6047, %v6271
      %v6273 = vpop.f32.mrf.mxu0
      %6274 = vmatprep.mubr.f32.mxu0 0.0
      %6275 = vmatmul.mubr.f32.gmra.mxu0 %v5430
      %v6276 = vpop.f32.mrf.mxu0
      %v6277 = vadd.f32 %v6052, %v6276
      %v6278 = vpop.f32.mrf.mxu0
      %6279 = vmatprep.mubr.f32.mxu0 0.0
      %6280 = vmatmul.mubr.f32.gmra.mxu0 %v5433
      %v6281 = vpop.f32.mrf.mxu0
      %v6282 = vadd.f32 %v6057, %v6281
      %v6283 = vpop.f32.mrf.mxu0
      %6284 = vmatprep.mubr.f32.mxu0 0.0
      %6285 = vmatmul.mubr.f32.gmra.mxu0 %v5436
      %v6286 = vpop.f32.mrf.mxu0
      %v6287 = vadd.f32 %v6062, %v6286
      %v6288 = vpop.f32.mrf.mxu0
      %6289 = vmatprep.mubr.f32.mxu0 0.0
      %6290 = vmatmul.mubr.f32.gmra.mxu0 %v5439
      %v6291 = vpop.f32.mrf.mxu0
      %v6292 = vadd.f32 %v6067, %v6291
      %v6293 = vpop.f32.mrf.mxu0
      %6294 = vmatprep.mubr.f32.mxu0 0.0
      %6295 = vmatmul.mubr.f32.gmra.mxu0 %v5442
      %v6296 = vpop.f32.mrf.mxu0
      %v6297 = vadd.f32 %v6072, %v6296
      %v6298 = vpop.f32.mrf.mxu0
      %6299 = vmatprep.mubr.f32.mxu0 0.0
      %6300 = vmatmul.mubr.f32.gmra.mxu0 %v5445
      %v6301 = vpop.f32.mrf.mxu0
      %v6302 = vadd.f32 %v6077, %v6301
      %v6303 = vpop.f32.mrf.mxu0
      %6304 = vmatprep.mubr.f32.mxu0 0.0
      %6305 = vmatmul.mubr.f32.gmra.mxu0 %v5448
      %v6306 = vpop.f32.mrf.mxu0
      %v6307 = vadd.f32 %v6082, %v6306
      %v6308 = vpop.f32.mrf.mxu0
      %6309 = vmatprep.mubr.f32.mxu0 0.0
      %6310 = vmatmul.mubr.f32.gmra.mxu0 %v5451
      %v6311 = vpop.f32.mrf.mxu0
      %v6312 = vadd.f32 %v6087, %v6311
      %v6313 = vpop.f32.mrf.mxu0
      %6314 = vmatprep.mubr.f32.mxu0 0.0
      %6315 = vmatmul.mubr.f32.gmra.mxu0 %v5454
      %v6316 = vpop.f32.mrf.mxu0
      %v6317 = vadd.f32 %v6092, %v6316
      %v6318 = vpop.f32.mrf.mxu0
      %6319 = vmatprep.mubr.f32.mxu0 0.0
      %6320 = vmatmul.mubr.f32.gmra.mxu0 %v5457
      %v6321 = vpop.f32.mrf.mxu0
      %v6322 = vadd.f32 %v6097, %v6321
      %v6323 = vpop.f32.mrf.mxu0
      %6324 = vmatprep.mubr.f32.mxu0 0.0
      %6325 = vmatmul.mubr.f32.gmra.mxu0 %v5460
      %v6326 = vpop.f32.mrf.mxu0
      %v6327 = vadd.f32 %v6102, %v6326
      %v6328 = vpop.f32.mrf.mxu0
      %6329 = vmatprep.mubr.f32.mxu0 0.0
      %6330 = vmatmul.mubr.f32.gmra.mxu0 %v5463
      %v6331 = vpop.f32.mrf.mxu0
      %v6332 = vadd.f32 %v6107, %v6331
      %v6333 = vpop.f32.mrf.mxu0
      %6334 = vmatprep.mubr.f32.mxu0 0.0
      %6335 = vmatmul.mubr.f32.gmra.mxu0 %v5466
      %v6336 = vpop.f32.mrf.mxu0
      %v6337 = vadd.f32 %v6112, %v6336
      %v6338 = vpop.f32.mrf.mxu0
      %6339 = vmatprep.mubr.f32.mxu0 0.0
      %6340 = vmatmul.mubr.f32.gmra.mxu0 %v5469
      %v6341 = vpop.f32.mrf.mxu0
      %v6342 = vadd.f32 %v6117, %v6341
      %v6343 = vpop.f32.mrf.mxu0
      %6344 = vmatprep.mubr.f32.mxu0 0.0
      %6345 = vmatmul.mubr.f32.gmra.mxu0 %v5472
      %v6346 = vpop.f32.mrf.mxu0
      %v6347 = vadd.f32 %v6122, %v6346
      %v6348 = vpop.f32.mrf.mxu0
      %6349 = vmatprep.mubr.f32.mxu0 0.0
      %6350 = vmatmul.mubr.f32.gmra.mxu0 %v5475
      %v6351 = vpop.f32.mrf.mxu0
      %v6352 = vadd.f32 %v6127, %v6351
      %v6353 = vpop.f32.mrf.mxu0
      %6354 = vmatprep.mubr.f32.mxu0 0.0
      %6355 = vmatmul.mubr.f32.gmra.mxu0 %v5478
      %v6356 = vpop.f32.mrf.mxu0
      %v6357 = vadd.f32 %v6132, %v6356
      %v6358 = vpop.f32.mrf.mxu0
      %6359 = vmatprep.mubr.f32.mxu0 0.0
      %6360 = vmatmul.mubr.f32.gmra.mxu0 %v5481
      %v6361 = vpop.f32.mrf.mxu0
      %v6362 = vadd.f32 %v6137, %v6361
      %v6363 = vpop.f32.mrf.mxu0
      %6364 = vmatprep.mubr.f32.mxu0 0.0
      %6365 = vmatmul.mubr.f32.gmra.mxu0 %v5484
      %v6366 = vpop.f32.mrf.mxu0
      %v6367 = vadd.f32 %v6142, %v6366
      %v6368 = vpop.f32.mrf.mxu0
      %6369 = vmatprep.mubr.f32.mxu0 0.0
      %6370 = vmatmul.mubr.f32.gmra.mxu0 %v5487
      %v6371 = vpop.f32.mrf.mxu0
      %v6372 = vadd.f32 %v6147, %v6371
      %v6373 = vpop.f32.mrf.mxu0
      %6374 = vmatprep.mubr.f32.mxu0 0.0
      %6375 = vmatmul.mubr.f32.gmra.mxu0 %v5490
      %v6376 = vpop.f32.mrf.mxu0
      %v6377 = vadd.f32 %v6152, %v6376
      %v6378 = vpop.f32.mrf.mxu0
      %6379 = vmatprep.mubr.f32.mxu0 0.0
      %6380 = vmatmul.mubr.f32.gmra.mxu0 %v5493
      %v6381 = vpop.f32.mrf.mxu0
      %v6382 = vadd.f32 %v6157, %v6381
      %v6383 = vpop.f32.mrf.mxu0
      %6384 = vmatprep.mubr.f32.mxu0 0.0
      %6385 = vmatmul.mubr.f32.gmra.mxu0 %v5496
      %v6386 = vpop.f32.mrf.mxu0
      %v6387 = vadd.f32 %v6162, %v6386
      %v6388 = vpop.f32.mrf.mxu0
      %6389 = vmatprep.mubr.f32.mxu0 0.0
      %6390 = vmatmul.mubr.f32.gmra.mxu0 %v5499
      %v6391 = vpop.f32.mrf.mxu0
      %v6392 = vadd.f32 %v6167, %v6391
      %v6393 = vpop.f32.mrf.mxu0
      %6394 = vmatprep.mubr.f32.mxu0 0.0
      %6395 = vmatmul.mubr.f32.gmra.mxu0 %v5502
      %v6396 = vpop.f32.mrf.mxu0
      %v6397 = vadd.f32 %v6172, %v6396
      %v6398 = vpop.f32.mrf.mxu0
      %6399 = vmatprep.mubr.f32.mxu0 0.0
      %6400 = vmatmul.mubr.f32.gmra.mxu0 %v5505
      %v6401 = vpop.f32.mrf.mxu0
      %v6402 = vadd.f32 %v6177, %v6401
      %v6403 = vpop.f32.mrf.mxu0
      %6404 = vmatprep.mubr.f32.mxu0 0.0
      %6405 = vmatmul.mubr.f32.gmra.mxu0 %v5508
      %v6406 = vpop.f32.mrf.mxu0
      %v6407 = vadd.f32 %v6182, %v6406
      %v6408 = vpop.f32.mrf.mxu0
      %6409 = vdwg.mxu0
      %v6410 = vmax.f32 %v6252, 0.0
      %v6411 = vmax.f32 %v6257, 0.0
      %v6412 = vmax.f32 %v6262, 0.0
      %v6413 = vmax.f32 %v6267, 0.0
      %v6414 = vmax.f32 %v6272, 0.0
      %v6415 = vmax.f32 %v6277, 0.0
      %v6416 = vmax.f32 %v6282, 0.0
      %v6417 = vmax.f32 %v6287, 0.0
      %v6418 = vmax.f32 %v6292, 0.0
      %v6419 = vmax.f32 %v6297, 0.0
      %v6420 = vmax.f32 %v6302, 0.0
      %v6421 = vmax.f32 %v6307, 0.0
      %v6422 = vmax.f32 %v6312, 0.0
      %v6423 = vmax.f32 %v6317, 0.0
      %v6424 = vmax.f32 %v6322, 0.0
      %v6425 = vmax.f32 %v6327, 0.0
      %v6426 = vmax.f32 %v6332, 0.0
      %v6427 = vmax.f32 %v6337, 0.0
      %v6428 = vmax.f32 %v6342, 0.0
      %v6429 = vmax.f32 %v6347, 0.0
      %v6430 = vmax.f32 %v6352, 0.0
      %v6431 = vmax.f32 %v6357, 0.0
      %v6432 = vmax.f32 %v6362, 0.0
      %v6433 = vmax.f32 %v6367, 0.0
      %v6434 = vmax.f32 %v6372, 0.0
      %v6435 = vmax.f32 %v6377, 0.0
      %v6436 = vmax.f32 %v6382, 0.0
      %v6437 = vmax.f32 %v6387, 0.0
      %v6438 = vmax.f32 %v6392, 0.0
      %v6439 = vmax.f32 %v6397, 0.0
      %v6440 = vmax.f32 %v6402, 0.0
      %v6441 = vmax.f32 %v6407, 0.0
      %v6442 = vmin.f32 %v6410, 255.0
      %v6443 = vmin.f32 %v6411, 255.0
      %v6444 = vmin.f32 %v6412, 255.0
      %v6445 = vmin.f32 %v6413, 255.0
      %v6446 = vmin.f32 %v6414, 255.0
      %v6447 = vmin.f32 %v6415, 255.0
      %v6448 = vmin.f32 %v6416, 255.0
      %v6449 = vmin.f32 %v6417, 255.0
      %v6450 = vmin.f32 %v6418, 255.0
      %v6451 = vmin.f32 %v6419, 255.0
      %v6452 = vmin.f32 %v6420, 255.0
      %v6453 = vmin.f32 %v6421, 255.0
      %v6454 = vmin.f32 %v6422, 255.0
      %v6455 = vmin.f32 %v6423, 255.0
      %v6456 = vmin.f32 %v6424, 255.0
      %v6457 = vmin.f32 %v6425, 255.0
      %v6458 = vmin.f32 %v6426, 255.0
      %v6459 = vmin.f32 %v6427, 255.0
      %v6460 = vmin.f32 %v6428, 255.0
      %v6461 = vmin.f32 %v6429, 255.0
      %v6462 = vmin.f32 %v6430, 255.0
      %v6463 = vmin.f32 %v6431, 255.0
      %v6464 = vmin.f32 %v6432, 255.0
      %v6465 = vmin.f32 %v6433, 255.0
      %v6466 = vmin.f32 %v6434, 255.0
      %v6467 = vmin.f32 %v6435, 255.0
      %v6468 = vmin.f32 %v6436, 255.0
      %v6469 = vmin.f32 %v6437, 255.0
      %v6470 = vmin.f32 %v6438, 255.0
      %v6471 = vmin.f32 %v6439, 255.0
      %v6472 = vmin.f32 %v6440, 255.0
      %v6473 = vmin.f32 %v6441, 255.0
      %vm6474 = vcmask 23552
      %6475 = vst.msk [vmem:[%s278] sm:$0xff] %vm6474, %v6442
      %6476 = vst.msk [vmem:[%s278 + $0x8] sm:$0xff] %vm6474, %v6443
      %6477 = vst.msk [vmem:[%s278 + $0x10] sm:$0xff] %vm6474, %v6444
      %6478 = vst.msk [vmem:[%s278 + $0x18] sm:$0xff] %vm6474, %v6445
      %6479 = vst.msk [vmem:[%s278 + $0x20] sm:$0xff] %vm6474, %v6446
      %6480 = vst.msk [vmem:[%s278 + $0x28] sm:$0xff] %vm6474, %v6447
      %6481 = vst.msk [vmem:[%s278 + $0x30] sm:$0xff] %vm6474, %v6448
      %6482 = vst.msk [vmem:[%s278 + $0x38] sm:$0xff] %vm6474, %v6449
      %6483 = vst.msk [vmem:[%s278 + $0x40] sm:$0xff] %vm6474, %v6450
      %6484 = vst.msk [vmem:[%s278 + $0x48] sm:$0xff] %vm6474, %v6451
      %6485 = vst.msk [vmem:[%s278 + $0x50] sm:$0xff] %vm6474, %v6452
      %6486 = vst.msk [vmem:[%s278 + $0x58] sm:$0xff] %vm6474, %v6453
      %6487 = vst.msk [vmem:[%s278 + $0x60] sm:$0xff] %vm6474, %v6454
      %6488 = vst.msk [vmem:[%s278 + $0x68] sm:$0xff] %vm6474, %v6455
      %6489 = vst.msk [vmem:[%s278 + $0x70] sm:$0xff] %vm6474, %v6456
      %6490 = vst.msk [vmem:[%s278 + $0x78] sm:$0xff] %vm6474, %v6457
      %6491 = vst.msk [vmem:[%s278 + $0x80] sm:$0xff] %vm6474, %v6458
      %6492 = vst.msk [vmem:[%s278 + $0x88] sm:$0xff] %vm6474, %v6459
      %6493 = vst.msk [vmem:[%s278 + $0x90] sm:$0xff] %vm6474, %v6460
      %6494 = vst.msk [vmem:[%s278 + $0x98] sm:$0xff] %vm6474, %v6461
      %6495 = vst.msk [vmem:[%s278 + $0xa0] sm:$0xff] %vm6474, %v6462
      %6496 = vst.msk [vmem:[%s278 + $0xa8] sm:$0xff] %vm6474, %v6463
      %6497 = vst.msk [vmem:[%s278 + $0xb0] sm:$0xff] %vm6474, %v6464
      %6498 = vst.msk [vmem:[%s278 + $0xb8] sm:$0xff] %vm6474, %v6465
      %6499 = vst.msk [vmem:[%s278 + $0xc0] sm:$0xff] %vm6474, %v6466
      %6500 = vst.msk [vmem:[%s278 + $0xc8] sm:$0xff] %vm6474, %v6467
      %6501 = vst.msk [vmem:[%s278 + $0xd0] sm:$0xff] %vm6474, %v6468
      %6502 = vst.msk [vmem:[%s278 + $0xd8] sm:$0xff] %vm6474, %v6469
      %6503 = vst.msk [vmem:[%s278 + $0xe0] sm:$0xff] %vm6474, %v6470
      %6504 = vst.msk [vmem:[%s278 + $0xe8] sm:$0xff] %vm6474, %v6471
      %6505 = vst.msk [vmem:[%s278 + $0xf0] sm:$0xff] %vm6474, %v6472
      %6506 = vst.msk [vmem:[%s278 + $0xf8] sm:$0xff] %vm6474, %v6473
      %p6507 = scmp.lt.s32.totalorder %s18, 1
      %s6508 = scalar_select %p6507, %s18, 1
      %s6509 = smul.addr %s6508, 32
      %s6510 = smul.addr %s6509, 8
      %s6511 = scalar_lea.vmem %s7, %s6510
      // Predicated region
      $region49: #{srcnn_forward.1} parent=47 // pred_check
        %p6512 = pneg %p188
      $region50: #{srcnn_forward.1} parent=47 // pred_check_branch
        %6514 = sbr.rel (%p6512) target = $region52
      $region51: #{srcnn_forward.1} parent=47 // pred_region
        _
      $region52: #{srcnn_forward.1} parent=47 // pred_fallthru
        _
    $region48: #{srcnn_forward.1} parent=5 // pred_fallthru
      _
    %p6515 = scmp.le.s32.totalorder 2, %s13
    // Predicated region
    $region53: #{srcnn_forward.1} parent=5 // pred_check
      %p6516 = pneg %p6515
    $region54: #{srcnn_forward.1} parent=5 // pred_check_branch
      %6518 = sbr.rel (%p6516) target = $region56
    $region55: #{srcnn_forward.1} parent=5 // pred_region
      %s6519 = ssub.s32 %s13, 2
      // Predicated region
      $region57: #{srcnn_forward.1} parent=55 // pred_check
        %p6520 = pneg %p194
      $region58: #{srcnn_forward.1} parent=55 // pred_check_branch
        %6522 = sbr.rel (%p6520) target = $region60
      $region59: #{srcnn_forward.1} parent=55 // pred_region
        %p6523 = scmp.lt.s32.totalorder %s19, 1
        %s6524 = scalar_select %p6523, %s19, 1
        %s6525 = smul.addr %s6524, 32
        %s6526 = smul.addr %s6525, 8
        %s6527 = scalar_lea.vmem %s7, %s6526
      $region60: #{srcnn_forward.1} parent=55 // pred_fallthru
        _
    $region56: #{srcnn_forward.1} parent=5 // pred_fallthru
      _
  $region6: #{srcnn_forward.1} parent=0 // loop_footer
    %s17 = sadd.s32 1, %s13
  $region7: #{srcnn_forward.1} parent=0 // loop_footer_branch
    %12 = sbr.rel target = $region3
  $region8: #{srcnn_forward.1} parent=0 // loop_exit
    _

</llo_original>
